<compile_context>
chip_gen: v6e
topology: v6e:2x2x1
jax: 0.10.0
libtpu: 0.0.40
codegen_flags: <defaults>
</compile_context>

<pallas_src>
import numpy as np

import jax
import jax.numpy as jnp
from jax.experimental import pallas as pl
from jax.experimental.pallas import tpu as pltpu


MXU_DTYPE = jnp.bfloat16   # matmul operand / intermediate activation dtype
TILE_M = 512               # cap on slab-row tile; re-check VMEM if raised (v7x: 64 MiB)
_ROW_ALIGN = 16            # bf16-safe sublane granularity
_LANE = 128

_PARALLEL_1D = pltpu.CompilerParams(dimension_semantics=("parallel",))


def _round_up(x, m):
  return (x + m - 1) // m * m


def _cdiv(a, b):
  return -(-a // b)


# ----------------------------------------------------------------------------
# Pallas kernels
# ----------------------------------------------------------------------------
def _make_conv3x3_kernel(H, W, C, n_p, *, pre_relu, act, has_stage2,
                         residual, out_mode):
  """3x3/stride-1 conv over a zero-padded, row-flattened activation.

  Input block: [1, (H+2)*(W+2), C].  Taps are contiguous row-slices of the
  flattened padded image; the "extended" output grid covers (H, W+2) positions
  (the 2 extra columns per row are junk and are dropped on store).
    out_mode == "padded": write the valid HxW region back into a zero-padded
                          flat [1, (H+2)*(W+2), C] block (chains to next layer).
    out_mode == "ext"   : write the raw extended [1, H*(W+2), n_p] block
                          (ConvTranspose sub-pixel path; wrapper pixel-shuffles).
  """
  Wp = W + 2
  M_ext = H * Wp
  M_out = M_ext - 2      # drop last 2 junk rows so every tap slice is in-bounds

  def kernel(*refs):
    refs = list(refs)
    x_ref, w1_ref, t1_ref = refs[0], refs[1], refs[2]
    pos = 3
    if has_stage2:
      w2_ref, t2_ref = refs[pos], refs[pos + 1]
      pos += 2
    o_ref = refs[pos]

    x_all = x_ref[0]                              # [(H+2)*Wp, C]
    x_f32 = x_all.astype(jnp.float32)
    src = jnp.maximum(x_f32, 0.0) if pre_relu else x_f32
    src = src.astype(MXU_DTYPE)

    acc = jnp.zeros((M_out, n_p), jnp.float32)
    for t in range(9):                            # 9 taps, unrolled at trace time
      dy, dx = divmod(t, 3)
      off = dy * Wp + dx
      acc = acc + jnp.dot(src[off:off + M_out, :],
                          w1_ref[t * C:(t + 1) * C, :],
                          preferred_element_type=jnp.float32)
    y = acc + t1_ref[...]                         # folded bias + BatchNorm shift
    if has_stage2:                                # ReLU -> 1x1 conv -> affine
      y = jnp.maximum(y, 0.0)
      y = jnp.dot(y.astype(MXU_DTYPE), w2_ref[...],
                  preferred_element_type=jnp.float32) + t2_ref[...]
    if act == "relu":
      y = jnp.maximum(y, 0.0)
    elif act == "tanh":
      y = jnp.tanh(y)

    if out_mode == "padded":
      o_ref[...] = jnp.zeros_like(o_ref)          # borders stay zero for next layer
      for h in range(H):
        row = y[h * Wp:h * Wp + W, :C]
        if residual:
          row = row + x_f32[(h + 1) * Wp + 1:(h + 1) * Wp + 1 + W, :]
        o_ref[0, (h + 1) * Wp + 1:(h + 1) * Wp + 1 + W, :] = row.astype(o_ref.dtype)
    else:  # "ext"
      o_ref[0, :M_out, :] = y.astype(o_ref.dtype)
      o_ref[0, M_out:M_ext, :] = jnp.zeros((2, n_p), o_ref.dtype)

  return kernel


def _make_matmul_kernel(act):
  """X @ W (scale pre-folded into W) + shift -> optional activation."""

  def kernel(x_ref, w_ref, t_ref, o_ref):
    y = jnp.dot(x_ref[...], w_ref[...], preferred_element_type=jnp.float32)
    y = y + t_ref[...]
    if act == "relu":
      y = jnp.maximum(y, 0.0)
    elif act == "tanh":
      y = jnp.tanh(y)
    o_ref[...] = y.astype(o_ref.dtype)

  return kernel


def _vq_kernel(z_ref, cbt_ref, cb_ref, cbsq_ref, codes_ref):
  """Nearest codebook entry (L2) + quantised codes via one-hot matmul.

  ||z||^2 is omitted (constant per row -> same argmin); the codebook arrives
  pre-transposed ([Dp, Kp]) for the distance matmul and untransposed
  ([Kp, Dp]) for the one-hot gather, so no in-kernel XLU transpose is needed.
  """
  z = z_ref[...]                                       # [tm, Dp] f32
  zc = jnp.dot(z, cbt_ref[...], preferred_element_type=jnp.float32)   # [tm, Kp]
  dist = cbsq_ref[...] - 2.0 * zc                                     # [tm, Kp]
  dmin = jnp.min(dist, axis=1, keepdims=True)
  tm, kp = dist.shape
  kio = jax.lax.broadcasted_iota(jnp.int32, (tm, kp), 1)
  # First index achieving the minimum (torch.min over dim=1 semantics).
  idx = jnp.min(jnp.where(dist <= dmin, kio, kp), axis=1, keepdims=True)
  onehot = (kio == idx).astype(jnp.float32)
  codes_ref[...] = jnp.dot(onehot, cb_ref[...], preferred_element_type=jnp.float32)


# ----------------------------------------------------------------------------
# pallas_call wrappers
# ----------------------------------------------------------------------------
def _conv3x3_call(xpf, w1, t1, *, H, W, C, n_p, n_valid, pre_relu, act,
                  stage2, residual, out_mode, out_dtype):
  b, n_rows, c_in = xpf.shape
  Wp = W + 2
  Np = (H + 2) * Wp
  M_ext = H * Wp
  assert n_rows == Np and c_in == C

  kernel = _make_conv3x3_kernel(H, W, C, n_p, pre_relu=pre_relu, act=act,
                                has_stage2=stage2 is not None,
                                residual=residual, out_mode=out_mode)
  args = [xpf, w1, t1]
  in_specs = [pl.BlockSpec((1, Np, C), lambda i: (i, 0, 0)),
              pl.BlockSpec(w1.shape, lambda i: (0, 0)),       # resident weights
              pl.BlockSpec((1, n_p), lambda i: (0, 0))]
  if stage2 is not None:
    w2, t2 = stage2
    args += [w2, t2]
    in_specs += [pl.BlockSpec((n_p, n_p), lambda i: (0, 0)),
                 pl.BlockSpec((1, n_p), lambda i: (0, 0))]

  if out_mode == "padded":
    out_shape = jax.ShapeDtypeStruct((b, Np, C), out_dtype)
    out_spec = pl.BlockSpec((1, Np, C), lambda i: (i, 0, 0))
    out_elems = b * Np * C
  else:
    out_shape = jax.ShapeDtypeStruct((b, M_ext, n_p), out_dtype)
    out_spec = pl.BlockSpec((1, M_ext, n_p), lambda i: (i, 0, 0))
    out_elems = b * M_ext * n_p

  flops = 2 * b * H * W * (9 * C) * n_valid
  if stage2 is not None:
    flops += 2 * b * H * W * C * C
  trans = b * H * W * n_valid if act == "tanh" else 0
  bytes_acc = int(xpf.size) * xpf.dtype.itemsize
  for a in args[1:]:
    bytes_acc += int(a.size) * a.dtype.itemsize
  bytes_acc += out_elems * np.dtype(out_dtype).itemsize

  return pl.pallas_call(
      kernel,
      grid=(b,),                                        # >= 2 grid steps (batch)
      in_specs=in_specs,
      out_specs=out_spec,
      out_shape=out_shape,
      compiler_params=_PARALLEL_1D,
      cost_estimate=pl.CostEstimate(flops=int(flops), transcendentals=int(trans),
                                    bytes_accessed=int(bytes_acc)),
  )(*args)


def fused_matmul(x, w, shift, *, act=None, out_dtype=jnp.float32):
  """act(x @ w + shift); used only for the strided 4x4 encoder convs."""
  m, k = x.shape
  n = w.shape[1]
  k_p = _round_up(k, _LANE)            # lane-dense contraction
  n_p = _round_up(n, _LANE)            # lane-dense output (kept at 128)
  tm = min(TILE_M, max(_ROW_ALIGN, _round_up(_cdiv(m, 4), _ROW_ALIGN)))
  m_p = _round_up(m, tm)
  grid_m = m_p // tm                   # >= 2 so megacore / pipelining engage

  x_p = jnp.pad(x.astype(MXU_DTYPE), ((0, m_p - m), (0, k_p - k)))
  w_p = jnp.pad(w, ((0, k_p - k), (0, n_p - n))).astype(MXU_DTYPE)
  t_p = jnp.pad(shift.reshape(1, n).astype(jnp.float32), ((0, 0), (0, n_p - n)))

  bytes_acc = (m * k + k * n) * 2 + n * 4 + m * n * np.dtype(out_dtype).itemsize
  out = pl.pallas_call(
      _make_matmul_kernel(act),
      grid=(grid_m,),
      in_specs=[pl.BlockSpec((tm, k_p), lambda i: (i, 0)),
                pl.BlockSpec((k_p, n_p), lambda i: (0, 0)),   # resident weight
                pl.BlockSpec((1, n_p), lambda i: (0, 0))],
      out_specs=pl.BlockSpec((tm, n_p), lambda i: (i, 0)),
      out_shape=jax.ShapeDtypeStruct((m_p, n_p), out_dtype),
      compiler_params=_PARALLEL_1D,
      cost_estimate=pl.CostEstimate(
          flops=int(2 * m * k * n),
          transcendentals=int(m * n) if act == "tanh" else 0,
          bytes_accessed=int(bytes_acc)),
  )(x_p, w_p, t_p)
  return out[:m, :n]


def vq_quantize(z_flat, codebook):
  """Nearest-codebook lookup; returns the quantised codes [M, D] (f32, exact rows)."""
  m, d = z_flat.shape
  k = codebook.shape[0]
  d_p = _round_up(d, _LANE)
  k_p = _round_up(k, _LANE)
  tm = min(TILE_M, max(_ROW_ALIGN, _round_up(_cdiv(m, 2), _ROW_ALIGN)))
  m_p = _round_up(m, tm)

  z_p = jnp.pad(z_flat.astype(jnp.float32), ((0, m_p - m), (0, d_p - d)))
  cb_p = jnp.pad(codebook.astype(jnp.float32), ((0, k_p - k), (0, d_p - d)))
  cbt_p = cb_p.T                                        # one-time wrapper transpose
  cbsq = jnp.sum(codebook * codebook, axis=1)
  cbsq_p = jnp.pad(cbsq, (0, k_p - k),
                   constant_values=1e30).reshape(1, k_p)   # pads never win

  bytes_acc = (m * d + 2 * k * d + k + m * d) * 4
  codes = pl.pallas_call(
      _vq_kernel,
      grid=(m_p // tm,),
      in_specs=[pl.BlockSpec((tm, d_p), lambda i: (i, 0)),
                pl.BlockSpec((d_p, k_p), lambda i: (0, 0)),   # resident cb^T
                pl.BlockSpec((k_p, d_p), lambda i: (0, 0)),   # resident cb
                pl.BlockSpec((1, k_p), lambda i: (0, 0))],
      out_specs=pl.BlockSpec((tm, d_p), lambda i: (i, 0)),
      out_shape=jax.ShapeDtypeStruct((m_p, d_p), jnp.float32),
      compiler_params=_PARALLEL_1D,
      cost_estimate=pl.CostEstimate(flops=int(4 * m * d * k), transcendentals=0,
                                    bytes_accessed=int(bytes_acc)),
  )(z_p, cbt_p, cb_p, cbsq_p)
  return codes[:m, :d]


# ----------------------------------------------------------------------------
# Plain-JAX glue: padding / im2col / parameter folding / layer wrappers
# ----------------------------------------------------------------------------
def pad_flat(x_nhwc):
  """[B,H,W,C] -> zero-padded (pad=1), row-flattened [B,(H+2)*(W+2),C]."""
  b, h, w, c = x_nhwc.shape
  xp = jnp.pad(x_nhwc, ((0, 0), (1, 1), (1, 1), (0, 0)))
  return xp.reshape(b, (h + 2) * (w + 2), c)


def unpad_flat(xpf, h, w):
  b, _, c = xpf.shape
  return xpf.reshape(b, h + 2, w + 2, c)[:, 1:h + 1, 1:w + 1, :]


def im2col(x, kh, kw, stride, pad):
  """x: [B,H,W,C] -> patches [B*Ho*Wo, kh*kw*C] (patch order kh, kw, C)."""
  b, h, w, c = x.shape
  ho = (h + 2 * pad - kh) // stride + 1
  wo = (w + 2 * pad - kw) // stride + 1
  xp = jnp.pad(x, ((0, 0), (pad, pad), (pad, pad), (0, 0)))
  cols = []
  for i in range(kh):
    for j in range(kw):
      cols.append(xp[:, i:i + (ho - 1) * stride + 1:stride,
                     j:j + (wo - 1) * stride + 1:stride, :])
  patches = jnp.concatenate(cols, axis=-1)
  return patches.reshape(b * ho * wo, kh * kw * c), (b, ho, wo)


def bn_fold(conv_bias, bn, eps=1e-5):
  s = bn["g"] / jnp.sqrt(bn["v"] + eps)
  return s, (conv_bias - bn["m"]) * s + bn["b"]


def res_block(xpf, p, *, H, W, C, out_dtype):
  """x + BN2(Conv1x1(ReLU(BN1(Conv3x3(ReLU(x)))))) as ONE fused pallas_call."""
  s1, t1 = bn_fold(p["c1"]["b"], p["bn1"])
  s2, t2 = bn_fold(p["c2"]["b"], p["bn2"])
  n_p = _round_up(C, _LANE)
  w1 = jnp.transpose(p["c1"]["w"], (2, 3, 1, 0)).reshape(9 * C, C) * s1[None, :]
  w2 = jnp.transpose(p["c2"]["w"], (2, 3, 1, 0)).reshape(C, C) * s2[None, :]
  w1_p = jnp.pad(w1, ((0, 0), (0, n_p - C))).astype(MXU_DTYPE)
  w2_p = jnp.pad(w2, ((0, n_p - C), (0, n_p - C))).astype(MXU_DTYPE)
  t1_p = jnp.pad(t1.reshape(1, C).astype(jnp.float32), ((0, 0), (0, n_p - C)))
  t2_p = jnp.pad(t2.reshape(1, C).astype(jnp.float32), ((0, 0), (0, n_p - C)))
  return _conv3x3_call(xpf, w1_p, t1_p, H=H, W=W, C=C, n_p=n_p, n_valid=C,
                       pre_relu=True, act=None, stage2=(w2_p, t2_p),
                       residual=True, out_mode="padded", out_dtype=out_dtype)


def conv_transpose_apply(xpf, weight, scale, shift, *, H, W, pre_relu, act,
                         out_dtype):
  """ConvTranspose2d(k=4, s=2, p=1) via sub-pixel decomposition (one 3x3 conv).

  weight: torch layout [C_in, C_out, 4, 4].  The kernel produces all 4 output
  phases at once ([.., 4*C_out] lanes); the pixel shuffle happens in XLA on the
  small result.
  """
  cin, cout = weight.shape[0], weight.shape[1]
  # (phase, window-offset) -> kernel tap, from oy = 2*iy - 1 + ky.
  tap = {(0, 0): 3, (0, 1): 1, (1, 1): 2, (1, 2): 0}
  w_all = jnp.zeros((3, 3, cin, 2, 2, cout), jnp.float32)
  for (r, dy), ky in tap.items():
    for (c, dx), kx in tap.items():
      w_all = w_all.at[dy, dx, :, r, c, :].set(weight[:, :, ky, kx])
  n4 = 4 * cout
  wmat = w_all.reshape(9 * cin, n4) * jnp.tile(scale, 4)[None, :]
  shift4 = jnp.tile(shift, 4)
  n_p = _round_up(n4, _LANE)
  w_p = jnp.pad(wmat, ((0, 0), (0, n_p - n4))).astype(MXU_DTYPE)
  t_p = jnp.pad(shift4.reshape(1, n4).astype(jnp.float32), ((0, 0), (0, n_p - n4)))

  y_ext = _conv3x3_call(xpf, w_p, t_p, H=H, W=W, C=cin, n_p=n_p, n_valid=n4,
                        pre_relu=pre_relu, act=act, stage2=None, residual=False,
                        out_mode="ext", out_dtype=out_dtype)
  b = xpf.shape[0]
  y = y_ext.reshape(b, H, W + 2, n_p)[:, :, :W, :n4]     # drop junk cols / pad lanes
  y = y.reshape(b, H, W, 2, 2, cout)
  y = jnp.transpose(y, (0, 1, 3, 2, 4, 5)).reshape(b, 2 * H, 2 * W, cout)
  return y


# ----------------------------------------------------------------------------
# Model (encoder / VQ / decoder)
# ----------------------------------------------------------------------------
def encoder_fwd(x, P):
  dim = P["enc_c1"]["w"].shape[0]
  cin = P["enc_c1"]["w"].shape[1]
  # Conv2d(input_dim, dim, 4, 2, 1) + BN + ReLU   (im2col path, bf16 out)
  s1, t1 = bn_fold(P["enc_c1"]["b"], P["enc_bn1"])
  patches, (b, ho, wo) = im2col(x, 4, 4, 2, 1)
  w1 = jnp.transpose(P["enc_c1"]["w"], (2, 3, 1, 0)).reshape(16 * cin, dim) * s1[None, :]
  h = fused_matmul(patches, w1, t1, act="relu", out_dtype=MXU_DTYPE)
  h = h.reshape(b, ho, wo, dim)
  # Conv2d(dim, dim, 4, 2, 1) (bias only, bf16 out)
  patches, (b, ho, wo) = im2col(h, 4, 4, 2, 1)
  w2 = jnp.transpose(P["enc_c2"]["w"], (2, 3, 1, 0)).reshape(16 * dim, dim)
  h = fused_matmul(patches, w2, P["enc_c2"]["b"], act=None, out_dtype=MXU_DTYPE)
  h = h.reshape(b, ho, wo, dim)
  # Two ResBlocks, chained in the zero-padded flat layout (no inter-kernel glue).
  hp = pad_flat(h)
  hp = res_block(hp, P["enc_rb1"], H=ho, W=wo, C=dim, out_dtype=MXU_DTYPE)
  hp = res_block(hp, P["enc_rb2"], H=ho, W=wo, C=dim, out_dtype=jnp.float32)
  return unpad_flat(hp, ho, wo)                        # z_e (f32, crop only here)


def decoder_fwd(z_q, P):
  b, H, W, dim = z_q.shape
  hp = pad_flat(z_q)                                   # f32; kernel casts taps
  hp = res_block(hp, P["dec_rb1"], H=H, W=W, C=dim, out_dtype=MXU_DTYPE)
  hp = res_block(hp, P["dec_rb2"], H=H, W=W, C=dim, out_dtype=MXU_DTYPE)
  # ReLU -> ConvT(dim, dim) -> BN -> ReLU fused in one kernel
  s1, t1 = bn_fold(P["dec_ct1"]["b"], P["dec_bn1"])
  h = conv_transpose_apply(hp, P["dec_ct1"]["w"], s1, t1, H=H, W=W,
                           pre_relu=True, act="relu", out_dtype=MXU_DTYPE)
  # ConvT(dim, input_dim) -> Tanh
  cout = P["dec_ct2"]["w"].shape[1]
  hp = pad_flat(h)
  x_tilde = conv_transpose_apply(hp, P["dec_ct2"]["w"],
                                 jnp.ones((cout,), jnp.float32),
                                 P["dec_ct2"]["b"], H=2 * H, W=2 * W,
                                 pre_relu=False, act="tanh",
                                 out_dtype=jnp.float32)
  return x_tilde


def vqvae_forward(params, x_nchw):
  x = jnp.transpose(x_nchw, (0, 2, 3, 1))                 # NCHW -> NHWC
  z_e = encoder_fwd(x, params)                            # [B, H', W', D] f32
  b, h, w, d = z_e.shape
  codes = vq_quantize(z_e.reshape(b * h * w, d), params["codebook"])
  z_q = codes.reshape(b, h, w, d)                         # quantised codes (f32)
  x_tilde = decoder_fwd(z_q, params)
  to_nchw = lambda t: jnp.transpose(t, (0, 3, 1, 2))
  # Matches PyTorch forward(): (x_tilde, z_e_x, z_q_x)
  return to_nchw(x_tilde), to_nchw(z_e), to_nchw(z_q)


# ----------------------------------------------------------------------------
# Deterministic parameter initialisation (mirrors __init__ + weights_init)
# ----------------------------------------------------------------------------
def init_params(key, input_dim, dim, K):
  keys = iter(jax.random.split(key, 16))

  def bn(c):
    return dict(g=jnp.ones((c,), jnp.float32), b=jnp.zeros((c,), jnp.float32),
                m=jnp.zeros((c,), jnp.float32), v=jnp.ones((c,), jnp.float32))

  def conv(cin, cout, k):
    fan_in, fan_out = cin * k * k, cout * k * k
    bound = (6.0 / (fan_in + fan_out)) ** 0.5
    w = jax.random.uniform(next(keys), (cout, cin, k, k), jnp.float32,
                           -bound, bound)
    return dict(w=w, b=jnp.zeros((cout,), jnp.float32))

  def convT(cin, cout, k):
    # torch ConvTranspose2d weight shape: (C_in, C_out, k, k)
    fan_in, fan_out = cout * k * k, cin * k * k
    bound = (6.0 / (fan_in + fan_out)) ** 0.5
    w = jax.random.uniform(next(keys), (cin, cout, k, k), jnp.float32,
                           -bound, bound)
    return dict(w=w, b=jnp.zeros((cout,), jnp.float32))

  def resblock(c):
    return dict(c1=conv(c, c, 3), bn1=bn(c), c2=conv(c, c, 1), bn2=bn(c))

  return dict(
      enc_c1=conv(input_dim, dim, 4), enc_bn1=bn(dim),
      enc_c2=conv(dim, dim, 4),
      enc_rb1=resblock(dim), enc_rb2=resblock(dim),
      codebook=jax.random.uniform(next(keys), (K, dim), jnp.float32,
                                  -1.0 / K, 1.0 / K),
      dec_rb1=resblock(dim), dec_rb2=resblock(dim),
      dec_ct1=convT(dim, dim, 4), dec_bn1=bn(dim),
      dec_ct2=convT(dim, input_dim, 4),
  )


# ----------------------------------------------------------------------------
# Pure-JAX (lax.conv) f32 reference used for the tolerance check
# ----------------------------------------------------------------------------
def _ref_bn(x, bn, eps=1e-5):
  return (x - bn["m"]) / jnp.sqrt(bn["v"] + eps) * bn["g"] + bn["b"]


def _ref_conv(x, w, b, stride, pad):
  y = jax.lax.conv_general_dilated(
      x, jnp.transpose(w, (2, 3, 1, 0)), (stride, stride),
      ((pad, pad), (pad, pad)), dimension_numbers=("NHWC", "HWIO", "NHWC"))
  return y + b


def _ref_convT(x, w, b):   # ConvTranspose2d(k=4, s=2, p=1)
  wk = jnp.transpose(w[:, :, ::-1, ::-1], (2, 3, 0, 1))
  y = jax.lax.conv_general_dilated(
      x, wk, (1, 1), ((2, 2), (2, 2)), lhs_dilation=(2, 2),
      dimension_numbers=("NHWC", "HWIO", "NHWC"))
  return y + b


def _ref_resblock(x, p):
  h = jnp.maximum(x, 0.0)
  h = _ref_bn(_ref_conv(h, p["c1"]["w"], p["c1"]["b"], 1, 1), p["bn1"])
  h = jnp.maximum(h, 0.0)
  h = _ref_bn(_ref_conv(h, p["c2"]["w"], p["c2"]["b"], 1, 0), p["bn2"])
  return x + h


def ref_encoder(x, P):
  h = jnp.maximum(_ref_bn(_ref_conv(x, P["enc_c1"]["w"], P["enc_c1"]["b"], 2, 1),
                          P["enc_bn1"]), 0.0)
  h = _ref_conv(h, P["enc_c2"]["w"], P["enc_c2"]["b"], 2, 1)
  h = _ref_resblock(h, P["enc_rb1"])
  h = _ref_resblock(h, P["enc_rb2"])
  return h


def ref_decoder(z_q, P):
  h = _ref_resblock(z_q, P["dec_rb1"])
  h = _ref_resblock(h, P["dec_rb2"])
  h = jnp.maximum(h, 0.0)
  h = jnp.maximum(_ref_bn(_ref_convT(h, P["dec_ct1"]["w"], P["dec_ct1"]["b"]),
                          P["dec_bn1"]), 0.0)
  return jnp.tanh(_ref_convT(h, P["dec_ct2"]["w"], P["dec_ct2"]["b"]))


# ----------------------------------------------------------------------------
if __name__ == "__main__":
  input_dim, dim, K = 3, 32, 64          # small demo config (K=512 in paper)
  root = jax.random.PRNGKey(0)
  k_params, k_x = jax.random.split(root)
  params = init_params(k_params, input_dim, dim, K)
  x = jax.random.normal(k_x, (2, input_dim, 16, 16), dtype=jnp.float32)

  fwd = jax.jit(vqvae_forward)
  x_tilde, z_e_x, z_q_x = fwd(params, x)
  jax.block_until_ready((x_tilde, z_e_x, z_q_x))

  assert x_tilde.shape == (2, input_dim, 16, 16)
  assert z_e_x.shape == (2, dim, 4, 4)
  assert z_q_x.shape == (2, dim, 4, 4)
  assert bool(jnp.all(jnp.isfinite(x_tilde)))
  assert bool(jnp.all(jnp.abs(x_tilde) <= 1.0))   # tanh range (f32 epilogue)

  # Tolerance check vs. a pure-JAX f32 lax.conv reference (bf16 MXU operands
  # in the Pallas path -> loose relative-Frobenius tolerance).
  to_nhwc = lambda t: jnp.transpose(t, (0, 2, 3, 1))
  rel = lambda a, b: float(
      jnp.linalg.norm((a - b).astype(jnp.float32)) /
      (jnp.linalg.norm(b.astype(jnp.float32)) + 1e-12))
  z_e_ref = ref_encoder(to_nhwc(x), params)
  err_enc = rel(to_nhwc(z_e_x), z_e_ref)
  assert err_enc < 5e-2, f"encoder mismatch: rel={err_enc}"
  # Decoder checked on the SAME z_q (avoids near-tie argmin flips in VQ).
  z_q_nhwc = to_nhwc(z_q_x)
  x_tilde_ref = ref_decoder(z_q_nhwc, params)
  err_dec = rel(to_nhwc(x_tilde), x_tilde_ref)
  assert err_dec < 5e-2, f"decoder mismatch: rel={err_dec}"
  # Every quantised vector must be an exact codebook row.
  zq_flat = z_q_nhwc.reshape(-1, dim)
  gap = jnp.max(jnp.min(jnp.max(
      jnp.abs(zq_flat[:, None, :] - params["codebook"][None, :, :]),
      axis=-1), axis=-1))
  assert float(gap) < 1e-5, f"z_q not on codebook: gap={gap}"

  print("KERNEL_OK")
</pallas_src>

<mosaic_0001>
module attributes {stable_mosaic.version = 11 : i64} {
  func.func @kernel(%arg0: i32, %arg1: memref<32x128xbf16, #tpu.memory_space<vmem>>, %arg2: memref<128x128xbf16, #tpu.memory_space<vmem>>, %arg3: memref<1x128xf32, #tpu.memory_space<vmem>>, %arg4: memref<32x128xbf16, #tpu.memory_space<vmem>>) attributes {dimension_semantics = [#tpu.dimension_semantics<parallel>], iteration_bounds = array<i64: 4>, scalar_prefetch = 0 : i64, scratch_operands = 0 : i64, tpu.core_type = #tpu.core_type<tc>, window_params = [{transform_indices = @transform_0, window_bounds = array<i64: 32, 128>}, {pipeline_mode = #tpu.pipeline_mode<synchronous>, transform_indices = @transform_1, window_bounds = array<i64: 128, 128>}, {pipeline_mode = #tpu.pipeline_mode<synchronous>, transform_indices = @transform_2, window_bounds = array<i64: 1, 128>}, {transform_indices = @transform_3, window_bounds = array<i64: 32, 128>}]} {
    %c0 = arith.constant 0 : index
    %c0_0 = arith.constant 0 : index
    %0 = vector.load %arg1[%c0, %c0_0] : memref<32x128xbf16, #tpu.memory_space<vmem>>, vector<32x128xbf16>
    %c0_1 = arith.constant 0 : index
    %c0_2 = arith.constant 0 : index
    %1 = vector.load %arg2[%c0_1, %c0_2] : memref<128x128xbf16, #tpu.memory_space<vmem>>, vector<128x128xbf16>
    %cst = arith.constant dense<0.000000e+00> : vector<32x128xf32>
    %2 = tpu.matmul %0, %1, %cst {dimension_numbers = #tpu.dot_dimension_numbers<[1], [0], [0], [1], [0, 0, 1, 1], [], []>} : vector<32x128xbf16>, vector<128x128xbf16>, vector<32x128xf32> -> vector<32x128xf32>
    %c0_3 = arith.constant 0 : index
    %c0_4 = arith.constant 0 : index
    %3 = vector.load %arg3[%c0_3, %c0_4] : memref<1x128xf32, #tpu.memory_space<vmem>>, vector<1x128xf32>
    %4 = vector.broadcast %3 : vector<1x128xf32> to vector<32x128xf32>
    %5 = arith.addf %2, %4 : vector<32x128xf32>
    %cst_5 = arith.constant 0.000000e+00 : f32
    %6 = vector.broadcast %cst_5 : f32 to vector<32x128xf32>
    %7 = arith.maximumf %5, %6 : vector<32x128xf32>
    %8 = arith.truncf %7 : vector<32x128xf32> to vector<32x128xbf16>
    %c0_6 = arith.constant 0 : index
    %c0_7 = arith.constant 0 : index
    %9 = vector.load %arg4[%c0_6, %c0_7] : memref<32x128xbf16, #tpu.memory_space<vmem>>, vector<32x128xbf16>
    tpu.vector_store %arg4[%c0_6, %c0_7], %8 {strides = array<i32>} : memref<32x128xbf16, #tpu.memory_space<vmem>>, vector<32x128xbf16>,
    return
  }
  func.func @transform_0(%arg0: i32) -> (i32, i32) {
    %c0_i32 = arith.constant 0 : i32
    %c0_i32_0 = arith.constant 0 : i32
    return %arg0, %c0_i32 : i32, i32
  }
  func.func @transform_1(%arg0: i32) -> (i32, i32) {
    %c0_i32 = arith.constant 0 : i32
    %c0_i32_0 = arith.constant 0 : i32
    %c0_i32_1 = arith.constant 0 : i32
    return %c0_i32, %c0_i32_0 : i32, i32
  }
  func.func @transform_2(%arg0: i32) -> (i32, i32) {
    %c0_i32 = arith.constant 0 : i32
    %c0_i32_0 = arith.constant 0 : i32
    %c0_i32_1 = arith.constant 0 : i32
    return %c0_i32, %c0_i32_0 : i32, i32
  }
  func.func @transform_3(%arg0: i32) -> (i32, i32) {
    %c0_i32 = arith.constant 0 : i32
    %c0_i32_0 = arith.constant 0 : i32
    return %arg0, %c0_i32 : i32, i32
  }
}

module attributes {stable_mosaic.version = 11 : i64} {
  func.func @kernel(%arg0: i32, %arg1: memref<16x512xbf16, #tpu.memory_space<vmem>>, %arg2: memref<512x128xbf16, #tpu.memory_space<vmem>>, %arg3: memref<1x128xf32, #tpu.memory_space<vmem>>, %arg4: memref<16x128xbf16, #tpu.memory_space<vmem>>) attributes {dimension_semantics = [#tpu.dimension_semantics<parallel>], iteration_bounds = array<i64: 2>, scalar_prefetch = 0 : i64, scratch_operands = 0 : i64, tpu.core_type = #tpu.core_type<tc>, window_params = [{transform_indices = @transform_0, window_bounds = array<i64: 16, 512>}, {pipeline_mode = #tpu.pipeline_mode<synchronous>, transform_indices = @transform_1, window_bounds = array<i64: 512, 128>}, {pipeline_mode = #tpu.pipeline_mode<synchronous>, transform_indices = @transform_2, window_bounds = array<i64: 1, 128>}, {transform_indices = @transform_3, window_bounds = array<i64: 16, 128>}]} {
    %c0 = arith.constant 0 : index
    %c0_0 = arith.constant 0 : index
    %0 = vector.load %arg1[%c0, %c0_0] : memref<16x512xbf16, #tpu.memory_space<vmem>>, vector<16x512xbf16>
    %c0_1 = arith.constant 0 : index
    %c0_2 = arith.constant 0 : index
    %1 = vector.load %arg2[%c0_1, %c0_2] : memref<512x128xbf16, #tpu.memory_space<vmem>>, vector<512x128xbf16>
    %cst = arith.constant dense<0.000000e+00> : vector<16x128xf32>
    %2 = tpu.matmul %0, %1, %cst {dimension_numbers = #tpu.dot_dimension_numbers<[1], [0], [0], [1], [0, 0, 1, 1], [], []>} : vector<16x512xbf16>, vector<512x128xbf16>, vector<16x128xf32> -> vector<16x128xf32>
    %c0_3 = arith.constant 0 : index
    %c0_4 = arith.constant 0 : index
    %3 = vector.load %arg3[%c0_3, %c0_4] : memref<1x128xf32, #tpu.memory_space<vmem>>, vector<1x128xf32>
    %4 = vector.broadcast %3 : vector<1x128xf32> to vector<16x128xf32>
    %5 = arith.addf %2, %4 : vector<16x128xf32>
    %6 = arith.truncf %5 : vector<16x128xf32> to vector<16x128xbf16>
    %c0_5 = arith.constant 0 : index
    %c0_6 = arith.constant 0 : index
    %7 = vector.load %arg4[%c0_5, %c0_6] : memref<16x128xbf16, #tpu.memory_space<vmem>>, vector<16x128xbf16>
    tpu.vector_store %arg4[%c0_5, %c0_6], %6 {strides = array<i32>} : memref<16x128xbf16, #tpu.memory_space<vmem>>, vector<16x128xbf16>,
    return
  }
  func.func @transform_0(%arg0: i32) -> (i32, i32) {
    %c0_i32 = arith.constant 0 : i32
    %c0_i32_0 = arith.constant 0 : i32
    return %arg0, %c0_i32 : i32, i32
  }
  func.func @transform_1(%arg0: i32) -> (i32, i32) {
    %c0_i32 = arith.constant 0 : i32
    %c0_i32_0 = arith.constant 0 : i32
    %c0_i32_1 = arith.constant 0 : i32
    return %c0_i32, %c0_i32_0 : i32, i32
  }
  func.func @transform_2(%arg0: i32) -> (i32, i32) {
    %c0_i32 = arith.constant 0 : i32
    %c0_i32_0 = arith.constant 0 : i32
    %c0_i32_1 = arith.constant 0 : i32
    return %c0_i32, %c0_i32_0 : i32, i32
  }
  func.func @transform_3(%arg0: i32) -> (i32, i32) {
    %c0_i32 = arith.constant 0 : i32
    %c0_i32_0 = arith.constant 0 : i32
    return %arg0, %c0_i32 : i32, i32
  }
}

module attributes {stable_mosaic.version = 11 : i64} {
  func.func @kernel(%arg0: i32, %arg1: memref<1x36x32xbf16, #tpu.memory_space<vmem>>, %arg2: memref<288x128xbf16, #tpu.memory_space<vmem>>, %arg3: memref<1x128xf32, #tpu.memory_space<vmem>>, %arg4: memref<128x128xbf16, #tpu.memory_space<vmem>>, %arg5: memref<1x128xf32, #tpu.memory_space<vmem>>, %arg6: memref<1x36x32xbf16, #tpu.memory_space<vmem>>) attributes {dimension_semantics = [#tpu.dimension_semantics<parallel>], iteration_bounds = array<i64: 2>, scalar_prefetch = 0 : i64, scratch_operands = 0 : i64, tpu.core_type = #tpu.core_type<tc>, window_params = [{transform_indices = @transform_0, window_bounds = array<i64: 1, 36, 32>}, {pipeline_mode = #tpu.pipeline_mode<synchronous>, transform_indices = @transform_1, window_bounds = array<i64: 288, 128>}, {pipeline_mode = #tpu.pipeline_mode<synchronous>, transform_indices = @transform_2, window_bounds = array<i64: 1, 128>}, {pipeline_mode = #tpu.pipeline_mode<synchronous>, transform_indices = @transform_3, window_bounds = array<i64: 128, 128>}, {pipeline_mode = #tpu.pipeline_mode<synchronous>, transform_indices = @transform_4, window_bounds = array<i64: 1, 128>}, {transform_indices = @transform_5, window_bounds = array<i64: 1, 36, 32>}]} {
    %c0 = arith.constant 0 : index
    %c0_0 = arith.constant 0 : index
    %c0_1 = arith.constant 0 : index
    %0 = vector.load %arg1[%c0, %c0_0, %c0_1] : memref<1x36x32xbf16, #tpu.memory_space<vmem>>, vector<1x36x32xbf16>
    %1 = vector.shape_cast %0 : vector<1x36x32xbf16> to vector<36x32xbf16>
    %2 = arith.extf %1 : vector<36x32xbf16> to vector<36x32xf32>
    %cst = arith.constant 0.000000e+00 : f32
    %3 = vector.broadcast %cst : f32 to vector<36x32xf32>
    %4 = arith.maximumf %2, %3 : vector<36x32xf32>
    %5 = arith.truncf %4 : vector<36x32xf32> to vector<36x32xbf16>
    %cst_2 = arith.constant 0.000000e+00 : f32
    %6 = vector.broadcast %cst_2 : f32 to vector<22x128xf32>
    %7 = vector.extract_strided_slice %5 {offsets = [0, 0], sizes = [22, 32], strides = [1, 1]} : vector<36x32xbf16> to vector<22x32xbf16>
    %c0_3 = arith.constant 0 : index
    %c0_4 = arith.constant 0 : index
    %8 = vector.load %arg2[%c0_3, %c0_4] : memref<288x128xbf16, #tpu.memory_space<vmem>>, vector<32x128xbf16>
    %cst_5 = arith.constant dense<0.000000e+00> : vector<22x128xf32>
    %9 = tpu.matmul %7, %8, %cst_5 {dimension_numbers = #tpu.dot_dimension_numbers<[1], [0], [0], [1], [0, 0, 1, 1], [], []>} : vector<22x32xbf16>, vector<32x128xbf16>, vector<22x128xf32> -> vector<22x128xf32>
    %10 = arith.addf %6, %9 : vector<22x128xf32>
    %11 = vector.extract_strided_slice %5 {offsets = [1, 0], sizes = [22, 32], strides = [1, 1]} : vector<36x32xbf16> to vector<22x32xbf16>
    %c32 = arith.constant 32 : index
    %c0_6 = arith.constant 0 : index
    %12 = vector.load %arg2[%c32, %c0_6] : memref<288x128xbf16, #tpu.memory_space<vmem>>, vector<32x128xbf16>
    %cst_7 = arith.constant dense<0.000000e+00> : vector<22x128xf32>
    %13 = tpu.matmul %11, %12, %cst_7 {dimension_numbers = #tpu.dot_dimension_numbers<[1], [0], [0], [1], [0, 0, 1, 1], [], []>} : vector<22x32xbf16>, vector<32x128xbf16>, vector<22x128xf32> -> vector<22x128xf32>
    %14 = arith.addf %10, %13 : vector<22x128xf32>
    %15 = vector.extract_strided_slice %5 {offsets = [2, 0], sizes = [22, 32], strides = [1, 1]} : vector<36x32xbf16> to vector<22x32xbf16>
    %c64 = arith.constant 64 : index
    %c0_8 = arith.constant 0 : index
    %16 = vector.load %arg2[%c64, %c0_8] : memref<288x128xbf16, #tpu.memory_space<vmem>>, vector<32x128xbf16>
    %cst_9 = arith.constant dense<0.000000e+00> : vector<22x128xf32>
    %17 = tpu.matmul %15, %16, %cst_9 {dimension_numbers = #tpu.dot_dimension_numbers<[1], [0], [0], [1], [0, 0, 1, 1], [], []>} : vector<22x32xbf16>, vector<32x128xbf16>, vector<22x128xf32> -> vector<22x128xf32>
    %18 = arith.addf %14, %17 : vector<22x128xf32>
    %19 = vector.extract_strided_slice %5 {offsets = [6, 0], sizes = [22, 32], strides = [1, 1]} : vector<36x32xbf16> to vector<22x32xbf16>
    %c96 = arith.constant 96 : index
    %c0_10 = arith.constant 0 : index
    %20 = vector.load %arg2[%c96, %c0_10] : memref<288x128xbf16, #tpu.memory_space<vmem>>, vector<32x128xbf16>
    %cst_11 = arith.constant dense<0.000000e+00> : vector<22x128xf32>
    %21 = tpu.matmul %19, %20, %cst_11 {dimension_numbers = #tpu.dot_dimension_numbers<[1], [0], [0], [1], [0, 0, 1, 1], [], []>} : vector<22x32xbf16>, vector<32x128xbf16>, vector<22x128xf32> -> vector<22x128xf32>
    %22 = arith.addf %18, %21 : vector<22x128xf32>
    %23 = vector.extract_strided_slice %5 {offsets = [7, 0], sizes = [22, 32], strides = [1, 1]} : vector<36x32xbf16> to vector<22x32xbf16>
    %c128 = arith.constant 128 : index
    %c0_12 = arith.constant 0 : index
    %24 = vector.load %arg2[%c128, %c0_12] : memref<288x128xbf16, #tpu.memory_space<vmem>>, vector<32x128xbf16>
    %cst_13 = arith.constant dense<0.000000e+00> : vector<22x128xf32>
    %25 = tpu.matmul %23, %24, %cst_13 {dimension_numbers = #tpu.dot_dimension_numbers<[1], [0], [0], [1], [0, 0, 1, 1], [], []>} : vector<22x32xbf16>, vector<32x128xbf16>, vector<22x128xf32> -> vector<22x128xf32>
    %26 = arith.addf %22, %25 : vector<22x128xf32>
    %27 = vector.extract_strided_slice %5 {offsets = [8, 0], sizes = [22, 32], strides = [1, 1]} : vector<36x32xbf16> to vector<22x32xbf16>
    %c160 = arith.constant 160 : index
    %c0_14 = arith.constant 0 : index
    %28 = vector.load %arg2[%c160, %c0_14] : memref<288x128xbf16, #tpu.memory_space<vmem>>, vector<32x128xbf16>
    %cst_15 = arith.constant dense<0.000000e+00> : vector<22x128xf32>
    %29 = tpu.matmul %27, %28, %cst_15 {dimension_numbers = #tpu.dot_dimension_numbers<[1], [0], [0], [1], [0, 0, 1, 1], [], []>} : vector<22x32xbf16>, vector<32x128xbf16>, vector<22x128xf32> -> vector<22x128xf32>
    %30 = arith.addf %26, %29 : vector<22x128xf32>
    %31 = vector.extract_strided_slice %5 {offsets = [12, 0], sizes = [22, 32], strides = [1, 1]} : vector<36x32xbf16> to vector<22x32xbf16>
    %c192 = arith.constant 192 : index
    %c0_16 = arith.constant 0 : index
    %32 = vector.load %arg2[%c192, %c0_16] : memref<288x128xbf16, #tpu.memory_space<vmem>>, vector<32x128xbf16>
    %cst_17 = arith.constant dense<0.000000e+00> : vector<22x128xf32>
    %33 = tpu.matmul %31, %32, %cst_17 {dimension_numbers = #tpu.dot_dimension_numbers<[1], [0], [0], [1], [0, 0, 1, 1], [], []>} : vector<22x32xbf16>, vector<32x128xbf16>, vector<22x128xf32> -> vector<22x128xf32>
    %34 = arith.addf %30, %33 : vector<22x128xf32>
    %35 = vector.extract_strided_slice %5 {offsets = [13, 0], sizes = [22, 32], strides = [1, 1]} : vector<36x32xbf16> to vector<22x32xbf16>
    %c224 = arith.constant 224 : index
    %c0_18 = arith.constant 0 : index
    %36 = vector.load %arg2[%c224, %c0_18] : memref<288x128xbf16, #tpu.memory_space<vmem>>, vector<32x128xbf16>
    %cst_19 = arith.constant dense<0.000000e+00> : vector<22x128xf32>
    %37 = tpu.matmul %35, %36, %cst_19 {dimension_numbers = #tpu.dot_dimension_numbers<[1], [0], [0], [1], [0, 0, 1, 1], [], []>} : vector<22x32xbf16>, vector<32x128xbf16>, vector<22x128xf32> -> vector<22x128xf32>
    %38 = arith.addf %34, %37 : vector<22x128xf32>
    %39 = vector.extract_strided_slice %5 {offsets = [14, 0], sizes = [22, 32], strides = [1, 1]} : vector<36x32xbf16> to vector<22x32xbf16>
    %c256 = arith.constant 256 : index
    %c0_20 = arith.constant 0 : index
    %40 = vector.load %arg2[%c256, %c0_20] : memref<288x128xbf16, #tpu.memory_space<vmem>>, vector<32x128xbf16>
    %cst_21 = arith.constant dense<0.000000e+00> : vector<22x128xf32>
    %41 = tpu.matmul %39, %40, %cst_21 {dimension_numbers = #tpu.dot_dimension_numbers<[1], [0], [0], [1], [0, 0, 1, 1], [], []>} : vector<22x32xbf16>, vector<32x128xbf16>, vector<22x128xf32> -> vector<22x128xf32>
    %42 = arith.addf %38, %41 : vector<22x128xf32>
    %c0_22 = arith.constant 0 : index
    %c0_23 = arith.constant 0 : index
    %43 = vector.load %arg3[%c0_22, %c0_23] : memref<1x128xf32, #tpu.memory_space<vmem>>, vector<1x128xf32>
    %44 = vector.broadcast %43 : vector<1x128xf32> to vector<22x128xf32>
    %45 = arith.addf %42, %44 : vector<22x128xf32>
    %cst_24 = arith.constant 0.000000e+00 : f32
    %46 = vector.broadcast %cst_24 : f32 to vector<22x128xf32>
    %47 = arith.maximumf %45, %46 : vector<22x128xf32>
    %48 = arith.truncf %47 : vector<22x128xf32> to vector<22x128xbf16>
    %c0_25 = arith.constant 0 : index
    %c0_26 = arith.constant 0 : index
    %49 = vector.load %arg4[%c0_25, %c0_26] : memref<128x128xbf16, #tpu.memory_space<vmem>>, vector<128x128xbf16>
    %cst_27 = arith.constant dense<0.000000e+00> : vector<22x128xf32>
    %50 = tpu.matmul %48, %49, %cst_27 {dimension_numbers = #tpu.dot_dimension_numbers<[1], [0], [0], [1], [0, 0, 1, 1], [], []>} : vector<22x128xbf16>, vector<128x128xbf16>, vector<22x128xf32> -> vector<22x128xf32>
    %c0_28 = arith.constant 0 : index
    %c0_29 = arith.constant 0 : index
    %51 = vector.load %arg5[%c0_28, %c0_29] : memref<1x128xf32, #tpu.memory_space<vmem>>, vector<1x128xf32>
    %52 = vector.broadcast %51 : vector<1x128xf32> to vector<22x128xf32>
    %53 = arith.addf %50, %52 : vector<22x128xf32>
    %cst_30 = arith.constant 0.000000e+00 : bf16
    %54 = vector.broadcast %cst_30 : bf16 to vector<1x36x32xbf16>
    %c0_31 = arith.constant 0 : index
    %c0_32 = arith.constant 0 : index
    %c0_33 = arith.constant 0 : index
    %55 = vector.load %arg6[%c0_31, %c0_32, %c0_33] : memref<1x36x32xbf16, #tpu.memory_space<vmem>>, vector<1x36x32xbf16>
    tpu.vector_store %arg6[%c0_31, %c0_32, %c0_33], %54 {strides = array<i32>} : memref<1x36x32xbf16, #tpu.memory_space<vmem>>, vector<1x36x32xbf16>,
    %56 = vector.extract_strided_slice %53 {offsets = [0, 0], sizes = [4, 32], strides = [1, 1]} : vector<22x128xf32> to vector<4x32xf32>
    %57 = vector.extract_strided_slice %2 {offsets = [7, 0], sizes = [4, 32], strides = [1, 1]} : vector<36x32xf32> to vector<4x32xf32>
    %58 = arith.addf %56, %57 : vector<4x32xf32>
    %59 = arith.truncf %58 : vector<4x32xf32> to vector<4x32xbf16>
    %c0_34 = arith.constant 0 : index
    %c7 = arith.constant 7 : index
    %c0_35 = arith.constant 0 : index
    %60 = vector.load %arg6[%c0_34, %c7, %c0_35] : memref<1x36x32xbf16, #tpu.memory_space<vmem>>, vector<1x4x32xbf16>
    %61 = vector.shape_cast %60 : vector<1x4x32xbf16> to vector<4x32xbf16>
    %62 = vector.shape_cast %59 : vector<4x32xbf16> to vector<1x4x32xbf16>
    tpu.vector_store %arg6[%c0_34, %c7, %c0_35], %62 {strides = array<i32>} : memref<1x36x32xbf16, #tpu.memory_space<vmem>>, vector<1x4x32xbf16>,
    %63 = vector.extract_strided_slice %53 {offsets = [6, 0], sizes = [4, 32], strides = [1, 1]} : vector<22x128xf32> to vector<4x32xf32>
    %64 = vector.extract_strided_slice %2 {offsets = [13, 0], sizes = [4, 32], strides = [1, 1]} : vector<36x32xf32> to vector<4x32xf32>
    %65 = arith.addf %63, %64 : vector<4x32xf32>
    %66 = arith.truncf %65 : vector<4x32xf32> to vector<4x32xbf16>
    %c0_36 = arith.constant 0 : index
    %c13 = arith.constant 13 : index
    %c0_37 = arith.constant 0 : index
    %67 = vector.load %arg6[%c0_36, %c13, %c0_37] : memref<1x36x32xbf16, #tpu.memory_space<vmem>>, vector<1x4x32xbf16>
    %68 = vector.shape_cast %67 : vector<1x4x32xbf16> to vector<4x32xbf16>
    %69 = vector.shape_cast %66 : vector<4x32xbf16> to vector<1x4x32xbf16>
    tpu.vector_store %arg6[%c0_36, %c13, %c0_37], %69 {strides = array<i32>} : memref<1x36x32xbf16, #tpu.memory_space<vmem>>, vector<1x4x32xbf16>,
    %70 = vector.extract_strided_slice %53 {offsets = [12, 0], sizes = [4, 32], strides = [1, 1]} : vector<22x128xf32> to vector<4x32xf32>
    %71 = vector.extract_strided_slice %2 {offsets = [19, 0], sizes = [4, 32], strides = [1, 1]} : vector<36x32xf32> to vector<4x32xf32>
    %72 = arith.addf %70, %71 : vector<4x32xf32>
    %73 = arith.truncf %72 : vector<4x32xf32> to vector<4x32xbf16>
    %c0_38 = arith.constant 0 : index
    %c19 = arith.constant 19 : index
    %c0_39 = arith.constant 0 : index
    %74 = vector.load %arg6[%c0_38, %c19, %c0_39] : memref<1x36x32xbf16, #tpu.memory_space<vmem>>, vector<1x4x32xbf16>
    %75 = vector.shape_cast %74 : vector<1x4x32xbf16> to vector<4x32xbf16>
    %76 = vector.shape_cast %73 : vector<4x32xbf16> to vector<1x4x32xbf16>
    tpu.vector_store %arg6[%c0_38, %c19, %c0_39], %76 {strides = array<i32>} : memref<1x36x32xbf16, #tpu.memory_space<vmem>>, vector<1x4x32xbf16>,
    %77 = vector.extract_strided_slice %53 {offsets = [18, 0], sizes = [4, 32], strides = [1, 1]} : vector<22x128xf32> to vector<4x32xf32>
    %78 = vector.extract_strided_slice %2 {offsets = [25, 0], sizes = [4, 32], strides = [1, 1]} : vector<36x32xf32> to vector<4x32xf32>
    %79 = arith.addf %77, %78 : vector<4x32xf32>
    %80 = arith.truncf %79 : vector<4x32xf32> to vector<4x32xbf16>
    %c0_40 = arith.constant 0 : index
    %c25 = arith.constant 25 : index
    %c0_41 = arith.constant 0 : index
    %81 = vector.load %arg6[%c0_40, %c25, %c0_41] : memref<1x36x32xbf16, #tpu.memory_space<vmem>>, vector<1x4x32xbf16>
    %82 = vector.shape_cast %81 : vector<1x4x32xbf16> to vector<4x32xbf16>
    %83 = vector.shape_cast %80 : vector<4x32xbf16> to vector<1x4x32xbf16>
    tpu.vector_store %arg6[%c0_40, %c25, %c0_41], %83 {strides = array<i32>} : memref<1x36x32xbf16, #tpu.memory_space<vmem>>, vector<1x4x32xbf16>,
    return
  }
  func.func @transform_0(%arg0: i32) -> (i32, i32, i32) {
    %c0_i32 = arith.constant 0 : i32
    %c0_i32_0 = arith.constant 0 : i32
    %c0_i32_1 = arith.constant 0 : i32
    return %arg0, %c0_i32, %c0_i32_0 : i32, i32, i32
  }
  func.func @transform_1(%arg0: i32) -> (i32, i32) {
    %c0_i32 = arith.constant 0 : i32
    %c0_i32_0 = arith.constant 0 : i32
    %c0_i32_1 = arith.constant 0 : i32
    return %c0_i32, %c0_i32_0 : i32, i32
  }
  func.func @transform_2(%arg0: i32) -> (i32, i32) {
    %c0_i32 = arith.constant 0 : i32
    %c0_i32_0 = arith.constant 0 : i32
    %c0_i32_1 = arith.constant 0 : i32
    return %c0_i32, %c0_i32_0 : i32, i32
  }
  func.func @transform_3(%arg0: i32) -> (i32, i32) {
    %c0_i32 = arith.constant 0 : i32
    %c0_i32_0 = arith.constant 0 : i32
    %c0_i32_1 = arith.constant 0 : i32
    return %c0_i32, %c0_i32_0 : i32, i32
  }
  func.func @transform_4(%arg0: i32) -> (i32, i32) {
    %c0_i32 = arith.constant 0 : i32
    %c0_i32_0 = arith.constant 0 : i32
    %c0_i32_1 = arith.constant 0 : i32
    return %c0_i32, %c0_i32_0 : i32, i32
  }
  func.func @transform_5(%arg0: i32) -> (i32, i32, i32) {
    %c0_i32 = arith.constant 0 : i32
    %c0_i32_0 = arith.constant 0 : i32
    %c0_i32_1 = arith.constant 0 : i32
    return %arg0, %c0_i32, %c0_i32_0 : i32, i32, i32
  }
}

module attributes {stable_mosaic.version = 11 : i64} {
  func.func @kernel(%arg0: i32, %arg1: memref<1x36x32xbf16, #tpu.memory_space<vmem>>, %arg2: memref<288x128xbf16, #tpu.memory_space<vmem>>, %arg3: memref<1x128xf32, #tpu.memory_space<vmem>>, %arg4: memref<128x128xbf16, #tpu.memory_space<vmem>>, %arg5: memref<1x128xf32, #tpu.memory_space<vmem>>, %arg6: memref<1x36x32xf32, #tpu.memory_space<vmem>>) attributes {dimension_semantics = [#tpu.dimension_semantics<parallel>], iteration_bounds = array<i64: 2>, scalar_prefetch = 0 : i64, scratch_operands = 0 : i64, tpu.core_type = #tpu.core_type<tc>, window_params = [{transform_indices = @transform_0, window_bounds = array<i64: 1, 36, 32>}, {pipeline_mode = #tpu.pipeline_mode<synchronous>, transform_indices = @transform_1, window_bounds = array<i64: 288, 128>}, {pipeline_mode = #tpu.pipeline_mode<synchronous>, transform_indices = @transform_2, window_bounds = array<i64: 1, 128>}, {pipeline_mode = #tpu.pipeline_mode<synchronous>, transform_indices = @transform_3, window_bounds = array<i64: 128, 128>}, {pipeline_mode = #tpu.pipeline_mode<synchronous>, transform_indices = @transform_4, window_bounds = array<i64: 1, 128>}, {transform_indices = @transform_5, window_bounds = array<i64: 1, 36, 32>}]} {
    %c0 = arith.constant 0 : index
    %c0_0 = arith.constant 0 : index
    %c0_1 = arith.constant 0 : index
    %0 = vector.load %arg1[%c0, %c0_0, %c0_1] : memref<1x36x32xbf16, #tpu.memory_space<vmem>>, vector<1x36x32xbf16>
    %1 = vector.shape_cast %0 : vector<1x36x32xbf16> to vector<36x32xbf16>
    %2 = arith.extf %1 : vector<36x32xbf16> to vector<36x32xf32>
    %cst = arith.constant 0.000000e+00 : f32
    %3 = vector.broadcast %cst : f32 to vector<36x32xf32>
    %4 = arith.maximumf %2, %3 : vector<36x32xf32>
    %5 = arith.truncf %4 : vector<36x32xf32> to vector<36x32xbf16>
    %cst_2 = arith.constant 0.000000e+00 : f32
    %6 = vector.broadcast %cst_2 : f32 to vector<22x128xf32>
    %7 = vector.extract_strided_slice %5 {offsets = [0, 0], sizes = [22, 32], strides = [1, 1]} : vector<36x32xbf16> to vector<22x32xbf16>
    %c0_3 = arith.constant 0 : index
    %c0_4 = arith.constant 0 : index
    %8 = vector.load %arg2[%c0_3, %c0_4] : memref<288x128xbf16, #tpu.memory_space<vmem>>, vector<32x128xbf16>
    %cst_5 = arith.constant dense<0.000000e+00> : vector<22x128xf32>
    %9 = tpu.matmul %7, %8, %cst_5 {dimension_numbers = #tpu.dot_dimension_numbers<[1], [0], [0], [1], [0, 0, 1, 1], [], []>} : vector<22x32xbf16>, vector<32x128xbf16>, vector<22x128xf32> -> vector<22x128xf32>
    %10 = arith.addf %6, %9 : vector<22x128xf32>
    %11 = vector.extract_strided_slice %5 {offsets = [1, 0], sizes = [22, 32], strides = [1, 1]} : vector<36x32xbf16> to vector<22x32xbf16>
    %c32 = arith.constant 32 : index
    %c0_6 = arith.constant 0 : index
    %12 = vector.load %arg2[%c32, %c0_6] : memref<288x128xbf16, #tpu.memory_space<vmem>>, vector<32x128xbf16>
    %cst_7 = arith.constant dense<0.000000e+00> : vector<22x128xf32>
    %13 = tpu.matmul %11, %12, %cst_7 {dimension_numbers = #tpu.dot_dimension_numbers<[1], [0], [0], [1], [0, 0, 1, 1], [], []>} : vector<22x32xbf16>, vector<32x128xbf16>, vector<22x128xf32> -> vector<22x128xf32>
    %14 = arith.addf %10, %13 : vector<22x128xf32>
    %15 = vector.extract_strided_slice %5 {offsets = [2, 0], sizes = [22, 32], strides = [1, 1]} : vector<36x32xbf16> to vector<22x32xbf16>
    %c64 = arith.constant 64 : index
    %c0_8 = arith.constant 0 : index
    %16 = vector.load %arg2[%c64, %c0_8] : memref<288x128xbf16, #tpu.memory_space<vmem>>, vector<32x128xbf16>
    %cst_9 = arith.constant dense<0.000000e+00> : vector<22x128xf32>
    %17 = tpu.matmul %15, %16, %cst_9 {dimension_numbers = #tpu.dot_dimension_numbers<[1], [0], [0], [1], [0, 0, 1, 1], [], []>} : vector<22x32xbf16>, vector<32x128xbf16>, vector<22x128xf32> -> vector<22x128xf32>
    %18 = arith.addf %14, %17 : vector<22x128xf32>
    %19 = vector.extract_strided_slice %5 {offsets = [6, 0], sizes = [22, 32], strides = [1, 1]} : vector<36x32xbf16> to vector<22x32xbf16>
    %c96 = arith.constant 96 : index
    %c0_10 = arith.constant 0 : index
    %20 = vector.load %arg2[%c96, %c0_10] : memref<288x128xbf16, #tpu.memory_space<vmem>>, vector<32x128xbf16>
    %cst_11 = arith.constant dense<0.000000e+00> : vector<22x128xf32>
    %21 = tpu.matmul %19, %20, %cst_11 {dimension_numbers = #tpu.dot_dimension_numbers<[1], [0], [0], [1], [0, 0, 1, 1], [], []>} : vector<22x32xbf16>, vector<32x128xbf16>, vector<22x128xf32> -> vector<22x128xf32>
    %22 = arith.addf %18, %21 : vector<22x128xf32>
    %23 = vector.extract_strided_slice %5 {offsets = [7, 0], sizes = [22, 32], strides = [1, 1]} : vector<36x32xbf16> to vector<22x32xbf16>
    %c128 = arith.constant 128 : index
    %c0_12 = arith.constant 0 : index
    %24 = vector.load %arg2[%c128, %c0_12] : memref<288x128xbf16, #tpu.memory_space<vmem>>, vector<32x128xbf16>
    %cst_13 = arith.constant dense<0.000000e+00> : vector<22x128xf32>
    %25 = tpu.matmul %23, %24, %cst_13 {dimension_numbers = #tpu.dot_dimension_numbers<[1], [0], [0], [1], [0, 0, 1, 1], [], []>} : vector<22x32xbf16>, vector<32x128xbf16>, vector<22x128xf32> -> vector<22x128xf32>
    %26 = arith.addf %22, %25 : vector<22x128xf32>
    %27 = vector.extract_strided_slice %5 {offsets = [8, 0], sizes = [22, 32], strides = [1, 1]} : vector<36x32xbf16> to vector<22x32xbf16>
    %c160 = arith.constant 160 : index
    %c0_14 = arith.constant 0 : index
    %28 = vector.load %arg2[%c160, %c0_14] : memref<288x128xbf16, #tpu.memory_space<vmem>>, vector<32x128xbf16>
    %cst_15 = arith.constant dense<0.000000e+00> : vector<22x128xf32>
    %29 = tpu.matmul %27, %28, %cst_15 {dimension_numbers = #tpu.dot_dimension_numbers<[1], [0], [0], [1], [0, 0, 1, 1], [], []>} : vector<22x32xbf16>, vector<32x128xbf16>, vector<22x128xf32> -> vector<22x128xf32>
    %30 = arith.addf %26, %29 : vector<22x128xf32>
    %31 = vector.extract_strided_slice %5 {offsets = [12, 0], sizes = [22, 32], strides = [1, 1]} : vector<36x32xbf16> to vector<22x32xbf16>
    %c192 = arith.constant 192 : index
    %c0_16 = arith.constant 0 : index
    %32 = vector.load %arg2[%c192, %c0_16] : memref<288x128xbf16, #tpu.memory_space<vmem>>, vector<32x128xbf16>
    %cst_17 = arith.constant dense<0.000000e+00> : vector<22x128xf32>
    %33 = tpu.matmul %31, %32, %cst_17 {dimension_numbers = #tpu.dot_dimension_numbers<[1], [0], [0], [1], [0, 0, 1, 1], [], []>} : vector<22x32xbf16>, vector<32x128xbf16>, vector<22x128xf32> -> vector<22x128xf32>
    %34 = arith.addf %30, %33 : vector<22x128xf32>
    %35 = vector.extract_strided_slice %5 {offsets = [13, 0], sizes = [22, 32], strides = [1, 1]} : vector<36x32xbf16> to vector<22x32xbf16>
    %c224 = arith.constant 224 : index
    %c0_18 = arith.constant 0 : index
    %36 = vector.load %arg2[%c224, %c0_18] : memref<288x128xbf16, #tpu.memory_space<vmem>>, vector<32x128xbf16>
    %cst_19 = arith.constant dense<0.000000e+00> : vector<22x128xf32>
    %37 = tpu.matmul %35, %36, %cst_19 {dimension_numbers = #tpu.dot_dimension_numbers<[1], [0], [0], [1], [0, 0, 1, 1], [], []>} : vector<22x32xbf16>, vector<32x128xbf16>, vector<22x128xf32> -> vector<22x128xf32>
    %38 = arith.addf %34, %37 : vector<22x128xf32>
    %39 = vector.extract_strided_slice %5 {offsets = [14, 0], sizes = [22, 32], strides = [1, 1]} : vector<36x32xbf16> to vector<22x32xbf16>
    %c256 = arith.constant 256 : index
    %c0_20 = arith.constant 0 : index
    %40 = vector.load %arg2[%c256, %c0_20] : memref<288x128xbf16, #tpu.memory_space<vmem>>, vector<32x128xbf16>
    %cst_21 = arith.constant dense<0.000000e+00> : vector<22x128xf32>
    %41 = tpu.matmul %39, %40, %cst_21 {dimension_numbers = #tpu.dot_dimension_numbers<[1], [0], [0], [1], [0, 0, 1, 1], [], []>} : vector<22x32xbf16>, vector<32x128xbf16>, vector<22x128xf32> -> vector<22x128xf32>
    %42 = arith.addf %38, %41 : vector<22x128xf32>
    %c0_22 = arith.constant 0 : index
    %c0_23 = arith.constant 0 : index
    %43 = vector.load %arg3[%c0_22, %c0_23] : memref<1x128xf32, #tpu.memory_space<vmem>>, vector<1x128xf32>
    %44 = vector.broadcast %43 : vector<1x128xf32> to vector<22x128xf32>
    %45 = arith.addf %42, %44 : vector<22x128xf32>
    %cst_24 = arith.constant 0.000000e+00 : f32
    %46 = vector.broadcast %cst_24 : f32 to vector<22x128xf32>
    %47 = arith.maximumf %45, %46 : vector<22x128xf32>
    %48 = arith.truncf %47 : vector<22x128xf32> to vector<22x128xbf16>
    %c0_25 = arith.constant 0 : index
    %c0_26 = arith.constant 0 : index
    %49 = vector.load %arg4[%c0_25, %c0_26] : memref<128x128xbf16, #tpu.memory_space<vmem>>, vector<128x128xbf16>
    %cst_27 = arith.constant dense<0.000000e+00> : vector<22x128xf32>
    %50 = tpu.matmul %48, %49, %cst_27 {dimension_numbers = #tpu.dot_dimension_numbers<[1], [0], [0], [1], [0, 0, 1, 1], [], []>} : vector<22x128xbf16>, vector<128x128xbf16>, vector<22x128xf32> -> vector<22x128xf32>
    %c0_28 = arith.constant 0 : index
    %c0_29 = arith.constant 0 : index
    %51 = vector.load %arg5[%c0_28, %c0_29] : memref<1x128xf32, #tpu.memory_space<vmem>>, vector<1x128xf32>
    %52 = vector.broadcast %51 : vector<1x128xf32> to vector<22x128xf32>
    %53 = arith.addf %50, %52 : vector<22x128xf32>
    %cst_30 = arith.constant 0.000000e+00 : f32
    %54 = vector.broadcast %cst_30 : f32 to vector<1x36x32xf32>
    %c0_31 = arith.constant 0 : index
    %c0_32 = arith.constant 0 : index
    %c0_33 = arith.constant 0 : index
    %55 = vector.load %arg6[%c0_31, %c0_32, %c0_33] : memref<1x36x32xf32, #tpu.memory_space<vmem>>, vector<1x36x32xf32>
    tpu.vector_store %arg6[%c0_31, %c0_32, %c0_33], %54 {strides = array<i32>} : memref<1x36x32xf32, #tpu.memory_space<vmem>>, vector<1x36x32xf32>,
    %56 = vector.extract_strided_slice %53 {offsets = [0, 0], sizes = [4, 32], strides = [1, 1]} : vector<22x128xf32> to vector<4x32xf32>
    %57 = vector.extract_strided_slice %2 {offsets = [7, 0], sizes = [4, 32], strides = [1, 1]} : vector<36x32xf32> to vector<4x32xf32>
    %58 = arith.addf %56, %57 : vector<4x32xf32>
    %c0_34 = arith.constant 0 : index
    %c7 = arith.constant 7 : index
    %c0_35 = arith.constant 0 : index
    %59 = vector.load %arg6[%c0_34, %c7, %c0_35] : memref<1x36x32xf32, #tpu.memory_space<vmem>>, vector<1x4x32xf32>
    %60 = vector.shape_cast %59 : vector<1x4x32xf32> to vector<4x32xf32>
    %61 = vector.shape_cast %58 : vector<4x32xf32> to vector<1x4x32xf32>
    tpu.vector_store %arg6[%c0_34, %c7, %c0_35], %61 {strides = array<i32>} : memref<1x36x32xf32, #tpu.memory_space<vmem>>, vector<1x4x32xf32>,
    %62 = vector.extract_strided_slice %53 {offsets = [6, 0], sizes = [4, 32], strides = [1, 1]} : vector<22x128xf32> to vector<4x32xf32>
    %63 = vector.extract_strided_slice %2 {offsets = [13, 0], sizes = [4, 32], strides = [1, 1]} : vector<36x32xf32> to vector<4x32xf32>
    %64 = arith.addf %62, %63 : vector<4x32xf32>
    %c0_36 = arith.constant 0 : index
    %c13 = arith.constant 13 : index
    %c0_37 = arith.constant 0 : index
    %65 = vector.load %arg6[%c0_36, %c13, %c0_37] : memref<1x36x32xf32, #tpu.memory_space<vmem>>, vector<1x4x32xf32>
    %66 = vector.shape_cast %65 : vector<1x4x32xf32> to vector<4x32xf32>
    %67 = vector.shape_cast %64 : vector<4x32xf32> to vector<1x4x32xf32>
    tpu.vector_store %arg6[%c0_36, %c13, %c0_37], %67 {strides = array<i32>} : memref<1x36x32xf32, #tpu.memory_space<vmem>>, vector<1x4x32xf32>,
    %68 = vector.extract_strided_slice %53 {offsets = [12, 0], sizes = [4, 32], strides = [1, 1]} : vector<22x128xf32> to vector<4x32xf32>
    %69 = vector.extract_strided_slice %2 {offsets = [19, 0], sizes = [4, 32], strides = [1, 1]} : vector<36x32xf32> to vector<4x32xf32>
    %70 = arith.addf %68, %69 : vector<4x32xf32>
    %c0_38 = arith.constant 0 : index
    %c19 = arith.constant 19 : index
    %c0_39 = arith.constant 0 : index
    %71 = vector.load %arg6[%c0_38, %c19, %c0_39] : memref<1x36x32xf32, #tpu.memory_space<vmem>>, vector<1x4x32xf32>
    %72 = vector.shape_cast %71 : vector<1x4x32xf32> to vector<4x32xf32>
    %73 = vector.shape_cast %70 : vector<4x32xf32> to vector<1x4x32xf32>
    tpu.vector_store %arg6[%c0_38, %c19, %c0_39], %73 {strides = array<i32>} : memref<1x36x32xf32, #tpu.memory_space<vmem>>, vector<1x4x32xf32>,
    %74 = vector.extract_strided_slice %53 {offsets = [18, 0], sizes = [4, 32], strides = [1, 1]} : vector<22x128xf32> to vector<4x32xf32>
    %75 = vector.extract_strided_slice %2 {offsets = [25, 0], sizes = [4, 32], strides = [1, 1]} : vector<36x32xf32> to vector<4x32xf32>
    %76 = arith.addf %74, %75 : vector<4x32xf32>
    %c0_40 = arith.constant 0 : index
    %c25 = arith.constant 25 : index
    %c0_41 = arith.constant 0 : index
    %77 = vector.load %arg6[%c0_40, %c25, %c0_41] : memref<1x36x32xf32, #tpu.memory_space<vmem>>, vector<1x4x32xf32>
    %78 = vector.shape_cast %77 : vector<1x4x32xf32> to vector<4x32xf32>
    %79 = vector.shape_cast %76 : vector<4x32xf32> to vector<1x4x32xf32>
    tpu.vector_store %arg6[%c0_40, %c25, %c0_41], %79 {strides = array<i32>} : memref<1x36x32xf32, #tpu.memory_space<vmem>>, vector<1x4x32xf32>,
    return
  }
  func.func @transform_0(%arg0: i32) -> (i32, i32, i32) {
    %c0_i32 = arith.constant 0 : i32
    %c0_i32_0 = arith.constant 0 : i32
    %c0_i32_1 = arith.constant 0 : i32
    return %arg0, %c0_i32, %c0_i32_0 : i32, i32, i32
  }
  func.func @transform_1(%arg0: i32) -> (i32, i32) {
    %c0_i32 = arith.constant 0 : i32
    %c0_i32_0 = arith.constant 0 : i32
    %c0_i32_1 = arith.constant 0 : i32
    return %c0_i32, %c0_i32_0 : i32, i32
  }
  func.func @transform_2(%arg0: i32) -> (i32, i32) {
    %c0_i32 = arith.constant 0 : i32
    %c0_i32_0 = arith.constant 0 : i32
    %c0_i32_1 = arith.constant 0 : i32
    return %c0_i32, %c0_i32_0 : i32, i32
  }
  func.func @transform_3(%arg0: i32) -> (i32, i32) {
    %c0_i32 = arith.constant 0 : i32
    %c0_i32_0 = arith.constant 0 : i32
    %c0_i32_1 = arith.constant 0 : i32
    return %c0_i32, %c0_i32_0 : i32, i32
  }
  func.func @transform_4(%arg0: i32) -> (i32, i32) {
    %c0_i32 = arith.constant 0 : i32
    %c0_i32_0 = arith.constant 0 : i32
    %c0_i32_1 = arith.constant 0 : i32
    return %c0_i32, %c0_i32_0 : i32, i32
  }
  func.func @transform_5(%arg0: i32) -> (i32, i32, i32) {
    %c0_i32 = arith.constant 0 : i32
    %c0_i32_0 = arith.constant 0 : i32
    %c0_i32_1 = arith.constant 0 : i32
    return %arg0, %c0_i32, %c0_i32_0 : i32, i32, i32
  }
}

module attributes {stable_mosaic.version = 11 : i64} {
  func.func @_vq_kernel(%arg0: i32, %arg1: memref<16x128xf32, #tpu.memory_space<vmem>>, %arg2: memref<128x128xf32, #tpu.memory_space<vmem>>, %arg3: memref<128x128xf32, #tpu.memory_space<vmem>>, %arg4: memref<1x128xf32, #tpu.memory_space<vmem>>, %arg5: memref<16x128xf32, #tpu.memory_space<vmem>>) attributes {dimension_semantics = [#tpu.dimension_semantics<parallel>], iteration_bounds = array<i64: 2>, scalar_prefetch = 0 : i64, scratch_operands = 0 : i64, tpu.core_type = #tpu.core_type<tc>, window_params = [{transform_indices = @transform_0, window_bounds = array<i64: 16, 128>}, {pipeline_mode = #tpu.pipeline_mode<synchronous>, transform_indices = @transform_1, window_bounds = array<i64: 128, 128>}, {pipeline_mode = #tpu.pipeline_mode<synchronous>, transform_indices = @transform_2, window_bounds = array<i64: 128, 128>}, {pipeline_mode = #tpu.pipeline_mode<synchronous>, transform_indices = @transform_3, window_bounds = array<i64: 1, 128>}, {transform_indices = @transform_4, window_bounds = array<i64: 16, 128>}]} {
    %c0 = arith.constant 0 : index
    %c0_0 = arith.constant 0 : index
    %0 = vector.load %arg1[%c0, %c0_0] : memref<16x128xf32, #tpu.memory_space<vmem>>, vector<16x128xf32>
    %c0_1 = arith.constant 0 : index
    %c0_2 = arith.constant 0 : index
    %1 = vector.load %arg2[%c0_1, %c0_2] : memref<128x128xf32, #tpu.memory_space<vmem>>, vector<128x128xf32>
    %cst = arith.constant dense<0.000000e+00> : vector<16x128xf32>
    %2 = tpu.matmul %0, %1, %cst {dimension_numbers = #tpu.dot_dimension_numbers<[1], [0], [0], [1], [0, 0, 1, 1], [], []>} : vector<16x128xf32>, vector<128x128xf32>, vector<16x128xf32> -> vector<16x128xf32>
    %c0_3 = arith.constant 0 : index
    %c0_4 = arith.constant 0 : index
    %3 = vector.load %arg4[%c0_3, %c0_4] : memref<1x128xf32, #tpu.memory_space<vmem>>, vector<1x128xf32>
    %cst_5 = arith.constant 2.000000e+00 : f32
    %4 = vector.broadcast %cst_5 : f32 to vector<16x128xf32>
    %5 = arith.mulf %4, %2 : vector<16x128xf32>
    %6 = vector.broadcast %3 : vector<1x128xf32> to vector<16x128xf32>
    %7 = arith.subf %6, %5 : vector<16x128xf32>
    %cst_6 = arith.constant dense<0x7F800000> : vector<16xf32>
    %8 = vector.multi_reduction <minimumf>, %7, %cst_6 [1] : vector<16x128xf32> to vector<16xf32>
    %9 = vector.shape_cast %8 : vector<16xf32> to vector<16x1xf32>
    %10 = tpu.iota {dimensions = array<i32: 1>} : vector<16x128xi32>
    %11 = vector.broadcast %9 : vector<16x1xf32> to vector<16x128xf32>
    %12 = arith.cmpf ole, %7, %11 : vector<16x128xf32>
    %c128_i32 = arith.constant 128 : i32
    %13 = vector.broadcast %c128_i32 : i32 to vector<16x128xi32>
    %14 = arith.select %12, %10, %13 : vector<16x128xi1>, vector<16x128xi32>
    %cst_7 = arith.constant dense<2147483647> : vector<16xi32>
    %15 = vector.multi_reduction <minsi>, %14, %cst_7 [1] : vector<16x128xi32> to vector<16xi32>
    %16 = vector.shape_cast %15 : vector<16xi32> to vector<16x1xi32>
    %17 = vector.broadcast %16 : vector<16x1xi32> to vector<16x128xi32>
    %18 = arith.cmpi eq, %10, %17 : vector<16x128xi32>
    %19 = arith.extui %18 : vector<16x128xi1> to vector<16x128xi32>
    %20 = arith.sitofp %19 : vector<16x128xi32> to vector<16x128xf32>
    %c0_8 = arith.constant 0 : index
    %c0_9 = arith.constant 0 : index
    %21 = vector.load %arg3[%c0_8, %c0_9] : memref<128x128xf32, #tpu.memory_space<vmem>>, vector<128x128xf32>
    %cst_10 = arith.constant dense<0.000000e+00> : vector<16x128xf32>
    %22 = tpu.matmul %20, %21, %cst_10 {dimension_numbers = #tpu.dot_dimension_numbers<[1], [0], [0], [1], [0, 0, 1, 1], [], []>} : vector<16x128xf32>, vector<128x128xf32>, vector<16x128xf32> -> vector<16x128xf32>
    %c0_11 = arith.constant 0 : index
    %c0_12 = arith.constant 0 : index
    %23 = vector.load %arg5[%c0_11, %c0_12] : memref<16x128xf32, #tpu.memory_space<vmem>>, vector<16x128xf32>
    tpu.vector_store %arg5[%c0_11, %c0_12], %22 {strides = array<i32>} : memref<16x128xf32, #tpu.memory_space<vmem>>, vector<16x128xf32>,
    return
  }
  func.func @transform_0(%arg0: i32) -> (i32, i32) {
    %c0_i32 = arith.constant 0 : i32
    %c0_i32_0 = arith.constant 0 : i32
    return %arg0, %c0_i32 : i32, i32
  }
  func.func @transform_1(%arg0: i32) -> (i32, i32) {
    %c0_i32 = arith.constant 0 : i32
    %c0_i32_0 = arith.constant 0 : i32
    %c0_i32_1 = arith.constant 0 : i32
    return %c0_i32, %c0_i32_0 : i32, i32
  }
  func.func @transform_2(%arg0: i32) -> (i32, i32) {
    %c0_i32 = arith.constant 0 : i32
    %c0_i32_0 = arith.constant 0 : i32
    %c0_i32_1 = arith.constant 0 : i32
    return %c0_i32, %c0_i32_0 : i32, i32
  }
  func.func @transform_3(%arg0: i32) -> (i32, i32) {
    %c0_i32 = arith.constant 0 : i32
    %c0_i32_0 = arith.constant 0 : i32
    %c0_i32_1 = arith.constant 0 : i32
    return %c0_i32, %c0_i32_0 : i32, i32
  }
  func.func @transform_4(%arg0: i32) -> (i32, i32) {
    %c0_i32 = arith.constant 0 : i32
    %c0_i32_0 = arith.constant 0 : i32
    return %arg0, %c0_i32 : i32, i32
  }
}

module attributes {stable_mosaic.version = 11 : i64} {
  func.func @kernel(%arg0: i32, %arg1: memref<1x36x32xf32, #tpu.memory_space<vmem>>, %arg2: memref<288x128xbf16, #tpu.memory_space<vmem>>, %arg3: memref<1x128xf32, #tpu.memory_space<vmem>>, %arg4: memref<128x128xbf16, #tpu.memory_space<vmem>>, %arg5: memref<1x128xf32, #tpu.memory_space<vmem>>, %arg6: memref<1x36x32xbf16, #tpu.memory_space<vmem>>) attributes {dimension_semantics = [#tpu.dimension_semantics<parallel>], iteration_bounds = array<i64: 2>, scalar_prefetch = 0 : i64, scratch_operands = 0 : i64, tpu.core_type = #tpu.core_type<tc>, window_params = [{transform_indices = @transform_0, window_bounds = array<i64: 1, 36, 32>}, {pipeline_mode = #tpu.pipeline_mode<synchronous>, transform_indices = @transform_1, window_bounds = array<i64: 288, 128>}, {pipeline_mode = #tpu.pipeline_mode<synchronous>, transform_indices = @transform_2, window_bounds = array<i64: 1, 128>}, {pipeline_mode = #tpu.pipeline_mode<synchronous>, transform_indices = @transform_3, window_bounds = array<i64: 128, 128>}, {pipeline_mode = #tpu.pipeline_mode<synchronous>, transform_indices = @transform_4, window_bounds = array<i64: 1, 128>}, {transform_indices = @transform_5, window_bounds = array<i64: 1, 36, 32>}]} {
    %c0 = arith.constant 0 : index
    %c0_0 = arith.constant 0 : index
    %c0_1 = arith.constant 0 : index
    %0 = vector.load %arg1[%c0, %c0_0, %c0_1] : memref<1x36x32xf32, #tpu.memory_space<vmem>>, vector<1x36x32xf32>
    %1 = vector.shape_cast %0 : vector<1x36x32xf32> to vector<36x32xf32>
    %cst = arith.constant 0.000000e+00 : f32
    %2 = vector.broadcast %cst : f32 to vector<36x32xf32>
    %3 = arith.maximumf %1, %2 : vector<36x32xf32>
    %4 = arith.truncf %3 : vector<36x32xf32> to vector<36x32xbf16>
    %cst_2 = arith.constant 0.000000e+00 : f32
    %5 = vector.broadcast %cst_2 : f32 to vector<22x128xf32>
    %6 = vector.extract_strided_slice %4 {offsets = [0, 0], sizes = [22, 32], strides = [1, 1]} : vector<36x32xbf16> to vector<22x32xbf16>
    %c0_3 = arith.constant 0 : index
    %c0_4 = arith.constant 0 : index
    %7 = vector.load %arg2[%c0_3, %c0_4] : memref<288x128xbf16, #tpu.memory_space<vmem>>, vector<32x128xbf16>
    %cst_5 = arith.constant dense<0.000000e+00> : vector<22x128xf32>
    %8 = tpu.matmul %6, %7, %cst_5 {dimension_numbers = #tpu.dot_dimension_numbers<[1], [0], [0], [1], [0, 0, 1, 1], [], []>} : vector<22x32xbf16>, vector<32x128xbf16>, vector<22x128xf32> -> vector<22x128xf32>
    %9 = arith.addf %5, %8 : vector<22x128xf32>
    %10 = vector.extract_strided_slice %4 {offsets = [1, 0], sizes = [22, 32], strides = [1, 1]} : vector<36x32xbf16> to vector<22x32xbf16>
    %c32 = arith.constant 32 : index
    %c0_6 = arith.constant 0 : index
    %11 = vector.load %arg2[%c32, %c0_6] : memref<288x128xbf16, #tpu.memory_space<vmem>>, vector<32x128xbf16>
    %cst_7 = arith.constant dense<0.000000e+00> : vector<22x128xf32>
    %12 = tpu.matmul %10, %11, %cst_7 {dimension_numbers = #tpu.dot_dimension_numbers<[1], [0], [0], [1], [0, 0, 1, 1], [], []>} : vector<22x32xbf16>, vector<32x128xbf16>, vector<22x128xf32> -> vector<22x128xf32>
    %13 = arith.addf %9, %12 : vector<22x128xf32>
    %14 = vector.extract_strided_slice %4 {offsets = [2, 0], sizes = [22, 32], strides = [1, 1]} : vector<36x32xbf16> to vector<22x32xbf16>
    %c64 = arith.constant 64 : index
    %c0_8 = arith.constant 0 : index
    %15 = vector.load %arg2[%c64, %c0_8] : memref<288x128xbf16, #tpu.memory_space<vmem>>, vector<32x128xbf16>
    %cst_9 = arith.constant dense<0.000000e+00> : vector<22x128xf32>
    %16 = tpu.matmul %14, %15, %cst_9 {dimension_numbers = #tpu.dot_dimension_numbers<[1], [0], [0], [1], [0, 0, 1, 1], [], []>} : vector<22x32xbf16>, vector<32x128xbf16>, vector<22x128xf32> -> vector<22x128xf32>
    %17 = arith.addf %13, %16 : vector<22x128xf32>
    %18 = vector.extract_strided_slice %4 {offsets = [6, 0], sizes = [22, 32], strides = [1, 1]} : vector<36x32xbf16> to vector<22x32xbf16>
    %c96 = arith.constant 96 : index
    %c0_10 = arith.constant 0 : index
    %19 = vector.load %arg2[%c96, %c0_10] : memref<288x128xbf16, #tpu.memory_space<vmem>>, vector<32x128xbf16>
    %cst_11 = arith.constant dense<0.000000e+00> : vector<22x128xf32>
    %20 = tpu.matmul %18, %19, %cst_11 {dimension_numbers = #tpu.dot_dimension_numbers<[1], [0], [0], [1], [0, 0, 1, 1], [], []>} : vector<22x32xbf16>, vector<32x128xbf16>, vector<22x128xf32> -> vector<22x128xf32>
    %21 = arith.addf %17, %20 : vector<22x128xf32>
    %22 = vector.extract_strided_slice %4 {offsets = [7, 0], sizes = [22, 32], strides = [1, 1]} : vector<36x32xbf16> to vector<22x32xbf16>
    %c128 = arith.constant 128 : index
    %c0_12 = arith.constant 0 : index
    %23 = vector.load %arg2[%c128, %c0_12] : memref<288x128xbf16, #tpu.memory_space<vmem>>, vector<32x128xbf16>
    %cst_13 = arith.constant dense<0.000000e+00> : vector<22x128xf32>
    %24 = tpu.matmul %22, %23, %cst_13 {dimension_numbers = #tpu.dot_dimension_numbers<[1], [0], [0], [1], [0, 0, 1, 1], [], []>} : vector<22x32xbf16>, vector<32x128xbf16>, vector<22x128xf32> -> vector<22x128xf32>
    %25 = arith.addf %21, %24 : vector<22x128xf32>
    %26 = vector.extract_strided_slice %4 {offsets = [8, 0], sizes = [22, 32], strides = [1, 1]} : vector<36x32xbf16> to vector<22x32xbf16>
    %c160 = arith.constant 160 : index
    %c0_14 = arith.constant 0 : index
    %27 = vector.load %arg2[%c160, %c0_14] : memref<288x128xbf16, #tpu.memory_space<vmem>>, vector<32x128xbf16>
    %cst_15 = arith.constant dense<0.000000e+00> : vector<22x128xf32>
    %28 = tpu.matmul %26, %27, %cst_15 {dimension_numbers = #tpu.dot_dimension_numbers<[1], [0], [0], [1], [0, 0, 1, 1], [], []>} : vector<22x32xbf16>, vector<32x128xbf16>, vector<22x128xf32> -> vector<22x128xf32>
    %29 = arith.addf %25, %28 : vector<22x128xf32>
    %30 = vector.extract_strided_slice %4 {offsets = [12, 0], sizes = [22, 32], strides = [1, 1]} : vector<36x32xbf16> to vector<22x32xbf16>
    %c192 = arith.constant 192 : index
    %c0_16 = arith.constant 0 : index
    %31 = vector.load %arg2[%c192, %c0_16] : memref<288x128xbf16, #tpu.memory_space<vmem>>, vector<32x128xbf16>
    %cst_17 = arith.constant dense<0.000000e+00> : vector<22x128xf32>
    %32 = tpu.matmul %30, %31, %cst_17 {dimension_numbers = #tpu.dot_dimension_numbers<[1], [0], [0], [1], [0, 0, 1, 1], [], []>} : vector<22x32xbf16>, vector<32x128xbf16>, vector<22x128xf32> -> vector<22x128xf32>
    %33 = arith.addf %29, %32 : vector<22x128xf32>
    %34 = vector.extract_strided_slice %4 {offsets = [13, 0], sizes = [22, 32], strides = [1, 1]} : vector<36x32xbf16> to vector<22x32xbf16>
    %c224 = arith.constant 224 : index
    %c0_18 = arith.constant 0 : index
    %35 = vector.load %arg2[%c224, %c0_18] : memref<288x128xbf16, #tpu.memory_space<vmem>>, vector<32x128xbf16>
    %cst_19 = arith.constant dense<0.000000e+00> : vector<22x128xf32>
    %36 = tpu.matmul %34, %35, %cst_19 {dimension_numbers = #tpu.dot_dimension_numbers<[1], [0], [0], [1], [0, 0, 1, 1], [], []>} : vector<22x32xbf16>, vector<32x128xbf16>, vector<22x128xf32> -> vector<22x128xf32>
    %37 = arith.addf %33, %36 : vector<22x128xf32>
    %38 = vector.extract_strided_slice %4 {offsets = [14, 0], sizes = [22, 32], strides = [1, 1]} : vector<36x32xbf16> to vector<22x32xbf16>
    %c256 = arith.constant 256 : index
    %c0_20 = arith.constant 0 : index
    %39 = vector.load %arg2[%c256, %c0_20] : memref<288x128xbf16, #tpu.memory_space<vmem>>, vector<32x128xbf16>
    %cst_21 = arith.constant dense<0.000000e+00> : vector<22x128xf32>
    %40 = tpu.matmul %38, %39, %cst_21 {dimension_numbers = #tpu.dot_dimension_numbers<[1], [0], [0], [1], [0, 0, 1, 1], [], []>} : vector<22x32xbf16>, vector<32x128xbf16>, vector<22x128xf32> -> vector<22x128xf32>
    %41 = arith.addf %37, %40 : vector<22x128xf32>
    %c0_22 = arith.constant 0 : index
    %c0_23 = arith.constant 0 : index
    %42 = vector.load %arg3[%c0_22, %c0_23] : memref<1x128xf32, #tpu.memory_space<vmem>>, vector<1x128xf32>
    %43 = vector.broadcast %42 : vector<1x128xf32> to vector<22x128xf32>
    %44 = arith.addf %41, %43 : vector<22x128xf32>
    %cst_24 = arith.constant 0.000000e+00 : f32
    %45 = vector.broadcast %cst_24 : f32 to vector<22x128xf32>
    %46 = arith.maximumf %44, %45 : vector<22x128xf32>
    %47 = arith.truncf %46 : vector<22x128xf32> to vector<22x128xbf16>
    %c0_25 = arith.constant 0 : index
    %c0_26 = arith.constant 0 : index
    %48 = vector.load %arg4[%c0_25, %c0_26] : memref<128x128xbf16, #tpu.memory_space<vmem>>, vector<128x128xbf16>
    %cst_27 = arith.constant dense<0.000000e+00> : vector<22x128xf32>
    %49 = tpu.matmul %47, %48, %cst_27 {dimension_numbers = #tpu.dot_dimension_numbers<[1], [0], [0], [1], [0, 0, 1, 1], [], []>} : vector<22x128xbf16>, vector<128x128xbf16>, vector<22x128xf32> -> vector<22x128xf32>
    %c0_28 = arith.constant 0 : index
    %c0_29 = arith.constant 0 : index
    %50 = vector.load %arg5[%c0_28, %c0_29] : memref<1x128xf32, #tpu.memory_space<vmem>>, vector<1x128xf32>
    %51 = vector.broadcast %50 : vector<1x128xf32> to vector<22x128xf32>
    %52 = arith.addf %49, %51 : vector<22x128xf32>
    %cst_30 = arith.constant 0.000000e+00 : bf16
    %53 = vector.broadcast %cst_30 : bf16 to vector<1x36x32xbf16>
    %c0_31 = arith.constant 0 : index
    %c0_32 = arith.constant 0 : index
    %c0_33 = arith.constant 0 : index
    %54 = vector.load %arg6[%c0_31, %c0_32, %c0_33] : memref<1x36x32xbf16, #tpu.memory_space<vmem>>, vector<1x36x32xbf16>
    tpu.vector_store %arg6[%c0_31, %c0_32, %c0_33], %53 {strides = array<i32>} : memref<1x36x32xbf16, #tpu.memory_space<vmem>>, vector<1x36x32xbf16>,
    %55 = vector.extract_strided_slice %52 {offsets = [0, 0], sizes = [4, 32], strides = [1, 1]} : vector<22x128xf32> to vector<4x32xf32>
    %56 = vector.extract_strided_slice %1 {offsets = [7, 0], sizes = [4, 32], strides = [1, 1]} : vector<36x32xf32> to vector<4x32xf32>
    %57 = arith.addf %55, %56 : vector<4x32xf32>
    %58 = arith.truncf %57 : vector<4x32xf32> to vector<4x32xbf16>
    %c0_34 = arith.constant 0 : index
    %c7 = arith.constant 7 : index
    %c0_35 = arith.constant 0 : index
    %59 = vector.load %arg6[%c0_34, %c7, %c0_35] : memref<1x36x32xbf16, #tpu.memory_space<vmem>>, vector<1x4x32xbf16>
    %60 = vector.shape_cast %59 : vector<1x4x32xbf16> to vector<4x32xbf16>
    %61 = vector.shape_cast %58 : vector<4x32xbf16> to vector<1x4x32xbf16>
    tpu.vector_store %arg6[%c0_34, %c7, %c0_35], %61 {strides = array<i32>} : memref<1x36x32xbf16, #tpu.memory_space<vmem>>, vector<1x4x32xbf16>,
    %62 = vector.extract_strided_slice %52 {offsets = [6, 0], sizes = [4, 32], strides = [1, 1]} : vector<22x128xf32> to vector<4x32xf32>
    %63 = vector.extract_strided_slice %1 {offsets = [13, 0], sizes = [4, 32], strides = [1, 1]} : vector<36x32xf32> to vector<4x32xf32>
    %64 = arith.addf %62, %63 : vector<4x32xf32>
    %65 = arith.truncf %64 : vector<4x32xf32> to vector<4x32xbf16>
    %c0_36 = arith.constant 0 : index
    %c13 = arith.constant 13 : index
    %c0_37 = arith.constant 0 : index
    %66 = vector.load %arg6[%c0_36, %c13, %c0_37] : memref<1x36x32xbf16, #tpu.memory_space<vmem>>, vector<1x4x32xbf16>
    %67 = vector.shape_cast %66 : vector<1x4x32xbf16> to vector<4x32xbf16>
    %68 = vector.shape_cast %65 : vector<4x32xbf16> to vector<1x4x32xbf16>
    tpu.vector_store %arg6[%c0_36, %c13, %c0_37], %68 {strides = array<i32>} : memref<1x36x32xbf16, #tpu.memory_space<vmem>>, vector<1x4x32xbf16>,
    %69 = vector.extract_strided_slice %52 {offsets = [12, 0], sizes = [4, 32], strides = [1, 1]} : vector<22x128xf32> to vector<4x32xf32>
    %70 = vector.extract_strided_slice %1 {offsets = [19, 0], sizes = [4, 32], strides = [1, 1]} : vector<36x32xf32> to vector<4x32xf32>
    %71 = arith.addf %69, %70 : vector<4x32xf32>
    %72 = arith.truncf %71 : vector<4x32xf32> to vector<4x32xbf16>
    %c0_38 = arith.constant 0 : index
    %c19 = arith.constant 19 : index
    %c0_39 = arith.constant 0 : index
    %73 = vector.load %arg6[%c0_38, %c19, %c0_39] : memref<1x36x32xbf16, #tpu.memory_space<vmem>>, vector<1x4x32xbf16>
    %74 = vector.shape_cast %73 : vector<1x4x32xbf16> to vector<4x32xbf16>
    %75 = vector.shape_cast %72 : vector<4x32xbf16> to vector<1x4x32xbf16>
    tpu.vector_store %arg6[%c0_38, %c19, %c0_39], %75 {strides = array<i32>} : memref<1x36x32xbf16, #tpu.memory_space<vmem>>, vector<1x4x32xbf16>,
    %76 = vector.extract_strided_slice %52 {offsets = [18, 0], sizes = [4, 32], strides = [1, 1]} : vector<22x128xf32> to vector<4x32xf32>
    %77 = vector.extract_strided_slice %1 {offsets = [25, 0], sizes = [4, 32], strides = [1, 1]} : vector<36x32xf32> to vector<4x32xf32>
    %78 = arith.addf %76, %77 : vector<4x32xf32>
    %79 = arith.truncf %78 : vector<4x32xf32> to vector<4x32xbf16>
    %c0_40 = arith.constant 0 : index
    %c25 = arith.constant 25 : index
    %c0_41 = arith.constant 0 : index
    %80 = vector.load %arg6[%c0_40, %c25, %c0_41] : memref<1x36x32xbf16, #tpu.memory_space<vmem>>, vector<1x4x32xbf16>
    %81 = vector.shape_cast %80 : vector<1x4x32xbf16> to vector<4x32xbf16>
    %82 = vector.shape_cast %79 : vector<4x32xbf16> to vector<1x4x32xbf16>
    tpu.vector_store %arg6[%c0_40, %c25, %c0_41], %82 {strides = array<i32>} : memref<1x36x32xbf16, #tpu.memory_space<vmem>>, vector<1x4x32xbf16>,
    return
  }
  func.func @transform_0(%arg0: i32) -> (i32, i32, i32) {
    %c0_i32 = arith.constant 0 : i32
    %c0_i32_0 = arith.constant 0 : i32
    %c0_i32_1 = arith.constant 0 : i32
    return %arg0, %c0_i32, %c0_i32_0 : i32, i32, i32
  }
  func.func @transform_1(%arg0: i32) -> (i32, i32) {
    %c0_i32 = arith.constant 0 : i32
    %c0_i32_0 = arith.constant 0 : i32
    %c0_i32_1 = arith.constant 0 : i32
    return %c0_i32, %c0_i32_0 : i32, i32
  }
  func.func @transform_2(%arg0: i32) -> (i32, i32) {
    %c0_i32 = arith.constant 0 : i32
    %c0_i32_0 = arith.constant 0 : i32
    %c0_i32_1 = arith.constant 0 : i32
    return %c0_i32, %c0_i32_0 : i32, i32
  }
  func.func @transform_3(%arg0: i32) -> (i32, i32) {
    %c0_i32 = arith.constant 0 : i32
    %c0_i32_0 = arith.constant 0 : i32
    %c0_i32_1 = arith.constant 0 : i32
    return %c0_i32, %c0_i32_0 : i32, i32
  }
  func.func @transform_4(%arg0: i32) -> (i32, i32) {
    %c0_i32 = arith.constant 0 : i32
    %c0_i32_0 = arith.constant 0 : i32
    %c0_i32_1 = arith.constant 0 : i32
    return %c0_i32, %c0_i32_0 : i32, i32
  }
  func.func @transform_5(%arg0: i32) -> (i32, i32, i32) {
    %c0_i32 = arith.constant 0 : i32
    %c0_i32_0 = arith.constant 0 : i32
    %c0_i32_1 = arith.constant 0 : i32
    return %arg0, %c0_i32, %c0_i32_0 : i32, i32, i32
  }
}

module attributes {stable_mosaic.version = 11 : i64} {
  func.func @kernel(%arg0: i32, %arg1: memref<1x36x32xbf16, #tpu.memory_space<vmem>>, %arg2: memref<288x128xbf16, #tpu.memory_space<vmem>>, %arg3: memref<1x128xf32, #tpu.memory_space<vmem>>, %arg4: memref<1x24x128xbf16, #tpu.memory_space<vmem>>) attributes {dimension_semantics = [#tpu.dimension_semantics<parallel>], iteration_bounds = array<i64: 2>, scalar_prefetch = 0 : i64, scratch_operands = 0 : i64, tpu.core_type = #tpu.core_type<tc>, window_params = [{transform_indices = @transform_0, window_bounds = array<i64: 1, 36, 32>}, {pipeline_mode = #tpu.pipeline_mode<synchronous>, transform_indices = @transform_1, window_bounds = array<i64: 288, 128>}, {pipeline_mode = #tpu.pipeline_mode<synchronous>, transform_indices = @transform_2, window_bounds = array<i64: 1, 128>}, {transform_indices = @transform_3, window_bounds = array<i64: 1, 24, 128>}]} {
    %c0 = arith.constant 0 : index
    %c0_0 = arith.constant 0 : index
    %c0_1 = arith.constant 0 : index
    %0 = vector.load %arg1[%c0, %c0_0, %c0_1] : memref<1x36x32xbf16, #tpu.memory_space<vmem>>, vector<1x36x32xbf16>
    %1 = vector.shape_cast %0 : vector<1x36x32xbf16> to vector<36x32xbf16>
    %2 = arith.extf %1 : vector<36x32xbf16> to vector<36x32xf32>
    %cst = arith.constant 0.000000e+00 : f32
    %3 = vector.broadcast %cst : f32 to vector<36x32xf32>
    %4 = arith.maximumf %2, %3 : vector<36x32xf32>
    %5 = arith.truncf %4 : vector<36x32xf32> to vector<36x32xbf16>
    %cst_2 = arith.constant 0.000000e+00 : f32
    %6 = vector.broadcast %cst_2 : f32 to vector<22x128xf32>
    %7 = vector.extract_strided_slice %5 {offsets = [0, 0], sizes = [22, 32], strides = [1, 1]} : vector<36x32xbf16> to vector<22x32xbf16>
    %c0_3 = arith.constant 0 : index
    %c0_4 = arith.constant 0 : index
    %8 = vector.load %arg2[%c0_3, %c0_4] : memref<288x128xbf16, #tpu.memory_space<vmem>>, vector<32x128xbf16>
    %cst_5 = arith.constant dense<0.000000e+00> : vector<22x128xf32>
    %9 = tpu.matmul %7, %8, %cst_5 {dimension_numbers = #tpu.dot_dimension_numbers<[1], [0], [0], [1], [0, 0, 1, 1], [], []>} : vector<22x32xbf16>, vector<32x128xbf16>, vector<22x128xf32> -> vector<22x128xf32>
    %10 = arith.addf %6, %9 : vector<22x128xf32>
    %11 = vector.extract_strided_slice %5 {offsets = [1, 0], sizes = [22, 32], strides = [1, 1]} : vector<36x32xbf16> to vector<22x32xbf16>
    %c32 = arith.constant 32 : index
    %c0_6 = arith.constant 0 : index
    %12 = vector.load %arg2[%c32, %c0_6] : memref<288x128xbf16, #tpu.memory_space<vmem>>, vector<32x128xbf16>
    %cst_7 = arith.constant dense<0.000000e+00> : vector<22x128xf32>
    %13 = tpu.matmul %11, %12, %cst_7 {dimension_numbers = #tpu.dot_dimension_numbers<[1], [0], [0], [1], [0, 0, 1, 1], [], []>} : vector<22x32xbf16>, vector<32x128xbf16>, vector<22x128xf32> -> vector<22x128xf32>
    %14 = arith.addf %10, %13 : vector<22x128xf32>
    %15 = vector.extract_strided_slice %5 {offsets = [2, 0], sizes = [22, 32], strides = [1, 1]} : vector<36x32xbf16> to vector<22x32xbf16>
    %c64 = arith.constant 64 : index
    %c0_8 = arith.constant 0 : index
    %16 = vector.load %arg2[%c64, %c0_8] : memref<288x128xbf16, #tpu.memory_space<vmem>>, vector<32x128xbf16>
    %cst_9 = arith.constant dense<0.000000e+00> : vector<22x128xf32>
    %17 = tpu.matmul %15, %16, %cst_9 {dimension_numbers = #tpu.dot_dimension_numbers<[1], [0], [0], [1], [0, 0, 1, 1], [], []>} : vector<22x32xbf16>, vector<32x128xbf16>, vector<22x128xf32> -> vector<22x128xf32>
    %18 = arith.addf %14, %17 : vector<22x128xf32>
    %19 = vector.extract_strided_slice %5 {offsets = [6, 0], sizes = [22, 32], strides = [1, 1]} : vector<36x32xbf16> to vector<22x32xbf16>
    %c96 = arith.constant 96 : index
    %c0_10 = arith.constant 0 : index
    %20 = vector.load %arg2[%c96, %c0_10] : memref<288x128xbf16, #tpu.memory_space<vmem>>, vector<32x128xbf16>
    %cst_11 = arith.constant dense<0.000000e+00> : vector<22x128xf32>
    %21 = tpu.matmul %19, %20, %cst_11 {dimension_numbers = #tpu.dot_dimension_numbers<[1], [0], [0], [1], [0, 0, 1, 1], [], []>} : vector<22x32xbf16>, vector<32x128xbf16>, vector<22x128xf32> -> vector<22x128xf32>
    %22 = arith.addf %18, %21 : vector<22x128xf32>
    %23 = vector.extract_strided_slice %5 {offsets = [7, 0], sizes = [22, 32], strides = [1, 1]} : vector<36x32xbf16> to vector<22x32xbf16>
    %c128 = arith.constant 128 : index
    %c0_12 = arith.constant 0 : index
    %24 = vector.load %arg2[%c128, %c0_12] : memref<288x128xbf16, #tpu.memory_space<vmem>>, vector<32x128xbf16>
    %cst_13 = arith.constant dense<0.000000e+00> : vector<22x128xf32>
    %25 = tpu.matmul %23, %24, %cst_13 {dimension_numbers = #tpu.dot_dimension_numbers<[1], [0], [0], [1], [0, 0, 1, 1], [], []>} : vector<22x32xbf16>, vector<32x128xbf16>, vector<22x128xf32> -> vector<22x128xf32>
    %26 = arith.addf %22, %25 : vector<22x128xf32>
    %27 = vector.extract_strided_slice %5 {offsets = [8, 0], sizes = [22, 32], strides = [1, 1]} : vector<36x32xbf16> to vector<22x32xbf16>
    %c160 = arith.constant 160 : index
    %c0_14 = arith.constant 0 : index
    %28 = vector.load %arg2[%c160, %c0_14] : memref<288x128xbf16, #tpu.memory_space<vmem>>, vector<32x128xbf16>
    %cst_15 = arith.constant dense<0.000000e+00> : vector<22x128xf32>
    %29 = tpu.matmul %27, %28, %cst_15 {dimension_numbers = #tpu.dot_dimension_numbers<[1], [0], [0], [1], [0, 0, 1, 1], [], []>} : vector<22x32xbf16>, vector<32x128xbf16>, vector<22x128xf32> -> vector<22x128xf32>
    %30 = arith.addf %26, %29 : vector<22x128xf32>
    %31 = vector.extract_strided_slice %5 {offsets = [12, 0], sizes = [22, 32], strides = [1, 1]} : vector<36x32xbf16> to vector<22x32xbf16>
    %c192 = arith.constant 192 : index
    %c0_16 = arith.constant 0 : index
    %32 = vector.load %arg2[%c192, %c0_16] : memref<288x128xbf16, #tpu.memory_space<vmem>>, vector<32x128xbf16>
    %cst_17 = arith.constant dense<0.000000e+00> : vector<22x128xf32>
    %33 = tpu.matmul %31, %32, %cst_17 {dimension_numbers = #tpu.dot_dimension_numbers<[1], [0], [0], [1], [0, 0, 1, 1], [], []>} : vector<22x32xbf16>, vector<32x128xbf16>, vector<22x128xf32> -> vector<22x128xf32>
    %34 = arith.addf %30, %33 : vector<22x128xf32>
    %35 = vector.extract_strided_slice %5 {offsets = [13, 0], sizes = [22, 32], strides = [1, 1]} : vector<36x32xbf16> to vector<22x32xbf16>
    %c224 = arith.constant 224 : index
    %c0_18 = arith.constant 0 : index
    %36 = vector.load %arg2[%c224, %c0_18] : memref<288x128xbf16, #tpu.memory_space<vmem>>, vector<32x128xbf16>
    %cst_19 = arith.constant dense<0.000000e+00> : vector<22x128xf32>
    %37 = tpu.matmul %35, %36, %cst_19 {dimension_numbers = #tpu.dot_dimension_numbers<[1], [0], [0], [1], [0, 0, 1, 1], [], []>} : vector<22x32xbf16>, vector<32x128xbf16>, vector<22x128xf32> -> vector<22x128xf32>
    %38 = arith.addf %34, %37 : vector<22x128xf32>
    %39 = vector.extract_strided_slice %5 {offsets = [14, 0], sizes = [22, 32], strides = [1, 1]} : vector<36x32xbf16> to vector<22x32xbf16>
    %c256 = arith.constant 256 : index
    %c0_20 = arith.constant 0 : index
    %40 = vector.load %arg2[%c256, %c0_20] : memref<288x128xbf16, #tpu.memory_space<vmem>>, vector<32x128xbf16>
    %cst_21 = arith.constant dense<0.000000e+00> : vector<22x128xf32>
    %41 = tpu.matmul %39, %40, %cst_21 {dimension_numbers = #tpu.dot_dimension_numbers<[1], [0], [0], [1], [0, 0, 1, 1], [], []>} : vector<22x32xbf16>, vector<32x128xbf16>, vector<22x128xf32> -> vector<22x128xf32>
    %42 = arith.addf %38, %41 : vector<22x128xf32>
    %c0_22 = arith.constant 0 : index
    %c0_23 = arith.constant 0 : index
    %43 = vector.load %arg3[%c0_22, %c0_23] : memref<1x128xf32, #tpu.memory_space<vmem>>, vector<1x128xf32>
    %44 = vector.broadcast %43 : vector<1x128xf32> to vector<22x128xf32>
    %45 = arith.addf %42, %44 : vector<22x128xf32>
    %cst_24 = arith.constant 0.000000e+00 : f32
    %46 = vector.broadcast %cst_24 : f32 to vector<22x128xf32>
    %47 = arith.maximumf %45, %46 : vector<22x128xf32>
    %48 = arith.truncf %47 : vector<22x128xf32> to vector<22x128xbf16>
    %c0_25 = arith.constant 0 : index
    %c0_26 = arith.constant 0 : index
    %c0_27 = arith.constant 0 : index
    %49 = vector.load %arg4[%c0_25, %c0_26, %c0_27] : memref<1x24x128xbf16, #tpu.memory_space<vmem>>, vector<1x22x128xbf16>
    %50 = vector.shape_cast %49 : vector<1x22x128xbf16> to vector<22x128xbf16>
    %51 = vector.shape_cast %48 : vector<22x128xbf16> to vector<1x22x128xbf16>
    tpu.vector_store %arg4[%c0_25, %c0_26, %c0_27], %51 {strides = array<i32>} : memref<1x24x128xbf16, #tpu.memory_space<vmem>>, vector<1x22x128xbf16>,
    %cst_28 = arith.constant 0.000000e+00 : bf16
    %52 = vector.broadcast %cst_28 : bf16 to vector<2x128xbf16>
    %c0_29 = arith.constant 0 : index
    %c22 = arith.constant 22 : index
    %c0_30 = arith.constant 0 : index
    %53 = vector.load %arg4[%c0_29, %c22, %c0_30] : memref<1x24x128xbf16, #tpu.memory_space<vmem>>, vector<1x2x128xbf16>
    %54 = vector.shape_cast %53 : vector<1x2x128xbf16> to vector<2x128xbf16>
    %55 = vector.shape_cast %52 : vector<2x128xbf16> to vector<1x2x128xbf16>
    tpu.vector_store %arg4[%c0_29, %c22, %c0_30], %55 {strides = array<i32>} : memref<1x24x128xbf16, #tpu.memory_space<vmem>>, vector<1x2x128xbf16>,
    return
  }
  func.func @transform_0(%arg0: i32) -> (i32, i32, i32) {
    %c0_i32 = arith.constant 0 : i32
    %c0_i32_0 = arith.constant 0 : i32
    %c0_i32_1 = arith.constant 0 : i32
    return %arg0, %c0_i32, %c0_i32_0 : i32, i32, i32
  }
  func.func @transform_1(%arg0: i32) -> (i32, i32) {
    %c0_i32 = arith.constant 0 : i32
    %c0_i32_0 = arith.constant 0 : i32
    %c0_i32_1 = arith.constant 0 : i32
    return %c0_i32, %c0_i32_0 : i32, i32
  }
  func.func @transform_2(%arg0: i32) -> (i32, i32) {
    %c0_i32 = arith.constant 0 : i32
    %c0_i32_0 = arith.constant 0 : i32
    %c0_i32_1 = arith.constant 0 : i32
    return %c0_i32, %c0_i32_0 : i32, i32
  }
  func.func @transform_3(%arg0: i32) -> (i32, i32, i32) {
    %c0_i32 = arith.constant 0 : i32
    %c0_i32_0 = arith.constant 0 : i32
    %c0_i32_1 = arith.constant 0 : i32
    return %arg0, %c0_i32, %c0_i32_0 : i32, i32, i32
  }
}

module attributes {stable_mosaic.version = 11 : i64} {
  func.func @kernel(%arg0: i32, %arg1: memref<1x100x32xbf16, #tpu.memory_space<vmem>>, %arg2: memref<288x128xbf16, #tpu.memory_space<vmem>>, %arg3: memref<1x128xf32, #tpu.memory_space<vmem>>, %arg4: memref<1x80x128xf32, #tpu.memory_space<vmem>>) attributes {dimension_semantics = [#tpu.dimension_semantics<parallel>], iteration_bounds = array<i64: 2>, scalar_prefetch = 0 : i64, scratch_operands = 0 : i64, tpu.core_type = #tpu.core_type<tc>, window_params = [{transform_indices = @transform_0, window_bounds = array<i64: 1, 100, 32>}, {pipeline_mode = #tpu.pipeline_mode<synchronous>, transform_indices = @transform_1, window_bounds = array<i64: 288, 128>}, {pipeline_mode = #tpu.pipeline_mode<synchronous>, transform_indices = @transform_2, window_bounds = array<i64: 1, 128>}, {transform_indices = @transform_3, window_bounds = array<i64: 1, 80, 128>}]} {
    %c0 = arith.constant 0 : index
    %c0_0 = arith.constant 0 : index
    %c0_1 = arith.constant 0 : index
    %0 = vector.load %arg1[%c0, %c0_0, %c0_1] : memref<1x100x32xbf16, #tpu.memory_space<vmem>>, vector<1x100x32xbf16>
    %1 = vector.shape_cast %0 : vector<1x100x32xbf16> to vector<100x32xbf16>
    %2 = arith.extf %1 : vector<100x32xbf16> to vector<100x32xf32>
    %3 = arith.truncf %2 : vector<100x32xf32> to vector<100x32xbf16>
    %cst = arith.constant 0.000000e+00 : f32
    %4 = vector.broadcast %cst : f32 to vector<78x128xf32>
    %5 = vector.extract_strided_slice %3 {offsets = [0, 0], sizes = [78, 32], strides = [1, 1]} : vector<100x32xbf16> to vector<78x32xbf16>
    %c0_2 = arith.constant 0 : index
    %c0_3 = arith.constant 0 : index
    %6 = vector.load %arg2[%c0_2, %c0_3] : memref<288x128xbf16, #tpu.memory_space<vmem>>, vector<32x128xbf16>
    %cst_4 = arith.constant dense<0.000000e+00> : vector<78x128xf32>
    %7 = tpu.matmul %5, %6, %cst_4 {dimension_numbers = #tpu.dot_dimension_numbers<[1], [0], [0], [1], [0, 0, 1, 1], [], []>} : vector<78x32xbf16>, vector<32x128xbf16>, vector<78x128xf32> -> vector<78x128xf32>
    %8 = arith.addf %4, %7 : vector<78x128xf32>
    %9 = vector.extract_strided_slice %3 {offsets = [1, 0], sizes = [78, 32], strides = [1, 1]} : vector<100x32xbf16> to vector<78x32xbf16>
    %c32 = arith.constant 32 : index
    %c0_5 = arith.constant 0 : index
    %10 = vector.load %arg2[%c32, %c0_5] : memref<288x128xbf16, #tpu.memory_space<vmem>>, vector<32x128xbf16>
    %cst_6 = arith.constant dense<0.000000e+00> : vector<78x128xf32>
    %11 = tpu.matmul %9, %10, %cst_6 {dimension_numbers = #tpu.dot_dimension_numbers<[1], [0], [0], [1], [0, 0, 1, 1], [], []>} : vector<78x32xbf16>, vector<32x128xbf16>, vector<78x128xf32> -> vector<78x128xf32>
    %12 = arith.addf %8, %11 : vector<78x128xf32>
    %13 = vector.extract_strided_slice %3 {offsets = [2, 0], sizes = [78, 32], strides = [1, 1]} : vector<100x32xbf16> to vector<78x32xbf16>
    %c64 = arith.constant 64 : index
    %c0_7 = arith.constant 0 : index
    %14 = vector.load %arg2[%c64, %c0_7] : memref<288x128xbf16, #tpu.memory_space<vmem>>, vector<32x128xbf16>
    %cst_8 = arith.constant dense<0.000000e+00> : vector<78x128xf32>
    %15 = tpu.matmul %13, %14, %cst_8 {dimension_numbers = #tpu.dot_dimension_numbers<[1], [0], [0], [1], [0, 0, 1, 1], [], []>} : vector<78x32xbf16>, vector<32x128xbf16>, vector<78x128xf32> -> vector<78x128xf32>
    %16 = arith.addf %12, %15 : vector<78x128xf32>
    %17 = vector.extract_strided_slice %3 {offsets = [10, 0], sizes = [78, 32], strides = [1, 1]} : vector<100x32xbf16> to vector<78x32xbf16>
    %c96 = arith.constant 96 : index
    %c0_9 = arith.constant 0 : index
    %18 = vector.load %arg2[%c96, %c0_9] : memref<288x128xbf16, #tpu.memory_space<vmem>>, vector<32x128xbf16>
    %cst_10 = arith.constant dense<0.000000e+00> : vector<78x128xf32>
    %19 = tpu.matmul %17, %18, %cst_10 {dimension_numbers = #tpu.dot_dimension_numbers<[1], [0], [0], [1], [0, 0, 1, 1], [], []>} : vector<78x32xbf16>, vector<32x128xbf16>, vector<78x128xf32> -> vector<78x128xf32>
    %20 = arith.addf %16, %19 : vector<78x128xf32>
    %21 = vector.extract_strided_slice %3 {offsets = [11, 0], sizes = [78, 32], strides = [1, 1]} : vector<100x32xbf16> to vector<78x32xbf16>
    %c128 = arith.constant 128 : index
    %c0_11 = arith.constant 0 : index
    %22 = vector.load %arg2[%c128, %c0_11] : memref<288x128xbf16, #tpu.memory_space<vmem>>, vector<32x128xbf16>
    %cst_12 = arith.constant dense<0.000000e+00> : vector<78x128xf32>
    %23 = tpu.matmul %21, %22, %cst_12 {dimension_numbers = #tpu.dot_dimension_numbers<[1], [0], [0], [1], [0, 0, 1, 1], [], []>} : vector<78x32xbf16>, vector<32x128xbf16>, vector<78x128xf32> -> vector<78x128xf32>
    %24 = arith.addf %20, %23 : vector<78x128xf32>
    %25 = vector.extract_strided_slice %3 {offsets = [12, 0], sizes = [78, 32], strides = [1, 1]} : vector<100x32xbf16> to vector<78x32xbf16>
    %c160 = arith.constant 160 : index
    %c0_13 = arith.constant 0 : index
    %26 = vector.load %arg2[%c160, %c0_13] : memref<288x128xbf16, #tpu.memory_space<vmem>>, vector<32x128xbf16>
    %cst_14 = arith.constant dense<0.000000e+00> : vector<78x128xf32>
    %27 = tpu.matmul %25, %26, %cst_14 {dimension_numbers = #tpu.dot_dimension_numbers<[1], [0], [0], [1], [0, 0, 1, 1], [], []>} : vector<78x32xbf16>, vector<32x128xbf16>, vector<78x128xf32> -> vector<78x128xf32>
    %28 = arith.addf %24, %27 : vector<78x128xf32>
    %29 = vector.extract_strided_slice %3 {offsets = [20, 0], sizes = [78, 32], strides = [1, 1]} : vector<100x32xbf16> to vector<78x32xbf16>
    %c192 = arith.constant 192 : index
    %c0_15 = arith.constant 0 : index
    %30 = vector.load %arg2[%c192, %c0_15] : memref<288x128xbf16, #tpu.memory_space<vmem>>, vector<32x128xbf16>
    %cst_16 = arith.constant dense<0.000000e+00> : vector<78x128xf32>
    %31 = tpu.matmul %29, %30, %cst_16 {dimension_numbers = #tpu.dot_dimension_numbers<[1], [0], [0], [1], [0, 0, 1, 1], [], []>} : vector<78x32xbf16>, vector<32x128xbf16>, vector<78x128xf32> -> vector<78x128xf32>
    %32 = arith.addf %28, %31 : vector<78x128xf32>
    %33 = vector.extract_strided_slice %3 {offsets = [21, 0], sizes = [78, 32], strides = [1, 1]} : vector<100x32xbf16> to vector<78x32xbf16>
    %c224 = arith.constant 224 : index
    %c0_17 = arith.constant 0 : index
    %34 = vector.load %arg2[%c224, %c0_17] : memref<288x128xbf16, #tpu.memory_space<vmem>>, vector<32x128xbf16>
    %cst_18 = arith.constant dense<0.000000e+00> : vector<78x128xf32>
    %35 = tpu.matmul %33, %34, %cst_18 {dimension_numbers = #tpu.dot_dimension_numbers<[1], [0], [0], [1], [0, 0, 1, 1], [], []>} : vector<78x32xbf16>, vector<32x128xbf16>, vector<78x128xf32> -> vector<78x128xf32>
    %36 = arith.addf %32, %35 : vector<78x128xf32>
    %37 = vector.extract_strided_slice %3 {offsets = [22, 0], sizes = [78, 32], strides = [1, 1]} : vector<100x32xbf16> to vector<78x32xbf16>
    %c256 = arith.constant 256 : index
    %c0_19 = arith.constant 0 : index
    %38 = vector.load %arg2[%c256, %c0_19] : memref<288x128xbf16, #tpu.memory_space<vmem>>, vector<32x128xbf16>
    %cst_20 = arith.constant dense<0.000000e+00> : vector<78x128xf32>
    %39 = tpu.matmul %37, %38, %cst_20 {dimension_numbers = #tpu.dot_dimension_numbers<[1], [0], [0], [1], [0, 0, 1, 1], [], []>} : vector<78x32xbf16>, vector<32x128xbf16>, vector<78x128xf32> -> vector<78x128xf32>
    %40 = arith.addf %36, %39 : vector<78x128xf32>
    %c0_21 = arith.constant 0 : index
    %c0_22 = arith.constant 0 : index
    %41 = vector.load %arg3[%c0_21, %c0_22] : memref<1x128xf32, #tpu.memory_space<vmem>>, vector<1x128xf32>
    %42 = vector.broadcast %41 : vector<1x128xf32> to vector<78x128xf32>
    %43 = arith.addf %40, %42 : vector<78x128xf32>
    %44 = math.tanh %43 : vector<78x128xf32>
    %c0_23 = arith.constant 0 : index
    %c0_24 = arith.constant 0 : index
    %c0_25 = arith.constant 0 : index
    %45 = vector.load %arg4[%c0_23, %c0_24, %c0_25] : memref<1x80x128xf32, #tpu.memory_space<vmem>>, vector<1x78x128xf32>
    %46 = vector.shape_cast %45 : vector<1x78x128xf32> to vector<78x128xf32>
    %47 = vector.shape_cast %44 : vector<78x128xf32> to vector<1x78x128xf32>
    tpu.vector_store %arg4[%c0_23, %c0_24, %c0_25], %47 {strides = array<i32>} : memref<1x80x128xf32, #tpu.memory_space<vmem>>, vector<1x78x128xf32>,
    %cst_26 = arith.constant 0.000000e+00 : f32
    %48 = vector.broadcast %cst_26 : f32 to vector<2x128xf32>
    %c0_27 = arith.constant 0 : index
    %c78 = arith.constant 78 : index
    %c0_28 = arith.constant 0 : index
    %49 = vector.load %arg4[%c0_27, %c78, %c0_28] : memref<1x80x128xf32, #tpu.memory_space<vmem>>, vector<1x2x128xf32>
    %50 = vector.shape_cast %49 : vector<1x2x128xf32> to vector<2x128xf32>
    %51 = vector.shape_cast %48 : vector<2x128xf32> to vector<1x2x128xf32>
    tpu.vector_store %arg4[%c0_27, %c78, %c0_28], %51 {strides = array<i32>} : memref<1x80x128xf32, #tpu.memory_space<vmem>>, vector<1x2x128xf32>,
    return
  }
  func.func @transform_0(%arg0: i32) -> (i32, i32, i32) {
    %c0_i32 = arith.constant 0 : i32
    %c0_i32_0 = arith.constant 0 : i32
    %c0_i32_1 = arith.constant 0 : i32
    return %arg0, %c0_i32, %c0_i32_0 : i32, i32, i32
  }
  func.func @transform_1(%arg0: i32) -> (i32, i32) {
    %c0_i32 = arith.constant 0 : i32
    %c0_i32_0 = arith.constant 0 : i32
    %c0_i32_1 = arith.constant 0 : i32
    return %c0_i32, %c0_i32_0 : i32, i32
  }
  func.func @transform_2(%arg0: i32) -> (i32, i32) {
    %c0_i32 = arith.constant 0 : i32
    %c0_i32_0 = arith.constant 0 : i32
    %c0_i32_1 = arith.constant 0 : i32
    return %c0_i32, %c0_i32_0 : i32, i32
  }
  func.func @transform_3(%arg0: i32) -> (i32, i32, i32) {
    %c0_i32 = arith.constant 0 : i32
    %c0_i32_0 = arith.constant 0 : i32
    %c0_i32_1 = arith.constant 0 : i32
    return %arg0, %c0_i32, %c0_i32_0 : i32, i32, i32
  }
}

</mosaic_0001>

<llo_original>
// kernel: vqvae_forward.9
$region0: #{vqvae_forward.9}
  #allocation0 [shape = 'u32[]', space=smem, size = 0x4, offset = 0x4, fixed_abs, tag = 'smem constant byte address 0x4 - core index']
  #allocation1 [shape = 'u32[144,128]{1,0:T(1,128)}', space=vmem, size = 0x12000, scoped, tag = 'internal scratch']
  %s0 = inlined_call_operand.vmem [shape: bf16[128,128], index: 0, kind: input, shape index: {}]
  %s1 = inlined_call_operand.vmem [shape: bf16[128,128], index: 1, kind: input, shape index: {}]
  %s2 = inlined_call_operand.vmem [shape: f32[1,128], index: 2, kind: input, shape index: {}]
  %s3 = inlined_call_operand.vmem [shape: bf16[128,128], index: 3, kind: output, shape index: {}]
  %s4 = sld [smem:[#allocation0]]
  $region45: #{vqvae_forward.9} parent=0
    _
  %s6 = ssub.s32 1, %s4
  %s7 = scalar_select 0, %s6, %s4
  loop: start=0, step=1, limit=6
  $region2: #{vqvae_forward.9} parent=0 // loop_pre_header
    _
  $region3: #{vqvae_forward.9} parent=0 // loop_header
    %s9 = sphi 0, %s13
    %p10 = scmp.ge.s32.totalorder %s9, 6
    %s19 = sphi 0, %s21
    %s22 = sphi 0, %s19
    %s23 = sphi 0, %s22
    %s39 = sphi 0, %s23
    %s43 = sphi 0, %s43
    %s45 = sphi 0, %s43
    %s46 = sphi 0, %s45
    %s60 = sphi 0, %s46
    %s64 = sphi 0, %s64
    %s66 = sphi 0, %s64
    %s67 = sphi 0, %s66
    %s81 = sphi 0, %s67
    %s87 = sphi 0, %s89
    %s90 = sphi 0, %s87
    %s91 = sphi 0, %s90
    %s107 = sphi 0, %s91
  $region4: #{vqvae_forward.9} parent=0 // loop_header_branch
    %12 = sbr.rel (%p10) target = $region8
  $region5: #{vqvae_forward.9} parent=0 // loop_body
    %s14 = ssub.s32 %s9, 1
    %s15 = ssub.s32 %s9, 2
    %s16 = sadd.s32 %s9, 1
    %s17 = ssub.s32 %s9, %s16
    %p18 = scmp.eq.s32.totalorder %s17, 0
    %s20 = sadd.s32 %s19, 1
    %s21 = scalar_select %p18, %s19, %s20
    %p24 = pneg %p18
    %p25 = scmp.eq.s32.totalorder %s9, 3
    %p26 = por %p24, %p25
    %p27 = scmp.ne.s32.totalorder %s19, %s22
    %p28 = scmp.eq.s32.totalorder %s9, 0
    %p29 = por %p27, %p28
    %p30 = scmp.ne.s32.totalorder %s19, %s22
    %p31 = scmp.eq.s32.totalorder %s14, 3
    %p32 = por %p30, %p31
    %p33 = scmp.ne.s32.totalorder %s22, %s23
    %p34 = scmp.eq.s32.totalorder %s14, 0
    %p35 = por %p33, %p34
    %p36 = scmp.ne.s32.totalorder %s22, %s23
    %p37 = scmp.eq.s32.totalorder %s15, 3
    %p38 = por %p36, %p37
    %p40 = scmp.ne.s32.totalorder %s23, %s39
    %p41 = scmp.eq.s32.totalorder %s15, 0
    %p42 = por %p40, %p41
    %s44 = sadd.s32 %s43, 1
    %p47 = scmp.eq.s32.totalorder %s9, 3
    %p48 = scmp.ne.s32.totalorder %s43, %s45
    %p49 = scmp.eq.s32.totalorder %s9, 0
    %p50 = por %p48, %p49
    %p51 = scmp.ne.s32.totalorder %s43, %s45
    %p52 = scmp.eq.s32.totalorder %s14, 3
    %p53 = por %p51, %p52
    %p54 = scmp.ne.s32.totalorder %s45, %s46
    %p55 = scmp.eq.s32.totalorder %s14, 0
    %p56 = por %p54, %p55
    %p57 = scmp.ne.s32.totalorder %s45, %s46
    %p58 = scmp.eq.s32.totalorder %s15, 3
    %p59 = por %p57, %p58
    %p61 = scmp.ne.s32.totalorder %s46, %s60
    %p62 = scmp.eq.s32.totalorder %s15, 0
    %p63 = por %p61, %p62
    %s65 = sadd.s32 %s64, 1
    %p68 = scmp.eq.s32.totalorder %s9, 3
    %p69 = scmp.ne.s32.totalorder %s64, %s66
    %p70 = scmp.eq.s32.totalorder %s9, 0
    %p71 = por %p69, %p70
    %p72 = scmp.ne.s32.totalorder %s64, %s66
    %p73 = scmp.eq.s32.totalorder %s14, 3
    %p74 = por %p72, %p73
    %p75 = scmp.ne.s32.totalorder %s66, %s67
    %p76 = scmp.eq.s32.totalorder %s14, 0
    %p77 = por %p75, %p76
    %p78 = scmp.ne.s32.totalorder %s66, %s67
    %p79 = scmp.eq.s32.totalorder %s15, 3
    %p80 = por %p78, %p79
    %p82 = scmp.ne.s32.totalorder %s67, %s81
    %p83 = scmp.eq.s32.totalorder %s15, 0
    %p84 = por %p82, %p83
    %s85 = ssub.s32 %s9, %s16
    %p86 = scmp.eq.s32.totalorder %s85, 0
    %s88 = sadd.s32 %s87, 1
    %s89 = scalar_select %p86, %s87, %s88
    %p92 = pneg %p86
    %p93 = scmp.eq.s32.totalorder %s9, 3
    %p94 = por %p92, %p93
    %p95 = scmp.ne.s32.totalorder %s87, %s90
    %p96 = scmp.eq.s32.totalorder %s9, 0
    %p97 = por %p95, %p96
    %p98 = scmp.ne.s32.totalorder %s87, %s90
    %p99 = scmp.eq.s32.totalorder %s14, 3
    %p100 = por %p98, %p99
    %p101 = scmp.ne.s32.totalorder %s90, %s91
    %p102 = scmp.eq.s32.totalorder %s14, 0
    %p103 = por %p101, %p102
    %p104 = scmp.ne.s32.totalorder %s90, %s91
    %p105 = scmp.eq.s32.totalorder %s15, 3
    %p106 = por %p104, %p105
    %p108 = scmp.ne.s32.totalorder %s91, %s107
    %p109 = scmp.eq.s32.totalorder %s15, 0
    %p110 = por %p108, %p109
    %p111 = scmp.le.s32.totalorder 1, %s9
    %p112 = scmp.lt.s32.totalorder %s9, 5
    %p113 = pnand %p111, %p112
    %p114 = pneg %p113
    // Predicated region
    $region9: #{vqvae_forward.9} parent=5 // pred_check
      _
    $region10: #{vqvae_forward.9} parent=5 // pred_check_branch
      %116 = sbr.rel (%p113) target = $region12
    $region11: #{vqvae_forward.9} parent=5 // pred_region
      %s117 = ssub.s32 %s9, 1
      // Predicated region
      $region13: #{vqvae_forward.9} parent=11 // pred_check
        %p118 = pneg %p56
      $region14: #{vqvae_forward.9} parent=11 // pred_check_branch
        %120 = sbr.rel (%p118) target = $region16
      $region15: #{vqvae_forward.9} parent=11 // pred_region
        _
      $region16: #{vqvae_forward.9} parent=11 // pred_fallthru
        _
      // Predicated region
      $region17: #{vqvae_forward.9} parent=11 // pred_check
        %p121 = pneg %p77
      $region18: #{vqvae_forward.9} parent=11 // pred_check_branch
        %123 = sbr.rel (%p121) target = $region20
      $region19: #{vqvae_forward.9} parent=11 // pred_region
        _
      $region20: #{vqvae_forward.9} parent=11 // pred_fallthru
        _
    $region12: #{vqvae_forward.9} parent=5 // pred_fallthru
      _
    %p124 = scmp.lt.s32.totalorder %s9, 4
    // Predicated region
    $region21: #{vqvae_forward.9} parent=5 // pred_check
      %p125 = pneg %p124
    $region22: #{vqvae_forward.9} parent=5 // pred_check_branch
      %127 = sbr.rel (%p125) target = $region24
    $region23: #{vqvae_forward.9} parent=5 // pred_region
      // Predicated region
      $region25: #{vqvae_forward.9} parent=23 // pred_check
        %p128 = pneg %p29
      $region26: #{vqvae_forward.9} parent=23 // pred_check_branch
        %130 = sbr.rel (%p128) target = $region28
      $region27: #{vqvae_forward.9} parent=23 // pred_region
        %s131 = smul.u32 4, %s9
        %p132 = scmp.lt.s32.totalorder %s131, 15
        %s133 = scalar_select %p132, %s131, 15
        %s134 = smul.addr %s133, 4
        %s135 = scalar_lea.vmem %s0, %s134
        %s136 = smul.u32 4, %s9
      $region28: #{vqvae_forward.9} parent=23 // pred_fallthru
        _
    $region24: #{vqvae_forward.9} parent=5 // pred_fallthru
      _
    %p137 = scmp.le.s32.totalorder 1, %s9
    %p138 = scmp.lt.s32.totalorder %s9, 5
    %p139 = pnand %p137, %p138
    %p140 = pneg %p139
    // Predicated region
    $region29: #{vqvae_forward.9} parent=5 // pred_check
      _
    $region30: #{vqvae_forward.9} parent=5 // pred_check_branch
      %142 = sbr.rel (%p139) target = $region32
    $region31: #{vqvae_forward.9} parent=5 // pred_region
      %s143 = ssub.s32 %s9, 1
      %s144 = smul.u32 4, %s14
      %p145 = scmp.lt.s32.totalorder %s144, 15
      %s146 = scalar_select %p145, %s144, 15
      %s147 = smul.addr %s146, 4
      %s148 = scalar_lea.vmem %s0, %s147
      %p149 = pneg %p35
      %p150 = pneg %p32
      %p151 = pneg %p56
      %p152 = pneg %p53
      %p153 = pneg %p77
      %p154 = pneg %p74
      %p155 = pneg %p103
      %p156 = pneg %p100
      %s157 = smul.u32 4, %s14
      %p158 = scmp.lt.s32.totalorder %s157, 15
      %s159 = scalar_select %p158, %s157, 15
      %s160 = smul.addr %s159, 4
      %s161 = scalar_lea.vmem %s3, %s160
      %s162 = smul.u32 4, %s14
      %p163 = scmp.lt.s32.totalorder %s162, 15
      %s164 = scalar_select %p163, %s162, 15
      %s165 = smul.addr %s164, 4
      %s166 = scalar_lea.vmem %s0, %s165
      %s167 = smul.u32 4, %s14
      %s168 = smul.u32 4, %s14
      %p169 = scmp.lt.s32.totalorder %s168, 15
      %s170 = scalar_select %p169, %s168, 15
      %s171 = smul.addr %s170, 4
      %s172 = scalar_lea.vmem %s3, %s171
      %s173 = smul.u32 4, %s14
      %v175 = vld [vmem:[%s166] sm:$0xf]
      %v176 = vld [vmem:[%s166 + $0x4] sm:$0xf]
      %v177 = vld [vmem:[%s166 + $0x8] sm:$0xf]
      %v178 = vld [vmem:[%s166 + $0xc] sm:$0xf]
      %v179 = vld [vmem:[%s1] sm:$0xf]
      %v180 = vld [vmem:[%s1 + $0x4] sm:$0xf]
      %v181 = vld [vmem:[%s1 + $0x8] sm:$0xf]
      %v182 = vld [vmem:[%s1 + $0xc] sm:$0xf]
      %v183 = vld [vmem:[%s1 + $0x10] sm:$0xf]
      %v184 = vld [vmem:[%s1 + $0x14] sm:$0xf]
      %v185 = vld [vmem:[%s1 + $0x18] sm:$0xf]
      %v186 = vld [vmem:[%s1 + $0x1c] sm:$0xf]
      %v187 = vld [vmem:[%s1 + $0x20] sm:$0xf]
      %v188 = vld [vmem:[%s1 + $0x24] sm:$0xf]
      %v189 = vld [vmem:[%s1 + $0x28] sm:$0xf]
      %v190 = vld [vmem:[%s1 + $0x2c] sm:$0xf]
      %v191 = vld [vmem:[%s1 + $0x30] sm:$0xf]
      %v192 = vld [vmem:[%s1 + $0x34] sm:$0xf]
      %v193 = vld [vmem:[%s1 + $0x38] sm:$0xf]
      %v194 = vld [vmem:[%s1 + $0x3c] sm:$0xf]
      %v195 = vld [vmem:[%s2] sm:$0x1]
      %v197 = vlaneseq
      %v198 = vshrl.u32 %v197, 7
      %v199 = vsub.s32 0, %v198
      %v200 = vrot.slane %v195, %v199
      %v206 = vunpack.c.l.b16 %v175
      %v207 = vunpack.c.l.b16 %v176
      %v208 = vunpack.c.l.b16 %v177
      %v209 = vunpack.c.l.b16 %v178
      %v210 = vpack.c.b16 %v207, %v206
      %v211 = vpack.c.b16 %v209, %v208
      %v230 = vunpack.c.l.b16 %v179
      %v231 = vunpack.c.l.b16 %v180
      %v232 = vunpack.c.l.b16 %v181
      %v233 = vunpack.c.l.b16 %v182
      %v234 = vunpack.c.l.b16 %v183
      %v235 = vunpack.c.l.b16 %v184
      %v236 = vunpack.c.l.b16 %v185
      %v237 = vunpack.c.l.b16 %v186
      %v238 = vunpack.c.l.b16 %v187
      %v239 = vunpack.c.l.b16 %v188
      %v240 = vunpack.c.l.b16 %v189
      %v241 = vunpack.c.l.b16 %v190
      %v242 = vunpack.c.l.b16 %v191
      %v243 = vunpack.c.l.b16 %v192
      %v244 = vunpack.c.l.b16 %v193
      %v245 = vunpack.c.l.b16 %v194
      %v246 = vpack.c.b16 %v231, %v230
      %v247 = vpack.c.b16 %v233, %v232
      %v248 = vpack.c.b16 %v235, %v234
      %v249 = vpack.c.b16 %v237, %v236
      %v250 = vpack.c.b16 %v239, %v238
      %v251 = vpack.c.b16 %v241, %v240
      %v252 = vpack.c.b16 %v243, %v242
      %v253 = vpack.c.b16 %v245, %v244
      %262 = vmatprep.subr.bf16.mxu0 0
      %263 = vmatpush1.bf16.msra.mxu0 %v253
      %264 = vmatprep.subr.bf16.mxu0 0
      %265 = vmatpush1.bf16.msra.mxu0 %v252
      %266 = vmatprep.subr.bf16.mxu0 0
      %267 = vmatpush1.bf16.msra.mxu0 %v251
      %268 = vmatprep.subr.bf16.mxu0 0
      %269 = vmatpush1.bf16.msra.mxu0 %v250
      %270 = vmatprep.subr.bf16.mxu0 0
      %271 = vmatpush1.bf16.msra.mxu0 %v249
      %272 = vmatprep.subr.bf16.mxu0 0
      %273 = vmatpush1.bf16.msra.mxu0 %v248
      %274 = vmatprep.subr.bf16.mxu0 0
      %275 = vmatpush1.bf16.msra.mxu0 %v247
      %276 = vmatprep.subr.bf16.mxu0 0
      %277 = vmatpush1.bf16.msra.mxu0 %v246
      %278 = vmatprep.subr.bf16.mxu0 0
      %279 = vmatpush2.bf16.msra.mxu0 0
      %280 = vmatprep.subr.bf16.mxu0 0
      %281 = vmatpush2.bf16.msra.mxu0 0
      %282 = vmatprep.subr.bf16.mxu0 0
      %283 = vmatpush2.bf16.msra.mxu0 0
      %284 = vmatprep.subr.bf16.mxu0 0
      %285 = vmatpush2.bf16.msra.mxu0 0
      %286 = vmatprep.subr.bf16.mxu0 0
      %287 = vmatpush2.bf16.msra.mxu0 0
      %288 = vmatprep.subr.bf16.mxu0 0
      %289 = vmatpush2.bf16.msra.mxu0 0
      %290 = vmatprep.subr.bf16.mxu0 0
      %291 = vmatpush2.bf16.msra.mxu0 0
      %292 = vmatprep.subr.bf16.mxu0 0
      %293 = vmatpush2.bf16.msra.mxu0 0
      %294 = vmatprep.mubr.bf16.mxu0 0
      %295 = vmatmul.mubr.bf16.gmra.mxu0 %v210
      %v296 = vpop.f32.mrf.mxu0
      %v297 = vadd.f32 %v200, %v296
      %v298 = vpop.f32.mrf.mxu0
      %v299 = vpop.f32.mrf.mxu0
      %v300 = vadd.f32 %v200, %v299
      %v301 = vpop.f32.mrf.mxu0
      %302 = vmatprep.mubr.bf16.mxu0 0
      %303 = vmatmul.mubr.bf16.gmra.mxu0 %v211
      %v304 = vpop.f32.mrf.mxu0
      %v305 = vadd.f32 %v200, %v304
      %v306 = vpop.f32.mrf.mxu0
      %v307 = vpop.f32.mrf.mxu0
      %v308 = vadd.f32 %v200, %v307
      %v309 = vpop.f32.mrf.mxu0
      %310 = vdwg.mxu0
      %v311 = vmax.f32 %v297, 0.0
      %v312 = vmax.f32 %v300, 0.0
      %v313 = vmax.f32 %v305, 0.0
      %v314 = vmax.f32 %v308, 0.0
      %v315 = vpack.c.bf16 %v312, %v311
      %v316 = vpack.c.bf16 %v314, %v313
      %v319 = vunpack.c.l.b16 %v315
      %v320 = vunpack.c.h.b16 %v315
      %v321 = vunpack.c.l.b16 %v316
      %v322 = vunpack.c.h.b16 %v316
      %v323 = vpack.c.b16 %v319, %v319
      %v324 = vpack.c.b16 %v320, %v320
      %v325 = vpack.c.b16 %v321, %v321
      %v326 = vpack.c.b16 %v322, %v322
      %331 = vst [vmem:[%s172] sm:$0xf] %v323
      %332 = vst [vmem:[%s172 + $0x4] sm:$0xf] %v324
      %333 = vst [vmem:[%s172 + $0x8] sm:$0xf] %v325
      %334 = vst [vmem:[%s172 + $0xc] sm:$0xf] %v326
      %s335 = smul.u32 4, %s14
      %p336 = scmp.lt.s32.totalorder %s335, 15
      %s337 = scalar_select %p336, %s335, 15
      %s338 = smul.addr %s337, 4
      %s339 = scalar_lea.vmem %s3, %s338
      // Predicated region
      $region33: #{vqvae_forward.9} parent=31 // pred_check
        %p340 = pneg %p100
      $region34: #{vqvae_forward.9} parent=31 // pred_check_branch
        %342 = sbr.rel (%p340) target = $region36
      $region35: #{vqvae_forward.9} parent=31 // pred_region
        %s343 = smul.u32 4, %s14
      $region36: #{vqvae_forward.9} parent=31 // pred_fallthru
        _
    $region32: #{vqvae_forward.9} parent=5 // pred_fallthru
      _
    %p344 = scmp.le.s32.totalorder 2, %s9
    // Predicated region
    $region37: #{vqvae_forward.9} parent=5 // pred_check
      %p345 = pneg %p344
    $region38: #{vqvae_forward.9} parent=5 // pred_check_branch
      %347 = sbr.rel (%p345) target = $region40
    $region39: #{vqvae_forward.9} parent=5 // pred_region
      %s348 = ssub.s32 %s9, 2
      // Predicated region
      $region41: #{vqvae_forward.9} parent=39 // pred_check
        %p349 = pneg %p106
      $region42: #{vqvae_forward.9} parent=39 // pred_check_branch
        %351 = sbr.rel (%p349) target = $region44
      $region43: #{vqvae_forward.9} parent=39 // pred_region
        %s352 = smul.u32 4, %s15
        %p353 = scmp.lt.s32.totalorder %s352, 15
        %s354 = scalar_select %p353, %s352, 15
        %s355 = smul.addr %s354, 4
        %s356 = scalar_lea.vmem %s3, %s355
      $region44: #{vqvae_forward.9} parent=39 // pred_fallthru
        _
    $region40: #{vqvae_forward.9} parent=5 // pred_fallthru
      _
  $region6: #{vqvae_forward.9} parent=0 // loop_footer
    %s13 = sadd.s32 1, %s9
  $region7: #{vqvae_forward.9} parent=0 // loop_footer_branch
    %8 = sbr.rel target = $region3
  $region8: #{vqvae_forward.9} parent=0 // loop_exit
    _

// kernel: vqvae_forward.10
$region0: #{vqvae_forward.10}
  #allocation0 [shape = 'u32[]', space=smem, size = 0x4, offset = 0x4, fixed_abs, tag = 'smem constant byte address 0x4 - core index']
  #allocation1 [shape = 'u32[144,128]{1,0:T(1,128)}', space=vmem, size = 0x12000, scoped, tag = 'internal scratch']
  %s0 = inlined_call_operand.vmem [shape: bf16[32,512], index: 0, kind: input, shape index: {}]
  %s1 = inlined_call_operand.vmem [shape: bf16[512,128], index: 1, kind: input, shape index: {}]
  %s2 = inlined_call_operand.vmem [shape: f32[1,128], index: 2, kind: input, shape index: {}]
  %s3 = inlined_call_operand.vmem [shape: bf16[32,128], index: 3, kind: output, shape index: {}]
  %s4 = sld [smem:[#allocation0]]
  $region45: #{vqvae_forward.10} parent=0
    _
  %s6 = ssub.s32 1, %s4
  %s7 = scalar_select 0, %s6, %s4
  loop: start=0, step=1, limit=4
  $region2: #{vqvae_forward.10} parent=0 // loop_pre_header
    _
  $region3: #{vqvae_forward.10} parent=0 // loop_header
    %s9 = sphi 0, %s13
    %p10 = scmp.ge.s32.totalorder %s9, 4
    %s19 = sphi 0, %s21
    %s22 = sphi 0, %s19
    %s23 = sphi 0, %s22
    %s39 = sphi 0, %s23
    %s43 = sphi 0, %s43
    %s45 = sphi 0, %s43
    %s46 = sphi 0, %s45
    %s60 = sphi 0, %s46
    %s64 = sphi 0, %s64
    %s66 = sphi 0, %s64
    %s67 = sphi 0, %s66
    %s81 = sphi 0, %s67
    %s87 = sphi 0, %s89
    %s90 = sphi 0, %s87
    %s91 = sphi 0, %s90
    %s107 = sphi 0, %s91
  $region4: #{vqvae_forward.10} parent=0 // loop_header_branch
    %12 = sbr.rel (%p10) target = $region8
  $region5: #{vqvae_forward.10} parent=0 // loop_body
    %s14 = ssub.s32 %s9, 1
    %s15 = ssub.s32 %s9, 2
    %s16 = sadd.s32 %s9, 1
    %s17 = ssub.s32 %s9, %s16
    %p18 = scmp.eq.s32.totalorder %s17, 0
    %s20 = sadd.s32 %s19, 1
    %s21 = scalar_select %p18, %s19, %s20
    %p24 = pneg %p18
    %p25 = scmp.eq.s32.totalorder %s9, 1
    %p26 = por %p24, %p25
    %p27 = scmp.ne.s32.totalorder %s19, %s22
    %p28 = scmp.eq.s32.totalorder %s9, 0
    %p29 = por %p27, %p28
    %p30 = scmp.ne.s32.totalorder %s19, %s22
    %p31 = scmp.eq.s32.totalorder %s14, 1
    %p32 = por %p30, %p31
    %p33 = scmp.ne.s32.totalorder %s22, %s23
    %p34 = scmp.eq.s32.totalorder %s14, 0
    %p35 = por %p33, %p34
    %p36 = scmp.ne.s32.totalorder %s22, %s23
    %p37 = scmp.eq.s32.totalorder %s15, 1
    %p38 = por %p36, %p37
    %p40 = scmp.ne.s32.totalorder %s23, %s39
    %p41 = scmp.eq.s32.totalorder %s15, 0
    %p42 = por %p40, %p41
    %s44 = sadd.s32 %s43, 1
    %p47 = scmp.eq.s32.totalorder %s9, 1
    %p48 = scmp.ne.s32.totalorder %s43, %s45
    %p49 = scmp.eq.s32.totalorder %s9, 0
    %p50 = por %p48, %p49
    %p51 = scmp.ne.s32.totalorder %s43, %s45
    %p52 = scmp.eq.s32.totalorder %s14, 1
    %p53 = por %p51, %p52
    %p54 = scmp.ne.s32.totalorder %s45, %s46
    %p55 = scmp.eq.s32.totalorder %s14, 0
    %p56 = por %p54, %p55
    %p57 = scmp.ne.s32.totalorder %s45, %s46
    %p58 = scmp.eq.s32.totalorder %s15, 1
    %p59 = por %p57, %p58
    %p61 = scmp.ne.s32.totalorder %s46, %s60
    %p62 = scmp.eq.s32.totalorder %s15, 0
    %p63 = por %p61, %p62
    %s65 = sadd.s32 %s64, 1
    %p68 = scmp.eq.s32.totalorder %s9, 1
    %p69 = scmp.ne.s32.totalorder %s64, %s66
    %p70 = scmp.eq.s32.totalorder %s9, 0
    %p71 = por %p69, %p70
    %p72 = scmp.ne.s32.totalorder %s64, %s66
    %p73 = scmp.eq.s32.totalorder %s14, 1
    %p74 = por %p72, %p73
    %p75 = scmp.ne.s32.totalorder %s66, %s67
    %p76 = scmp.eq.s32.totalorder %s14, 0
    %p77 = por %p75, %p76
    %p78 = scmp.ne.s32.totalorder %s66, %s67
    %p79 = scmp.eq.s32.totalorder %s15, 1
    %p80 = por %p78, %p79
    %p82 = scmp.ne.s32.totalorder %s67, %s81
    %p83 = scmp.eq.s32.totalorder %s15, 0
    %p84 = por %p82, %p83
    %s85 = ssub.s32 %s9, %s16
    %p86 = scmp.eq.s32.totalorder %s85, 0
    %s88 = sadd.s32 %s87, 1
    %s89 = scalar_select %p86, %s87, %s88
    %p92 = pneg %p86
    %p93 = scmp.eq.s32.totalorder %s9, 1
    %p94 = por %p92, %p93
    %p95 = scmp.ne.s32.totalorder %s87, %s90
    %p96 = scmp.eq.s32.totalorder %s9, 0
    %p97 = por %p95, %p96
    %p98 = scmp.ne.s32.totalorder %s87, %s90
    %p99 = scmp.eq.s32.totalorder %s14, 1
    %p100 = por %p98, %p99
    %p101 = scmp.ne.s32.totalorder %s90, %s91
    %p102 = scmp.eq.s32.totalorder %s14, 0
    %p103 = por %p101, %p102
    %p104 = scmp.ne.s32.totalorder %s90, %s91
    %p105 = scmp.eq.s32.totalorder %s15, 1
    %p106 = por %p104, %p105
    %p108 = scmp.ne.s32.totalorder %s91, %s107
    %p109 = scmp.eq.s32.totalorder %s15, 0
    %p110 = por %p108, %p109
    %p111 = scmp.le.s32.totalorder 1, %s9
    %p112 = scmp.lt.s32.totalorder %s9, 3
    %p113 = pnand %p111, %p112
    %p114 = pneg %p113
    // Predicated region
    $region9: #{vqvae_forward.10} parent=5 // pred_check
      _
    $region10: #{vqvae_forward.10} parent=5 // pred_check_branch
      %116 = sbr.rel (%p113) target = $region12
    $region11: #{vqvae_forward.10} parent=5 // pred_region
      %s117 = ssub.s32 %s9, 1
      // Predicated region
      $region13: #{vqvae_forward.10} parent=11 // pred_check
        %p118 = pneg %p56
      $region14: #{vqvae_forward.10} parent=11 // pred_check_branch
        %120 = sbr.rel (%p118) target = $region16
      $region15: #{vqvae_forward.10} parent=11 // pred_region
        _
      $region16: #{vqvae_forward.10} parent=11 // pred_fallthru
        _
      // Predicated region
      $region17: #{vqvae_forward.10} parent=11 // pred_check
        %p121 = pneg %p77
      $region18: #{vqvae_forward.10} parent=11 // pred_check_branch
        %123 = sbr.rel (%p121) target = $region20
      $region19: #{vqvae_forward.10} parent=11 // pred_region
        _
      $region20: #{vqvae_forward.10} parent=11 // pred_fallthru
        _
    $region12: #{vqvae_forward.10} parent=5 // pred_fallthru
      _
    %p124 = scmp.lt.s32.totalorder %s9, 2
    // Predicated region
    $region21: #{vqvae_forward.10} parent=5 // pred_check
      %p125 = pneg %p124
    $region22: #{vqvae_forward.10} parent=5 // pred_check_branch
      %127 = sbr.rel (%p125) target = $region24
    $region23: #{vqvae_forward.10} parent=5 // pred_region
      // Predicated region
      $region25: #{vqvae_forward.10} parent=23 // pred_check
        %p128 = pneg %p29
      $region26: #{vqvae_forward.10} parent=23 // pred_check_branch
        %130 = sbr.rel (%p128) target = $region28
      $region27: #{vqvae_forward.10} parent=23 // pred_region
        %s131 = smul.u32 2, %s9
        %p132 = scmp.lt.s32.totalorder %s131, 3
        %s133 = scalar_select %p132, %s131, 3
        %s134 = smul.addr %s133, 4
        %s135 = smul.addr %s134, 4
        %s136 = scalar_lea.vmem %s0, %s135
        %s137 = smul.u32 2, %s9
      $region28: #{vqvae_forward.10} parent=23 // pred_fallthru
        _
    $region24: #{vqvae_forward.10} parent=5 // pred_fallthru
      _
    %p138 = scmp.le.s32.totalorder 1, %s9
    %p139 = scmp.lt.s32.totalorder %s9, 3
    %p140 = pnand %p138, %p139
    %p141 = pneg %p140
    // Predicated region
    $region29: #{vqvae_forward.10} parent=5 // pred_check
      _
    $region30: #{vqvae_forward.10} parent=5 // pred_check_branch
      %143 = sbr.rel (%p140) target = $region32
    $region31: #{vqvae_forward.10} parent=5 // pred_region
      %s144 = ssub.s32 %s9, 1
      %s145 = smul.u32 2, %s14
      %p146 = scmp.lt.s32.totalorder %s145, 3
      %s147 = scalar_select %p146, %s145, 3
      %s148 = smul.addr %s147, 4
      %s149 = smul.addr %s148, 4
      %s150 = scalar_lea.vmem %s0, %s149
      %p151 = pneg %p35
      %p152 = pneg %p32
      %p153 = pneg %p56
      %p154 = pneg %p53
      %p155 = pneg %p77
      %p156 = pneg %p74
      %p157 = pneg %p103
      %p158 = pneg %p100
      %s159 = smul.u32 2, %s14
      %p160 = scmp.lt.s32.totalorder %s159, 3
      %s161 = scalar_select %p160, %s159, 3
      %s162 = smul.addr %s161, 4
      %s163 = scalar_lea.vmem %s3, %s162
      %s164 = smul.u32 2, %s14
      %p165 = scmp.lt.s32.totalorder %s164, 3
      %s166 = scalar_select %p165, %s164, 3
      %s167 = smul.addr %s166, 4
      %s168 = smul.addr %s167, 4
      %s169 = scalar_lea.vmem %s0, %s168
      %s170 = smul.u32 2, %s14
      %s171 = smul.u32 2, %s14
      %p172 = scmp.lt.s32.totalorder %s171, 3
      %s173 = scalar_select %p172, %s171, 3
      %s174 = smul.addr %s173, 4
      %s175 = scalar_lea.vmem %s3, %s174
      %s176 = smul.u32 2, %s14
      %v178 = vld [vmem:[%s169] sm:$0xff]
      %v179 = vld [vmem:[%s169 + $0x8] sm:$0xff]
      %v180 = vld [vmem:[%s169 + $0x10] sm:$0xff]
      %v181 = vld [vmem:[%s169 + $0x18] sm:$0xff]
      %v182 = vld [vmem:[%s1] sm:$0xf]
      %v183 = vld [vmem:[%s1 + $0x4] sm:$0xf]
      %v184 = vld [vmem:[%s1 + $0x8] sm:$0xf]
      %v185 = vld [vmem:[%s1 + $0xc] sm:$0xf]
      %v186 = vld [vmem:[%s1 + $0x10] sm:$0xf]
      %v187 = vld [vmem:[%s1 + $0x14] sm:$0xf]
      %v188 = vld [vmem:[%s1 + $0x18] sm:$0xf]
      %v189 = vld [vmem:[%s1 + $0x1c] sm:$0xf]
      %v190 = vld [vmem:[%s1 + $0x20] sm:$0xf]
      %v191 = vld [vmem:[%s1 + $0x24] sm:$0xf]
      %v192 = vld [vmem:[%s1 + $0x28] sm:$0xf]
      %v193 = vld [vmem:[%s1 + $0x2c] sm:$0xf]
      %v194 = vld [vmem:[%s1 + $0x30] sm:$0xf]
      %v195 = vld [vmem:[%s1 + $0x34] sm:$0xf]
      %v196 = vld [vmem:[%s1 + $0x38] sm:$0xf]
      %v197 = vld [vmem:[%s1 + $0x3c] sm:$0xf]
      %v198 = vld [vmem:[%s1 + $0x40] sm:$0xf]
      %v199 = vld [vmem:[%s1 + $0x44] sm:$0xf]
      %v200 = vld [vmem:[%s1 + $0x48] sm:$0xf]
      %v201 = vld [vmem:[%s1 + $0x4c] sm:$0xf]
      %v202 = vld [vmem:[%s1 + $0x50] sm:$0xf]
      %v203 = vld [vmem:[%s1 + $0x54] sm:$0xf]
      %v204 = vld [vmem:[%s1 + $0x58] sm:$0xf]
      %v205 = vld [vmem:[%s1 + $0x5c] sm:$0xf]
      %v206 = vld [vmem:[%s1 + $0x60] sm:$0xf]
      %v207 = vld [vmem:[%s1 + $0x64] sm:$0xf]
      %v208 = vld [vmem:[%s1 + $0x68] sm:$0xf]
      %v209 = vld [vmem:[%s1 + $0x6c] sm:$0xf]
      %v210 = vld [vmem:[%s1 + $0x70] sm:$0xf]
      %v211 = vld [vmem:[%s1 + $0x74] sm:$0xf]
      %v212 = vld [vmem:[%s1 + $0x78] sm:$0xf]
      %v213 = vld [vmem:[%s1 + $0x7c] sm:$0xf]
      %v214 = vld [vmem:[%s1 + $0x80] sm:$0xf]
      %v215 = vld [vmem:[%s1 + $0x84] sm:$0xf]
      %v216 = vld [vmem:[%s1 + $0x88] sm:$0xf]
      %v217 = vld [vmem:[%s1 + $0x8c] sm:$0xf]
      %v218 = vld [vmem:[%s1 + $0x90] sm:$0xf]
      %v219 = vld [vmem:[%s1 + $0x94] sm:$0xf]
      %v220 = vld [vmem:[%s1 + $0x98] sm:$0xf]
      %v221 = vld [vmem:[%s1 + $0x9c] sm:$0xf]
      %v222 = vld [vmem:[%s1 + $0xa0] sm:$0xf]
      %v223 = vld [vmem:[%s1 + $0xa4] sm:$0xf]
      %v224 = vld [vmem:[%s1 + $0xa8] sm:$0xf]
      %v225 = vld [vmem:[%s1 + $0xac] sm:$0xf]
      %v226 = vld [vmem:[%s1 + $0xb0] sm:$0xf]
      %v227 = vld [vmem:[%s1 + $0xb4] sm:$0xf]
      %v228 = vld [vmem:[%s1 + $0xb8] sm:$0xf]
      %v229 = vld [vmem:[%s1 + $0xbc] sm:$0xf]
      %v230 = vld [vmem:[%s1 + $0xc0] sm:$0xf]
      %v231 = vld [vmem:[%s1 + $0xc4] sm:$0xf]
      %v232 = vld [vmem:[%s1 + $0xc8] sm:$0xf]
      %v233 = vld [vmem:[%s1 + $0xcc] sm:$0xf]
      %v234 = vld [vmem:[%s1 + $0xd0] sm:$0xf]
      %v235 = vld [vmem:[%s1 + $0xd4] sm:$0xf]
      %v236 = vld [vmem:[%s1 + $0xd8] sm:$0xf]
      %v237 = vld [vmem:[%s1 + $0xdc] sm:$0xf]
      %v238 = vld [vmem:[%s1 + $0xe0] sm:$0xf]
      %v239 = vld [vmem:[%s1 + $0xe4] sm:$0xf]
      %v240 = vld [vmem:[%s1 + $0xe8] sm:$0xf]
      %v241 = vld [vmem:[%s1 + $0xec] sm:$0xf]
      %v242 = vld [vmem:[%s1 + $0xf0] sm:$0xf]
      %v243 = vld [vmem:[%s1 + $0xf4] sm:$0xf]
      %v244 = vld [vmem:[%s1 + $0xf8] sm:$0xf]
      %v245 = vld [vmem:[%s1 + $0xfc] sm:$0xf]
      %v246 = vld [vmem:[%s2] sm:$0x1]
      %v248 = vlaneseq
      %v249 = vshrl.u32 %v248, 7
      %v250 = vsub.s32 0, %v249
      %v251 = vrot.slane %v246, %v250
      %v257 = vunpack.c.l.b16 %v178
      %v258 = vunpack.c.h.b16 %v178
      %v259 = vunpack.c.l.b16 %v179
      %v260 = vunpack.c.h.b16 %v179
      %v261 = vunpack.c.l.b16 %v180
      %v262 = vunpack.c.h.b16 %v180
      %v263 = vunpack.c.l.b16 %v181
      %v264 = vunpack.c.h.b16 %v181
      %v265 = vpack.c.b16 %v261, %v257
      %v266 = vpack.c.b16 %v262, %v258
      %v267 = vpack.c.b16 %v263, %v259
      %v268 = vpack.c.b16 %v264, %v260
      %v337 = vunpack.c.l.b16 %v182
      %v338 = vunpack.c.l.b16 %v183
      %v339 = vunpack.c.l.b16 %v184
      %v340 = vunpack.c.l.b16 %v185
      %v341 = vunpack.c.l.b16 %v186
      %v342 = vunpack.c.l.b16 %v187
      %v343 = vunpack.c.l.b16 %v188
      %v344 = vunpack.c.l.b16 %v189
      %v345 = vunpack.c.l.b16 %v190
      %v346 = vunpack.c.l.b16 %v191
      %v347 = vunpack.c.l.b16 %v192
      %v348 = vunpack.c.l.b16 %v193
      %v349 = vunpack.c.l.b16 %v194
      %v350 = vunpack.c.l.b16 %v195
      %v351 = vunpack.c.l.b16 %v196
      %v352 = vunpack.c.l.b16 %v197
      %v353 = vunpack.c.l.b16 %v198
      %v354 = vunpack.c.l.b16 %v199
      %v355 = vunpack.c.l.b16 %v200
      %v356 = vunpack.c.l.b16 %v201
      %v357 = vunpack.c.l.b16 %v202
      %v358 = vunpack.c.l.b16 %v203
      %v359 = vunpack.c.l.b16 %v204
      %v360 = vunpack.c.l.b16 %v205
      %v361 = vunpack.c.l.b16 %v206
      %v362 = vunpack.c.l.b16 %v207
      %v363 = vunpack.c.l.b16 %v208
      %v364 = vunpack.c.l.b16 %v209
      %v365 = vunpack.c.l.b16 %v210
      %v366 = vunpack.c.l.b16 %v211
      %v367 = vunpack.c.l.b16 %v212
      %v368 = vunpack.c.l.b16 %v213
      %v369 = vunpack.c.l.b16 %v214
      %v370 = vunpack.c.l.b16 %v215
      %v371 = vunpack.c.l.b16 %v216
      %v372 = vunpack.c.l.b16 %v217
      %v373 = vunpack.c.l.b16 %v218
      %v374 = vunpack.c.l.b16 %v219
      %v375 = vunpack.c.l.b16 %v220
      %v376 = vunpack.c.l.b16 %v221
      %v377 = vunpack.c.l.b16 %v222
      %v378 = vunpack.c.l.b16 %v223
      %v379 = vunpack.c.l.b16 %v224
      %v380 = vunpack.c.l.b16 %v225
      %v381 = vunpack.c.l.b16 %v226
      %v382 = vunpack.c.l.b16 %v227
      %v383 = vunpack.c.l.b16 %v228
      %v384 = vunpack.c.l.b16 %v229
      %v385 = vunpack.c.l.b16 %v230
      %v386 = vunpack.c.l.b16 %v231
      %v387 = vunpack.c.l.b16 %v232
      %v388 = vunpack.c.l.b16 %v233
      %v389 = vunpack.c.l.b16 %v234
      %v390 = vunpack.c.l.b16 %v235
      %v391 = vunpack.c.l.b16 %v236
      %v392 = vunpack.c.l.b16 %v237
      %v393 = vunpack.c.l.b16 %v238
      %v394 = vunpack.c.l.b16 %v239
      %v395 = vunpack.c.l.b16 %v240
      %v396 = vunpack.c.l.b16 %v241
      %v397 = vunpack.c.l.b16 %v242
      %v398 = vunpack.c.l.b16 %v243
      %v399 = vunpack.c.l.b16 %v244
      %v400 = vunpack.c.l.b16 %v245
      %v401 = vpack.c.b16 %v338, %v337
      %v402 = vpack.c.b16 %v340, %v339
      %v403 = vpack.c.b16 %v342, %v341
      %v404 = vpack.c.b16 %v344, %v343
      %v405 = vpack.c.b16 %v346, %v345
      %v406 = vpack.c.b16 %v348, %v347
      %v407 = vpack.c.b16 %v350, %v349
      %v408 = vpack.c.b16 %v352, %v351
      %v409 = vpack.c.b16 %v354, %v353
      %v410 = vpack.c.b16 %v356, %v355
      %v411 = vpack.c.b16 %v358, %v357
      %v412 = vpack.c.b16 %v360, %v359
      %v413 = vpack.c.b16 %v362, %v361
      %v414 = vpack.c.b16 %v364, %v363
      %v415 = vpack.c.b16 %v366, %v365
      %v416 = vpack.c.b16 %v368, %v367
      %v417 = vpack.c.b16 %v370, %v369
      %v418 = vpack.c.b16 %v372, %v371
      %v419 = vpack.c.b16 %v374, %v373
      %v420 = vpack.c.b16 %v376, %v375
      %v421 = vpack.c.b16 %v378, %v377
      %v422 = vpack.c.b16 %v380, %v379
      %v423 = vpack.c.b16 %v382, %v381
      %v424 = vpack.c.b16 %v384, %v383
      %v425 = vpack.c.b16 %v386, %v385
      %v426 = vpack.c.b16 %v388, %v387
      %v427 = vpack.c.b16 %v390, %v389
      %v428 = vpack.c.b16 %v392, %v391
      %v429 = vpack.c.b16 %v394, %v393
      %v430 = vpack.c.b16 %v396, %v395
      %v431 = vpack.c.b16 %v398, %v397
      %v432 = vpack.c.b16 %v400, %v399
      %465 = vmatprep.subr.bf16.mxu0 0
      %466 = vmatpush1.bf16.msra.mxu0 %v408
      %467 = vmatprep.subr.bf16.mxu0 0
      %468 = vmatpush1.bf16.msra.mxu0 %v407
      %469 = vmatprep.subr.bf16.mxu0 0
      %470 = vmatpush1.bf16.msra.mxu0 %v406
      %471 = vmatprep.subr.bf16.mxu0 0
      %472 = vmatpush1.bf16.msra.mxu0 %v405
      %473 = vmatprep.subr.bf16.mxu0 0
      %474 = vmatpush1.bf16.msra.mxu0 %v404
      %475 = vmatprep.subr.bf16.mxu0 0
      %476 = vmatpush1.bf16.msra.mxu0 %v403
      %477 = vmatprep.subr.bf16.mxu0 0
      %478 = vmatpush1.bf16.msra.mxu0 %v402
      %479 = vmatprep.subr.bf16.mxu0 0
      %480 = vmatpush1.bf16.msra.mxu0 %v401
      %481 = vmatprep.subr.bf16.mxu0 0
      %482 = vmatpush2.bf16.msra.mxu0 %v416
      %483 = vmatprep.subr.bf16.mxu0 0
      %484 = vmatpush2.bf16.msra.mxu0 %v415
      %485 = vmatprep.subr.bf16.mxu0 0
      %486 = vmatpush2.bf16.msra.mxu0 %v414
      %487 = vmatprep.subr.bf16.mxu0 0
      %488 = vmatpush2.bf16.msra.mxu0 %v413
      %489 = vmatprep.subr.bf16.mxu0 0
      %490 = vmatpush2.bf16.msra.mxu0 %v412
      %491 = vmatprep.subr.bf16.mxu0 0
      %492 = vmatpush2.bf16.msra.mxu0 %v411
      %493 = vmatprep.subr.bf16.mxu0 0
      %494 = vmatpush2.bf16.msra.mxu0 %v410
      %495 = vmatprep.subr.bf16.mxu0 0
      %496 = vmatpush2.bf16.msra.mxu0 %v409
      %497 = vmatprep.mubr.bf16.mxu0 %v266
      %498 = vmatmul.mubr.bf16.gmra.mxu0 %v265
      %v499 = vpop.f32.mrf.mxu0
      %v500 = vadd.f32 %v251, %v499
      %v501 = vpop.f32.mrf.mxu0
      %v502 = vpop.f32.mrf.mxu0
      %v503 = vadd.f32 %v251, %v502
      %v504 = vpop.f32.mrf.mxu0
      %505 = vdwg.mxu0
      %506 = vmatprep.subr.bf16.mxu0 0
      %507 = vmatpush1.bf16.msra.mxu0 %v424
      %508 = vmatprep.subr.bf16.mxu0 0
      %509 = vmatpush1.bf16.msra.mxu0 %v423
      %510 = vmatprep.subr.bf16.mxu0 0
      %511 = vmatpush1.bf16.msra.mxu0 %v422
      %512 = vmatprep.subr.bf16.mxu0 0
      %513 = vmatpush1.bf16.msra.mxu0 %v421
      %514 = vmatprep.subr.bf16.mxu0 0
      %515 = vmatpush1.bf16.msra.mxu0 %v420
      %516 = vmatprep.subr.bf16.mxu0 0
      %517 = vmatpush1.bf16.msra.mxu0 %v419
      %518 = vmatprep.subr.bf16.mxu0 0
      %519 = vmatpush1.bf16.msra.mxu0 %v418
      %520 = vmatprep.subr.bf16.mxu0 0
      %521 = vmatpush1.bf16.msra.mxu0 %v417
      %522 = vmatprep.subr.bf16.mxu0 0
      %523 = vmatpush2.bf16.msra.mxu0 %v432
      %524 = vmatprep.subr.bf16.mxu0 0
      %525 = vmatpush2.bf16.msra.mxu0 %v431
      %526 = vmatprep.subr.bf16.mxu0 0
      %527 = vmatpush2.bf16.msra.mxu0 %v430
      %528 = vmatprep.subr.bf16.mxu0 0
      %529 = vmatpush2.bf16.msra.mxu0 %v429
      %530 = vmatprep.subr.bf16.mxu0 0
      %531 = vmatpush2.bf16.msra.mxu0 %v428
      %532 = vmatprep.subr.bf16.mxu0 0
      %533 = vmatpush2.bf16.msra.mxu0 %v427
      %534 = vmatprep.subr.bf16.mxu0 0
      %535 = vmatpush2.bf16.msra.mxu0 %v426
      %536 = vmatprep.subr.bf16.mxu0 0
      %537 = vmatpush2.bf16.msra.mxu0 %v425
      %538 = vmatprep.mubr.bf16.mxu0 %v268
      %539 = vmatmul.mubr.bf16.gmra.mxu0 %v267
      %v540 = vpop.f32.mrf.mxu0
      %v541 = vadd.f32 %v500, %v540
      %v542 = vpop.f32.mrf.mxu0
      %v543 = vpop.f32.mrf.mxu0
      %v544 = vadd.f32 %v503, %v543
      %v545 = vpop.f32.mrf.mxu0
      %546 = vdwg.mxu0
      %v547 = vpack.c.bf16 %v544, %v541
      %v549 = vunpack.c.l.b16 %v547
      %v550 = vunpack.c.h.b16 %v547
      %v551 = vpack.c.b16 %v549, %v549
      %v552 = vpack.c.b16 %v550, %v550
      %555 = vst [vmem:[%s175] sm:$0xf] %v551
      %556 = vst [vmem:[%s175 + $0x4] sm:$0xf] %v552
      %s557 = smul.u32 2, %s14
      %p558 = scmp.lt.s32.totalorder %s557, 3
      %s559 = scalar_select %p558, %s557, 3
      %s560 = smul.addr %s559, 4
      %s561 = scalar_lea.vmem %s3, %s560
      // Predicated region
      $region33: #{vqvae_forward.10} parent=31 // pred_check
        %p562 = pneg %p100
      $region34: #{vqvae_forward.10} parent=31 // pred_check_branch
        %564 = sbr.rel (%p562) target = $region36
      $region35: #{vqvae_forward.10} parent=31 // pred_region
        %s565 = smul.u32 2, %s14
      $region36: #{vqvae_forward.10} parent=31 // pred_fallthru
        _
    $region32: #{vqvae_forward.10} parent=5 // pred_fallthru
      _
    %p566 = scmp.le.s32.totalorder 2, %s9
    // Predicated region
    $region37: #{vqvae_forward.10} parent=5 // pred_check
      %p567 = pneg %p566
    $region38: #{vqvae_forward.10} parent=5 // pred_check_branch
      %569 = sbr.rel (%p567) target = $region40
    $region39: #{vqvae_forward.10} parent=5 // pred_region
      %s570 = ssub.s32 %s9, 2
      // Predicated region
      $region41: #{vqvae_forward.10} parent=39 // pred_check
        %p571 = pneg %p106
      $region42: #{vqvae_forward.10} parent=39 // pred_check_branch
        %573 = sbr.rel (%p571) target = $region44
      $region43: #{vqvae_forward.10} parent=39 // pred_region
        %s574 = smul.u32 2, %s15
        %p575 = scmp.lt.s32.totalorder %s574, 3
        %s576 = scalar_select %p575, %s574, 3
        %s577 = smul.addr %s576, 4
        %s578 = scalar_lea.vmem %s3, %s577
      $region44: #{vqvae_forward.10} parent=39 // pred_fallthru
        _
    $region40: #{vqvae_forward.10} parent=5 // pred_fallthru
      _
  $region6: #{vqvae_forward.10} parent=0 // loop_footer
    %s13 = sadd.s32 1, %s9
  $region7: #{vqvae_forward.10} parent=0 // loop_footer_branch
    %8 = sbr.rel target = $region3
  $region8: #{vqvae_forward.10} parent=0 // loop_exit
    _

// kernel: vqvae_forward.12
$region0: #{vqvae_forward.12}
  #allocation0 [shape = 'u32[]', space=smem, size = 0x4, offset = 0x4, fixed_abs, tag = 'smem constant byte address 0x4 - core index']
  #allocation1 [shape = 'u32[144,128]{1,0:T(1,128)}', space=vmem, size = 0x12000, scoped, tag = 'internal scratch']
  %s0 = inlined_call_operand.vmem [shape: bf16[2,36,32], index: 0, kind: input, shape index: {}]
  %s1 = inlined_call_operand.vmem [shape: bf16[288,128], index: 1, kind: input, shape index: {}]
  %s2 = inlined_call_operand.vmem [shape: f32[1,128], index: 2, kind: input, shape index: {}]
  %s3 = inlined_call_operand.vmem [shape: bf16[128,128], index: 3, kind: input, shape index: {}]
  %s4 = inlined_call_operand.vmem [shape: f32[1,128], index: 4, kind: input, shape index: {}]
  %s5 = inlined_call_operand.vmem [shape: f32[2,36,32], index: 5, kind: output, shape index: {}]
  %s6 = sld [smem:[#allocation0]]
  $region53: #{vqvae_forward.12} parent=0
    _
  %s8 = ssub.s32 1, %s6
  %s9 = scalar_select 0, %s8, %s6
  loop: start=0, step=1, limit=4
  $region2: #{vqvae_forward.12} parent=0 // loop_pre_header
    _
  $region3: #{vqvae_forward.12} parent=0 // loop_header
    %s11 = sphi 0, %s15
    %p12 = scmp.ge.s32.totalorder %s11, 4
    %s21 = sphi 0, %s23
    %s24 = sphi 0, %s21
    %s25 = sphi 0, %s24
    %s41 = sphi 0, %s25
    %s45 = sphi 0, %s45
    %s47 = sphi 0, %s45
    %s48 = sphi 0, %s47
    %s62 = sphi 0, %s48
    %s66 = sphi 0, %s66
    %s68 = sphi 0, %s66
    %s69 = sphi 0, %s68
    %s83 = sphi 0, %s69
    %s87 = sphi 0, %s87
    %s89 = sphi 0, %s87
    %s90 = sphi 0, %s89
    %s104 = sphi 0, %s90
    %s108 = sphi 0, %s108
    %s110 = sphi 0, %s108
    %s111 = sphi 0, %s110
    %s125 = sphi 0, %s111
    %s131 = sphi 0, %s133
    %s134 = sphi 0, %s131
    %s135 = sphi 0, %s134
    %s151 = sphi 0, %s135
  $region4: #{vqvae_forward.12} parent=0 // loop_header_branch
    %14 = sbr.rel (%p12) target = $region8
  $region5: #{vqvae_forward.12} parent=0 // loop_body
    %s16 = ssub.s32 %s11, 1
    %s17 = ssub.s32 %s11, 2
    %s18 = sadd.s32 %s11, 1
    %s19 = ssub.s32 %s11, %s18
    %p20 = scmp.eq.s32.totalorder %s19, 0
    %s22 = sadd.s32 %s21, 1
    %s23 = scalar_select %p20, %s21, %s22
    %p26 = pneg %p20
    %p27 = scmp.eq.s32.totalorder %s11, 1
    %p28 = por %p26, %p27
    %p29 = scmp.ne.s32.totalorder %s21, %s24
    %p30 = scmp.eq.s32.totalorder %s11, 0
    %p31 = por %p29, %p30
    %p32 = scmp.ne.s32.totalorder %s21, %s24
    %p33 = scmp.eq.s32.totalorder %s16, 1
    %p34 = por %p32, %p33
    %p35 = scmp.ne.s32.totalorder %s24, %s25
    %p36 = scmp.eq.s32.totalorder %s16, 0
    %p37 = por %p35, %p36
    %p38 = scmp.ne.s32.totalorder %s24, %s25
    %p39 = scmp.eq.s32.totalorder %s17, 1
    %p40 = por %p38, %p39
    %p42 = scmp.ne.s32.totalorder %s25, %s41
    %p43 = scmp.eq.s32.totalorder %s17, 0
    %p44 = por %p42, %p43
    %s46 = sadd.s32 %s45, 1
    %p49 = scmp.eq.s32.totalorder %s11, 1
    %p50 = scmp.ne.s32.totalorder %s45, %s47
    %p51 = scmp.eq.s32.totalorder %s11, 0
    %p52 = por %p50, %p51
    %p53 = scmp.ne.s32.totalorder %s45, %s47
    %p54 = scmp.eq.s32.totalorder %s16, 1
    %p55 = por %p53, %p54
    %p56 = scmp.ne.s32.totalorder %s47, %s48
    %p57 = scmp.eq.s32.totalorder %s16, 0
    %p58 = por %p56, %p57
    %p59 = scmp.ne.s32.totalorder %s47, %s48
    %p60 = scmp.eq.s32.totalorder %s17, 1
    %p61 = por %p59, %p60
    %p63 = scmp.ne.s32.totalorder %s48, %s62
    %p64 = scmp.eq.s32.totalorder %s17, 0
    %p65 = por %p63, %p64
    %s67 = sadd.s32 %s66, 1
    %p70 = scmp.eq.s32.totalorder %s11, 1
    %p71 = scmp.ne.s32.totalorder %s66, %s68
    %p72 = scmp.eq.s32.totalorder %s11, 0
    %p73 = por %p71, %p72
    %p74 = scmp.ne.s32.totalorder %s66, %s68
    %p75 = scmp.eq.s32.totalorder %s16, 1
    %p76 = por %p74, %p75
    %p77 = scmp.ne.s32.totalorder %s68, %s69
    %p78 = scmp.eq.s32.totalorder %s16, 0
    %p79 = por %p77, %p78
    %p80 = scmp.ne.s32.totalorder %s68, %s69
    %p81 = scmp.eq.s32.totalorder %s17, 1
    %p82 = por %p80, %p81
    %p84 = scmp.ne.s32.totalorder %s69, %s83
    %p85 = scmp.eq.s32.totalorder %s17, 0
    %p86 = por %p84, %p85
    %s88 = sadd.s32 %s87, 1
    %p91 = scmp.eq.s32.totalorder %s11, 1
    %p92 = scmp.ne.s32.totalorder %s87, %s89
    %p93 = scmp.eq.s32.totalorder %s11, 0
    %p94 = por %p92, %p93
    %p95 = scmp.ne.s32.totalorder %s87, %s89
    %p96 = scmp.eq.s32.totalorder %s16, 1
    %p97 = por %p95, %p96
    %p98 = scmp.ne.s32.totalorder %s89, %s90
    %p99 = scmp.eq.s32.totalorder %s16, 0
    %p100 = por %p98, %p99
    %p101 = scmp.ne.s32.totalorder %s89, %s90
    %p102 = scmp.eq.s32.totalorder %s17, 1
    %p103 = por %p101, %p102
    %p105 = scmp.ne.s32.totalorder %s90, %s104
    %p106 = scmp.eq.s32.totalorder %s17, 0
    %p107 = por %p105, %p106
    %s109 = sadd.s32 %s108, 1
    %p112 = scmp.eq.s32.totalorder %s11, 1
    %p113 = scmp.ne.s32.totalorder %s108, %s110
    %p114 = scmp.eq.s32.totalorder %s11, 0
    %p115 = por %p113, %p114
    %p116 = scmp.ne.s32.totalorder %s108, %s110
    %p117 = scmp.eq.s32.totalorder %s16, 1
    %p118 = por %p116, %p117
    %p119 = scmp.ne.s32.totalorder %s110, %s111
    %p120 = scmp.eq.s32.totalorder %s16, 0
    %p121 = por %p119, %p120
    %p122 = scmp.ne.s32.totalorder %s110, %s111
    %p123 = scmp.eq.s32.totalorder %s17, 1
    %p124 = por %p122, %p123
    %p126 = scmp.ne.s32.totalorder %s111, %s125
    %p127 = scmp.eq.s32.totalorder %s17, 0
    %p128 = por %p126, %p127
    %s129 = ssub.s32 %s11, %s18
    %p130 = scmp.eq.s32.totalorder %s129, 0
    %s132 = sadd.s32 %s131, 1
    %s133 = scalar_select %p130, %s131, %s132
    %p136 = pneg %p130
    %p137 = scmp.eq.s32.totalorder %s11, 1
    %p138 = por %p136, %p137
    %p139 = scmp.ne.s32.totalorder %s131, %s134
    %p140 = scmp.eq.s32.totalorder %s11, 0
    %p141 = por %p139, %p140
    %p142 = scmp.ne.s32.totalorder %s131, %s134
    %p143 = scmp.eq.s32.totalorder %s16, 1
    %p144 = por %p142, %p143
    %p145 = scmp.ne.s32.totalorder %s134, %s135
    %p146 = scmp.eq.s32.totalorder %s16, 0
    %p147 = por %p145, %p146
    %p148 = scmp.ne.s32.totalorder %s134, %s135
    %p149 = scmp.eq.s32.totalorder %s17, 1
    %p150 = por %p148, %p149
    %p152 = scmp.ne.s32.totalorder %s135, %s151
    %p153 = scmp.eq.s32.totalorder %s17, 0
    %p154 = por %p152, %p153
    %p155 = scmp.le.s32.totalorder 1, %s11
    %p156 = scmp.lt.s32.totalorder %s11, 3
    %p157 = pnand %p155, %p156
    %p158 = pneg %p157
    // Predicated region
    $region9: #{vqvae_forward.12} parent=5 // pred_check
      _
    $region10: #{vqvae_forward.12} parent=5 // pred_check_branch
      %160 = sbr.rel (%p157) target = $region12
    $region11: #{vqvae_forward.12} parent=5 // pred_region
      %s161 = ssub.s32 %s11, 1
      // Predicated region
      $region13: #{vqvae_forward.12} parent=11 // pred_check
        %p162 = pneg %p58
      $region14: #{vqvae_forward.12} parent=11 // pred_check_branch
        %164 = sbr.rel (%p162) target = $region16
      $region15: #{vqvae_forward.12} parent=11 // pred_region
        _
      $region16: #{vqvae_forward.12} parent=11 // pred_fallthru
        _
      // Predicated region
      $region17: #{vqvae_forward.12} parent=11 // pred_check
        %p165 = pneg %p79
      $region18: #{vqvae_forward.12} parent=11 // pred_check_branch
        %167 = sbr.rel (%p165) target = $region20
      $region19: #{vqvae_forward.12} parent=11 // pred_region
        _
      $region20: #{vqvae_forward.12} parent=11 // pred_fallthru
        _
      // Predicated region
      $region21: #{vqvae_forward.12} parent=11 // pred_check
        %p168 = pneg %p100
      $region22: #{vqvae_forward.12} parent=11 // pred_check_branch
        %170 = sbr.rel (%p168) target = $region24
      $region23: #{vqvae_forward.12} parent=11 // pred_region
        _
      $region24: #{vqvae_forward.12} parent=11 // pred_fallthru
        _
      // Predicated region
      $region25: #{vqvae_forward.12} parent=11 // pred_check
        %p171 = pneg %p121
      $region26: #{vqvae_forward.12} parent=11 // pred_check_branch
        %173 = sbr.rel (%p171) target = $region28
      $region27: #{vqvae_forward.12} parent=11 // pred_region
        _
      $region28: #{vqvae_forward.12} parent=11 // pred_fallthru
        _
    $region12: #{vqvae_forward.12} parent=5 // pred_fallthru
      _
    %p174 = scmp.lt.s32.totalorder %s11, 2
    // Predicated region
    $region29: #{vqvae_forward.12} parent=5 // pred_check
      %p175 = pneg %p174
    $region30: #{vqvae_forward.12} parent=5 // pred_check_branch
      %177 = sbr.rel (%p175) target = $region32
    $region31: #{vqvae_forward.12} parent=5 // pred_region
      // Predicated region
      $region33: #{vqvae_forward.12} parent=31 // pred_check
        %p178 = pneg %p31
      $region34: #{vqvae_forward.12} parent=31 // pred_check_branch
        %180 = sbr.rel (%p178) target = $region36
      $region35: #{vqvae_forward.12} parent=31 // pred_region
        %p181 = scmp.lt.s32.totalorder %s11, 1
        %s182 = scalar_select %p181, %s11, 1
        %s183 = smul.addr %s182, 5
        %s184 = smul.addr %s183, 4
        %s185 = scalar_lea.vmem %s0, %s184
      $region36: #{vqvae_forward.12} parent=31 // pred_fallthru
        _
    $region32: #{vqvae_forward.12} parent=5 // pred_fallthru
      _
    %p186 = scmp.le.s32.totalorder 1, %s11
    %p187 = scmp.lt.s32.totalorder %s11, 3
    %p188 = pnand %p186, %p187
    %p189 = pneg %p188
    // Predicated region
    $region37: #{vqvae_forward.12} parent=5 // pred_check
      _
    $region38: #{vqvae_forward.12} parent=5 // pred_check_branch
      %191 = sbr.rel (%p188) target = $region40
    $region39: #{vqvae_forward.12} parent=5 // pred_region
      %s192 = ssub.s32 %s11, 1
      %p193 = scmp.lt.s32.totalorder %s16, 1
      %s194 = scalar_select %p193, %s16, 1
      %s195 = smul.addr %s194, 5
      %s196 = smul.addr %s195, 4
      %s197 = scalar_lea.vmem %s0, %s196
      %p198 = pneg %p37
      %p199 = pneg %p34
      %p200 = pneg %p58
      %p201 = pneg %p55
      %p202 = pneg %p79
      %p203 = pneg %p76
      %p204 = pneg %p100
      %p205 = pneg %p97
      %p206 = pneg %p121
      %p207 = pneg %p118
      %p208 = pneg %p147
      %p209 = pneg %p144
      %p210 = scmp.lt.s32.totalorder %s16, 1
      %s211 = scalar_select %p210, %s16, 1
      %s212 = smul.addr %s211, 5
      %s213 = smul.addr %s212, 8
      %s214 = scalar_lea.vmem %s5, %s213
      %p215 = scmp.lt.s32.totalorder %s16, 1
      %s216 = scalar_select %p215, %s16, 1
      %s217 = smul.addr %s216, 5
      %s218 = smul.addr %s217, 4
      %s219 = scalar_lea.vmem %s0, %s218
      %p220 = scmp.lt.s32.totalorder %s16, 1
      %s221 = scalar_select %p220, %s16, 1
      %s222 = smul.addr %s221, 5
      %s223 = smul.addr %s222, 8
      %s224 = scalar_lea.vmem %s5, %s223
      %v226 = vld [vmem:[%s219] sm:$0xf]
      %v227 = vld [vmem:[%s219 + $0x4] sm:$0xf]
      %v228 = vld [vmem:[%s219 + $0x8] sm:$0xf]
      %v229 = vld [vmem:[%s219 + $0xc] sm:$0xf]
      %v230 = vld [vmem:[%s219 + $0x10] sm:$0x3]
      %v231 = vunpack.c.l.bf16 %v226
      %v232 = vunpack.c.l.bf16 %v227
      %v233 = vunpack.c.l.bf16 %v228
      %v234 = vunpack.c.l.bf16 %v229
      %v235 = vunpack.c.l.bf16 %v230
      %v236 = vmax.f32 %v231, 0.0
      %v237 = vmax.f32 %v232, 0.0
      %v238 = vmax.f32 %v233, 0.0
      %v239 = vmax.f32 %v234, 0.0
      %v240 = vmax.f32 %v235, 0.0
      %v241 = vpack.c.bf16 %v237, %v236
      %v242 = vpack.c.bf16 %v239, %v238
      %v243 = vpack.c.bf16 %v240, %v240
      %v244 = vld [vmem:[%s1] sm:$0xf]
      %v245 = vld [vmem:[%s1 + $0x4] sm:$0xf]
      %v246 = vld [vmem:[%s1 + $0x8] sm:$0xf]
      %v247 = vld [vmem:[%s1 + $0xc] sm:$0xf]
      %v248 = vld [vmem:[%s1 + $0x10] sm:$0xf]
      %v249 = vld [vmem:[%s1 + $0x14] sm:$0xf]
      %v250 = vld [vmem:[%s1 + $0x18] sm:$0xf]
      %v251 = vld [vmem:[%s1 + $0x1c] sm:$0xf]
      %vm252 = vsmask.f32 7424
      %v254 = vshrl.u32 %v241, 16
      %v256 = vshll.u32 %v241, 16
      %v258 = vrot.slane %v256, 1
      %v259 = vor.u32 %v254, %v258
      %v261 = vshll.u32 %v242, 16
      %v263 = vrot.slane %v261, 1
      %v264 = vsel %vm252, %v259, %v263
      %v265 = vshrl.u32 %v242, 16
      %v267 = vor.u32 %v265, %v263
      %v272 = vunpack.c.l.b16 %v248
      %v273 = vunpack.c.l.b16 %v249
      %v274 = vunpack.c.l.b16 %v250
      %v275 = vunpack.c.l.b16 %v251
      %v276 = vpack.c.b16 %v273, %v272
      %v277 = vpack.c.b16 %v275, %v274
      %vm280 = vcmask 261120
      %v282 = vsel %vm280, %v264, 0
      %v285 = vsel %vm280, %v267, 0
      %287 = vmatprep.subr.bf16.mxu0 0
      %288 = vmatpush1.bf16.msra.mxu0 0
      %289 = vmatprep.subr.bf16.mxu0 0
      %290 = vmatpush1.bf16.msra.mxu0 0
      %291 = vmatprep.subr.bf16.mxu0 0
      %292 = vmatpush1.bf16.msra.mxu0 0
      %293 = vmatprep.subr.bf16.mxu0 0
      %294 = vmatpush1.bf16.msra.mxu0 0
      %295 = vmatprep.subr.bf16.mxu0 0
      %296 = vmatpush1.bf16.msra.mxu0 0
      %297 = vmatprep.subr.bf16.mxu0 0
      %298 = vmatpush1.bf16.msra.mxu0 0
      %299 = vmatprep.subr.bf16.mxu0 0
      %300 = vmatpush1.bf16.msra.mxu0 %v277
      %301 = vmatprep.subr.bf16.mxu0 0
      %302 = vmatpush1.bf16.msra.mxu0 %v276
      %303 = vmatprep.subr.bf16.mxu0 0
      %304 = vmatpush2.bf16.msra.mxu0 0
      %305 = vmatprep.subr.bf16.mxu0 0
      %306 = vmatpush2.bf16.msra.mxu0 0
      %307 = vmatprep.subr.bf16.mxu0 0
      %308 = vmatpush2.bf16.msra.mxu0 0
      %309 = vmatprep.subr.bf16.mxu0 0
      %310 = vmatpush2.bf16.msra.mxu0 0
      %311 = vmatprep.subr.bf16.mxu0 0
      %312 = vmatpush2.bf16.msra.mxu0 0
      %313 = vmatprep.subr.bf16.mxu0 0
      %314 = vmatpush2.bf16.msra.mxu0 0
      %315 = vmatprep.subr.bf16.mxu0 0
      %316 = vmatpush2.bf16.msra.mxu0 0
      %317 = vmatprep.subr.bf16.mxu0 0
      %318 = vmatpush2.bf16.msra.mxu0 0
      %319 = vmatprep.mubr.bf16.mxu0 0
      %320 = vmatmul.mubr.bf16.gmra.mxu0 %v282
      %v321 = vpop.f32.mrf.mxu0
      %v322 = vadd.f32 0.0, %v321
      %v323 = vpop.f32.mrf.mxu0
      %v324 = vpop.f32.mrf.mxu0
      %v325 = vadd.f32 0.0, %v324
      %v326 = vpop.f32.mrf.mxu0
      %327 = vmatprep.mubr.bf16.mxu0 0
      %328 = vmatmul.mubr.bf16.gmra.mxu0 %v285
      %v329 = vpop.f32.mrf.mxu0
      %v330 = vadd.f32 0.0, %v329
      %v331 = vpop.f32.mrf.mxu0
      %v332 = vpop.f32.mrf.mxu0
      %v333 = vpop.f32.mrf.mxu0
      %334 = vdwg.mxu0
      %v339 = vunpack.c.l.b16 %v244
      %v340 = vunpack.c.l.b16 %v245
      %v341 = vunpack.c.l.b16 %v246
      %v342 = vunpack.c.l.b16 %v247
      %v343 = vpack.c.b16 %v340, %v339
      %v344 = vpack.c.b16 %v342, %v341
      %v347 = vsel %vm280, %v241, 0
      %v349 = vsel %vm280, %v242, 0
      %351 = vmatprep.subr.bf16.mxu0 0
      %352 = vmatpush1.bf16.msra.mxu0 0
      %353 = vmatprep.subr.bf16.mxu0 0
      %354 = vmatpush1.bf16.msra.mxu0 0
      %355 = vmatprep.subr.bf16.mxu0 0
      %356 = vmatpush1.bf16.msra.mxu0 0
      %357 = vmatprep.subr.bf16.mxu0 0
      %358 = vmatpush1.bf16.msra.mxu0 0
      %359 = vmatprep.subr.bf16.mxu0 0
      %360 = vmatpush1.bf16.msra.mxu0 0
      %361 = vmatprep.subr.bf16.mxu0 0
      %362 = vmatpush1.bf16.msra.mxu0 0
      %363 = vmatprep.subr.bf16.mxu0 0
      %364 = vmatpush1.bf16.msra.mxu0 %v344
      %365 = vmatprep.subr.bf16.mxu0 0
      %366 = vmatpush1.bf16.msra.mxu0 %v343
      %367 = vmatprep.subr.bf16.mxu0 0
      %368 = vmatpush2.bf16.msra.mxu0 0
      %369 = vmatprep.subr.bf16.mxu0 0
      %370 = vmatpush2.bf16.msra.mxu0 0
      %371 = vmatprep.subr.bf16.mxu0 0
      %372 = vmatpush2.bf16.msra.mxu0 0
      %373 = vmatprep.subr.bf16.mxu0 0
      %374 = vmatpush2.bf16.msra.mxu0 0
      %375 = vmatprep.subr.bf16.mxu0 0
      %376 = vmatpush2.bf16.msra.mxu0 0
      %377 = vmatprep.subr.bf16.mxu0 0
      %378 = vmatpush2.bf16.msra.mxu0 0
      %379 = vmatprep.subr.bf16.mxu0 0
      %380 = vmatpush2.bf16.msra.mxu0 0
      %381 = vmatprep.subr.bf16.mxu0 0
      %382 = vmatpush2.bf16.msra.mxu0 0
      %383 = vmatprep.mubr.bf16.mxu0 0
      %384 = vmatmul.mubr.bf16.gmra.mxu0 %v347
      %v385 = vpop.f32.mrf.mxu0
      %v386 = vadd.f32 %v322, %v385
      %v387 = vpop.f32.mrf.mxu0
      %v388 = vpop.f32.mrf.mxu0
      %v389 = vadd.f32 %v325, %v388
      %v390 = vpop.f32.mrf.mxu0
      %391 = vmatprep.mubr.bf16.mxu0 0
      %392 = vmatmul.mubr.bf16.gmra.mxu0 %v349
      %v393 = vpop.f32.mrf.mxu0
      %v394 = vadd.f32 %v330, %v393
      %v395 = vpop.f32.mrf.mxu0
      %v396 = vpop.f32.mrf.mxu0
      %v397 = vpop.f32.mrf.mxu0
      %398 = vdwg.mxu0
      %v399 = vld [vmem:[%s1 + $0x20] sm:$0xf]
      %v400 = vld [vmem:[%s1 + $0x24] sm:$0xf]
      %v401 = vld [vmem:[%s1 + $0x28] sm:$0xf]
      %v402 = vld [vmem:[%s1 + $0x2c] sm:$0xf]
      %vm405 = vcmask 1046528
      %v406 = vrot.slane %v241, 1
      %v407 = vrot.slane %v242, 1
      %v408 = vsel %vm405, %v406, %v407
      %v413 = vunpack.c.l.b16 %v399
      %v414 = vunpack.c.l.b16 %v400
      %v415 = vunpack.c.l.b16 %v401
      %v416 = vunpack.c.l.b16 %v402
      %v417 = vpack.c.b16 %v414, %v413
      %v418 = vpack.c.b16 %v416, %v415
      %v422 = vsel %vm280, %v408, 0
      %v425 = vsel %vm280, %v407, 0
      %427 = vmatprep.subr.bf16.mxu0 0
      %428 = vmatpush1.bf16.msra.mxu0 0
      %429 = vmatprep.subr.bf16.mxu0 0
      %430 = vmatpush1.bf16.msra.mxu0 0
      %431 = vmatprep.subr.bf16.mxu0 0
      %432 = vmatpush1.bf16.msra.mxu0 0
      %433 = vmatprep.subr.bf16.mxu0 0
      %434 = vmatpush1.bf16.msra.mxu0 0
      %435 = vmatprep.subr.bf16.mxu0 0
      %436 = vmatpush1.bf16.msra.mxu0 0
      %437 = vmatprep.subr.bf16.mxu0 0
      %438 = vmatpush1.bf16.msra.mxu0 0
      %439 = vmatprep.subr.bf16.mxu0 0
      %440 = vmatpush1.bf16.msra.mxu0 %v418
      %441 = vmatprep.subr.bf16.mxu0 0
      %442 = vmatpush1.bf16.msra.mxu0 %v417
      %443 = vmatprep.subr.bf16.mxu0 0
      %444 = vmatpush2.bf16.msra.mxu0 0
      %445 = vmatprep.subr.bf16.mxu0 0
      %446 = vmatpush2.bf16.msra.mxu0 0
      %447 = vmatprep.subr.bf16.mxu0 0
      %448 = vmatpush2.bf16.msra.mxu0 0
      %449 = vmatprep.subr.bf16.mxu0 0
      %450 = vmatpush2.bf16.msra.mxu0 0
      %451 = vmatprep.subr.bf16.mxu0 0
      %452 = vmatpush2.bf16.msra.mxu0 0
      %453 = vmatprep.subr.bf16.mxu0 0
      %454 = vmatpush2.bf16.msra.mxu0 0
      %455 = vmatprep.subr.bf16.mxu0 0
      %456 = vmatpush2.bf16.msra.mxu0 0
      %457 = vmatprep.subr.bf16.mxu0 0
      %458 = vmatpush2.bf16.msra.mxu0 0
      %459 = vmatprep.mubr.bf16.mxu0 0
      %460 = vmatmul.mubr.bf16.gmra.mxu0 %v422
      %v461 = vpop.f32.mrf.mxu0
      %v462 = vadd.f32 0.0, %v461
      %v463 = vpop.f32.mrf.mxu0
      %v464 = vpop.f32.mrf.mxu0
      %v465 = vadd.f32 0.0, %v464
      %v466 = vpop.f32.mrf.mxu0
      %467 = vmatprep.mubr.bf16.mxu0 0
      %468 = vmatmul.mubr.bf16.gmra.mxu0 %v425
      %v469 = vpop.f32.mrf.mxu0
      %v470 = vadd.f32 0.0, %v469
      %v471 = vpop.f32.mrf.mxu0
      %v472 = vpop.f32.mrf.mxu0
      %v473 = vpop.f32.mrf.mxu0
      %474 = vdwg.mxu0
      %v475 = vadd.f32 %v386, %v462
      %v476 = vadd.f32 %v389, %v465
      %v477 = vadd.f32 %v394, %v470
      %v478 = vld [vmem:[%s1 + $0x30] sm:$0xf]
      %v479 = vld [vmem:[%s1 + $0x34] sm:$0xf]
      %v480 = vld [vmem:[%s1 + $0x38] sm:$0xf]
      %v481 = vld [vmem:[%s1 + $0x3c] sm:$0xf]
      %vm482 = vcmask 1044480
      %v483 = vrot.slane %v241, 3
      %v484 = vrot.slane %v242, 3
      %v485 = vsel %vm482, %v483, %v484
      %v490 = vunpack.c.l.b16 %v478
      %v491 = vunpack.c.l.b16 %v479
      %v492 = vunpack.c.l.b16 %v480
      %v493 = vunpack.c.l.b16 %v481
      %v494 = vpack.c.b16 %v491, %v490
      %v495 = vpack.c.b16 %v493, %v492
      %v499 = vsel %vm280, %v485, 0
      %v502 = vsel %vm280, %v484, 0
      %504 = vmatprep.subr.bf16.mxu0 0
      %505 = vmatpush1.bf16.msra.mxu0 0
      %506 = vmatprep.subr.bf16.mxu0 0
      %507 = vmatpush1.bf16.msra.mxu0 0
      %508 = vmatprep.subr.bf16.mxu0 0
      %509 = vmatpush1.bf16.msra.mxu0 0
      %510 = vmatprep.subr.bf16.mxu0 0
      %511 = vmatpush1.bf16.msra.mxu0 0
      %512 = vmatprep.subr.bf16.mxu0 0
      %513 = vmatpush1.bf16.msra.mxu0 0
      %514 = vmatprep.subr.bf16.mxu0 0
      %515 = vmatpush1.bf16.msra.mxu0 0
      %516 = vmatprep.subr.bf16.mxu0 0
      %517 = vmatpush1.bf16.msra.mxu0 %v495
      %518 = vmatprep.subr.bf16.mxu0 0
      %519 = vmatpush1.bf16.msra.mxu0 %v494
      %520 = vmatprep.subr.bf16.mxu0 0
      %521 = vmatpush2.bf16.msra.mxu0 0
      %522 = vmatprep.subr.bf16.mxu0 0
      %523 = vmatpush2.bf16.msra.mxu0 0
      %524 = vmatprep.subr.bf16.mxu0 0
      %525 = vmatpush2.bf16.msra.mxu0 0
      %526 = vmatprep.subr.bf16.mxu0 0
      %527 = vmatpush2.bf16.msra.mxu0 0
      %528 = vmatprep.subr.bf16.mxu0 0
      %529 = vmatpush2.bf16.msra.mxu0 0
      %530 = vmatprep.subr.bf16.mxu0 0
      %531 = vmatpush2.bf16.msra.mxu0 0
      %532 = vmatprep.subr.bf16.mxu0 0
      %533 = vmatpush2.bf16.msra.mxu0 0
      %534 = vmatprep.subr.bf16.mxu0 0
      %535 = vmatpush2.bf16.msra.mxu0 0
      %536 = vmatprep.mubr.bf16.mxu0 0
      %537 = vmatmul.mubr.bf16.gmra.mxu0 %v499
      %v538 = vpop.f32.mrf.mxu0
      %v539 = vadd.f32 0.0, %v538
      %v540 = vpop.f32.mrf.mxu0
      %v541 = vpop.f32.mrf.mxu0
      %v542 = vadd.f32 0.0, %v541
      %v543 = vpop.f32.mrf.mxu0
      %544 = vmatprep.mubr.bf16.mxu0 0
      %545 = vmatmul.mubr.bf16.gmra.mxu0 %v502
      %v546 = vpop.f32.mrf.mxu0
      %v547 = vadd.f32 0.0, %v546
      %v548 = vpop.f32.mrf.mxu0
      %v549 = vpop.f32.mrf.mxu0
      %v550 = vpop.f32.mrf.mxu0
      %551 = vdwg.mxu0
      %v552 = vadd.f32 %v475, %v539
      %v553 = vadd.f32 %v476, %v542
      %v554 = vadd.f32 %v477, %v547
      %v555 = vld [vmem:[%s1 + $0x40] sm:$0xf]
      %v556 = vld [vmem:[%s1 + $0x44] sm:$0xf]
      %v557 = vld [vmem:[%s1 + $0x48] sm:$0xf]
      %v558 = vld [vmem:[%s1 + $0x4c] sm:$0xf]
      %vm559 = vsmask.f32 4352
      %v560 = vrot.slane %v254, 3
      %v561 = vrot.slane %v256, 4
      %v562 = vor.u32 %v560, %v561
      %v563 = vrot.slane %v265, 3
      %v564 = vrot.slane %v261, 4
      %v565 = vor.u32 %v563, %v564
      %v566 = vsel %vm559, %v562, %v565
      %v571 = vunpack.c.l.b16 %v555
      %v572 = vunpack.c.l.b16 %v556
      %v573 = vunpack.c.l.b16 %v557
      %v574 = vunpack.c.l.b16 %v558
      %v575 = vpack.c.b16 %v572, %v571
      %v576 = vpack.c.b16 %v574, %v573
      %v580 = vsel %vm280, %v566, 0
      %v583 = vsel %vm280, %v565, 0
      %585 = vmatprep.subr.bf16.mxu0 0
      %586 = vmatpush1.bf16.msra.mxu0 0
      %587 = vmatprep.subr.bf16.mxu0 0
      %588 = vmatpush1.bf16.msra.mxu0 0
      %589 = vmatprep.subr.bf16.mxu0 0
      %590 = vmatpush1.bf16.msra.mxu0 0
      %591 = vmatprep.subr.bf16.mxu0 0
      %592 = vmatpush1.bf16.msra.mxu0 0
      %593 = vmatprep.subr.bf16.mxu0 0
      %594 = vmatpush1.bf16.msra.mxu0 0
      %595 = vmatprep.subr.bf16.mxu0 0
      %596 = vmatpush1.bf16.msra.mxu0 0
      %597 = vmatprep.subr.bf16.mxu0 0
      %598 = vmatpush1.bf16.msra.mxu0 %v576
      %599 = vmatprep.subr.bf16.mxu0 0
      %600 = vmatpush1.bf16.msra.mxu0 %v575
      %601 = vmatprep.subr.bf16.mxu0 0
      %602 = vmatpush2.bf16.msra.mxu0 0
      %603 = vmatprep.subr.bf16.mxu0 0
      %604 = vmatpush2.bf16.msra.mxu0 0
      %605 = vmatprep.subr.bf16.mxu0 0
      %606 = vmatpush2.bf16.msra.mxu0 0
      %607 = vmatprep.subr.bf16.mxu0 0
      %608 = vmatpush2.bf16.msra.mxu0 0
      %609 = vmatprep.subr.bf16.mxu0 0
      %610 = vmatpush2.bf16.msra.mxu0 0
      %611 = vmatprep.subr.bf16.mxu0 0
      %612 = vmatpush2.bf16.msra.mxu0 0
      %613 = vmatprep.subr.bf16.mxu0 0
      %614 = vmatpush2.bf16.msra.mxu0 0
      %615 = vmatprep.subr.bf16.mxu0 0
      %616 = vmatpush2.bf16.msra.mxu0 0
      %617 = vmatprep.mubr.bf16.mxu0 0
      %618 = vmatmul.mubr.bf16.gmra.mxu0 %v580
      %v619 = vpop.f32.mrf.mxu0
      %v620 = vadd.f32 0.0, %v619
      %v621 = vpop.f32.mrf.mxu0
      %v622 = vpop.f32.mrf.mxu0
      %v623 = vadd.f32 0.0, %v622
      %v624 = vpop.f32.mrf.mxu0
      %625 = vmatprep.mubr.bf16.mxu0 0
      %626 = vmatmul.mubr.bf16.gmra.mxu0 %v583
      %v627 = vpop.f32.mrf.mxu0
      %v628 = vadd.f32 0.0, %v627
      %v629 = vpop.f32.mrf.mxu0
      %v630 = vpop.f32.mrf.mxu0
      %v631 = vpop.f32.mrf.mxu0
      %632 = vdwg.mxu0
      %v633 = vadd.f32 %v552, %v620
      %v634 = vadd.f32 %v553, %v623
      %v635 = vadd.f32 %v554, %v628
      %v636 = vld [vmem:[%s1 + $0x50] sm:$0xf]
      %v637 = vld [vmem:[%s1 + $0x54] sm:$0xf]
      %v638 = vld [vmem:[%s1 + $0x58] sm:$0xf]
      %v639 = vld [vmem:[%s1 + $0x5c] sm:$0xf]
      %vm640 = vcmask 1043456
      %v641 = vrot.slane %v241, 4
      %v642 = vrot.slane %v242, 4
      %v643 = vsel %vm640, %v641, %v642
      %v648 = vunpack.c.l.b16 %v636
      %v649 = vunpack.c.l.b16 %v637
      %v650 = vunpack.c.l.b16 %v638
      %v651 = vunpack.c.l.b16 %v639
      %v652 = vpack.c.b16 %v649, %v648
      %v653 = vpack.c.b16 %v651, %v650
      %v657 = vsel %vm280, %v643, 0
      %v660 = vsel %vm280, %v642, 0
      %662 = vmatprep.subr.bf16.mxu0 0
      %663 = vmatpush1.bf16.msra.mxu0 0
      %664 = vmatprep.subr.bf16.mxu0 0
      %665 = vmatpush1.bf16.msra.mxu0 0
      %666 = vmatprep.subr.bf16.mxu0 0
      %667 = vmatpush1.bf16.msra.mxu0 0
      %668 = vmatprep.subr.bf16.mxu0 0
      %669 = vmatpush1.bf16.msra.mxu0 0
      %670 = vmatprep.subr.bf16.mxu0 0
      %671 = vmatpush1.bf16.msra.mxu0 0
      %672 = vmatprep.subr.bf16.mxu0 0
      %673 = vmatpush1.bf16.msra.mxu0 0
      %674 = vmatprep.subr.bf16.mxu0 0
      %675 = vmatpush1.bf16.msra.mxu0 %v653
      %676 = vmatprep.subr.bf16.mxu0 0
      %677 = vmatpush1.bf16.msra.mxu0 %v652
      %678 = vmatprep.subr.bf16.mxu0 0
      %679 = vmatpush2.bf16.msra.mxu0 0
      %680 = vmatprep.subr.bf16.mxu0 0
      %681 = vmatpush2.bf16.msra.mxu0 0
      %682 = vmatprep.subr.bf16.mxu0 0
      %683 = vmatpush2.bf16.msra.mxu0 0
      %684 = vmatprep.subr.bf16.mxu0 0
      %685 = vmatpush2.bf16.msra.mxu0 0
      %686 = vmatprep.subr.bf16.mxu0 0
      %687 = vmatpush2.bf16.msra.mxu0 0
      %688 = vmatprep.subr.bf16.mxu0 0
      %689 = vmatpush2.bf16.msra.mxu0 0
      %690 = vmatprep.subr.bf16.mxu0 0
      %691 = vmatpush2.bf16.msra.mxu0 0
      %692 = vmatprep.subr.bf16.mxu0 0
      %693 = vmatpush2.bf16.msra.mxu0 0
      %694 = vmatprep.mubr.bf16.mxu0 0
      %695 = vmatmul.mubr.bf16.gmra.mxu0 %v657
      %v696 = vpop.f32.mrf.mxu0
      %v697 = vadd.f32 0.0, %v696
      %v698 = vpop.f32.mrf.mxu0
      %v699 = vpop.f32.mrf.mxu0
      %v700 = vadd.f32 0.0, %v699
      %v701 = vpop.f32.mrf.mxu0
      %702 = vmatprep.mubr.bf16.mxu0 0
      %703 = vmatmul.mubr.bf16.gmra.mxu0 %v660
      %v704 = vpop.f32.mrf.mxu0
      %v705 = vadd.f32 0.0, %v704
      %v706 = vpop.f32.mrf.mxu0
      %v707 = vpop.f32.mrf.mxu0
      %v708 = vpop.f32.mrf.mxu0
      %709 = vdwg.mxu0
      %v710 = vadd.f32 %v633, %v697
      %v711 = vadd.f32 %v634, %v700
      %v712 = vadd.f32 %v635, %v705
      %v713 = vld [vmem:[%s1 + $0x60] sm:$0xf]
      %v714 = vld [vmem:[%s1 + $0x64] sm:$0xf]
      %v715 = vld [vmem:[%s1 + $0x68] sm:$0xf]
      %v716 = vld [vmem:[%s1 + $0x6c] sm:$0xf]
      %vm718 = vcmask 1041408
      %v719 = vrot.slane %v241, 6
      %v720 = vrot.slane %v242, 6
      %v721 = vsel %vm718, %v719, %v720
      %v722 = vrot.slane %v243, 6
      %v723 = vsel %vm718, %v720, %v722
      %v728 = vunpack.c.l.b16 %v713
      %v729 = vunpack.c.l.b16 %v714
      %v730 = vunpack.c.l.b16 %v715
      %v731 = vunpack.c.l.b16 %v716
      %v732 = vpack.c.b16 %v729, %v728
      %v733 = vpack.c.b16 %v731, %v730
      %v737 = vsel %vm280, %v721, 0
      %v740 = vsel %vm280, %v723, 0
      %742 = vmatprep.subr.bf16.mxu0 0
      %743 = vmatpush1.bf16.msra.mxu0 0
      %744 = vmatprep.subr.bf16.mxu0 0
      %745 = vmatpush1.bf16.msra.mxu0 0
      %746 = vmatprep.subr.bf16.mxu0 0
      %747 = vmatpush1.bf16.msra.mxu0 0
      %748 = vmatprep.subr.bf16.mxu0 0
      %749 = vmatpush1.bf16.msra.mxu0 0
      %750 = vmatprep.subr.bf16.mxu0 0
      %751 = vmatpush1.bf16.msra.mxu0 0
      %752 = vmatprep.subr.bf16.mxu0 0
      %753 = vmatpush1.bf16.msra.mxu0 0
      %754 = vmatprep.subr.bf16.mxu0 0
      %755 = vmatpush1.bf16.msra.mxu0 %v733
      %756 = vmatprep.subr.bf16.mxu0 0
      %757 = vmatpush1.bf16.msra.mxu0 %v732
      %758 = vmatprep.subr.bf16.mxu0 0
      %759 = vmatpush2.bf16.msra.mxu0 0
      %760 = vmatprep.subr.bf16.mxu0 0
      %761 = vmatpush2.bf16.msra.mxu0 0
      %762 = vmatprep.subr.bf16.mxu0 0
      %763 = vmatpush2.bf16.msra.mxu0 0
      %764 = vmatprep.subr.bf16.mxu0 0
      %765 = vmatpush2.bf16.msra.mxu0 0
      %766 = vmatprep.subr.bf16.mxu0 0
      %767 = vmatpush2.bf16.msra.mxu0 0
      %768 = vmatprep.subr.bf16.mxu0 0
      %769 = vmatpush2.bf16.msra.mxu0 0
      %770 = vmatprep.subr.bf16.mxu0 0
      %771 = vmatpush2.bf16.msra.mxu0 0
      %772 = vmatprep.subr.bf16.mxu0 0
      %773 = vmatpush2.bf16.msra.mxu0 0
      %774 = vmatprep.mubr.bf16.mxu0 0
      %775 = vmatmul.mubr.bf16.gmra.mxu0 %v737
      %v776 = vpop.f32.mrf.mxu0
      %v777 = vadd.f32 0.0, %v776
      %v778 = vpop.f32.mrf.mxu0
      %v779 = vpop.f32.mrf.mxu0
      %v780 = vadd.f32 0.0, %v779
      %v781 = vpop.f32.mrf.mxu0
      %782 = vmatprep.mubr.bf16.mxu0 0
      %783 = vmatmul.mubr.bf16.gmra.mxu0 %v740
      %v784 = vpop.f32.mrf.mxu0
      %v785 = vadd.f32 0.0, %v784
      %v786 = vpop.f32.mrf.mxu0
      %v787 = vpop.f32.mrf.mxu0
      %v788 = vpop.f32.mrf.mxu0
      %789 = vdwg.mxu0
      %v790 = vadd.f32 %v710, %v777
      %v791 = vadd.f32 %v711, %v780
      %v792 = vadd.f32 %v712, %v785
      %v793 = vld [vmem:[%s1 + $0x70] sm:$0xf]
      %v794 = vld [vmem:[%s1 + $0x74] sm:$0xf]
      %v795 = vld [vmem:[%s1 + $0x78] sm:$0xf]
      %v796 = vld [vmem:[%s1 + $0x7c] sm:$0xf]
      %vm797 = vsmask.f32 1280
      %v798 = vrot.slane %v254, 6
      %v799 = vrot.slane %v256, 7
      %v800 = vor.u32 %v798, %v799
      %v801 = vrot.slane %v265, 6
      %v802 = vrot.slane %v261, 7
      %v803 = vor.u32 %v801, %v802
      %v804 = vsel %vm797, %v800, %v803
      %v806 = vshrl.u32 %v243, 16
      %v808 = vrot.slane %v806, 6
      %v809 = vshll.u32 %v243, 16
      %v811 = vrot.slane %v809, 7
      %v812 = vor.u32 %v808, %v811
      %v813 = vsel %vm797, %v803, %v812
      %v818 = vunpack.c.l.b16 %v793
      %v819 = vunpack.c.l.b16 %v794
      %v820 = vunpack.c.l.b16 %v795
      %v821 = vunpack.c.l.b16 %v796
      %v822 = vpack.c.b16 %v819, %v818
      %v823 = vpack.c.b16 %v821, %v820
      %v827 = vsel %vm280, %v804, 0
      %v830 = vsel %vm280, %v813, 0
      %832 = vmatprep.subr.bf16.mxu0 0
      %833 = vmatpush1.bf16.msra.mxu0 0
      %834 = vmatprep.subr.bf16.mxu0 0
      %835 = vmatpush1.bf16.msra.mxu0 0
      %836 = vmatprep.subr.bf16.mxu0 0
      %837 = vmatpush1.bf16.msra.mxu0 0
      %838 = vmatprep.subr.bf16.mxu0 0
      %839 = vmatpush1.bf16.msra.mxu0 0
      %840 = vmatprep.subr.bf16.mxu0 0
      %841 = vmatpush1.bf16.msra.mxu0 0
      %842 = vmatprep.subr.bf16.mxu0 0
      %843 = vmatpush1.bf16.msra.mxu0 0
      %844 = vmatprep.subr.bf16.mxu0 0
      %845 = vmatpush1.bf16.msra.mxu0 %v823
      %846 = vmatprep.subr.bf16.mxu0 0
      %847 = vmatpush1.bf16.msra.mxu0 %v822
      %848 = vmatprep.subr.bf16.mxu0 0
      %849 = vmatpush2.bf16.msra.mxu0 0
      %850 = vmatprep.subr.bf16.mxu0 0
      %851 = vmatpush2.bf16.msra.mxu0 0
      %852 = vmatprep.subr.bf16.mxu0 0
      %853 = vmatpush2.bf16.msra.mxu0 0
      %854 = vmatprep.subr.bf16.mxu0 0
      %855 = vmatpush2.bf16.msra.mxu0 0
      %856 = vmatprep.subr.bf16.mxu0 0
      %857 = vmatpush2.bf16.msra.mxu0 0
      %858 = vmatprep.subr.bf16.mxu0 0
      %859 = vmatpush2.bf16.msra.mxu0 0
      %860 = vmatprep.subr.bf16.mxu0 0
      %861 = vmatpush2.bf16.msra.mxu0 0
      %862 = vmatprep.subr.bf16.mxu0 0
      %863 = vmatpush2.bf16.msra.mxu0 0
      %864 = vmatprep.mubr.bf16.mxu0 0
      %865 = vmatmul.mubr.bf16.gmra.mxu0 %v827
      %v866 = vpop.f32.mrf.mxu0
      %v867 = vadd.f32 0.0, %v866
      %v868 = vpop.f32.mrf.mxu0
      %v869 = vpop.f32.mrf.mxu0
      %v870 = vadd.f32 0.0, %v869
      %v871 = vpop.f32.mrf.mxu0
      %872 = vmatprep.mubr.bf16.mxu0 0
      %873 = vmatmul.mubr.bf16.gmra.mxu0 %v830
      %v874 = vpop.f32.mrf.mxu0
      %v875 = vadd.f32 0.0, %v874
      %v876 = vpop.f32.mrf.mxu0
      %v877 = vpop.f32.mrf.mxu0
      %v878 = vpop.f32.mrf.mxu0
      %879 = vdwg.mxu0
      %v880 = vadd.f32 %v790, %v867
      %v881 = vadd.f32 %v791, %v870
      %v882 = vadd.f32 %v792, %v875
      %v883 = vld [vmem:[%s1 + $0x80] sm:$0xf]
      %v884 = vld [vmem:[%s1 + $0x84] sm:$0xf]
      %v885 = vld [vmem:[%s1 + $0x88] sm:$0xf]
      %v886 = vld [vmem:[%s1 + $0x8c] sm:$0xf]
      %vm887 = vcmask 1040384
      %v888 = vrot.slane %v241, 7
      %v889 = vrot.slane %v242, 7
      %v890 = vsel %vm887, %v888, %v889
      %v891 = vrot.slane %v243, 7
      %v892 = vsel %vm887, %v889, %v891
      %v897 = vunpack.c.l.b16 %v883
      %v898 = vunpack.c.l.b16 %v884
      %v899 = vunpack.c.l.b16 %v885
      %v900 = vunpack.c.l.b16 %v886
      %v901 = vpack.c.b16 %v898, %v897
      %v902 = vpack.c.b16 %v900, %v899
      %v906 = vsel %vm280, %v890, 0
      %v909 = vsel %vm280, %v892, 0
      %911 = vmatprep.subr.bf16.mxu0 0
      %912 = vmatpush1.bf16.msra.mxu0 0
      %913 = vmatprep.subr.bf16.mxu0 0
      %914 = vmatpush1.bf16.msra.mxu0 0
      %915 = vmatprep.subr.bf16.mxu0 0
      %916 = vmatpush1.bf16.msra.mxu0 0
      %917 = vmatprep.subr.bf16.mxu0 0
      %918 = vmatpush1.bf16.msra.mxu0 0
      %919 = vmatprep.subr.bf16.mxu0 0
      %920 = vmatpush1.bf16.msra.mxu0 0
      %921 = vmatprep.subr.bf16.mxu0 0
      %922 = vmatpush1.bf16.msra.mxu0 0
      %923 = vmatprep.subr.bf16.mxu0 0
      %924 = vmatpush1.bf16.msra.mxu0 %v902
      %925 = vmatprep.subr.bf16.mxu0 0
      %926 = vmatpush1.bf16.msra.mxu0 %v901
      %927 = vmatprep.subr.bf16.mxu0 0
      %928 = vmatpush2.bf16.msra.mxu0 0
      %929 = vmatprep.subr.bf16.mxu0 0
      %930 = vmatpush2.bf16.msra.mxu0 0
      %931 = vmatprep.subr.bf16.mxu0 0
      %932 = vmatpush2.bf16.msra.mxu0 0
      %933 = vmatprep.subr.bf16.mxu0 0
      %934 = vmatpush2.bf16.msra.mxu0 0
      %935 = vmatprep.subr.bf16.mxu0 0
      %936 = vmatpush2.bf16.msra.mxu0 0
      %937 = vmatprep.subr.bf16.mxu0 0
      %938 = vmatpush2.bf16.msra.mxu0 0
      %939 = vmatprep.subr.bf16.mxu0 0
      %940 = vmatpush2.bf16.msra.mxu0 0
      %941 = vmatprep.subr.bf16.mxu0 0
      %942 = vmatpush2.bf16.msra.mxu0 0
      %943 = vmatprep.mubr.bf16.mxu0 0
      %944 = vmatmul.mubr.bf16.gmra.mxu0 %v906
      %v945 = vpop.f32.mrf.mxu0
      %v946 = vadd.f32 0.0, %v945
      %v947 = vpop.f32.mrf.mxu0
      %v948 = vpop.f32.mrf.mxu0
      %v949 = vadd.f32 0.0, %v948
      %v950 = vpop.f32.mrf.mxu0
      %951 = vmatprep.mubr.bf16.mxu0 0
      %952 = vmatmul.mubr.bf16.gmra.mxu0 %v909
      %v953 = vpop.f32.mrf.mxu0
      %v954 = vadd.f32 0.0, %v953
      %v955 = vpop.f32.mrf.mxu0
      %v956 = vpop.f32.mrf.mxu0
      %v957 = vpop.f32.mrf.mxu0
      %958 = vdwg.mxu0
      %v959 = vadd.f32 %v880, %v946
      %v960 = vadd.f32 %v881, %v949
      %v961 = vadd.f32 %v882, %v954
      %v962 = vld [vmem:[%s2] sm:$0x1]
      %v964 = vlaneseq
      %v965 = vshrl.u32 %v964, 7
      %v966 = vsub.s32 0, %v965
      %v967 = vrot.slane %v962, %v966
      %v969 = vadd.f32 %v959, %v967
      %v970 = vadd.f32 %v960, %v967
      %v971 = vadd.f32 %v961, %v967
      %v972 = vmax.f32 %v969, 0.0
      %v973 = vmax.f32 %v970, 0.0
      %v974 = vmax.f32 %v971, 0.0
      %v975 = vpack.c.bf16 %v973, %v972
      %v976 = vpack.c.bf16 %v974, %v974
      %v977 = vld [vmem:[%s3] sm:$0xf]
      %v978 = vld [vmem:[%s3 + $0x4] sm:$0xf]
      %v979 = vld [vmem:[%s3 + $0x8] sm:$0xf]
      %v980 = vld [vmem:[%s3 + $0xc] sm:$0xf]
      %v981 = vld [vmem:[%s3 + $0x10] sm:$0xf]
      %v982 = vld [vmem:[%s3 + $0x14] sm:$0xf]
      %v983 = vld [vmem:[%s3 + $0x18] sm:$0xf]
      %v984 = vld [vmem:[%s3 + $0x1c] sm:$0xf]
      %v985 = vld [vmem:[%s3 + $0x20] sm:$0xf]
      %v986 = vld [vmem:[%s3 + $0x24] sm:$0xf]
      %v987 = vld [vmem:[%s3 + $0x28] sm:$0xf]
      %v988 = vld [vmem:[%s3 + $0x2c] sm:$0xf]
      %v989 = vld [vmem:[%s3 + $0x30] sm:$0xf]
      %v990 = vld [vmem:[%s3 + $0x34] sm:$0xf]
      %v991 = vld [vmem:[%s3 + $0x38] sm:$0xf]
      %v992 = vld [vmem:[%s3 + $0x3c] sm:$0xf]
      %v993 = vld [vmem:[%s4] sm:$0x1]
      %v995 = vlaneseq
      %v996 = vshrl.u32 %v995, 7
      %v997 = vsub.s32 0, %v996
      %v998 = vrot.slane %v993, %v997
      %v1016 = vunpack.c.l.b16 %v977
      %v1017 = vunpack.c.l.b16 %v978
      %v1018 = vunpack.c.l.b16 %v979
      %v1019 = vunpack.c.l.b16 %v980
      %v1020 = vunpack.c.l.b16 %v981
      %v1021 = vunpack.c.l.b16 %v982
      %v1022 = vunpack.c.l.b16 %v983
      %v1023 = vunpack.c.l.b16 %v984
      %v1024 = vunpack.c.l.b16 %v985
      %v1025 = vunpack.c.l.b16 %v986
      %v1026 = vunpack.c.l.b16 %v987
      %v1027 = vunpack.c.l.b16 %v988
      %v1028 = vunpack.c.l.b16 %v989
      %v1029 = vunpack.c.l.b16 %v990
      %v1030 = vunpack.c.l.b16 %v991
      %v1031 = vunpack.c.l.b16 %v992
      %v1032 = vpack.c.b16 %v1017, %v1016
      %v1033 = vpack.c.b16 %v1019, %v1018
      %v1034 = vpack.c.b16 %v1021, %v1020
      %v1035 = vpack.c.b16 %v1023, %v1022
      %v1036 = vpack.c.b16 %v1025, %v1024
      %v1037 = vpack.c.b16 %v1027, %v1026
      %v1038 = vpack.c.b16 %v1029, %v1028
      %v1039 = vpack.c.b16 %v1031, %v1030
      %1048 = vmatprep.subr.bf16.mxu0 0
      %1049 = vmatpush1.bf16.msra.mxu0 %v1039
      %1050 = vmatprep.subr.bf16.mxu0 0
      %1051 = vmatpush1.bf16.msra.mxu0 %v1038
      %1052 = vmatprep.subr.bf16.mxu0 0
      %1053 = vmatpush1.bf16.msra.mxu0 %v1037
      %1054 = vmatprep.subr.bf16.mxu0 0
      %1055 = vmatpush1.bf16.msra.mxu0 %v1036
      %1056 = vmatprep.subr.bf16.mxu0 0
      %1057 = vmatpush1.bf16.msra.mxu0 %v1035
      %1058 = vmatprep.subr.bf16.mxu0 0
      %1059 = vmatpush1.bf16.msra.mxu0 %v1034
      %1060 = vmatprep.subr.bf16.mxu0 0
      %1061 = vmatpush1.bf16.msra.mxu0 %v1033
      %1062 = vmatprep.subr.bf16.mxu0 0
      %1063 = vmatpush1.bf16.msra.mxu0 %v1032
      %1064 = vmatprep.subr.bf16.mxu0 0
      %1065 = vmatpush2.bf16.msra.mxu0 0
      %1066 = vmatprep.subr.bf16.mxu0 0
      %1067 = vmatpush2.bf16.msra.mxu0 0
      %1068 = vmatprep.subr.bf16.mxu0 0
      %1069 = vmatpush2.bf16.msra.mxu0 0
      %1070 = vmatprep.subr.bf16.mxu0 0
      %1071 = vmatpush2.bf16.msra.mxu0 0
      %1072 = vmatprep.subr.bf16.mxu0 0
      %1073 = vmatpush2.bf16.msra.mxu0 0
      %1074 = vmatprep.subr.bf16.mxu0 0
      %1075 = vmatpush2.bf16.msra.mxu0 0
      %1076 = vmatprep.subr.bf16.mxu0 0
      %1077 = vmatpush2.bf16.msra.mxu0 0
      %1078 = vmatprep.subr.bf16.mxu0 0
      %1079 = vmatpush2.bf16.msra.mxu0 0
      %1080 = vmatprep.mubr.bf16.mxu0 0
      %1081 = vmatmul.mubr.bf16.gmra.mxu0 %v975
      %v1082 = vpop.f32.mrf.mxu0
      %v1083 = vadd.f32 %v998, %v1082
      %v1084 = vpop.f32.mrf.mxu0
      %v1085 = vpop.f32.mrf.mxu0
      %v1086 = vadd.f32 %v998, %v1085
      %v1087 = vpop.f32.mrf.mxu0
      %1088 = vmatprep.mubr.bf16.mxu0 0
      %1089 = vmatmul.mubr.bf16.gmra.mxu0 %v976
      %v1090 = vpop.f32.mrf.mxu0
      %v1091 = vadd.f32 %v998, %v1090
      %v1092 = vpop.f32.mrf.mxu0
      %v1093 = vpop.f32.mrf.mxu0
      %v1094 = vpop.f32.mrf.mxu0
      %1095 = vdwg.mxu0
      %1096 = vst.msk [vmem:[%s224] sm:$0xff] %vm280, 0.0
      %1097 = vst.msk [vmem:[%s224 + $0x8] sm:$0xff] %vm280, 0.0
      %1098 = vst.msk [vmem:[%s224 + $0x10] sm:$0xff] %vm280, 0.0
      %1099 = vst.msk [vmem:[%s224 + $0x18] sm:$0xff] %vm280, 0.0
      %vm1100 = vcmask 257024
      %1101 = vst.msk [vmem:[%s224 + $0x20] sm:$0xf] %vm1100, 0.0
      %vm1104 = vcmask 1040384
      %v1105 = vrot.slane %v231, 7
      %v1106 = vrot.slane %v232, 7
      %v1107 = vsel %vm1104, %v1105, %v1106
      %v1109 = vadd.f32 %v1083, %v1107
      %1110 = vst.msk [vmem:[%s224 + $0x7] sm:$0xf] %vm1100, %v1109
      %v1112 = vrot.slane %v233, 7
      %v1113 = vsel %vm1104, %v1106, %v1112
      %v1116 = vadd.f32 %v1083, %v1106
      %v1117 = vadd.f32 %v1086, %v1113
      %vm1118 = vcmask 261126
      %1119 = vst.msk [vmem:[%s224 + $0x7] sm:$0xc0] %vm1118, %v1116
      %vm1120 = vcmask 254976
      %1121 = vst.msk [vmem:[%s224 + $0xf] sm:$0x3] %vm1120, %v1117
      %v1123 = vadd.f32 %v1086, %v1112
      %vm1124 = vcmask 261124
      %1125 = vst.msk [vmem:[%s224 + $0xf] sm:$0xf0] %vm1124, %v1123
      %v1127 = vrot.slane %v234, 7
      %v1129 = vadd.f32 %v1091, %v1127
      %vm1130 = vcmask 259074
      %1131 = vst.msk [vmem:[%s224 + $0x17] sm:$0x3c] %vm1130, %v1129
      %p1132 = scmp.lt.s32.totalorder %s16, 1
      %s1133 = scalar_select %p1132, %s16, 1
      %s1134 = smul.addr %s1133, 5
      %s1135 = smul.addr %s1134, 8
      %s1136 = scalar_lea.vmem %s5, %s1135
      // Predicated region
      $region41: #{vqvae_forward.12} parent=39 // pred_check
        %p1137 = pneg %p144
      $region42: #{vqvae_forward.12} parent=39 // pred_check_branch
        %1139 = sbr.rel (%p1137) target = $region44
      $region43: #{vqvae_forward.12} parent=39 // pred_region
        _
      $region44: #{vqvae_forward.12} parent=39 // pred_fallthru
        _
    $region40: #{vqvae_forward.12} parent=5 // pred_fallthru
      _
    %p1140 = scmp.le.s32.totalorder 2, %s11
    // Predicated region
    $region45: #{vqvae_forward.12} parent=5 // pred_check
      %p1141 = pneg %p1140
    $region46: #{vqvae_forward.12} parent=5 // pred_check_branch
      %1143 = sbr.rel (%p1141) target = $region48
    $region47: #{vqvae_forward.12} parent=5 // pred_region
      %s1144 = ssub.s32 %s11, 2
      // Predicated region
      $region49: #{vqvae_forward.12} parent=47 // pred_check
        %p1145 = pneg %p150
      $region50: #{vqvae_forward.12} parent=47 // pred_check_branch
        %1147 = sbr.rel (%p1145) target = $region52
      $region51: #{vqvae_forward.12} parent=47 // pred_region
        %p1148 = scmp.lt.s32.totalorder %s17, 1
        %s1149 = scalar_select %p1148, %s17, 1
        %s1150 = smul.addr %s1149, 5
        %s1151 = smul.addr %s1150, 8
        %s1152 = scalar_lea.vmem %s5, %s1151
      $region52: #{vqvae_forward.12} parent=47 // pred_fallthru
        _
    $region48: #{vqvae_forward.12} parent=5 // pred_fallthru
      _
  $region6: #{vqvae_forward.12} parent=0 // loop_footer
    %s15 = sadd.s32 1, %s11
  $region7: #{vqvae_forward.12} parent=0 // loop_footer_branch
    %10 = sbr.rel target = $region3
  $region8: #{vqvae_forward.12} parent=0 // loop_exit
    _

// kernel: vqvae_forward.11
$region0: #{vqvae_forward.11}
  #allocation0 [shape = 'u32[]', space=smem, size = 0x4, offset = 0x4, fixed_abs, tag = 'smem constant byte address 0x4 - core index']
  #allocation1 [shape = 'u32[144,128]{1,0:T(1,128)}', space=vmem, size = 0x12000, scoped, tag = 'internal scratch']
  %s0 = inlined_call_operand.vmem [shape: bf16[2,36,32], index: 0, kind: input, shape index: {}]
  %s1 = inlined_call_operand.vmem [shape: bf16[288,128], index: 1, kind: input, shape index: {}]
  %s2 = inlined_call_operand.vmem [shape: f32[1,128], index: 2, kind: input, shape index: {}]
  %s3 = inlined_call_operand.vmem [shape: bf16[128,128], index: 3, kind: input, shape index: {}]
  %s4 = inlined_call_operand.vmem [shape: f32[1,128], index: 4, kind: input, shape index: {}]
  %s5 = inlined_call_operand.vmem [shape: bf16[2,36,32], index: 5, kind: output, shape index: {}]
  %s6 = sld [smem:[#allocation0]]
  $region53: #{vqvae_forward.11} parent=0
    _
  %s8 = ssub.s32 1, %s6
  %s9 = scalar_select 0, %s8, %s6
  loop: start=0, step=1, limit=4
  $region2: #{vqvae_forward.11} parent=0 // loop_pre_header
    _
  $region3: #{vqvae_forward.11} parent=0 // loop_header
    %s11 = sphi 0, %s15
    %p12 = scmp.ge.s32.totalorder %s11, 4
    %s21 = sphi 0, %s23
    %s24 = sphi 0, %s21
    %s25 = sphi 0, %s24
    %s41 = sphi 0, %s25
    %s45 = sphi 0, %s45
    %s47 = sphi 0, %s45
    %s48 = sphi 0, %s47
    %s62 = sphi 0, %s48
    %s66 = sphi 0, %s66
    %s68 = sphi 0, %s66
    %s69 = sphi 0, %s68
    %s83 = sphi 0, %s69
    %s87 = sphi 0, %s87
    %s89 = sphi 0, %s87
    %s90 = sphi 0, %s89
    %s104 = sphi 0, %s90
    %s108 = sphi 0, %s108
    %s110 = sphi 0, %s108
    %s111 = sphi 0, %s110
    %s125 = sphi 0, %s111
    %s131 = sphi 0, %s133
    %s134 = sphi 0, %s131
    %s135 = sphi 0, %s134
    %s151 = sphi 0, %s135
  $region4: #{vqvae_forward.11} parent=0 // loop_header_branch
    %14 = sbr.rel (%p12) target = $region8
  $region5: #{vqvae_forward.11} parent=0 // loop_body
    %s16 = ssub.s32 %s11, 1
    %s17 = ssub.s32 %s11, 2
    %s18 = sadd.s32 %s11, 1
    %s19 = ssub.s32 %s11, %s18
    %p20 = scmp.eq.s32.totalorder %s19, 0
    %s22 = sadd.s32 %s21, 1
    %s23 = scalar_select %p20, %s21, %s22
    %p26 = pneg %p20
    %p27 = scmp.eq.s32.totalorder %s11, 1
    %p28 = por %p26, %p27
    %p29 = scmp.ne.s32.totalorder %s21, %s24
    %p30 = scmp.eq.s32.totalorder %s11, 0
    %p31 = por %p29, %p30
    %p32 = scmp.ne.s32.totalorder %s21, %s24
    %p33 = scmp.eq.s32.totalorder %s16, 1
    %p34 = por %p32, %p33
    %p35 = scmp.ne.s32.totalorder %s24, %s25
    %p36 = scmp.eq.s32.totalorder %s16, 0
    %p37 = por %p35, %p36
    %p38 = scmp.ne.s32.totalorder %s24, %s25
    %p39 = scmp.eq.s32.totalorder %s17, 1
    %p40 = por %p38, %p39
    %p42 = scmp.ne.s32.totalorder %s25, %s41
    %p43 = scmp.eq.s32.totalorder %s17, 0
    %p44 = por %p42, %p43
    %s46 = sadd.s32 %s45, 1
    %p49 = scmp.eq.s32.totalorder %s11, 1
    %p50 = scmp.ne.s32.totalorder %s45, %s47
    %p51 = scmp.eq.s32.totalorder %s11, 0
    %p52 = por %p50, %p51
    %p53 = scmp.ne.s32.totalorder %s45, %s47
    %p54 = scmp.eq.s32.totalorder %s16, 1
    %p55 = por %p53, %p54
    %p56 = scmp.ne.s32.totalorder %s47, %s48
    %p57 = scmp.eq.s32.totalorder %s16, 0
    %p58 = por %p56, %p57
    %p59 = scmp.ne.s32.totalorder %s47, %s48
    %p60 = scmp.eq.s32.totalorder %s17, 1
    %p61 = por %p59, %p60
    %p63 = scmp.ne.s32.totalorder %s48, %s62
    %p64 = scmp.eq.s32.totalorder %s17, 0
    %p65 = por %p63, %p64
    %s67 = sadd.s32 %s66, 1
    %p70 = scmp.eq.s32.totalorder %s11, 1
    %p71 = scmp.ne.s32.totalorder %s66, %s68
    %p72 = scmp.eq.s32.totalorder %s11, 0
    %p73 = por %p71, %p72
    %p74 = scmp.ne.s32.totalorder %s66, %s68
    %p75 = scmp.eq.s32.totalorder %s16, 1
    %p76 = por %p74, %p75
    %p77 = scmp.ne.s32.totalorder %s68, %s69
    %p78 = scmp.eq.s32.totalorder %s16, 0
    %p79 = por %p77, %p78
    %p80 = scmp.ne.s32.totalorder %s68, %s69
    %p81 = scmp.eq.s32.totalorder %s17, 1
    %p82 = por %p80, %p81
    %p84 = scmp.ne.s32.totalorder %s69, %s83
    %p85 = scmp.eq.s32.totalorder %s17, 0
    %p86 = por %p84, %p85
    %s88 = sadd.s32 %s87, 1
    %p91 = scmp.eq.s32.totalorder %s11, 1
    %p92 = scmp.ne.s32.totalorder %s87, %s89
    %p93 = scmp.eq.s32.totalorder %s11, 0
    %p94 = por %p92, %p93
    %p95 = scmp.ne.s32.totalorder %s87, %s89
    %p96 = scmp.eq.s32.totalorder %s16, 1
    %p97 = por %p95, %p96
    %p98 = scmp.ne.s32.totalorder %s89, %s90
    %p99 = scmp.eq.s32.totalorder %s16, 0
    %p100 = por %p98, %p99
    %p101 = scmp.ne.s32.totalorder %s89, %s90
    %p102 = scmp.eq.s32.totalorder %s17, 1
    %p103 = por %p101, %p102
    %p105 = scmp.ne.s32.totalorder %s90, %s104
    %p106 = scmp.eq.s32.totalorder %s17, 0
    %p107 = por %p105, %p106
    %s109 = sadd.s32 %s108, 1
    %p112 = scmp.eq.s32.totalorder %s11, 1
    %p113 = scmp.ne.s32.totalorder %s108, %s110
    %p114 = scmp.eq.s32.totalorder %s11, 0
    %p115 = por %p113, %p114
    %p116 = scmp.ne.s32.totalorder %s108, %s110
    %p117 = scmp.eq.s32.totalorder %s16, 1
    %p118 = por %p116, %p117
    %p119 = scmp.ne.s32.totalorder %s110, %s111
    %p120 = scmp.eq.s32.totalorder %s16, 0
    %p121 = por %p119, %p120
    %p122 = scmp.ne.s32.totalorder %s110, %s111
    %p123 = scmp.eq.s32.totalorder %s17, 1
    %p124 = por %p122, %p123
    %p126 = scmp.ne.s32.totalorder %s111, %s125
    %p127 = scmp.eq.s32.totalorder %s17, 0
    %p128 = por %p126, %p127
    %s129 = ssub.s32 %s11, %s18
    %p130 = scmp.eq.s32.totalorder %s129, 0
    %s132 = sadd.s32 %s131, 1
    %s133 = scalar_select %p130, %s131, %s132
    %p136 = pneg %p130
    %p137 = scmp.eq.s32.totalorder %s11, 1
    %p138 = por %p136, %p137
    %p139 = scmp.ne.s32.totalorder %s131, %s134
    %p140 = scmp.eq.s32.totalorder %s11, 0
    %p141 = por %p139, %p140
    %p142 = scmp.ne.s32.totalorder %s131, %s134
    %p143 = scmp.eq.s32.totalorder %s16, 1
    %p144 = por %p142, %p143
    %p145 = scmp.ne.s32.totalorder %s134, %s135
    %p146 = scmp.eq.s32.totalorder %s16, 0
    %p147 = por %p145, %p146
    %p148 = scmp.ne.s32.totalorder %s134, %s135
    %p149 = scmp.eq.s32.totalorder %s17, 1
    %p150 = por %p148, %p149
    %p152 = scmp.ne.s32.totalorder %s135, %s151
    %p153 = scmp.eq.s32.totalorder %s17, 0
    %p154 = por %p152, %p153
    %p155 = scmp.le.s32.totalorder 1, %s11
    %p156 = scmp.lt.s32.totalorder %s11, 3
    %p157 = pnand %p155, %p156
    %p158 = pneg %p157
    // Predicated region
    $region9: #{vqvae_forward.11} parent=5 // pred_check
      _
    $region10: #{vqvae_forward.11} parent=5 // pred_check_branch
      %160 = sbr.rel (%p157) target = $region12
    $region11: #{vqvae_forward.11} parent=5 // pred_region
      %s161 = ssub.s32 %s11, 1
      // Predicated region
      $region13: #{vqvae_forward.11} parent=11 // pred_check
        %p162 = pneg %p58
      $region14: #{vqvae_forward.11} parent=11 // pred_check_branch
        %164 = sbr.rel (%p162) target = $region16
      $region15: #{vqvae_forward.11} parent=11 // pred_region
        _
      $region16: #{vqvae_forward.11} parent=11 // pred_fallthru
        _
      // Predicated region
      $region17: #{vqvae_forward.11} parent=11 // pred_check
        %p165 = pneg %p79
      $region18: #{vqvae_forward.11} parent=11 // pred_check_branch
        %167 = sbr.rel (%p165) target = $region20
      $region19: #{vqvae_forward.11} parent=11 // pred_region
        _
      $region20: #{vqvae_forward.11} parent=11 // pred_fallthru
        _
      // Predicated region
      $region21: #{vqvae_forward.11} parent=11 // pred_check
        %p168 = pneg %p100
      $region22: #{vqvae_forward.11} parent=11 // pred_check_branch
        %170 = sbr.rel (%p168) target = $region24
      $region23: #{vqvae_forward.11} parent=11 // pred_region
        _
      $region24: #{vqvae_forward.11} parent=11 // pred_fallthru
        _
      // Predicated region
      $region25: #{vqvae_forward.11} parent=11 // pred_check
        %p171 = pneg %p121
      $region26: #{vqvae_forward.11} parent=11 // pred_check_branch
        %173 = sbr.rel (%p171) target = $region28
      $region27: #{vqvae_forward.11} parent=11 // pred_region
        _
      $region28: #{vqvae_forward.11} parent=11 // pred_fallthru
        _
    $region12: #{vqvae_forward.11} parent=5 // pred_fallthru
      _
    %p174 = scmp.lt.s32.totalorder %s11, 2
    // Predicated region
    $region29: #{vqvae_forward.11} parent=5 // pred_check
      %p175 = pneg %p174
    $region30: #{vqvae_forward.11} parent=5 // pred_check_branch
      %177 = sbr.rel (%p175) target = $region32
    $region31: #{vqvae_forward.11} parent=5 // pred_region
      // Predicated region
      $region33: #{vqvae_forward.11} parent=31 // pred_check
        %p178 = pneg %p31
      $region34: #{vqvae_forward.11} parent=31 // pred_check_branch
        %180 = sbr.rel (%p178) target = $region36
      $region35: #{vqvae_forward.11} parent=31 // pred_region
        %p181 = scmp.lt.s32.totalorder %s11, 1
        %s182 = scalar_select %p181, %s11, 1
        %s183 = smul.addr %s182, 5
        %s184 = smul.addr %s183, 4
        %s185 = scalar_lea.vmem %s0, %s184
      $region36: #{vqvae_forward.11} parent=31 // pred_fallthru
        _
    $region32: #{vqvae_forward.11} parent=5 // pred_fallthru
      _
    %p186 = scmp.le.s32.totalorder 1, %s11
    %p187 = scmp.lt.s32.totalorder %s11, 3
    %p188 = pnand %p186, %p187
    %p189 = pneg %p188
    // Predicated region
    $region37: #{vqvae_forward.11} parent=5 // pred_check
      _
    $region38: #{vqvae_forward.11} parent=5 // pred_check_branch
      %191 = sbr.rel (%p188) target = $region40
    $region39: #{vqvae_forward.11} parent=5 // pred_region
      %s192 = ssub.s32 %s11, 1
      %p193 = scmp.lt.s32.totalorder %s16, 1
      %s194 = scalar_select %p193, %s16, 1
      %s195 = smul.addr %s194, 5
      %s196 = smul.addr %s195, 4
      %s197 = scalar_lea.vmem %s0, %s196
      %p198 = pneg %p37
      %p199 = pneg %p34
      %p200 = pneg %p58
      %p201 = pneg %p55
      %p202 = pneg %p79
      %p203 = pneg %p76
      %p204 = pneg %p100
      %p205 = pneg %p97
      %p206 = pneg %p121
      %p207 = pneg %p118
      %p208 = pneg %p147
      %p209 = pneg %p144
      %p210 = scmp.lt.s32.totalorder %s16, 1
      %s211 = scalar_select %p210, %s16, 1
      %s212 = smul.addr %s211, 5
      %s213 = smul.addr %s212, 4
      %s214 = scalar_lea.vmem %s5, %s213
      %p215 = scmp.lt.s32.totalorder %s16, 1
      %s216 = scalar_select %p215, %s16, 1
      %s217 = smul.addr %s216, 5
      %s218 = smul.addr %s217, 4
      %s219 = scalar_lea.vmem %s0, %s218
      %p220 = scmp.lt.s32.totalorder %s16, 1
      %s221 = scalar_select %p220, %s16, 1
      %s222 = smul.addr %s221, 5
      %s223 = smul.addr %s222, 4
      %s224 = scalar_lea.vmem %s5, %s223
      %v226 = vld [vmem:[%s219] sm:$0xf]
      %v227 = vld [vmem:[%s219 + $0x4] sm:$0xf]
      %v228 = vld [vmem:[%s219 + $0x8] sm:$0xf]
      %v229 = vld [vmem:[%s219 + $0xc] sm:$0xf]
      %v230 = vld [vmem:[%s219 + $0x10] sm:$0x3]
      %v231 = vunpack.c.l.bf16 %v226
      %v232 = vunpack.c.l.bf16 %v227
      %v233 = vunpack.c.l.bf16 %v228
      %v234 = vunpack.c.l.bf16 %v229
      %v235 = vunpack.c.l.bf16 %v230
      %v236 = vmax.f32 %v231, 0.0
      %v237 = vmax.f32 %v232, 0.0
      %v238 = vmax.f32 %v233, 0.0
      %v239 = vmax.f32 %v234, 0.0
      %v240 = vmax.f32 %v235, 0.0
      %v241 = vpack.c.bf16 %v237, %v236
      %v242 = vpack.c.bf16 %v239, %v238
      %v243 = vpack.c.bf16 %v240, %v240
      %v244 = vld [vmem:[%s1] sm:$0xf]
      %v245 = vld [vmem:[%s1 + $0x4] sm:$0xf]
      %v246 = vld [vmem:[%s1 + $0x8] sm:$0xf]
      %v247 = vld [vmem:[%s1 + $0xc] sm:$0xf]
      %v248 = vld [vmem:[%s1 + $0x10] sm:$0xf]
      %v249 = vld [vmem:[%s1 + $0x14] sm:$0xf]
      %v250 = vld [vmem:[%s1 + $0x18] sm:$0xf]
      %v251 = vld [vmem:[%s1 + $0x1c] sm:$0xf]
      %vm252 = vsmask.f32 7424
      %v254 = vshrl.u32 %v241, 16
      %v256 = vshll.u32 %v241, 16
      %v258 = vrot.slane %v256, 1
      %v259 = vor.u32 %v254, %v258
      %v261 = vshll.u32 %v242, 16
      %v263 = vrot.slane %v261, 1
      %v264 = vsel %vm252, %v259, %v263
      %v265 = vshrl.u32 %v242, 16
      %v267 = vor.u32 %v265, %v263
      %v272 = vunpack.c.l.b16 %v248
      %v273 = vunpack.c.l.b16 %v249
      %v274 = vunpack.c.l.b16 %v250
      %v275 = vunpack.c.l.b16 %v251
      %v276 = vpack.c.b16 %v273, %v272
      %v277 = vpack.c.b16 %v275, %v274
      %vm280 = vcmask 261120
      %v282 = vsel %vm280, %v264, 0
      %v285 = vsel %vm280, %v267, 0
      %287 = vmatprep.subr.bf16.mxu0 0
      %288 = vmatpush1.bf16.msra.mxu0 0
      %289 = vmatprep.subr.bf16.mxu0 0
      %290 = vmatpush1.bf16.msra.mxu0 0
      %291 = vmatprep.subr.bf16.mxu0 0
      %292 = vmatpush1.bf16.msra.mxu0 0
      %293 = vmatprep.subr.bf16.mxu0 0
      %294 = vmatpush1.bf16.msra.mxu0 0
      %295 = vmatprep.subr.bf16.mxu0 0
      %296 = vmatpush1.bf16.msra.mxu0 0
      %297 = vmatprep.subr.bf16.mxu0 0
      %298 = vmatpush1.bf16.msra.mxu0 0
      %299 = vmatprep.subr.bf16.mxu0 0
      %300 = vmatpush1.bf16.msra.mxu0 %v277
      %301 = vmatprep.subr.bf16.mxu0 0
      %302 = vmatpush1.bf16.msra.mxu0 %v276
      %303 = vmatprep.subr.bf16.mxu0 0
      %304 = vmatpush2.bf16.msra.mxu0 0
      %305 = vmatprep.subr.bf16.mxu0 0
      %306 = vmatpush2.bf16.msra.mxu0 0
      %307 = vmatprep.subr.bf16.mxu0 0
      %308 = vmatpush2.bf16.msra.mxu0 0
      %309 = vmatprep.subr.bf16.mxu0 0
      %310 = vmatpush2.bf16.msra.mxu0 0
      %311 = vmatprep.subr.bf16.mxu0 0
      %312 = vmatpush2.bf16.msra.mxu0 0
      %313 = vmatprep.subr.bf16.mxu0 0
      %314 = vmatpush2.bf16.msra.mxu0 0
      %315 = vmatprep.subr.bf16.mxu0 0
      %316 = vmatpush2.bf16.msra.mxu0 0
      %317 = vmatprep.subr.bf16.mxu0 0
      %318 = vmatpush2.bf16.msra.mxu0 0
      %319 = vmatprep.mubr.bf16.mxu0 0
      %320 = vmatmul.mubr.bf16.gmra.mxu0 %v282
      %v321 = vpop.f32.mrf.mxu0
      %v322 = vadd.f32 0.0, %v321
      %v323 = vpop.f32.mrf.mxu0
      %v324 = vpop.f32.mrf.mxu0
      %v325 = vadd.f32 0.0, %v324
      %v326 = vpop.f32.mrf.mxu0
      %327 = vmatprep.mubr.bf16.mxu0 0
      %328 = vmatmul.mubr.bf16.gmra.mxu0 %v285
      %v329 = vpop.f32.mrf.mxu0
      %v330 = vadd.f32 0.0, %v329
      %v331 = vpop.f32.mrf.mxu0
      %v332 = vpop.f32.mrf.mxu0
      %v333 = vpop.f32.mrf.mxu0
      %334 = vdwg.mxu0
      %v339 = vunpack.c.l.b16 %v244
      %v340 = vunpack.c.l.b16 %v245
      %v341 = vunpack.c.l.b16 %v246
      %v342 = vunpack.c.l.b16 %v247
      %v343 = vpack.c.b16 %v340, %v339
      %v344 = vpack.c.b16 %v342, %v341
      %v347 = vsel %vm280, %v241, 0
      %v349 = vsel %vm280, %v242, 0
      %351 = vmatprep.subr.bf16.mxu0 0
      %352 = vmatpush1.bf16.msra.mxu0 0
      %353 = vmatprep.subr.bf16.mxu0 0
      %354 = vmatpush1.bf16.msra.mxu0 0
      %355 = vmatprep.subr.bf16.mxu0 0
      %356 = vmatpush1.bf16.msra.mxu0 0
      %357 = vmatprep.subr.bf16.mxu0 0
      %358 = vmatpush1.bf16.msra.mxu0 0
      %359 = vmatprep.subr.bf16.mxu0 0
      %360 = vmatpush1.bf16.msra.mxu0 0
      %361 = vmatprep.subr.bf16.mxu0 0
      %362 = vmatpush1.bf16.msra.mxu0 0
      %363 = vmatprep.subr.bf16.mxu0 0
      %364 = vmatpush1.bf16.msra.mxu0 %v344
      %365 = vmatprep.subr.bf16.mxu0 0
      %366 = vmatpush1.bf16.msra.mxu0 %v343
      %367 = vmatprep.subr.bf16.mxu0 0
      %368 = vmatpush2.bf16.msra.mxu0 0
      %369 = vmatprep.subr.bf16.mxu0 0
      %370 = vmatpush2.bf16.msra.mxu0 0
      %371 = vmatprep.subr.bf16.mxu0 0
      %372 = vmatpush2.bf16.msra.mxu0 0
      %373 = vmatprep.subr.bf16.mxu0 0
      %374 = vmatpush2.bf16.msra.mxu0 0
      %375 = vmatprep.subr.bf16.mxu0 0
      %376 = vmatpush2.bf16.msra.mxu0 0
      %377 = vmatprep.subr.bf16.mxu0 0
      %378 = vmatpush2.bf16.msra.mxu0 0
      %379 = vmatprep.subr.bf16.mxu0 0
      %380 = vmatpush2.bf16.msra.mxu0 0
      %381 = vmatprep.subr.bf16.mxu0 0
      %382 = vmatpush2.bf16.msra.mxu0 0
      %383 = vmatprep.mubr.bf16.mxu0 0
      %384 = vmatmul.mubr.bf16.gmra.mxu0 %v347
      %v385 = vpop.f32.mrf.mxu0
      %v386 = vadd.f32 %v322, %v385
      %v387 = vpop.f32.mrf.mxu0
      %v388 = vpop.f32.mrf.mxu0
      %v389 = vadd.f32 %v325, %v388
      %v390 = vpop.f32.mrf.mxu0
      %391 = vmatprep.mubr.bf16.mxu0 0
      %392 = vmatmul.mubr.bf16.gmra.mxu0 %v349
      %v393 = vpop.f32.mrf.mxu0
      %v394 = vadd.f32 %v330, %v393
      %v395 = vpop.f32.mrf.mxu0
      %v396 = vpop.f32.mrf.mxu0
      %v397 = vpop.f32.mrf.mxu0
      %398 = vdwg.mxu0
      %v399 = vld [vmem:[%s1 + $0x20] sm:$0xf]
      %v400 = vld [vmem:[%s1 + $0x24] sm:$0xf]
      %v401 = vld [vmem:[%s1 + $0x28] sm:$0xf]
      %v402 = vld [vmem:[%s1 + $0x2c] sm:$0xf]
      %vm405 = vcmask 1046528
      %v406 = vrot.slane %v241, 1
      %v407 = vrot.slane %v242, 1
      %v408 = vsel %vm405, %v406, %v407
      %v413 = vunpack.c.l.b16 %v399
      %v414 = vunpack.c.l.b16 %v400
      %v415 = vunpack.c.l.b16 %v401
      %v416 = vunpack.c.l.b16 %v402
      %v417 = vpack.c.b16 %v414, %v413
      %v418 = vpack.c.b16 %v416, %v415
      %v422 = vsel %vm280, %v408, 0
      %v425 = vsel %vm280, %v407, 0
      %427 = vmatprep.subr.bf16.mxu0 0
      %428 = vmatpush1.bf16.msra.mxu0 0
      %429 = vmatprep.subr.bf16.mxu0 0
      %430 = vmatpush1.bf16.msra.mxu0 0
      %431 = vmatprep.subr.bf16.mxu0 0
      %432 = vmatpush1.bf16.msra.mxu0 0
      %433 = vmatprep.subr.bf16.mxu0 0
      %434 = vmatpush1.bf16.msra.mxu0 0
      %435 = vmatprep.subr.bf16.mxu0 0
      %436 = vmatpush1.bf16.msra.mxu0 0
      %437 = vmatprep.subr.bf16.mxu0 0
      %438 = vmatpush1.bf16.msra.mxu0 0
      %439 = vmatprep.subr.bf16.mxu0 0
      %440 = vmatpush1.bf16.msra.mxu0 %v418
      %441 = vmatprep.subr.bf16.mxu0 0
      %442 = vmatpush1.bf16.msra.mxu0 %v417
      %443 = vmatprep.subr.bf16.mxu0 0
      %444 = vmatpush2.bf16.msra.mxu0 0
      %445 = vmatprep.subr.bf16.mxu0 0
      %446 = vmatpush2.bf16.msra.mxu0 0
      %447 = vmatprep.subr.bf16.mxu0 0
      %448 = vmatpush2.bf16.msra.mxu0 0
      %449 = vmatprep.subr.bf16.mxu0 0
      %450 = vmatpush2.bf16.msra.mxu0 0
      %451 = vmatprep.subr.bf16.mxu0 0
      %452 = vmatpush2.bf16.msra.mxu0 0
      %453 = vmatprep.subr.bf16.mxu0 0
      %454 = vmatpush2.bf16.msra.mxu0 0
      %455 = vmatprep.subr.bf16.mxu0 0
      %456 = vmatpush2.bf16.msra.mxu0 0
      %457 = vmatprep.subr.bf16.mxu0 0
      %458 = vmatpush2.bf16.msra.mxu0 0
      %459 = vmatprep.mubr.bf16.mxu0 0
      %460 = vmatmul.mubr.bf16.gmra.mxu0 %v422
      %v461 = vpop.f32.mrf.mxu0
      %v462 = vadd.f32 0.0, %v461
      %v463 = vpop.f32.mrf.mxu0
      %v464 = vpop.f32.mrf.mxu0
      %v465 = vadd.f32 0.0, %v464
      %v466 = vpop.f32.mrf.mxu0
      %467 = vmatprep.mubr.bf16.mxu0 0
      %468 = vmatmul.mubr.bf16.gmra.mxu0 %v425
      %v469 = vpop.f32.mrf.mxu0
      %v470 = vadd.f32 0.0, %v469
      %v471 = vpop.f32.mrf.mxu0
      %v472 = vpop.f32.mrf.mxu0
      %v473 = vpop.f32.mrf.mxu0
      %474 = vdwg.mxu0
      %v475 = vadd.f32 %v386, %v462
      %v476 = vadd.f32 %v389, %v465
      %v477 = vadd.f32 %v394, %v470
      %v478 = vld [vmem:[%s1 + $0x30] sm:$0xf]
      %v479 = vld [vmem:[%s1 + $0x34] sm:$0xf]
      %v480 = vld [vmem:[%s1 + $0x38] sm:$0xf]
      %v481 = vld [vmem:[%s1 + $0x3c] sm:$0xf]
      %vm482 = vcmask 1044480
      %v483 = vrot.slane %v241, 3
      %v484 = vrot.slane %v242, 3
      %v485 = vsel %vm482, %v483, %v484
      %v490 = vunpack.c.l.b16 %v478
      %v491 = vunpack.c.l.b16 %v479
      %v492 = vunpack.c.l.b16 %v480
      %v493 = vunpack.c.l.b16 %v481
      %v494 = vpack.c.b16 %v491, %v490
      %v495 = vpack.c.b16 %v493, %v492
      %v499 = vsel %vm280, %v485, 0
      %v502 = vsel %vm280, %v484, 0
      %504 = vmatprep.subr.bf16.mxu0 0
      %505 = vmatpush1.bf16.msra.mxu0 0
      %506 = vmatprep.subr.bf16.mxu0 0
      %507 = vmatpush1.bf16.msra.mxu0 0
      %508 = vmatprep.subr.bf16.mxu0 0
      %509 = vmatpush1.bf16.msra.mxu0 0
      %510 = vmatprep.subr.bf16.mxu0 0
      %511 = vmatpush1.bf16.msra.mxu0 0
      %512 = vmatprep.subr.bf16.mxu0 0
      %513 = vmatpush1.bf16.msra.mxu0 0
      %514 = vmatprep.subr.bf16.mxu0 0
      %515 = vmatpush1.bf16.msra.mxu0 0
      %516 = vmatprep.subr.bf16.mxu0 0
      %517 = vmatpush1.bf16.msra.mxu0 %v495
      %518 = vmatprep.subr.bf16.mxu0 0
      %519 = vmatpush1.bf16.msra.mxu0 %v494
      %520 = vmatprep.subr.bf16.mxu0 0
      %521 = vmatpush2.bf16.msra.mxu0 0
      %522 = vmatprep.subr.bf16.mxu0 0
      %523 = vmatpush2.bf16.msra.mxu0 0
      %524 = vmatprep.subr.bf16.mxu0 0
      %525 = vmatpush2.bf16.msra.mxu0 0
      %526 = vmatprep.subr.bf16.mxu0 0
      %527 = vmatpush2.bf16.msra.mxu0 0
      %528 = vmatprep.subr.bf16.mxu0 0
      %529 = vmatpush2.bf16.msra.mxu0 0
      %530 = vmatprep.subr.bf16.mxu0 0
      %531 = vmatpush2.bf16.msra.mxu0 0
      %532 = vmatprep.subr.bf16.mxu0 0
      %533 = vmatpush2.bf16.msra.mxu0 0
      %534 = vmatprep.subr.bf16.mxu0 0
      %535 = vmatpush2.bf16.msra.mxu0 0
      %536 = vmatprep.mubr.bf16.mxu0 0
      %537 = vmatmul.mubr.bf16.gmra.mxu0 %v499
      %v538 = vpop.f32.mrf.mxu0
      %v539 = vadd.f32 0.0, %v538
      %v540 = vpop.f32.mrf.mxu0
      %v541 = vpop.f32.mrf.mxu0
      %v542 = vadd.f32 0.0, %v541
      %v543 = vpop.f32.mrf.mxu0
      %544 = vmatprep.mubr.bf16.mxu0 0
      %545 = vmatmul.mubr.bf16.gmra.mxu0 %v502
      %v546 = vpop.f32.mrf.mxu0
      %v547 = vadd.f32 0.0, %v546
      %v548 = vpop.f32.mrf.mxu0
      %v549 = vpop.f32.mrf.mxu0
      %v550 = vpop.f32.mrf.mxu0
      %551 = vdwg.mxu0
      %v552 = vadd.f32 %v475, %v539
      %v553 = vadd.f32 %v476, %v542
      %v554 = vadd.f32 %v477, %v547
      %v555 = vld [vmem:[%s1 + $0x40] sm:$0xf]
      %v556 = vld [vmem:[%s1 + $0x44] sm:$0xf]
      %v557 = vld [vmem:[%s1 + $0x48] sm:$0xf]
      %v558 = vld [vmem:[%s1 + $0x4c] sm:$0xf]
      %vm559 = vsmask.f32 4352
      %v560 = vrot.slane %v254, 3
      %v561 = vrot.slane %v256, 4
      %v562 = vor.u32 %v560, %v561
      %v563 = vrot.slane %v265, 3
      %v564 = vrot.slane %v261, 4
      %v565 = vor.u32 %v563, %v564
      %v566 = vsel %vm559, %v562, %v565
      %v571 = vunpack.c.l.b16 %v555
      %v572 = vunpack.c.l.b16 %v556
      %v573 = vunpack.c.l.b16 %v557
      %v574 = vunpack.c.l.b16 %v558
      %v575 = vpack.c.b16 %v572, %v571
      %v576 = vpack.c.b16 %v574, %v573
      %v580 = vsel %vm280, %v566, 0
      %v583 = vsel %vm280, %v565, 0
      %585 = vmatprep.subr.bf16.mxu0 0
      %586 = vmatpush1.bf16.msra.mxu0 0
      %587 = vmatprep.subr.bf16.mxu0 0
      %588 = vmatpush1.bf16.msra.mxu0 0
      %589 = vmatprep.subr.bf16.mxu0 0
      %590 = vmatpush1.bf16.msra.mxu0 0
      %591 = vmatprep.subr.bf16.mxu0 0
      %592 = vmatpush1.bf16.msra.mxu0 0
      %593 = vmatprep.subr.bf16.mxu0 0
      %594 = vmatpush1.bf16.msra.mxu0 0
      %595 = vmatprep.subr.bf16.mxu0 0
      %596 = vmatpush1.bf16.msra.mxu0 0
      %597 = vmatprep.subr.bf16.mxu0 0
      %598 = vmatpush1.bf16.msra.mxu0 %v576
      %599 = vmatprep.subr.bf16.mxu0 0
      %600 = vmatpush1.bf16.msra.mxu0 %v575
      %601 = vmatprep.subr.bf16.mxu0 0
      %602 = vmatpush2.bf16.msra.mxu0 0
      %603 = vmatprep.subr.bf16.mxu0 0
      %604 = vmatpush2.bf16.msra.mxu0 0
      %605 = vmatprep.subr.bf16.mxu0 0
      %606 = vmatpush2.bf16.msra.mxu0 0
      %607 = vmatprep.subr.bf16.mxu0 0
      %608 = vmatpush2.bf16.msra.mxu0 0
      %609 = vmatprep.subr.bf16.mxu0 0
      %610 = vmatpush2.bf16.msra.mxu0 0
      %611 = vmatprep.subr.bf16.mxu0 0
      %612 = vmatpush2.bf16.msra.mxu0 0
      %613 = vmatprep.subr.bf16.mxu0 0
      %614 = vmatpush2.bf16.msra.mxu0 0
      %615 = vmatprep.subr.bf16.mxu0 0
      %616 = vmatpush2.bf16.msra.mxu0 0
      %617 = vmatprep.mubr.bf16.mxu0 0
      %618 = vmatmul.mubr.bf16.gmra.mxu0 %v580
      %v619 = vpop.f32.mrf.mxu0
      %v620 = vadd.f32 0.0, %v619
      %v621 = vpop.f32.mrf.mxu0
      %v622 = vpop.f32.mrf.mxu0
      %v623 = vadd.f32 0.0, %v622
      %v624 = vpop.f32.mrf.mxu0
      %625 = vmatprep.mubr.bf16.mxu0 0
      %626 = vmatmul.mubr.bf16.gmra.mxu0 %v583
      %v627 = vpop.f32.mrf.mxu0
      %v628 = vadd.f32 0.0, %v627
      %v629 = vpop.f32.mrf.mxu0
      %v630 = vpop.f32.mrf.mxu0
      %v631 = vpop.f32.mrf.mxu0
      %632 = vdwg.mxu0
      %v633 = vadd.f32 %v552, %v620
      %v634 = vadd.f32 %v553, %v623
      %v635 = vadd.f32 %v554, %v628
      %v636 = vld [vmem:[%s1 + $0x50] sm:$0xf]
      %v637 = vld [vmem:[%s1 + $0x54] sm:$0xf]
      %v638 = vld [vmem:[%s1 + $0x58] sm:$0xf]
      %v639 = vld [vmem:[%s1 + $0x5c] sm:$0xf]
      %vm640 = vcmask 1043456
      %v641 = vrot.slane %v241, 4
      %v642 = vrot.slane %v242, 4
      %v643 = vsel %vm640, %v641, %v642
      %v648 = vunpack.c.l.b16 %v636
      %v649 = vunpack.c.l.b16 %v637
      %v650 = vunpack.c.l.b16 %v638
      %v651 = vunpack.c.l.b16 %v639
      %v652 = vpack.c.b16 %v649, %v648
      %v653 = vpack.c.b16 %v651, %v650
      %v657 = vsel %vm280, %v643, 0
      %v660 = vsel %vm280, %v642, 0
      %662 = vmatprep.subr.bf16.mxu0 0
      %663 = vmatpush1.bf16.msra.mxu0 0
      %664 = vmatprep.subr.bf16.mxu0 0
      %665 = vmatpush1.bf16.msra.mxu0 0
      %666 = vmatprep.subr.bf16.mxu0 0
      %667 = vmatpush1.bf16.msra.mxu0 0
      %668 = vmatprep.subr.bf16.mxu0 0
      %669 = vmatpush1.bf16.msra.mxu0 0
      %670 = vmatprep.subr.bf16.mxu0 0
      %671 = vmatpush1.bf16.msra.mxu0 0
      %672 = vmatprep.subr.bf16.mxu0 0
      %673 = vmatpush1.bf16.msra.mxu0 0
      %674 = vmatprep.subr.bf16.mxu0 0
      %675 = vmatpush1.bf16.msra.mxu0 %v653
      %676 = vmatprep.subr.bf16.mxu0 0
      %677 = vmatpush1.bf16.msra.mxu0 %v652
      %678 = vmatprep.subr.bf16.mxu0 0
      %679 = vmatpush2.bf16.msra.mxu0 0
      %680 = vmatprep.subr.bf16.mxu0 0
      %681 = vmatpush2.bf16.msra.mxu0 0
      %682 = vmatprep.subr.bf16.mxu0 0
      %683 = vmatpush2.bf16.msra.mxu0 0
      %684 = vmatprep.subr.bf16.mxu0 0
      %685 = vmatpush2.bf16.msra.mxu0 0
      %686 = vmatprep.subr.bf16.mxu0 0
      %687 = vmatpush2.bf16.msra.mxu0 0
      %688 = vmatprep.subr.bf16.mxu0 0
      %689 = vmatpush2.bf16.msra.mxu0 0
      %690 = vmatprep.subr.bf16.mxu0 0
      %691 = vmatpush2.bf16.msra.mxu0 0
      %692 = vmatprep.subr.bf16.mxu0 0
      %693 = vmatpush2.bf16.msra.mxu0 0
      %694 = vmatprep.mubr.bf16.mxu0 0
      %695 = vmatmul.mubr.bf16.gmra.mxu0 %v657
      %v696 = vpop.f32.mrf.mxu0
      %v697 = vadd.f32 0.0, %v696
      %v698 = vpop.f32.mrf.mxu0
      %v699 = vpop.f32.mrf.mxu0
      %v700 = vadd.f32 0.0, %v699
      %v701 = vpop.f32.mrf.mxu0
      %702 = vmatprep.mubr.bf16.mxu0 0
      %703 = vmatmul.mubr.bf16.gmra.mxu0 %v660
      %v704 = vpop.f32.mrf.mxu0
      %v705 = vadd.f32 0.0, %v704
      %v706 = vpop.f32.mrf.mxu0
      %v707 = vpop.f32.mrf.mxu0
      %v708 = vpop.f32.mrf.mxu0
      %709 = vdwg.mxu0
      %v710 = vadd.f32 %v633, %v697
      %v711 = vadd.f32 %v634, %v700
      %v712 = vadd.f32 %v635, %v705
      %v713 = vld [vmem:[%s1 + $0x60] sm:$0xf]
      %v714 = vld [vmem:[%s1 + $0x64] sm:$0xf]
      %v715 = vld [vmem:[%s1 + $0x68] sm:$0xf]
      %v716 = vld [vmem:[%s1 + $0x6c] sm:$0xf]
      %vm718 = vcmask 1041408
      %v719 = vrot.slane %v241, 6
      %v720 = vrot.slane %v242, 6
      %v721 = vsel %vm718, %v719, %v720
      %v722 = vrot.slane %v243, 6
      %v723 = vsel %vm718, %v720, %v722
      %v728 = vunpack.c.l.b16 %v713
      %v729 = vunpack.c.l.b16 %v714
      %v730 = vunpack.c.l.b16 %v715
      %v731 = vunpack.c.l.b16 %v716
      %v732 = vpack.c.b16 %v729, %v728
      %v733 = vpack.c.b16 %v731, %v730
      %v737 = vsel %vm280, %v721, 0
      %v740 = vsel %vm280, %v723, 0
      %742 = vmatprep.subr.bf16.mxu0 0
      %743 = vmatpush1.bf16.msra.mxu0 0
      %744 = vmatprep.subr.bf16.mxu0 0
      %745 = vmatpush1.bf16.msra.mxu0 0
      %746 = vmatprep.subr.bf16.mxu0 0
      %747 = vmatpush1.bf16.msra.mxu0 0
      %748 = vmatprep.subr.bf16.mxu0 0
      %749 = vmatpush1.bf16.msra.mxu0 0
      %750 = vmatprep.subr.bf16.mxu0 0
      %751 = vmatpush1.bf16.msra.mxu0 0
      %752 = vmatprep.subr.bf16.mxu0 0
      %753 = vmatpush1.bf16.msra.mxu0 0
      %754 = vmatprep.subr.bf16.mxu0 0
      %755 = vmatpush1.bf16.msra.mxu0 %v733
      %756 = vmatprep.subr.bf16.mxu0 0
      %757 = vmatpush1.bf16.msra.mxu0 %v732
      %758 = vmatprep.subr.bf16.mxu0 0
      %759 = vmatpush2.bf16.msra.mxu0 0
      %760 = vmatprep.subr.bf16.mxu0 0
      %761 = vmatpush2.bf16.msra.mxu0 0
      %762 = vmatprep.subr.bf16.mxu0 0
      %763 = vmatpush2.bf16.msra.mxu0 0
      %764 = vmatprep.subr.bf16.mxu0 0
      %765 = vmatpush2.bf16.msra.mxu0 0
      %766 = vmatprep.subr.bf16.mxu0 0
      %767 = vmatpush2.bf16.msra.mxu0 0
      %768 = vmatprep.subr.bf16.mxu0 0
      %769 = vmatpush2.bf16.msra.mxu0 0
      %770 = vmatprep.subr.bf16.mxu0 0
      %771 = vmatpush2.bf16.msra.mxu0 0
      %772 = vmatprep.subr.bf16.mxu0 0
      %773 = vmatpush2.bf16.msra.mxu0 0
      %774 = vmatprep.mubr.bf16.mxu0 0
      %775 = vmatmul.mubr.bf16.gmra.mxu0 %v737
      %v776 = vpop.f32.mrf.mxu0
      %v777 = vadd.f32 0.0, %v776
      %v778 = vpop.f32.mrf.mxu0
      %v779 = vpop.f32.mrf.mxu0
      %v780 = vadd.f32 0.0, %v779
      %v781 = vpop.f32.mrf.mxu0
      %782 = vmatprep.mubr.bf16.mxu0 0
      %783 = vmatmul.mubr.bf16.gmra.mxu0 %v740
      %v784 = vpop.f32.mrf.mxu0
      %v785 = vadd.f32 0.0, %v784
      %v786 = vpop.f32.mrf.mxu0
      %v787 = vpop.f32.mrf.mxu0
      %v788 = vpop.f32.mrf.mxu0
      %789 = vdwg.mxu0
      %v790 = vadd.f32 %v710, %v777
      %v791 = vadd.f32 %v711, %v780
      %v792 = vadd.f32 %v712, %v785
      %v793 = vld [vmem:[%s1 + $0x70] sm:$0xf]
      %v794 = vld [vmem:[%s1 + $0x74] sm:$0xf]
      %v795 = vld [vmem:[%s1 + $0x78] sm:$0xf]
      %v796 = vld [vmem:[%s1 + $0x7c] sm:$0xf]
      %vm797 = vsmask.f32 1280
      %v798 = vrot.slane %v254, 6
      %v799 = vrot.slane %v256, 7
      %v800 = vor.u32 %v798, %v799
      %v801 = vrot.slane %v265, 6
      %v802 = vrot.slane %v261, 7
      %v803 = vor.u32 %v801, %v802
      %v804 = vsel %vm797, %v800, %v803
      %v806 = vshrl.u32 %v243, 16
      %v808 = vrot.slane %v806, 6
      %v809 = vshll.u32 %v243, 16
      %v811 = vrot.slane %v809, 7
      %v812 = vor.u32 %v808, %v811
      %v813 = vsel %vm797, %v803, %v812
      %v818 = vunpack.c.l.b16 %v793
      %v819 = vunpack.c.l.b16 %v794
      %v820 = vunpack.c.l.b16 %v795
      %v821 = vunpack.c.l.b16 %v796
      %v822 = vpack.c.b16 %v819, %v818
      %v823 = vpack.c.b16 %v821, %v820
      %v827 = vsel %vm280, %v804, 0
      %v830 = vsel %vm280, %v813, 0
      %832 = vmatprep.subr.bf16.mxu0 0
      %833 = vmatpush1.bf16.msra.mxu0 0
      %834 = vmatprep.subr.bf16.mxu0 0
      %835 = vmatpush1.bf16.msra.mxu0 0
      %836 = vmatprep.subr.bf16.mxu0 0
      %837 = vmatpush1.bf16.msra.mxu0 0
      %838 = vmatprep.subr.bf16.mxu0 0
      %839 = vmatpush1.bf16.msra.mxu0 0
      %840 = vmatprep.subr.bf16.mxu0 0
      %841 = vmatpush1.bf16.msra.mxu0 0
      %842 = vmatprep.subr.bf16.mxu0 0
      %843 = vmatpush1.bf16.msra.mxu0 0
      %844 = vmatprep.subr.bf16.mxu0 0
      %845 = vmatpush1.bf16.msra.mxu0 %v823
      %846 = vmatprep.subr.bf16.mxu0 0
      %847 = vmatpush1.bf16.msra.mxu0 %v822
      %848 = vmatprep.subr.bf16.mxu0 0
      %849 = vmatpush2.bf16.msra.mxu0 0
      %850 = vmatprep.subr.bf16.mxu0 0
      %851 = vmatpush2.bf16.msra.mxu0 0
      %852 = vmatprep.subr.bf16.mxu0 0
      %853 = vmatpush2.bf16.msra.mxu0 0
      %854 = vmatprep.subr.bf16.mxu0 0
      %855 = vmatpush2.bf16.msra.mxu0 0
      %856 = vmatprep.subr.bf16.mxu0 0
      %857 = vmatpush2.bf16.msra.mxu0 0
      %858 = vmatprep.subr.bf16.mxu0 0
      %859 = vmatpush2.bf16.msra.mxu0 0
      %860 = vmatprep.subr.bf16.mxu0 0
      %861 = vmatpush2.bf16.msra.mxu0 0
      %862 = vmatprep.subr.bf16.mxu0 0
      %863 = vmatpush2.bf16.msra.mxu0 0
      %864 = vmatprep.mubr.bf16.mxu0 0
      %865 = vmatmul.mubr.bf16.gmra.mxu0 %v827
      %v866 = vpop.f32.mrf.mxu0
      %v867 = vadd.f32 0.0, %v866
      %v868 = vpop.f32.mrf.mxu0
      %v869 = vpop.f32.mrf.mxu0
      %v870 = vadd.f32 0.0, %v869
      %v871 = vpop.f32.mrf.mxu0
      %872 = vmatprep.mubr.bf16.mxu0 0
      %873 = vmatmul.mubr.bf16.gmra.mxu0 %v830
      %v874 = vpop.f32.mrf.mxu0
      %v875 = vadd.f32 0.0, %v874
      %v876 = vpop.f32.mrf.mxu0
      %v877 = vpop.f32.mrf.mxu0
      %v878 = vpop.f32.mrf.mxu0
      %879 = vdwg.mxu0
      %v880 = vadd.f32 %v790, %v867
      %v881 = vadd.f32 %v791, %v870
      %v882 = vadd.f32 %v792, %v875
      %v883 = vld [vmem:[%s1 + $0x80] sm:$0xf]
      %v884 = vld [vmem:[%s1 + $0x84] sm:$0xf]
      %v885 = vld [vmem:[%s1 + $0x88] sm:$0xf]
      %v886 = vld [vmem:[%s1 + $0x8c] sm:$0xf]
      %vm887 = vcmask 1040384
      %v888 = vrot.slane %v241, 7
      %v889 = vrot.slane %v242, 7
      %v890 = vsel %vm887, %v888, %v889
      %v891 = vrot.slane %v243, 7
      %v892 = vsel %vm887, %v889, %v891
      %v897 = vunpack.c.l.b16 %v883
      %v898 = vunpack.c.l.b16 %v884
      %v899 = vunpack.c.l.b16 %v885
      %v900 = vunpack.c.l.b16 %v886
      %v901 = vpack.c.b16 %v898, %v897
      %v902 = vpack.c.b16 %v900, %v899
      %v906 = vsel %vm280, %v890, 0
      %v909 = vsel %vm280, %v892, 0
      %911 = vmatprep.subr.bf16.mxu0 0
      %912 = vmatpush1.bf16.msra.mxu0 0
      %913 = vmatprep.subr.bf16.mxu0 0
      %914 = vmatpush1.bf16.msra.mxu0 0
      %915 = vmatprep.subr.bf16.mxu0 0
      %916 = vmatpush1.bf16.msra.mxu0 0
      %917 = vmatprep.subr.bf16.mxu0 0
      %918 = vmatpush1.bf16.msra.mxu0 0
      %919 = vmatprep.subr.bf16.mxu0 0
      %920 = vmatpush1.bf16.msra.mxu0 0
      %921 = vmatprep.subr.bf16.mxu0 0
      %922 = vmatpush1.bf16.msra.mxu0 0
      %923 = vmatprep.subr.bf16.mxu0 0
      %924 = vmatpush1.bf16.msra.mxu0 %v902
      %925 = vmatprep.subr.bf16.mxu0 0
      %926 = vmatpush1.bf16.msra.mxu0 %v901
      %927 = vmatprep.subr.bf16.mxu0 0
      %928 = vmatpush2.bf16.msra.mxu0 0
      %929 = vmatprep.subr.bf16.mxu0 0
      %930 = vmatpush2.bf16.msra.mxu0 0
      %931 = vmatprep.subr.bf16.mxu0 0
      %932 = vmatpush2.bf16.msra.mxu0 0
      %933 = vmatprep.subr.bf16.mxu0 0
      %934 = vmatpush2.bf16.msra.mxu0 0
      %935 = vmatprep.subr.bf16.mxu0 0
      %936 = vmatpush2.bf16.msra.mxu0 0
      %937 = vmatprep.subr.bf16.mxu0 0
      %938 = vmatpush2.bf16.msra.mxu0 0
      %939 = vmatprep.subr.bf16.mxu0 0
      %940 = vmatpush2.bf16.msra.mxu0 0
      %941 = vmatprep.subr.bf16.mxu0 0
      %942 = vmatpush2.bf16.msra.mxu0 0
      %943 = vmatprep.mubr.bf16.mxu0 0
      %944 = vmatmul.mubr.bf16.gmra.mxu0 %v906
      %v945 = vpop.f32.mrf.mxu0
      %v946 = vadd.f32 0.0, %v945
      %v947 = vpop.f32.mrf.mxu0
      %v948 = vpop.f32.mrf.mxu0
      %v949 = vadd.f32 0.0, %v948
      %v950 = vpop.f32.mrf.mxu0
      %951 = vmatprep.mubr.bf16.mxu0 0
      %952 = vmatmul.mubr.bf16.gmra.mxu0 %v909
      %v953 = vpop.f32.mrf.mxu0
      %v954 = vadd.f32 0.0, %v953
      %v955 = vpop.f32.mrf.mxu0
      %v956 = vpop.f32.mrf.mxu0
      %v957 = vpop.f32.mrf.mxu0
      %958 = vdwg.mxu0
      %v959 = vadd.f32 %v880, %v946
      %v960 = vadd.f32 %v881, %v949
      %v961 = vadd.f32 %v882, %v954
      %v962 = vld [vmem:[%s2] sm:$0x1]
      %v964 = vlaneseq
      %v965 = vshrl.u32 %v964, 7
      %v966 = vsub.s32 0, %v965
      %v967 = vrot.slane %v962, %v966
      %v969 = vadd.f32 %v959, %v967
      %v970 = vadd.f32 %v960, %v967
      %v971 = vadd.f32 %v961, %v967
      %v972 = vmax.f32 %v969, 0.0
      %v973 = vmax.f32 %v970, 0.0
      %v974 = vmax.f32 %v971, 0.0
      %v975 = vpack.c.bf16 %v973, %v972
      %v976 = vpack.c.bf16 %v974, %v974
      %v977 = vld [vmem:[%s3] sm:$0xf]
      %v978 = vld [vmem:[%s3 + $0x4] sm:$0xf]
      %v979 = vld [vmem:[%s3 + $0x8] sm:$0xf]
      %v980 = vld [vmem:[%s3 + $0xc] sm:$0xf]
      %v981 = vld [vmem:[%s3 + $0x10] sm:$0xf]
      %v982 = vld [vmem:[%s3 + $0x14] sm:$0xf]
      %v983 = vld [vmem:[%s3 + $0x18] sm:$0xf]
      %v984 = vld [vmem:[%s3 + $0x1c] sm:$0xf]
      %v985 = vld [vmem:[%s3 + $0x20] sm:$0xf]
      %v986 = vld [vmem:[%s3 + $0x24] sm:$0xf]
      %v987 = vld [vmem:[%s3 + $0x28] sm:$0xf]
      %v988 = vld [vmem:[%s3 + $0x2c] sm:$0xf]
      %v989 = vld [vmem:[%s3 + $0x30] sm:$0xf]
      %v990 = vld [vmem:[%s3 + $0x34] sm:$0xf]
      %v991 = vld [vmem:[%s3 + $0x38] sm:$0xf]
      %v992 = vld [vmem:[%s3 + $0x3c] sm:$0xf]
      %v993 = vld [vmem:[%s4] sm:$0x1]
      %v995 = vlaneseq
      %v996 = vshrl.u32 %v995, 7
      %v997 = vsub.s32 0, %v996
      %v998 = vrot.slane %v993, %v997
      %v1016 = vunpack.c.l.b16 %v977
      %v1017 = vunpack.c.l.b16 %v978
      %v1018 = vunpack.c.l.b16 %v979
      %v1019 = vunpack.c.l.b16 %v980
      %v1020 = vunpack.c.l.b16 %v981
      %v1021 = vunpack.c.l.b16 %v982
      %v1022 = vunpack.c.l.b16 %v983
      %v1023 = vunpack.c.l.b16 %v984
      %v1024 = vunpack.c.l.b16 %v985
      %v1025 = vunpack.c.l.b16 %v986
      %v1026 = vunpack.c.l.b16 %v987
      %v1027 = vunpack.c.l.b16 %v988
      %v1028 = vunpack.c.l.b16 %v989
      %v1029 = vunpack.c.l.b16 %v990
      %v1030 = vunpack.c.l.b16 %v991
      %v1031 = vunpack.c.l.b16 %v992
      %v1032 = vpack.c.b16 %v1017, %v1016
      %v1033 = vpack.c.b16 %v1019, %v1018
      %v1034 = vpack.c.b16 %v1021, %v1020
      %v1035 = vpack.c.b16 %v1023, %v1022
      %v1036 = vpack.c.b16 %v1025, %v1024
      %v1037 = vpack.c.b16 %v1027, %v1026
      %v1038 = vpack.c.b16 %v1029, %v1028
      %v1039 = vpack.c.b16 %v1031, %v1030
      %1048 = vmatprep.subr.bf16.mxu0 0
      %1049 = vmatpush1.bf16.msra.mxu0 %v1039
      %1050 = vmatprep.subr.bf16.mxu0 0
      %1051 = vmatpush1.bf16.msra.mxu0 %v1038
      %1052 = vmatprep.subr.bf16.mxu0 0
      %1053 = vmatpush1.bf16.msra.mxu0 %v1037
      %1054 = vmatprep.subr.bf16.mxu0 0
      %1055 = vmatpush1.bf16.msra.mxu0 %v1036
      %1056 = vmatprep.subr.bf16.mxu0 0
      %1057 = vmatpush1.bf16.msra.mxu0 %v1035
      %1058 = vmatprep.subr.bf16.mxu0 0
      %1059 = vmatpush1.bf16.msra.mxu0 %v1034
      %1060 = vmatprep.subr.bf16.mxu0 0
      %1061 = vmatpush1.bf16.msra.mxu0 %v1033
      %1062 = vmatprep.subr.bf16.mxu0 0
      %1063 = vmatpush1.bf16.msra.mxu0 %v1032
      %1064 = vmatprep.subr.bf16.mxu0 0
      %1065 = vmatpush2.bf16.msra.mxu0 0
      %1066 = vmatprep.subr.bf16.mxu0 0
      %1067 = vmatpush2.bf16.msra.mxu0 0
      %1068 = vmatprep.subr.bf16.mxu0 0
      %1069 = vmatpush2.bf16.msra.mxu0 0
      %1070 = vmatprep.subr.bf16.mxu0 0
      %1071 = vmatpush2.bf16.msra.mxu0 0
      %1072 = vmatprep.subr.bf16.mxu0 0
      %1073 = vmatpush2.bf16.msra.mxu0 0
      %1074 = vmatprep.subr.bf16.mxu0 0
      %1075 = vmatpush2.bf16.msra.mxu0 0
      %1076 = vmatprep.subr.bf16.mxu0 0
      %1077 = vmatpush2.bf16.msra.mxu0 0
      %1078 = vmatprep.subr.bf16.mxu0 0
      %1079 = vmatpush2.bf16.msra.mxu0 0
      %1080 = vmatprep.mubr.bf16.mxu0 0
      %1081 = vmatmul.mubr.bf16.gmra.mxu0 %v975
      %v1082 = vpop.f32.mrf.mxu0
      %v1083 = vadd.f32 %v998, %v1082
      %v1084 = vpop.f32.mrf.mxu0
      %v1085 = vpop.f32.mrf.mxu0
      %v1086 = vadd.f32 %v998, %v1085
      %v1087 = vpop.f32.mrf.mxu0
      %1088 = vmatprep.mubr.bf16.mxu0 0
      %1089 = vmatmul.mubr.bf16.gmra.mxu0 %v976
      %v1090 = vpop.f32.mrf.mxu0
      %v1091 = vadd.f32 %v998, %v1090
      %v1092 = vpop.f32.mrf.mxu0
      %v1093 = vpop.f32.mrf.mxu0
      %v1094 = vpop.f32.mrf.mxu0
      %1095 = vdwg.mxu0
      %vm1096 = vcmask 257024
      %1097 = vst.msk [vmem:[%s224] sm:$0xf] %vm1096, 0
      %1098 = vst.msk [vmem:[%s224 + $0x4] sm:$0xf] %vm1096, 0
      %1099 = vst.msk [vmem:[%s224 + $0x8] sm:$0xf] %vm1096, 0
      %1100 = vst.msk [vmem:[%s224 + $0xc] sm:$0xf] %vm1096, 0
      %vm1101 = vcmask 254976
      %1102 = vst.msk [vmem:[%s224 + $0x10] sm:$0x3] %vm1101, 0
      %vm1105 = vcmask 1040384
      %v1106 = vrot.slane %v231, 7
      %v1107 = vrot.slane %v232, 7
      %v1108 = vsel %vm1105, %v1106, %v1107
      %v1110 = vadd.f32 %v1083, %v1108
      %v1111 = vpack.c.bf16 %v1110, %v1110
      %v1113 = vunpack.c.l.b16 %v1111
      %v1114 = vpack.c.b16 %v1113, %v1113
      %v1116 = vshll.u32 %v1114, 16
      %v1118 = vrot.slane %v1116, 5
      %v1119 = vshrl.u32 %v1114, 16
      %v1121 = vrot.slane %v1119, 4
      %v1122 = vor.u32 %v1121, %v1118
      %v1123 = vrot.slane %v1122, 4
      %vm1126 = vcmask 257027
      %vm1127 = vsmask.f32 7950
      %vm1128 = vmand %vm1126, %vm1127
      %v1129 = vld [vmem:[%s224] sm:$0x8]
      %v1130 = vsel %vm1128, %v1118, %v1129
      %1131 = vst [vmem:[%s224] sm:$0x8] %v1130
      %vm1132 = vcmask 254976
      %vm1133 = vmand %vm1132, %vm797
      %v1134 = vld [vmem:[%s224 + $0x4] sm:$0x3]
      %v1135 = vsel %vm1133, %v1123, %v1134
      %1136 = vst [vmem:[%s224 + $0x4] sm:$0x3] %v1135
      %v1138 = vrot.slane %v233, 7
      %v1139 = vsel %vm1105, %v1107, %v1138
      %v1142 = vadd.f32 %v1083, %v1107
      %v1143 = vadd.f32 %v1086, %v1139
      %v1144 = vpack.c.bf16 %v1143, %v1142
      %v1146 = vunpack.c.l.b16 %v1144
      %v1147 = vunpack.c.h.b16 %v1144
      %v1148 = vpack.c.b16 %v1146, %v1146
      %v1149 = vpack.c.b16 %v1147, %v1147
      %vm1150 = vsmask.f32 3328
      %vm1151 = vsmask.f32 7440
      %vm1152 = vmor %vm1150, %vm1151
      %v1154 = vshrl.u32 %v1148, 16
      %v1156 = vrot.slane %v1154, 4
      %v1157 = vshll.u32 %v1148, 16
      %v1159 = vrot.slane %v1157, 5
      %v1160 = vor.u32 %v1156, %v1159
      %v1161 = vrot.slane %v1160, 4
      %v1163 = vshll.u32 %v1149, 16
      %v1165 = vrot.slane %v1163, 5
      %v1166 = vsel %vm1152, %v1161, %v1165
      %v1167 = vshrl.u32 %v1149, 16
      %v1169 = vrot.slane %v1167, 4
      %v1170 = vrot.slane %v1169, 4
      %vm1173 = vcmask 257026
      %vm1174 = vsmask.f32 7946
      %vm1175 = vmand %vm1173, %vm1174
      %v1176 = vld [vmem:[%s224 + $0x4] sm:$0xc]
      %v1177 = vsel %vm1175, %v1166, %v1176
      %1178 = vst [vmem:[%s224 + $0x4] sm:$0xc] %v1177
      %vm1179 = vcmask 253952
      %vm1180 = vsmask.f32 256
      %vm1181 = vmand %vm1179, %vm1180
      %v1182 = vld [vmem:[%s224 + $0x8] sm:$0x1]
      %v1183 = vsel %vm1181, %v1170, %v1182
      %1184 = vst [vmem:[%s224 + $0x8] sm:$0x1] %v1183
      %v1186 = vadd.f32 %v1086, %v1138
      %v1187 = vpack.c.bf16 %v1186, %v1186
      %v1189 = vunpack.c.l.b16 %v1187
      %v1190 = vpack.c.b16 %v1189, %v1189
      %v1192 = vshrl.u32 %v1190, 16
      %v1194 = vrot.slane %v1192, 4
      %v1195 = vshll.u32 %v1190, 16
      %v1197 = vrot.slane %v1195, 5
      %v1198 = vor.u32 %v1194, %v1197
      %v1199 = vrot.slane %v1198, 4
      %vm1201 = vcmask 257025
      %vm1202 = vsmask.f32 3334
      %vm1203 = vmand %vm1201, %vm1202
      %v1204 = vld [vmem:[%s224 + $0x8] sm:$0xe]
      %v1205 = vsel %vm1203, %v1199, %v1204
      %1206 = vst [vmem:[%s224 + $0x8] sm:$0xe] %v1205
      %v1208 = vrot.slane %v234, 7
      %v1210 = vadd.f32 %v1091, %v1208
      %v1211 = vpack.c.bf16 %v1210, %v1210
      %v1213 = vunpack.c.l.b16 %v1211
      %v1214 = vpack.c.b16 %v1213, %v1213
      %v1216 = vshrl.u32 %v1214, 16
      %v1218 = vrot.slane %v1216, 4
      %v1219 = vshll.u32 %v1214, 16
      %v1221 = vrot.slane %v1219, 5
      %v1222 = vor.u32 %v1218, %v1221
      %v1223 = vrot.slane %v1222, 4
      %vm1225 = vcmask 256000
      %vm1226 = vsmask.f32 2306
      %vm1227 = vmand %vm1225, %vm1226
      %v1228 = vld [vmem:[%s224 + $0xc] sm:$0x7]
      %v1229 = vsel %vm1227, %v1223, %v1228
      %1230 = vst [vmem:[%s224 + $0xc] sm:$0x7] %v1229
      %p1231 = scmp.lt.s32.totalorder %s16, 1
      %s1232 = scalar_select %p1231, %s16, 1
      %s1233 = smul.addr %s1232, 5
      %s1234 = smul.addr %s1233, 4
      %s1235 = scalar_lea.vmem %s5, %s1234
      // Predicated region
      $region41: #{vqvae_forward.11} parent=39 // pred_check
        %p1236 = pneg %p144
      $region42: #{vqvae_forward.11} parent=39 // pred_check_branch
        %1238 = sbr.rel (%p1236) target = $region44
      $region43: #{vqvae_forward.11} parent=39 // pred_region
        _
      $region44: #{vqvae_forward.11} parent=39 // pred_fallthru
        _
    $region40: #{vqvae_forward.11} parent=5 // pred_fallthru
      _
    %p1239 = scmp.le.s32.totalorder 2, %s11
    // Predicated region
    $region45: #{vqvae_forward.11} parent=5 // pred_check
      %p1240 = pneg %p1239
    $region46: #{vqvae_forward.11} parent=5 // pred_check_branch
      %1242 = sbr.rel (%p1240) target = $region48
    $region47: #{vqvae_forward.11} parent=5 // pred_region
      %s1243 = ssub.s32 %s11, 2
      // Predicated region
      $region49: #{vqvae_forward.11} parent=47 // pred_check
        %p1244 = pneg %p150
      $region50: #{vqvae_forward.11} parent=47 // pred_check_branch
        %1246 = sbr.rel (%p1244) target = $region52
      $region51: #{vqvae_forward.11} parent=47 // pred_region
        %p1247 = scmp.lt.s32.totalorder %s17, 1
        %s1248 = scalar_select %p1247, %s17, 1
        %s1249 = smul.addr %s1248, 5
        %s1250 = smul.addr %s1249, 4
        %s1251 = scalar_lea.vmem %s5, %s1250
      $region52: #{vqvae_forward.11} parent=47 // pred_fallthru
        _
    $region48: #{vqvae_forward.11} parent=5 // pred_fallthru
      _
  $region6: #{vqvae_forward.11} parent=0 // loop_footer
    %s15 = sadd.s32 1, %s11
  $region7: #{vqvae_forward.11} parent=0 // loop_footer_branch
    %10 = sbr.rel target = $region3
  $region8: #{vqvae_forward.11} parent=0 // loop_exit
    _

// kernel: vqvae_forward.13
$region0: #{vqvae_forward.13}
  #allocation0 [shape = 'u32[]', space=smem, size = 0x4, offset = 0x4, fixed_abs, tag = 'smem constant byte address 0x4 - core index']
  #allocation1 [shape = 'u32[144,128]{1,0:T(1,128)}', space=vmem, size = 0x12000, scoped, tag = 'internal scratch']
  %s0 = inlined_call_operand.vmem [shape: f32[32,128], index: 0, kind: input, shape index: {}]
  %s1 = inlined_call_operand.vmem [shape: f32[128,128], index: 1, kind: input, shape index: {}]
  %s2 = inlined_call_operand.vmem [shape: f32[128,128], index: 2, kind: input, shape index: {}]
  %s3 = inlined_call_operand.vmem [shape: f32[1,128], index: 3, kind: input, shape index: {}]
  %s4 = inlined_call_operand.vmem [shape: f32[32,128], index: 4, kind: output, shape index: {}]
  %s5 = sld [smem:[#allocation0]]
  $region49: #{vqvae_forward.13} parent=0
    _
  %s7 = ssub.s32 1, %s5
  %s8 = scalar_select 0, %s7, %s5
  loop: start=0, step=1, limit=4
  $region2: #{vqvae_forward.13} parent=0 // loop_pre_header
    _
  $region3: #{vqvae_forward.13} parent=0 // loop_header
    %s10 = sphi 0, %s14
    %p11 = scmp.ge.s32.totalorder %s10, 4
    %s20 = sphi 0, %s22
    %s23 = sphi 0, %s20
    %s24 = sphi 0, %s23
    %s40 = sphi 0, %s24
    %s44 = sphi 0, %s44
    %s46 = sphi 0, %s44
    %s47 = sphi 0, %s46
    %s61 = sphi 0, %s47
    %s65 = sphi 0, %s65
    %s67 = sphi 0, %s65
    %s68 = sphi 0, %s67
    %s82 = sphi 0, %s68
    %s86 = sphi 0, %s86
    %s88 = sphi 0, %s86
    %s89 = sphi 0, %s88
    %s103 = sphi 0, %s89
    %s109 = sphi 0, %s111
    %s112 = sphi 0, %s109
    %s113 = sphi 0, %s112
    %s129 = sphi 0, %s113
  $region4: #{vqvae_forward.13} parent=0 // loop_header_branch
    %13 = sbr.rel (%p11) target = $region8
  $region5: #{vqvae_forward.13} parent=0 // loop_body
    %s15 = ssub.s32 %s10, 1
    %s16 = ssub.s32 %s10, 2
    %s17 = sadd.s32 %s10, 1
    %s18 = ssub.s32 %s10, %s17
    %p19 = scmp.eq.s32.totalorder %s18, 0
    %s21 = sadd.s32 %s20, 1
    %s22 = scalar_select %p19, %s20, %s21
    %p25 = pneg %p19
    %p26 = scmp.eq.s32.totalorder %s10, 1
    %p27 = por %p25, %p26
    %p28 = scmp.ne.s32.totalorder %s20, %s23
    %p29 = scmp.eq.s32.totalorder %s10, 0
    %p30 = por %p28, %p29
    %p31 = scmp.ne.s32.totalorder %s20, %s23
    %p32 = scmp.eq.s32.totalorder %s15, 1
    %p33 = por %p31, %p32
    %p34 = scmp.ne.s32.totalorder %s23, %s24
    %p35 = scmp.eq.s32.totalorder %s15, 0
    %p36 = por %p34, %p35
    %p37 = scmp.ne.s32.totalorder %s23, %s24
    %p38 = scmp.eq.s32.totalorder %s16, 1
    %p39 = por %p37, %p38
    %p41 = scmp.ne.s32.totalorder %s24, %s40
    %p42 = scmp.eq.s32.totalorder %s16, 0
    %p43 = por %p41, %p42
    %s45 = sadd.s32 %s44, 1
    %p48 = scmp.eq.s32.totalorder %s10, 1
    %p49 = scmp.ne.s32.totalorder %s44, %s46
    %p50 = scmp.eq.s32.totalorder %s10, 0
    %p51 = por %p49, %p50
    %p52 = scmp.ne.s32.totalorder %s44, %s46
    %p53 = scmp.eq.s32.totalorder %s15, 1
    %p54 = por %p52, %p53
    %p55 = scmp.ne.s32.totalorder %s46, %s47
    %p56 = scmp.eq.s32.totalorder %s15, 0
    %p57 = por %p55, %p56
    %p58 = scmp.ne.s32.totalorder %s46, %s47
    %p59 = scmp.eq.s32.totalorder %s16, 1
    %p60 = por %p58, %p59
    %p62 = scmp.ne.s32.totalorder %s47, %s61
    %p63 = scmp.eq.s32.totalorder %s16, 0
    %p64 = por %p62, %p63
    %s66 = sadd.s32 %s65, 1
    %p69 = scmp.eq.s32.totalorder %s10, 1
    %p70 = scmp.ne.s32.totalorder %s65, %s67
    %p71 = scmp.eq.s32.totalorder %s10, 0
    %p72 = por %p70, %p71
    %p73 = scmp.ne.s32.totalorder %s65, %s67
    %p74 = scmp.eq.s32.totalorder %s15, 1
    %p75 = por %p73, %p74
    %p76 = scmp.ne.s32.totalorder %s67, %s68
    %p77 = scmp.eq.s32.totalorder %s15, 0
    %p78 = por %p76, %p77
    %p79 = scmp.ne.s32.totalorder %s67, %s68
    %p80 = scmp.eq.s32.totalorder %s16, 1
    %p81 = por %p79, %p80
    %p83 = scmp.ne.s32.totalorder %s68, %s82
    %p84 = scmp.eq.s32.totalorder %s16, 0
    %p85 = por %p83, %p84
    %s87 = sadd.s32 %s86, 1
    %p90 = scmp.eq.s32.totalorder %s10, 1
    %p91 = scmp.ne.s32.totalorder %s86, %s88
    %p92 = scmp.eq.s32.totalorder %s10, 0
    %p93 = por %p91, %p92
    %p94 = scmp.ne.s32.totalorder %s86, %s88
    %p95 = scmp.eq.s32.totalorder %s15, 1
    %p96 = por %p94, %p95
    %p97 = scmp.ne.s32.totalorder %s88, %s89
    %p98 = scmp.eq.s32.totalorder %s15, 0
    %p99 = por %p97, %p98
    %p100 = scmp.ne.s32.totalorder %s88, %s89
    %p101 = scmp.eq.s32.totalorder %s16, 1
    %p102 = por %p100, %p101
    %p104 = scmp.ne.s32.totalorder %s89, %s103
    %p105 = scmp.eq.s32.totalorder %s16, 0
    %p106 = por %p104, %p105
    %s107 = ssub.s32 %s10, %s17
    %p108 = scmp.eq.s32.totalorder %s107, 0
    %s110 = sadd.s32 %s109, 1
    %s111 = scalar_select %p108, %s109, %s110
    %p114 = pneg %p108
    %p115 = scmp.eq.s32.totalorder %s10, 1
    %p116 = por %p114, %p115
    %p117 = scmp.ne.s32.totalorder %s109, %s112
    %p118 = scmp.eq.s32.totalorder %s10, 0
    %p119 = por %p117, %p118
    %p120 = scmp.ne.s32.totalorder %s109, %s112
    %p121 = scmp.eq.s32.totalorder %s15, 1
    %p122 = por %p120, %p121
    %p123 = scmp.ne.s32.totalorder %s112, %s113
    %p124 = scmp.eq.s32.totalorder %s15, 0
    %p125 = por %p123, %p124
    %p126 = scmp.ne.s32.totalorder %s112, %s113
    %p127 = scmp.eq.s32.totalorder %s16, 1
    %p128 = por %p126, %p127
    %p130 = scmp.ne.s32.totalorder %s113, %s129
    %p131 = scmp.eq.s32.totalorder %s16, 0
    %p132 = por %p130, %p131
    %p133 = scmp.le.s32.totalorder 1, %s10
    %p134 = scmp.lt.s32.totalorder %s10, 3
    %p135 = pnand %p133, %p134
    %p136 = pneg %p135
    // Predicated region
    $region9: #{vqvae_forward.13} parent=5 // pred_check
      _
    $region10: #{vqvae_forward.13} parent=5 // pred_check_branch
      %138 = sbr.rel (%p135) target = $region12
    $region11: #{vqvae_forward.13} parent=5 // pred_region
      %s139 = ssub.s32 %s10, 1
      // Predicated region
      $region13: #{vqvae_forward.13} parent=11 // pred_check
        %p140 = pneg %p57
      $region14: #{vqvae_forward.13} parent=11 // pred_check_branch
        %142 = sbr.rel (%p140) target = $region16
      $region15: #{vqvae_forward.13} parent=11 // pred_region
        _
      $region16: #{vqvae_forward.13} parent=11 // pred_fallthru
        _
      // Predicated region
      $region17: #{vqvae_forward.13} parent=11 // pred_check
        %p143 = pneg %p78
      $region18: #{vqvae_forward.13} parent=11 // pred_check_branch
        %145 = sbr.rel (%p143) target = $region20
      $region19: #{vqvae_forward.13} parent=11 // pred_region
        _
      $region20: #{vqvae_forward.13} parent=11 // pred_fallthru
        _
      // Predicated region
      $region21: #{vqvae_forward.13} parent=11 // pred_check
        %p146 = pneg %p99
      $region22: #{vqvae_forward.13} parent=11 // pred_check_branch
        %148 = sbr.rel (%p146) target = $region24
      $region23: #{vqvae_forward.13} parent=11 // pred_region
        _
      $region24: #{vqvae_forward.13} parent=11 // pred_fallthru
        _
    $region12: #{vqvae_forward.13} parent=5 // pred_fallthru
      _
    %p149 = scmp.lt.s32.totalorder %s10, 2
    // Predicated region
    $region25: #{vqvae_forward.13} parent=5 // pred_check
      %p150 = pneg %p149
    $region26: #{vqvae_forward.13} parent=5 // pred_check_branch
      %152 = sbr.rel (%p150) target = $region28
    $region27: #{vqvae_forward.13} parent=5 // pred_region
      // Predicated region
      $region29: #{vqvae_forward.13} parent=27 // pred_check
        %p153 = pneg %p30
      $region30: #{vqvae_forward.13} parent=27 // pred_check_branch
        %155 = sbr.rel (%p153) target = $region32
      $region31: #{vqvae_forward.13} parent=27 // pred_region
        %s156 = smul.u32 2, %s10
        %p157 = scmp.lt.s32.totalorder %s156, 3
        %s158 = scalar_select %p157, %s156, 3
        %s159 = smul.addr %s158, 8
        %s160 = scalar_lea.vmem %s0, %s159
        %s161 = smul.u32 2, %s10
      $region32: #{vqvae_forward.13} parent=27 // pred_fallthru
        _
    $region28: #{vqvae_forward.13} parent=5 // pred_fallthru
      _
    %p162 = scmp.le.s32.totalorder 1, %s10
    %p163 = scmp.lt.s32.totalorder %s10, 3
    %p164 = pnand %p162, %p163
    %p165 = pneg %p164
    // Predicated region
    $region33: #{vqvae_forward.13} parent=5 // pred_check
      _
    $region34: #{vqvae_forward.13} parent=5 // pred_check_branch
      %167 = sbr.rel (%p164) target = $region36
    $region35: #{vqvae_forward.13} parent=5 // pred_region
      %s168 = ssub.s32 %s10, 1
      %s169 = smul.u32 2, %s15
      %p170 = scmp.lt.s32.totalorder %s169, 3
      %s171 = scalar_select %p170, %s169, 3
      %s172 = smul.addr %s171, 8
      %s173 = scalar_lea.vmem %s0, %s172
      %p174 = pneg %p36
      %p175 = pneg %p33
      %p176 = pneg %p57
      %p177 = pneg %p54
      %p178 = pneg %p78
      %p179 = pneg %p75
      %p180 = pneg %p99
      %p181 = pneg %p96
      %p182 = pneg %p125
      %p183 = pneg %p122
      %s184 = smul.u32 2, %s15
      %p185 = scmp.lt.s32.totalorder %s184, 3
      %s186 = scalar_select %p185, %s184, 3
      %s187 = smul.addr %s186, 8
      %s188 = scalar_lea.vmem %s4, %s187
      %s189 = smul.u32 2, %s15
      %p190 = scmp.lt.s32.totalorder %s189, 3
      %s191 = scalar_select %p190, %s189, 3
      %s192 = smul.addr %s191, 8
      %s193 = scalar_lea.vmem %s0, %s192
      %s194 = smul.u32 2, %s15
      %s195 = smul.u32 2, %s15
      %p196 = scmp.lt.s32.totalorder %s195, 3
      %s197 = scalar_select %p196, %s195, 3
      %s198 = smul.addr %s197, 8
      %s199 = scalar_lea.vmem %s4, %s198
      %s200 = smul.u32 2, %s15
      %v201 = vld [vmem:[%s193] sm:$0xff]
      %v202 = vld [vmem:[%s193 + $0x8] sm:$0xff]
      %v203 = vld [vmem:[%s1] sm:$0xff]
      %v204 = vld [vmem:[%s1 + $0x8] sm:$0xff]
      %v205 = vld [vmem:[%s1 + $0x10] sm:$0xff]
      %v206 = vld [vmem:[%s1 + $0x18] sm:$0xff]
      %v207 = vld [vmem:[%s1 + $0x20] sm:$0xff]
      %v208 = vld [vmem:[%s1 + $0x28] sm:$0xff]
      %v209 = vld [vmem:[%s1 + $0x30] sm:$0xff]
      %v210 = vld [vmem:[%s1 + $0x38] sm:$0xff]
      %v211 = vld [vmem:[%s1 + $0x40] sm:$0xff]
      %v212 = vld [vmem:[%s1 + $0x48] sm:$0xff]
      %v213 = vld [vmem:[%s1 + $0x50] sm:$0xff]
      %v214 = vld [vmem:[%s1 + $0x58] sm:$0xff]
      %v215 = vld [vmem:[%s1 + $0x60] sm:$0xff]
      %v216 = vld [vmem:[%s1 + $0x68] sm:$0xff]
      %v217 = vld [vmem:[%s1 + $0x70] sm:$0xff]
      %v218 = vld [vmem:[%s1 + $0x78] sm:$0xff]
      %219 = vmatprep.subr.mxu0 0.0
      %220 = vmatpush1.msra.mxu0 %v218
      %221 = vmatprep.subr.mxu0 0.0
      %222 = vmatpush1.msra.mxu0 %v217
      %223 = vmatprep.subr.mxu0 0.0
      %224 = vmatpush1.msra.mxu0 %v216
      %225 = vmatprep.subr.mxu0 0.0
      %226 = vmatpush1.msra.mxu0 %v215
      %227 = vmatprep.subr.mxu0 0.0
      %228 = vmatpush1.msra.mxu0 %v214
      %229 = vmatprep.subr.mxu0 0.0
      %230 = vmatpush1.msra.mxu0 %v213
      %231 = vmatprep.subr.mxu0 0.0
      %232 = vmatpush1.msra.mxu0 %v212
      %233 = vmatprep.subr.mxu0 0.0
      %234 = vmatpush1.msra.mxu0 %v211
      %235 = vmatprep.subr.mxu0 0.0
      %236 = vmatpush1.msra.mxu0 %v210
      %237 = vmatprep.subr.mxu0 0.0
      %238 = vmatpush1.msra.mxu0 %v209
      %239 = vmatprep.subr.mxu0 0.0
      %240 = vmatpush1.msra.mxu0 %v208
      %241 = vmatprep.subr.mxu0 0.0
      %242 = vmatpush1.msra.mxu0 %v207
      %243 = vmatprep.subr.mxu0 0.0
      %244 = vmatpush1.msra.mxu0 %v206
      %245 = vmatprep.subr.mxu0 0.0
      %246 = vmatpush1.msra.mxu0 %v205
      %247 = vmatprep.subr.mxu0 0.0
      %248 = vmatpush1.msra.mxu0 %v204
      %249 = vmatprep.subr.mxu0 0.0
      %250 = vmatpush1.msra.mxu0 %v203
      %251 = vmatprep.subr.mxu0 0.0
      %252 = vmatpush2.msra.mxu0 0.0
      %253 = vmatprep.subr.mxu0 0.0
      %254 = vmatpush2.msra.mxu0 0.0
      %255 = vmatprep.subr.mxu0 0.0
      %256 = vmatpush2.msra.mxu0 0.0
      %257 = vmatprep.subr.mxu0 0.0
      %258 = vmatpush2.msra.mxu0 0.0
      %259 = vmatprep.subr.mxu0 0.0
      %260 = vmatpush2.msra.mxu0 0.0
      %261 = vmatprep.subr.mxu0 0.0
      %262 = vmatpush2.msra.mxu0 0.0
      %263 = vmatprep.subr.mxu0 0.0
      %264 = vmatpush2.msra.mxu0 0.0
      %265 = vmatprep.subr.mxu0 0.0
      %266 = vmatpush2.msra.mxu0 0.0
      %267 = vmatprep.subr.mxu0 0.0
      %268 = vmatpush2.msra.mxu0 0.0
      %269 = vmatprep.subr.mxu0 0.0
      %270 = vmatpush2.msra.mxu0 0.0
      %271 = vmatprep.subr.mxu0 0.0
      %272 = vmatpush2.msra.mxu0 0.0
      %273 = vmatprep.subr.mxu0 0.0
      %274 = vmatpush2.msra.mxu0 0.0
      %275 = vmatprep.subr.mxu0 0.0
      %276 = vmatpush2.msra.mxu0 0.0
      %277 = vmatprep.subr.mxu0 0.0
      %278 = vmatpush2.msra.mxu0 0.0
      %279 = vmatprep.subr.mxu0 0.0
      %280 = vmatpush2.msra.mxu0 0.0
      %281 = vmatprep.subr.mxu0 0.0
      %282 = vmatpush2.msra.mxu0 0.0
      %283 = vmatprep.mubr.f32.mxu0 0.0
      %284 = vmatmul.mubr.f32.gmra.mxu0 %v201
      %v285 = vpop.f32.mrf.mxu0
      %v286 = vadd.f32 0.0, %v285
      %v287 = vpop.f32.mrf.mxu0
      %288 = vmatprep.mubr.f32.mxu0 0.0
      %289 = vmatmul.mubr.f32.gmra.mxu0 %v202
      %v290 = vpop.f32.mrf.mxu0
      %v291 = vadd.f32 0.0, %v290
      %v292 = vpop.f32.mrf.mxu0
      %293 = vdwg.mxu0
      %v294 = vld [vmem:[%s3] sm:$0x1]
      %v295 = vmul.f32 %v286, 2.0
      %v296 = vmul.f32 %v291, 2.0
      %v298 = vlaneseq
      %v299 = vshrl.u32 %v298, 7
      %v300 = vsub.s32 0, %v299
      %v301 = vrot.slane %v294, %v300
      %v303 = vsub.f32 %v301, %v295
      %v304 = vsub.f32 %v301, %v296
      %305 = vmin.xlane.f32.xlu0 %v303
      %v306 = vpop.xlane.xlu0 %305
      %307 = vmin.xlane.f32.xlu0 %v304
      %v308 = vpop.xlane.xlu0 %307
      %v309 = vlaneseq
      %v310 = vand.u32 %v309, 127
      %vm311 = vcmp.le.f32.partialorder %v303, %v306
      %vm312 = vcmp.le.f32.partialorder %v304, %v308
      %v313 = vsel %vm311, %v310, 128
      %v314 = vsel %vm312, %v310, 128
      %v315 = vand.u32 %v313, 65535
      %v316 = vshra.s32 %v313, 16
      %v317 = vcvt.s32.f32 %v315
      %v318 = vcvt.s32.f32 %v316
      %319 = vmin.xlane.f32.xlu0 %v318
      %v320 = vpop.xlane.xlu0 %319
      %vm321 = vcmp.eq.f32.partialorder %v318, %v320
      %v322 = vsel %vm321, %v317, inf
      %323 = vmin.xlane.f32.xlu0 %v322
      %v324 = vpop.xlane.xlu0 %323
      %v325 = vcvt.f32.s32 %v324
      %v326 = vcvt.f32.s32 %v320
      %v327 = vshll.u32 %v326, 16
      %v328 = vadd.s32 %v327, %v325
      %v329 = vand.u32 %v314, 65535
      %v330 = vshra.s32 %v314, 16
      %v331 = vcvt.s32.f32 %v329
      %v332 = vcvt.s32.f32 %v330
      %333 = vmin.xlane.f32.xlu0 %v332
      %v334 = vpop.xlane.xlu0 %333
      %vm335 = vcmp.eq.f32.partialorder %v332, %v334
      %v336 = vsel %vm335, %v331, inf
      %337 = vmin.xlane.f32.xlu0 %v336
      %v338 = vpop.xlane.xlu0 %337
      %v339 = vcvt.f32.s32 %v338
      %v340 = vcvt.f32.s32 %v334
      %v341 = vshll.u32 %v340, 16
      %v342 = vadd.s32 %v341, %v339
      %vm343 = vcmp.eq.s32.totalorder %v310, %v328
      %vm344 = vcmp.eq.s32.totalorder %v310, %v342
      %v345 = vsel %vm343, 1, 0
      %v346 = vsel %vm344, 1, 0
      %v347 = vcvt.s32.f32 %v345
      %v348 = vcvt.s32.f32 %v346
      %v349 = vld [vmem:[%s2] sm:$0xff]
      %v350 = vld [vmem:[%s2 + $0x8] sm:$0xff]
      %v351 = vld [vmem:[%s2 + $0x10] sm:$0xff]
      %v352 = vld [vmem:[%s2 + $0x18] sm:$0xff]
      %v353 = vld [vmem:[%s2 + $0x20] sm:$0xff]
      %v354 = vld [vmem:[%s2 + $0x28] sm:$0xff]
      %v355 = vld [vmem:[%s2 + $0x30] sm:$0xff]
      %v356 = vld [vmem:[%s2 + $0x38] sm:$0xff]
      %v357 = vld [vmem:[%s2 + $0x40] sm:$0xff]
      %v358 = vld [vmem:[%s2 + $0x48] sm:$0xff]
      %v359 = vld [vmem:[%s2 + $0x50] sm:$0xff]
      %v360 = vld [vmem:[%s2 + $0x58] sm:$0xff]
      %v361 = vld [vmem:[%s2 + $0x60] sm:$0xff]
      %v362 = vld [vmem:[%s2 + $0x68] sm:$0xff]
      %v363 = vld [vmem:[%s2 + $0x70] sm:$0xff]
      %v364 = vld [vmem:[%s2 + $0x78] sm:$0xff]
      %365 = vmatprep.subr.mxu0 0.0
      %366 = vmatpush1.msra.mxu0 %v364
      %367 = vmatprep.subr.mxu0 0.0
      %368 = vmatpush1.msra.mxu0 %v363
      %369 = vmatprep.subr.mxu0 0.0
      %370 = vmatpush1.msra.mxu0 %v362
      %371 = vmatprep.subr.mxu0 0.0
      %372 = vmatpush1.msra.mxu0 %v361
      %373 = vmatprep.subr.mxu0 0.0
      %374 = vmatpush1.msra.mxu0 %v360
      %375 = vmatprep.subr.mxu0 0.0
      %376 = vmatpush1.msra.mxu0 %v359
      %377 = vmatprep.subr.mxu0 0.0
      %378 = vmatpush1.msra.mxu0 %v358
      %379 = vmatprep.subr.mxu0 0.0
      %380 = vmatpush1.msra.mxu0 %v357
      %381 = vmatprep.subr.mxu0 0.0
      %382 = vmatpush1.msra.mxu0 %v356
      %383 = vmatprep.subr.mxu0 0.0
      %384 = vmatpush1.msra.mxu0 %v355
      %385 = vmatprep.subr.mxu0 0.0
      %386 = vmatpush1.msra.mxu0 %v354
      %387 = vmatprep.subr.mxu0 0.0
      %388 = vmatpush1.msra.mxu0 %v353
      %389 = vmatprep.subr.mxu0 0.0
      %390 = vmatpush1.msra.mxu0 %v352
      %391 = vmatprep.subr.mxu0 0.0
      %392 = vmatpush1.msra.mxu0 %v351
      %393 = vmatprep.subr.mxu0 0.0
      %394 = vmatpush1.msra.mxu0 %v350
      %395 = vmatprep.subr.mxu0 0.0
      %396 = vmatpush1.msra.mxu0 %v349
      %397 = vmatprep.subr.mxu0 0.0
      %398 = vmatpush2.msra.mxu0 0.0
      %399 = vmatprep.subr.mxu0 0.0
      %400 = vmatpush2.msra.mxu0 0.0
      %401 = vmatprep.subr.mxu0 0.0
      %402 = vmatpush2.msra.mxu0 0.0
      %403 = vmatprep.subr.mxu0 0.0
      %404 = vmatpush2.msra.mxu0 0.0
      %405 = vmatprep.subr.mxu0 0.0
      %406 = vmatpush2.msra.mxu0 0.0
      %407 = vmatprep.subr.mxu0 0.0
      %408 = vmatpush2.msra.mxu0 0.0
      %409 = vmatprep.subr.mxu0 0.0
      %410 = vmatpush2.msra.mxu0 0.0
      %411 = vmatprep.subr.mxu0 0.0
      %412 = vmatpush2.msra.mxu0 0.0
      %413 = vmatprep.subr.mxu0 0.0
      %414 = vmatpush2.msra.mxu0 0.0
      %415 = vmatprep.subr.mxu0 0.0
      %416 = vmatpush2.msra.mxu0 0.0
      %417 = vmatprep.subr.mxu0 0.0
      %418 = vmatpush2.msra.mxu0 0.0
      %419 = vmatprep.subr.mxu0 0.0
      %420 = vmatpush2.msra.mxu0 0.0
      %421 = vmatprep.subr.mxu0 0.0
      %422 = vmatpush2.msra.mxu0 0.0
      %423 = vmatprep.subr.mxu0 0.0
      %424 = vmatpush2.msra.mxu0 0.0
      %425 = vmatprep.subr.mxu0 0.0
      %426 = vmatpush2.msra.mxu0 0.0
      %427 = vmatprep.subr.mxu0 0.0
      %428 = vmatpush2.msra.mxu0 0.0
      %429 = vmatprep.mubr.f32.mxu0 0.0
      %430 = vmatmul.mubr.f32.gmra.mxu0 %v347
      %v431 = vpop.f32.mrf.mxu0
      %v432 = vadd.f32 0.0, %v431
      %v433 = vpop.f32.mrf.mxu0
      %434 = vmatprep.mubr.f32.mxu0 0.0
      %435 = vmatmul.mubr.f32.gmra.mxu0 %v348
      %v436 = vpop.f32.mrf.mxu0
      %v437 = vadd.f32 0.0, %v436
      %v438 = vpop.f32.mrf.mxu0
      %439 = vdwg.mxu0
      %440 = vst [vmem:[%s199] sm:$0xff] %v432
      %441 = vst [vmem:[%s199 + $0x8] sm:$0xff] %v437
      %s442 = smul.u32 2, %s15
      %p443 = scmp.lt.s32.totalorder %s442, 3
      %s444 = scalar_select %p443, %s442, 3
      %s445 = smul.addr %s444, 8
      %s446 = scalar_lea.vmem %s4, %s445
      // Predicated region
      $region37: #{vqvae_forward.13} parent=35 // pred_check
        %p447 = pneg %p122
      $region38: #{vqvae_forward.13} parent=35 // pred_check_branch
        %449 = sbr.rel (%p447) target = $region40
      $region39: #{vqvae_forward.13} parent=35 // pred_region
        %s450 = smul.u32 2, %s15
      $region40: #{vqvae_forward.13} parent=35 // pred_fallthru
        _
    $region36: #{vqvae_forward.13} parent=5 // pred_fallthru
      _
    %p451 = scmp.le.s32.totalorder 2, %s10
    // Predicated region
    $region41: #{vqvae_forward.13} parent=5 // pred_check
      %p452 = pneg %p451
    $region42: #{vqvae_forward.13} parent=5 // pred_check_branch
      %454 = sbr.rel (%p452) target = $region44
    $region43: #{vqvae_forward.13} parent=5 // pred_region
      %s455 = ssub.s32 %s10, 2
      // Predicated region
      $region45: #{vqvae_forward.13} parent=43 // pred_check
        %p456 = pneg %p128
      $region46: #{vqvae_forward.13} parent=43 // pred_check_branch
        %458 = sbr.rel (%p456) target = $region48
      $region47: #{vqvae_forward.13} parent=43 // pred_region
        %s459 = smul.u32 2, %s16
        %p460 = scmp.lt.s32.totalorder %s459, 3
        %s461 = scalar_select %p460, %s459, 3
        %s462 = smul.addr %s461, 8
        %s463 = scalar_lea.vmem %s4, %s462
      $region48: #{vqvae_forward.13} parent=43 // pred_fallthru
        _
    $region44: #{vqvae_forward.13} parent=5 // pred_fallthru
      _
  $region6: #{vqvae_forward.13} parent=0 // loop_footer
    %s14 = sadd.s32 1, %s10
  $region7: #{vqvae_forward.13} parent=0 // loop_footer_branch
    %9 = sbr.rel target = $region3
  $region8: #{vqvae_forward.13} parent=0 // loop_exit
    _

// kernel: vqvae_forward.14
$region0: #{vqvae_forward.14}
  #allocation0 [shape = 'u32[]', space=smem, size = 0x4, offset = 0x4, fixed_abs, tag = 'smem constant byte address 0x4 - core index']
  #allocation1 [shape = 'u32[144,128]{1,0:T(1,128)}', space=vmem, size = 0x12000, scoped, tag = 'internal scratch']
  %s0 = inlined_call_operand.vmem [shape: f32[2,36,32], index: 0, kind: input, shape index: {}]
  %s1 = inlined_call_operand.vmem [shape: bf16[288,128], index: 1, kind: input, shape index: {}]
  %s2 = inlined_call_operand.vmem [shape: f32[1,128], index: 2, kind: input, shape index: {}]
  %s3 = inlined_call_operand.vmem [shape: bf16[128,128], index: 3, kind: input, shape index: {}]
  %s4 = inlined_call_operand.vmem [shape: f32[1,128], index: 4, kind: input, shape index: {}]
  %s5 = inlined_call_operand.vmem [shape: bf16[2,36,32], index: 5, kind: output, shape index: {}]
  %s6 = sld [smem:[#allocation0]]
  $region53: #{vqvae_forward.14} parent=0
    _
  %s8 = ssub.s32 1, %s6
  %s9 = scalar_select 0, %s8, %s6
  loop: start=0, step=1, limit=4
  $region2: #{vqvae_forward.14} parent=0 // loop_pre_header
    _
  $region3: #{vqvae_forward.14} parent=0 // loop_header
    %s11 = sphi 0, %s15
    %p12 = scmp.ge.s32.totalorder %s11, 4
    %s21 = sphi 0, %s23
    %s24 = sphi 0, %s21
    %s25 = sphi 0, %s24
    %s41 = sphi 0, %s25
    %s45 = sphi 0, %s45
    %s47 = sphi 0, %s45
    %s48 = sphi 0, %s47
    %s62 = sphi 0, %s48
    %s66 = sphi 0, %s66
    %s68 = sphi 0, %s66
    %s69 = sphi 0, %s68
    %s83 = sphi 0, %s69
    %s87 = sphi 0, %s87
    %s89 = sphi 0, %s87
    %s90 = sphi 0, %s89
    %s104 = sphi 0, %s90
    %s108 = sphi 0, %s108
    %s110 = sphi 0, %s108
    %s111 = sphi 0, %s110
    %s125 = sphi 0, %s111
    %s131 = sphi 0, %s133
    %s134 = sphi 0, %s131
    %s135 = sphi 0, %s134
    %s151 = sphi 0, %s135
  $region4: #{vqvae_forward.14} parent=0 // loop_header_branch
    %14 = sbr.rel (%p12) target = $region8
  $region5: #{vqvae_forward.14} parent=0 // loop_body
    %s16 = ssub.s32 %s11, 1
    %s17 = ssub.s32 %s11, 2
    %s18 = sadd.s32 %s11, 1
    %s19 = ssub.s32 %s11, %s18
    %p20 = scmp.eq.s32.totalorder %s19, 0
    %s22 = sadd.s32 %s21, 1
    %s23 = scalar_select %p20, %s21, %s22
    %p26 = pneg %p20
    %p27 = scmp.eq.s32.totalorder %s11, 1
    %p28 = por %p26, %p27
    %p29 = scmp.ne.s32.totalorder %s21, %s24
    %p30 = scmp.eq.s32.totalorder %s11, 0
    %p31 = por %p29, %p30
    %p32 = scmp.ne.s32.totalorder %s21, %s24
    %p33 = scmp.eq.s32.totalorder %s16, 1
    %p34 = por %p32, %p33
    %p35 = scmp.ne.s32.totalorder %s24, %s25
    %p36 = scmp.eq.s32.totalorder %s16, 0
    %p37 = por %p35, %p36
    %p38 = scmp.ne.s32.totalorder %s24, %s25
    %p39 = scmp.eq.s32.totalorder %s17, 1
    %p40 = por %p38, %p39
    %p42 = scmp.ne.s32.totalorder %s25, %s41
    %p43 = scmp.eq.s32.totalorder %s17, 0
    %p44 = por %p42, %p43
    %s46 = sadd.s32 %s45, 1
    %p49 = scmp.eq.s32.totalorder %s11, 1
    %p50 = scmp.ne.s32.totalorder %s45, %s47
    %p51 = scmp.eq.s32.totalorder %s11, 0
    %p52 = por %p50, %p51
    %p53 = scmp.ne.s32.totalorder %s45, %s47
    %p54 = scmp.eq.s32.totalorder %s16, 1
    %p55 = por %p53, %p54
    %p56 = scmp.ne.s32.totalorder %s47, %s48
    %p57 = scmp.eq.s32.totalorder %s16, 0
    %p58 = por %p56, %p57
    %p59 = scmp.ne.s32.totalorder %s47, %s48
    %p60 = scmp.eq.s32.totalorder %s17, 1
    %p61 = por %p59, %p60
    %p63 = scmp.ne.s32.totalorder %s48, %s62
    %p64 = scmp.eq.s32.totalorder %s17, 0
    %p65 = por %p63, %p64
    %s67 = sadd.s32 %s66, 1
    %p70 = scmp.eq.s32.totalorder %s11, 1
    %p71 = scmp.ne.s32.totalorder %s66, %s68
    %p72 = scmp.eq.s32.totalorder %s11, 0
    %p73 = por %p71, %p72
    %p74 = scmp.ne.s32.totalorder %s66, %s68
    %p75 = scmp.eq.s32.totalorder %s16, 1
    %p76 = por %p74, %p75
    %p77 = scmp.ne.s32.totalorder %s68, %s69
    %p78 = scmp.eq.s32.totalorder %s16, 0
    %p79 = por %p77, %p78
    %p80 = scmp.ne.s32.totalorder %s68, %s69
    %p81 = scmp.eq.s32.totalorder %s17, 1
    %p82 = por %p80, %p81
    %p84 = scmp.ne.s32.totalorder %s69, %s83
    %p85 = scmp.eq.s32.totalorder %s17, 0
    %p86 = por %p84, %p85
    %s88 = sadd.s32 %s87, 1
    %p91 = scmp.eq.s32.totalorder %s11, 1
    %p92 = scmp.ne.s32.totalorder %s87, %s89
    %p93 = scmp.eq.s32.totalorder %s11, 0
    %p94 = por %p92, %p93
    %p95 = scmp.ne.s32.totalorder %s87, %s89
    %p96 = scmp.eq.s32.totalorder %s16, 1
    %p97 = por %p95, %p96
    %p98 = scmp.ne.s32.totalorder %s89, %s90
    %p99 = scmp.eq.s32.totalorder %s16, 0
    %p100 = por %p98, %p99
    %p101 = scmp.ne.s32.totalorder %s89, %s90
    %p102 = scmp.eq.s32.totalorder %s17, 1
    %p103 = por %p101, %p102
    %p105 = scmp.ne.s32.totalorder %s90, %s104
    %p106 = scmp.eq.s32.totalorder %s17, 0
    %p107 = por %p105, %p106
    %s109 = sadd.s32 %s108, 1
    %p112 = scmp.eq.s32.totalorder %s11, 1
    %p113 = scmp.ne.s32.totalorder %s108, %s110
    %p114 = scmp.eq.s32.totalorder %s11, 0
    %p115 = por %p113, %p114
    %p116 = scmp.ne.s32.totalorder %s108, %s110
    %p117 = scmp.eq.s32.totalorder %s16, 1
    %p118 = por %p116, %p117
    %p119 = scmp.ne.s32.totalorder %s110, %s111
    %p120 = scmp.eq.s32.totalorder %s16, 0
    %p121 = por %p119, %p120
    %p122 = scmp.ne.s32.totalorder %s110, %s111
    %p123 = scmp.eq.s32.totalorder %s17, 1
    %p124 = por %p122, %p123
    %p126 = scmp.ne.s32.totalorder %s111, %s125
    %p127 = scmp.eq.s32.totalorder %s17, 0
    %p128 = por %p126, %p127
    %s129 = ssub.s32 %s11, %s18
    %p130 = scmp.eq.s32.totalorder %s129, 0
    %s132 = sadd.s32 %s131, 1
    %s133 = scalar_select %p130, %s131, %s132
    %p136 = pneg %p130
    %p137 = scmp.eq.s32.totalorder %s11, 1
    %p138 = por %p136, %p137
    %p139 = scmp.ne.s32.totalorder %s131, %s134
    %p140 = scmp.eq.s32.totalorder %s11, 0
    %p141 = por %p139, %p140
    %p142 = scmp.ne.s32.totalorder %s131, %s134
    %p143 = scmp.eq.s32.totalorder %s16, 1
    %p144 = por %p142, %p143
    %p145 = scmp.ne.s32.totalorder %s134, %s135
    %p146 = scmp.eq.s32.totalorder %s16, 0
    %p147 = por %p145, %p146
    %p148 = scmp.ne.s32.totalorder %s134, %s135
    %p149 = scmp.eq.s32.totalorder %s17, 1
    %p150 = por %p148, %p149
    %p152 = scmp.ne.s32.totalorder %s135, %s151
    %p153 = scmp.eq.s32.totalorder %s17, 0
    %p154 = por %p152, %p153
    %p155 = scmp.le.s32.totalorder 1, %s11
    %p156 = scmp.lt.s32.totalorder %s11, 3
    %p157 = pnand %p155, %p156
    %p158 = pneg %p157
    // Predicated region
    $region9: #{vqvae_forward.14} parent=5 // pred_check
      _
    $region10: #{vqvae_forward.14} parent=5 // pred_check_branch
      %160 = sbr.rel (%p157) target = $region12
    $region11: #{vqvae_forward.14} parent=5 // pred_region
      %s161 = ssub.s32 %s11, 1
      // Predicated region
      $region13: #{vqvae_forward.14} parent=11 // pred_check
        %p162 = pneg %p58
      $region14: #{vqvae_forward.14} parent=11 // pred_check_branch
        %164 = sbr.rel (%p162) target = $region16
      $region15: #{vqvae_forward.14} parent=11 // pred_region
        _
      $region16: #{vqvae_forward.14} parent=11 // pred_fallthru
        _
      // Predicated region
      $region17: #{vqvae_forward.14} parent=11 // pred_check
        %p165 = pneg %p79
      $region18: #{vqvae_forward.14} parent=11 // pred_check_branch
        %167 = sbr.rel (%p165) target = $region20
      $region19: #{vqvae_forward.14} parent=11 // pred_region
        _
      $region20: #{vqvae_forward.14} parent=11 // pred_fallthru
        _
      // Predicated region
      $region21: #{vqvae_forward.14} parent=11 // pred_check
        %p168 = pneg %p100
      $region22: #{vqvae_forward.14} parent=11 // pred_check_branch
        %170 = sbr.rel (%p168) target = $region24
      $region23: #{vqvae_forward.14} parent=11 // pred_region
        _
      $region24: #{vqvae_forward.14} parent=11 // pred_fallthru
        _
      // Predicated region
      $region25: #{vqvae_forward.14} parent=11 // pred_check
        %p171 = pneg %p121
      $region26: #{vqvae_forward.14} parent=11 // pred_check_branch
        %173 = sbr.rel (%p171) target = $region28
      $region27: #{vqvae_forward.14} parent=11 // pred_region
        _
      $region28: #{vqvae_forward.14} parent=11 // pred_fallthru
        _
    $region12: #{vqvae_forward.14} parent=5 // pred_fallthru
      _
    %p174 = scmp.lt.s32.totalorder %s11, 2
    // Predicated region
    $region29: #{vqvae_forward.14} parent=5 // pred_check
      %p175 = pneg %p174
    $region30: #{vqvae_forward.14} parent=5 // pred_check_branch
      %177 = sbr.rel (%p175) target = $region32
    $region31: #{vqvae_forward.14} parent=5 // pred_region
      // Predicated region
      $region33: #{vqvae_forward.14} parent=31 // pred_check
        %p178 = pneg %p31
      $region34: #{vqvae_forward.14} parent=31 // pred_check_branch
        %180 = sbr.rel (%p178) target = $region36
      $region35: #{vqvae_forward.14} parent=31 // pred_region
        %p181 = scmp.lt.s32.totalorder %s11, 1
        %s182 = scalar_select %p181, %s11, 1
        %s183 = smul.addr %s182, 5
        %s184 = smul.addr %s183, 8
        %s185 = scalar_lea.vmem %s0, %s184
      $region36: #{vqvae_forward.14} parent=31 // pred_fallthru
        _
    $region32: #{vqvae_forward.14} parent=5 // pred_fallthru
      _
    %p186 = scmp.le.s32.totalorder 1, %s11
    %p187 = scmp.lt.s32.totalorder %s11, 3
    %p188 = pnand %p186, %p187
    %p189 = pneg %p188
    // Predicated region
    $region37: #{vqvae_forward.14} parent=5 // pred_check
      _
    $region38: #{vqvae_forward.14} parent=5 // pred_check_branch
      %191 = sbr.rel (%p188) target = $region40
    $region39: #{vqvae_forward.14} parent=5 // pred_region
      %s192 = ssub.s32 %s11, 1
      %p193 = scmp.lt.s32.totalorder %s16, 1
      %s194 = scalar_select %p193, %s16, 1
      %s195 = smul.addr %s194, 5
      %s196 = smul.addr %s195, 8
      %s197 = scalar_lea.vmem %s0, %s196
      %p198 = pneg %p37
      %p199 = pneg %p34
      %p200 = pneg %p58
      %p201 = pneg %p55
      %p202 = pneg %p79
      %p203 = pneg %p76
      %p204 = pneg %p100
      %p205 = pneg %p97
      %p206 = pneg %p121
      %p207 = pneg %p118
      %p208 = pneg %p147
      %p209 = pneg %p144
      %p210 = scmp.lt.s32.totalorder %s16, 1
      %s211 = scalar_select %p210, %s16, 1
      %s212 = smul.addr %s211, 5
      %s213 = smul.addr %s212, 4
      %s214 = scalar_lea.vmem %s5, %s213
      %p215 = scmp.lt.s32.totalorder %s16, 1
      %s216 = scalar_select %p215, %s16, 1
      %s217 = smul.addr %s216, 5
      %s218 = smul.addr %s217, 8
      %s219 = scalar_lea.vmem %s0, %s218
      %p220 = scmp.lt.s32.totalorder %s16, 1
      %s221 = scalar_select %p220, %s16, 1
      %s222 = smul.addr %s221, 5
      %s223 = smul.addr %s222, 4
      %s224 = scalar_lea.vmem %s5, %s223
      %v226 = vld [vmem:[%s219] sm:$0xff]
      %v227 = vld [vmem:[%s219 + $0x8] sm:$0xff]
      %v228 = vld [vmem:[%s219 + $0x10] sm:$0xff]
      %v229 = vld [vmem:[%s219 + $0x18] sm:$0xff]
      %v230 = vld [vmem:[%s219 + $0x20] sm:$0xf]
      %v231 = vmax.f32 %v226, 0.0
      %v232 = vmax.f32 %v227, 0.0
      %v233 = vmax.f32 %v228, 0.0
      %v234 = vmax.f32 %v229, 0.0
      %v235 = vmax.f32 %v230, 0.0
      %v236 = vpack.c.bf16 %v232, %v231
      %v237 = vpack.c.bf16 %v234, %v233
      %v238 = vpack.c.bf16 %v235, %v235
      %v239 = vld [vmem:[%s1] sm:$0xf]
      %v240 = vld [vmem:[%s1 + $0x4] sm:$0xf]
      %v241 = vld [vmem:[%s1 + $0x8] sm:$0xf]
      %v242 = vld [vmem:[%s1 + $0xc] sm:$0xf]
      %v243 = vld [vmem:[%s1 + $0x10] sm:$0xf]
      %v244 = vld [vmem:[%s1 + $0x14] sm:$0xf]
      %v245 = vld [vmem:[%s1 + $0x18] sm:$0xf]
      %v246 = vld [vmem:[%s1 + $0x1c] sm:$0xf]
      %vm247 = vsmask.f32 7424
      %v249 = vshrl.u32 %v236, 16
      %v251 = vshll.u32 %v236, 16
      %v253 = vrot.slane %v251, 1
      %v254 = vor.u32 %v249, %v253
      %v256 = vshll.u32 %v237, 16
      %v258 = vrot.slane %v256, 1
      %v259 = vsel %vm247, %v254, %v258
      %v260 = vshrl.u32 %v237, 16
      %v262 = vor.u32 %v260, %v258
      %v267 = vunpack.c.l.b16 %v243
      %v268 = vunpack.c.l.b16 %v244
      %v269 = vunpack.c.l.b16 %v245
      %v270 = vunpack.c.l.b16 %v246
      %v271 = vpack.c.b16 %v268, %v267
      %v272 = vpack.c.b16 %v270, %v269
      %vm275 = vcmask 261120
      %v277 = vsel %vm275, %v259, 0
      %v280 = vsel %vm275, %v262, 0
      %282 = vmatprep.subr.bf16.mxu0 0
      %283 = vmatpush1.bf16.msra.mxu0 0
      %284 = vmatprep.subr.bf16.mxu0 0
      %285 = vmatpush1.bf16.msra.mxu0 0
      %286 = vmatprep.subr.bf16.mxu0 0
      %287 = vmatpush1.bf16.msra.mxu0 0
      %288 = vmatprep.subr.bf16.mxu0 0
      %289 = vmatpush1.bf16.msra.mxu0 0
      %290 = vmatprep.subr.bf16.mxu0 0
      %291 = vmatpush1.bf16.msra.mxu0 0
      %292 = vmatprep.subr.bf16.mxu0 0
      %293 = vmatpush1.bf16.msra.mxu0 0
      %294 = vmatprep.subr.bf16.mxu0 0
      %295 = vmatpush1.bf16.msra.mxu0 %v272
      %296 = vmatprep.subr.bf16.mxu0 0
      %297 = vmatpush1.bf16.msra.mxu0 %v271
      %298 = vmatprep.subr.bf16.mxu0 0
      %299 = vmatpush2.bf16.msra.mxu0 0
      %300 = vmatprep.subr.bf16.mxu0 0
      %301 = vmatpush2.bf16.msra.mxu0 0
      %302 = vmatprep.subr.bf16.mxu0 0
      %303 = vmatpush2.bf16.msra.mxu0 0
      %304 = vmatprep.subr.bf16.mxu0 0
      %305 = vmatpush2.bf16.msra.mxu0 0
      %306 = vmatprep.subr.bf16.mxu0 0
      %307 = vmatpush2.bf16.msra.mxu0 0
      %308 = vmatprep.subr.bf16.mxu0 0
      %309 = vmatpush2.bf16.msra.mxu0 0
      %310 = vmatprep.subr.bf16.mxu0 0
      %311 = vmatpush2.bf16.msra.mxu0 0
      %312 = vmatprep.subr.bf16.mxu0 0
      %313 = vmatpush2.bf16.msra.mxu0 0
      %314 = vmatprep.mubr.bf16.mxu0 0
      %315 = vmatmul.mubr.bf16.gmra.mxu0 %v277
      %v316 = vpop.f32.mrf.mxu0
      %v317 = vadd.f32 0.0, %v316
      %v318 = vpop.f32.mrf.mxu0
      %v319 = vpop.f32.mrf.mxu0
      %v320 = vadd.f32 0.0, %v319
      %v321 = vpop.f32.mrf.mxu0
      %322 = vmatprep.mubr.bf16.mxu0 0
      %323 = vmatmul.mubr.bf16.gmra.mxu0 %v280
      %v324 = vpop.f32.mrf.mxu0
      %v325 = vadd.f32 0.0, %v324
      %v326 = vpop.f32.mrf.mxu0
      %v327 = vpop.f32.mrf.mxu0
      %v328 = vpop.f32.mrf.mxu0
      %329 = vdwg.mxu0
      %v334 = vunpack.c.l.b16 %v239
      %v335 = vunpack.c.l.b16 %v240
      %v336 = vunpack.c.l.b16 %v241
      %v337 = vunpack.c.l.b16 %v242
      %v338 = vpack.c.b16 %v335, %v334
      %v339 = vpack.c.b16 %v337, %v336
      %v342 = vsel %vm275, %v236, 0
      %v344 = vsel %vm275, %v237, 0
      %346 = vmatprep.subr.bf16.mxu0 0
      %347 = vmatpush1.bf16.msra.mxu0 0
      %348 = vmatprep.subr.bf16.mxu0 0
      %349 = vmatpush1.bf16.msra.mxu0 0
      %350 = vmatprep.subr.bf16.mxu0 0
      %351 = vmatpush1.bf16.msra.mxu0 0
      %352 = vmatprep.subr.bf16.mxu0 0
      %353 = vmatpush1.bf16.msra.mxu0 0
      %354 = vmatprep.subr.bf16.mxu0 0
      %355 = vmatpush1.bf16.msra.mxu0 0
      %356 = vmatprep.subr.bf16.mxu0 0
      %357 = vmatpush1.bf16.msra.mxu0 0
      %358 = vmatprep.subr.bf16.mxu0 0
      %359 = vmatpush1.bf16.msra.mxu0 %v339
      %360 = vmatprep.subr.bf16.mxu0 0
      %361 = vmatpush1.bf16.msra.mxu0 %v338
      %362 = vmatprep.subr.bf16.mxu0 0
      %363 = vmatpush2.bf16.msra.mxu0 0
      %364 = vmatprep.subr.bf16.mxu0 0
      %365 = vmatpush2.bf16.msra.mxu0 0
      %366 = vmatprep.subr.bf16.mxu0 0
      %367 = vmatpush2.bf16.msra.mxu0 0
      %368 = vmatprep.subr.bf16.mxu0 0
      %369 = vmatpush2.bf16.msra.mxu0 0
      %370 = vmatprep.subr.bf16.mxu0 0
      %371 = vmatpush2.bf16.msra.mxu0 0
      %372 = vmatprep.subr.bf16.mxu0 0
      %373 = vmatpush2.bf16.msra.mxu0 0
      %374 = vmatprep.subr.bf16.mxu0 0
      %375 = vmatpush2.bf16.msra.mxu0 0
      %376 = vmatprep.subr.bf16.mxu0 0
      %377 = vmatpush2.bf16.msra.mxu0 0
      %378 = vmatprep.mubr.bf16.mxu0 0
      %379 = vmatmul.mubr.bf16.gmra.mxu0 %v342
      %v380 = vpop.f32.mrf.mxu0
      %v381 = vadd.f32 %v317, %v380
      %v382 = vpop.f32.mrf.mxu0
      %v383 = vpop.f32.mrf.mxu0
      %v384 = vadd.f32 %v320, %v383
      %v385 = vpop.f32.mrf.mxu0
      %386 = vmatprep.mubr.bf16.mxu0 0
      %387 = vmatmul.mubr.bf16.gmra.mxu0 %v344
      %v388 = vpop.f32.mrf.mxu0
      %v389 = vadd.f32 %v325, %v388
      %v390 = vpop.f32.mrf.mxu0
      %v391 = vpop.f32.mrf.mxu0
      %v392 = vpop.f32.mrf.mxu0
      %393 = vdwg.mxu0
      %v394 = vld [vmem:[%s1 + $0x20] sm:$0xf]
      %v395 = vld [vmem:[%s1 + $0x24] sm:$0xf]
      %v396 = vld [vmem:[%s1 + $0x28] sm:$0xf]
      %v397 = vld [vmem:[%s1 + $0x2c] sm:$0xf]
      %vm400 = vcmask 1046528
      %v401 = vrot.slane %v236, 1
      %v402 = vrot.slane %v237, 1
      %v403 = vsel %vm400, %v401, %v402
      %v408 = vunpack.c.l.b16 %v394
      %v409 = vunpack.c.l.b16 %v395
      %v410 = vunpack.c.l.b16 %v396
      %v411 = vunpack.c.l.b16 %v397
      %v412 = vpack.c.b16 %v409, %v408
      %v413 = vpack.c.b16 %v411, %v410
      %v417 = vsel %vm275, %v403, 0
      %v420 = vsel %vm275, %v402, 0
      %422 = vmatprep.subr.bf16.mxu0 0
      %423 = vmatpush1.bf16.msra.mxu0 0
      %424 = vmatprep.subr.bf16.mxu0 0
      %425 = vmatpush1.bf16.msra.mxu0 0
      %426 = vmatprep.subr.bf16.mxu0 0
      %427 = vmatpush1.bf16.msra.mxu0 0
      %428 = vmatprep.subr.bf16.mxu0 0
      %429 = vmatpush1.bf16.msra.mxu0 0
      %430 = vmatprep.subr.bf16.mxu0 0
      %431 = vmatpush1.bf16.msra.mxu0 0
      %432 = vmatprep.subr.bf16.mxu0 0
      %433 = vmatpush1.bf16.msra.mxu0 0
      %434 = vmatprep.subr.bf16.mxu0 0
      %435 = vmatpush1.bf16.msra.mxu0 %v413
      %436 = vmatprep.subr.bf16.mxu0 0
      %437 = vmatpush1.bf16.msra.mxu0 %v412
      %438 = vmatprep.subr.bf16.mxu0 0
      %439 = vmatpush2.bf16.msra.mxu0 0
      %440 = vmatprep.subr.bf16.mxu0 0
      %441 = vmatpush2.bf16.msra.mxu0 0
      %442 = vmatprep.subr.bf16.mxu0 0
      %443 = vmatpush2.bf16.msra.mxu0 0
      %444 = vmatprep.subr.bf16.mxu0 0
      %445 = vmatpush2.bf16.msra.mxu0 0
      %446 = vmatprep.subr.bf16.mxu0 0
      %447 = vmatpush2.bf16.msra.mxu0 0
      %448 = vmatprep.subr.bf16.mxu0 0
      %449 = vmatpush2.bf16.msra.mxu0 0
      %450 = vmatprep.subr.bf16.mxu0 0
      %451 = vmatpush2.bf16.msra.mxu0 0
      %452 = vmatprep.subr.bf16.mxu0 0
      %453 = vmatpush2.bf16.msra.mxu0 0
      %454 = vmatprep.mubr.bf16.mxu0 0
      %455 = vmatmul.mubr.bf16.gmra.mxu0 %v417
      %v456 = vpop.f32.mrf.mxu0
      %v457 = vadd.f32 0.0, %v456
      %v458 = vpop.f32.mrf.mxu0
      %v459 = vpop.f32.mrf.mxu0
      %v460 = vadd.f32 0.0, %v459
      %v461 = vpop.f32.mrf.mxu0
      %462 = vmatprep.mubr.bf16.mxu0 0
      %463 = vmatmul.mubr.bf16.gmra.mxu0 %v420
      %v464 = vpop.f32.mrf.mxu0
      %v465 = vadd.f32 0.0, %v464
      %v466 = vpop.f32.mrf.mxu0
      %v467 = vpop.f32.mrf.mxu0
      %v468 = vpop.f32.mrf.mxu0
      %469 = vdwg.mxu0
      %v470 = vadd.f32 %v381, %v457
      %v471 = vadd.f32 %v384, %v460
      %v472 = vadd.f32 %v389, %v465
      %v473 = vld [vmem:[%s1 + $0x30] sm:$0xf]
      %v474 = vld [vmem:[%s1 + $0x34] sm:$0xf]
      %v475 = vld [vmem:[%s1 + $0x38] sm:$0xf]
      %v476 = vld [vmem:[%s1 + $0x3c] sm:$0xf]
      %vm477 = vcmask 1044480
      %v478 = vrot.slane %v236, 3
      %v479 = vrot.slane %v237, 3
      %v480 = vsel %vm477, %v478, %v479
      %v485 = vunpack.c.l.b16 %v473
      %v486 = vunpack.c.l.b16 %v474
      %v487 = vunpack.c.l.b16 %v475
      %v488 = vunpack.c.l.b16 %v476
      %v489 = vpack.c.b16 %v486, %v485
      %v490 = vpack.c.b16 %v488, %v487
      %v494 = vsel %vm275, %v480, 0
      %v497 = vsel %vm275, %v479, 0
      %499 = vmatprep.subr.bf16.mxu0 0
      %500 = vmatpush1.bf16.msra.mxu0 0
      %501 = vmatprep.subr.bf16.mxu0 0
      %502 = vmatpush1.bf16.msra.mxu0 0
      %503 = vmatprep.subr.bf16.mxu0 0
      %504 = vmatpush1.bf16.msra.mxu0 0
      %505 = vmatprep.subr.bf16.mxu0 0
      %506 = vmatpush1.bf16.msra.mxu0 0
      %507 = vmatprep.subr.bf16.mxu0 0
      %508 = vmatpush1.bf16.msra.mxu0 0
      %509 = vmatprep.subr.bf16.mxu0 0
      %510 = vmatpush1.bf16.msra.mxu0 0
      %511 = vmatprep.subr.bf16.mxu0 0
      %512 = vmatpush1.bf16.msra.mxu0 %v490
      %513 = vmatprep.subr.bf16.mxu0 0
      %514 = vmatpush1.bf16.msra.mxu0 %v489
      %515 = vmatprep.subr.bf16.mxu0 0
      %516 = vmatpush2.bf16.msra.mxu0 0
      %517 = vmatprep.subr.bf16.mxu0 0
      %518 = vmatpush2.bf16.msra.mxu0 0
      %519 = vmatprep.subr.bf16.mxu0 0
      %520 = vmatpush2.bf16.msra.mxu0 0
      %521 = vmatprep.subr.bf16.mxu0 0
      %522 = vmatpush2.bf16.msra.mxu0 0
      %523 = vmatprep.subr.bf16.mxu0 0
      %524 = vmatpush2.bf16.msra.mxu0 0
      %525 = vmatprep.subr.bf16.mxu0 0
      %526 = vmatpush2.bf16.msra.mxu0 0
      %527 = vmatprep.subr.bf16.mxu0 0
      %528 = vmatpush2.bf16.msra.mxu0 0
      %529 = vmatprep.subr.bf16.mxu0 0
      %530 = vmatpush2.bf16.msra.mxu0 0
      %531 = vmatprep.mubr.bf16.mxu0 0
      %532 = vmatmul.mubr.bf16.gmra.mxu0 %v494
      %v533 = vpop.f32.mrf.mxu0
      %v534 = vadd.f32 0.0, %v533
      %v535 = vpop.f32.mrf.mxu0
      %v536 = vpop.f32.mrf.mxu0
      %v537 = vadd.f32 0.0, %v536
      %v538 = vpop.f32.mrf.mxu0
      %539 = vmatprep.mubr.bf16.mxu0 0
      %540 = vmatmul.mubr.bf16.gmra.mxu0 %v497
      %v541 = vpop.f32.mrf.mxu0
      %v542 = vadd.f32 0.0, %v541
      %v543 = vpop.f32.mrf.mxu0
      %v544 = vpop.f32.mrf.mxu0
      %v545 = vpop.f32.mrf.mxu0
      %546 = vdwg.mxu0
      %v547 = vadd.f32 %v470, %v534
      %v548 = vadd.f32 %v471, %v537
      %v549 = vadd.f32 %v472, %v542
      %v550 = vld [vmem:[%s1 + $0x40] sm:$0xf]
      %v551 = vld [vmem:[%s1 + $0x44] sm:$0xf]
      %v552 = vld [vmem:[%s1 + $0x48] sm:$0xf]
      %v553 = vld [vmem:[%s1 + $0x4c] sm:$0xf]
      %vm554 = vsmask.f32 4352
      %v555 = vrot.slane %v249, 3
      %v556 = vrot.slane %v251, 4
      %v557 = vor.u32 %v555, %v556
      %v558 = vrot.slane %v260, 3
      %v559 = vrot.slane %v256, 4
      %v560 = vor.u32 %v558, %v559
      %v561 = vsel %vm554, %v557, %v560
      %v566 = vunpack.c.l.b16 %v550
      %v567 = vunpack.c.l.b16 %v551
      %v568 = vunpack.c.l.b16 %v552
      %v569 = vunpack.c.l.b16 %v553
      %v570 = vpack.c.b16 %v567, %v566
      %v571 = vpack.c.b16 %v569, %v568
      %v575 = vsel %vm275, %v561, 0
      %v578 = vsel %vm275, %v560, 0
      %580 = vmatprep.subr.bf16.mxu0 0
      %581 = vmatpush1.bf16.msra.mxu0 0
      %582 = vmatprep.subr.bf16.mxu0 0
      %583 = vmatpush1.bf16.msra.mxu0 0
      %584 = vmatprep.subr.bf16.mxu0 0
      %585 = vmatpush1.bf16.msra.mxu0 0
      %586 = vmatprep.subr.bf16.mxu0 0
      %587 = vmatpush1.bf16.msra.mxu0 0
      %588 = vmatprep.subr.bf16.mxu0 0
      %589 = vmatpush1.bf16.msra.mxu0 0
      %590 = vmatprep.subr.bf16.mxu0 0
      %591 = vmatpush1.bf16.msra.mxu0 0
      %592 = vmatprep.subr.bf16.mxu0 0
      %593 = vmatpush1.bf16.msra.mxu0 %v571
      %594 = vmatprep.subr.bf16.mxu0 0
      %595 = vmatpush1.bf16.msra.mxu0 %v570
      %596 = vmatprep.subr.bf16.mxu0 0
      %597 = vmatpush2.bf16.msra.mxu0 0
      %598 = vmatprep.subr.bf16.mxu0 0
      %599 = vmatpush2.bf16.msra.mxu0 0
      %600 = vmatprep.subr.bf16.mxu0 0
      %601 = vmatpush2.bf16.msra.mxu0 0
      %602 = vmatprep.subr.bf16.mxu0 0
      %603 = vmatpush2.bf16.msra.mxu0 0
      %604 = vmatprep.subr.bf16.mxu0 0
      %605 = vmatpush2.bf16.msra.mxu0 0
      %606 = vmatprep.subr.bf16.mxu0 0
      %607 = vmatpush2.bf16.msra.mxu0 0
      %608 = vmatprep.subr.bf16.mxu0 0
      %609 = vmatpush2.bf16.msra.mxu0 0
      %610 = vmatprep.subr.bf16.mxu0 0
      %611 = vmatpush2.bf16.msra.mxu0 0
      %612 = vmatprep.mubr.bf16.mxu0 0
      %613 = vmatmul.mubr.bf16.gmra.mxu0 %v575
      %v614 = vpop.f32.mrf.mxu0
      %v615 = vadd.f32 0.0, %v614
      %v616 = vpop.f32.mrf.mxu0
      %v617 = vpop.f32.mrf.mxu0
      %v618 = vadd.f32 0.0, %v617
      %v619 = vpop.f32.mrf.mxu0
      %620 = vmatprep.mubr.bf16.mxu0 0
      %621 = vmatmul.mubr.bf16.gmra.mxu0 %v578
      %v622 = vpop.f32.mrf.mxu0
      %v623 = vadd.f32 0.0, %v622
      %v624 = vpop.f32.mrf.mxu0
      %v625 = vpop.f32.mrf.mxu0
      %v626 = vpop.f32.mrf.mxu0
      %627 = vdwg.mxu0
      %v628 = vadd.f32 %v547, %v615
      %v629 = vadd.f32 %v548, %v618
      %v630 = vadd.f32 %v549, %v623
      %v631 = vld [vmem:[%s1 + $0x50] sm:$0xf]
      %v632 = vld [vmem:[%s1 + $0x54] sm:$0xf]
      %v633 = vld [vmem:[%s1 + $0x58] sm:$0xf]
      %v634 = vld [vmem:[%s1 + $0x5c] sm:$0xf]
      %vm635 = vcmask 1043456
      %v636 = vrot.slane %v236, 4
      %v637 = vrot.slane %v237, 4
      %v638 = vsel %vm635, %v636, %v637
      %v643 = vunpack.c.l.b16 %v631
      %v644 = vunpack.c.l.b16 %v632
      %v645 = vunpack.c.l.b16 %v633
      %v646 = vunpack.c.l.b16 %v634
      %v647 = vpack.c.b16 %v644, %v643
      %v648 = vpack.c.b16 %v646, %v645
      %v652 = vsel %vm275, %v638, 0
      %v655 = vsel %vm275, %v637, 0
      %657 = vmatprep.subr.bf16.mxu0 0
      %658 = vmatpush1.bf16.msra.mxu0 0
      %659 = vmatprep.subr.bf16.mxu0 0
      %660 = vmatpush1.bf16.msra.mxu0 0
      %661 = vmatprep.subr.bf16.mxu0 0
      %662 = vmatpush1.bf16.msra.mxu0 0
      %663 = vmatprep.subr.bf16.mxu0 0
      %664 = vmatpush1.bf16.msra.mxu0 0
      %665 = vmatprep.subr.bf16.mxu0 0
      %666 = vmatpush1.bf16.msra.mxu0 0
      %667 = vmatprep.subr.bf16.mxu0 0
      %668 = vmatpush1.bf16.msra.mxu0 0
      %669 = vmatprep.subr.bf16.mxu0 0
      %670 = vmatpush1.bf16.msra.mxu0 %v648
      %671 = vmatprep.subr.bf16.mxu0 0
      %672 = vmatpush1.bf16.msra.mxu0 %v647
      %673 = vmatprep.subr.bf16.mxu0 0
      %674 = vmatpush2.bf16.msra.mxu0 0
      %675 = vmatprep.subr.bf16.mxu0 0
      %676 = vmatpush2.bf16.msra.mxu0 0
      %677 = vmatprep.subr.bf16.mxu0 0
      %678 = vmatpush2.bf16.msra.mxu0 0
      %679 = vmatprep.subr.bf16.mxu0 0
      %680 = vmatpush2.bf16.msra.mxu0 0
      %681 = vmatprep.subr.bf16.mxu0 0
      %682 = vmatpush2.bf16.msra.mxu0 0
      %683 = vmatprep.subr.bf16.mxu0 0
      %684 = vmatpush2.bf16.msra.mxu0 0
      %685 = vmatprep.subr.bf16.mxu0 0
      %686 = vmatpush2.bf16.msra.mxu0 0
      %687 = vmatprep.subr.bf16.mxu0 0
      %688 = vmatpush2.bf16.msra.mxu0 0
      %689 = vmatprep.mubr.bf16.mxu0 0
      %690 = vmatmul.mubr.bf16.gmra.mxu0 %v652
      %v691 = vpop.f32.mrf.mxu0
      %v692 = vadd.f32 0.0, %v691
      %v693 = vpop.f32.mrf.mxu0
      %v694 = vpop.f32.mrf.mxu0
      %v695 = vadd.f32 0.0, %v694
      %v696 = vpop.f32.mrf.mxu0
      %697 = vmatprep.mubr.bf16.mxu0 0
      %698 = vmatmul.mubr.bf16.gmra.mxu0 %v655
      %v699 = vpop.f32.mrf.mxu0
      %v700 = vadd.f32 0.0, %v699
      %v701 = vpop.f32.mrf.mxu0
      %v702 = vpop.f32.mrf.mxu0
      %v703 = vpop.f32.mrf.mxu0
      %704 = vdwg.mxu0
      %v705 = vadd.f32 %v628, %v692
      %v706 = vadd.f32 %v629, %v695
      %v707 = vadd.f32 %v630, %v700
      %v708 = vld [vmem:[%s1 + $0x60] sm:$0xf]
      %v709 = vld [vmem:[%s1 + $0x64] sm:$0xf]
      %v710 = vld [vmem:[%s1 + $0x68] sm:$0xf]
      %v711 = vld [vmem:[%s1 + $0x6c] sm:$0xf]
      %vm713 = vcmask 1041408
      %v714 = vrot.slane %v236, 6
      %v715 = vrot.slane %v237, 6
      %v716 = vsel %vm713, %v714, %v715
      %v717 = vrot.slane %v238, 6
      %v718 = vsel %vm713, %v715, %v717
      %v723 = vunpack.c.l.b16 %v708
      %v724 = vunpack.c.l.b16 %v709
      %v725 = vunpack.c.l.b16 %v710
      %v726 = vunpack.c.l.b16 %v711
      %v727 = vpack.c.b16 %v724, %v723
      %v728 = vpack.c.b16 %v726, %v725
      %v732 = vsel %vm275, %v716, 0
      %v735 = vsel %vm275, %v718, 0
      %737 = vmatprep.subr.bf16.mxu0 0
      %738 = vmatpush1.bf16.msra.mxu0 0
      %739 = vmatprep.subr.bf16.mxu0 0
      %740 = vmatpush1.bf16.msra.mxu0 0
      %741 = vmatprep.subr.bf16.mxu0 0
      %742 = vmatpush1.bf16.msra.mxu0 0
      %743 = vmatprep.subr.bf16.mxu0 0
      %744 = vmatpush1.bf16.msra.mxu0 0
      %745 = vmatprep.subr.bf16.mxu0 0
      %746 = vmatpush1.bf16.msra.mxu0 0
      %747 = vmatprep.subr.bf16.mxu0 0
      %748 = vmatpush1.bf16.msra.mxu0 0
      %749 = vmatprep.subr.bf16.mxu0 0
      %750 = vmatpush1.bf16.msra.mxu0 %v728
      %751 = vmatprep.subr.bf16.mxu0 0
      %752 = vmatpush1.bf16.msra.mxu0 %v727
      %753 = vmatprep.subr.bf16.mxu0 0
      %754 = vmatpush2.bf16.msra.mxu0 0
      %755 = vmatprep.subr.bf16.mxu0 0
      %756 = vmatpush2.bf16.msra.mxu0 0
      %757 = vmatprep.subr.bf16.mxu0 0
      %758 = vmatpush2.bf16.msra.mxu0 0
      %759 = vmatprep.subr.bf16.mxu0 0
      %760 = vmatpush2.bf16.msra.mxu0 0
      %761 = vmatprep.subr.bf16.mxu0 0
      %762 = vmatpush2.bf16.msra.mxu0 0
      %763 = vmatprep.subr.bf16.mxu0 0
      %764 = vmatpush2.bf16.msra.mxu0 0
      %765 = vmatprep.subr.bf16.mxu0 0
      %766 = vmatpush2.bf16.msra.mxu0 0
      %767 = vmatprep.subr.bf16.mxu0 0
      %768 = vmatpush2.bf16.msra.mxu0 0
      %769 = vmatprep.mubr.bf16.mxu0 0
      %770 = vmatmul.mubr.bf16.gmra.mxu0 %v732
      %v771 = vpop.f32.mrf.mxu0
      %v772 = vadd.f32 0.0, %v771
      %v773 = vpop.f32.mrf.mxu0
      %v774 = vpop.f32.mrf.mxu0
      %v775 = vadd.f32 0.0, %v774
      %v776 = vpop.f32.mrf.mxu0
      %777 = vmatprep.mubr.bf16.mxu0 0
      %778 = vmatmul.mubr.bf16.gmra.mxu0 %v735
      %v779 = vpop.f32.mrf.mxu0
      %v780 = vadd.f32 0.0, %v779
      %v781 = vpop.f32.mrf.mxu0
      %v782 = vpop.f32.mrf.mxu0
      %v783 = vpop.f32.mrf.mxu0
      %784 = vdwg.mxu0
      %v785 = vadd.f32 %v705, %v772
      %v786 = vadd.f32 %v706, %v775
      %v787 = vadd.f32 %v707, %v780
      %v788 = vld [vmem:[%s1 + $0x70] sm:$0xf]
      %v789 = vld [vmem:[%s1 + $0x74] sm:$0xf]
      %v790 = vld [vmem:[%s1 + $0x78] sm:$0xf]
      %v791 = vld [vmem:[%s1 + $0x7c] sm:$0xf]
      %vm792 = vsmask.f32 1280
      %v793 = vrot.slane %v249, 6
      %v794 = vrot.slane %v251, 7
      %v795 = vor.u32 %v793, %v794
      %v796 = vrot.slane %v260, 6
      %v797 = vrot.slane %v256, 7
      %v798 = vor.u32 %v796, %v797
      %v799 = vsel %vm792, %v795, %v798
      %v801 = vshrl.u32 %v238, 16
      %v803 = vrot.slane %v801, 6
      %v804 = vshll.u32 %v238, 16
      %v806 = vrot.slane %v804, 7
      %v807 = vor.u32 %v803, %v806
      %v808 = vsel %vm792, %v798, %v807
      %v813 = vunpack.c.l.b16 %v788
      %v814 = vunpack.c.l.b16 %v789
      %v815 = vunpack.c.l.b16 %v790
      %v816 = vunpack.c.l.b16 %v791
      %v817 = vpack.c.b16 %v814, %v813
      %v818 = vpack.c.b16 %v816, %v815
      %v822 = vsel %vm275, %v799, 0
      %v825 = vsel %vm275, %v808, 0
      %827 = vmatprep.subr.bf16.mxu0 0
      %828 = vmatpush1.bf16.msra.mxu0 0
      %829 = vmatprep.subr.bf16.mxu0 0
      %830 = vmatpush1.bf16.msra.mxu0 0
      %831 = vmatprep.subr.bf16.mxu0 0
      %832 = vmatpush1.bf16.msra.mxu0 0
      %833 = vmatprep.subr.bf16.mxu0 0
      %834 = vmatpush1.bf16.msra.mxu0 0
      %835 = vmatprep.subr.bf16.mxu0 0
      %836 = vmatpush1.bf16.msra.mxu0 0
      %837 = vmatprep.subr.bf16.mxu0 0
      %838 = vmatpush1.bf16.msra.mxu0 0
      %839 = vmatprep.subr.bf16.mxu0 0
      %840 = vmatpush1.bf16.msra.mxu0 %v818
      %841 = vmatprep.subr.bf16.mxu0 0
      %842 = vmatpush1.bf16.msra.mxu0 %v817
      %843 = vmatprep.subr.bf16.mxu0 0
      %844 = vmatpush2.bf16.msra.mxu0 0
      %845 = vmatprep.subr.bf16.mxu0 0
      %846 = vmatpush2.bf16.msra.mxu0 0
      %847 = vmatprep.subr.bf16.mxu0 0
      %848 = vmatpush2.bf16.msra.mxu0 0
      %849 = vmatprep.subr.bf16.mxu0 0
      %850 = vmatpush2.bf16.msra.mxu0 0
      %851 = vmatprep.subr.bf16.mxu0 0
      %852 = vmatpush2.bf16.msra.mxu0 0
      %853 = vmatprep.subr.bf16.mxu0 0
      %854 = vmatpush2.bf16.msra.mxu0 0
      %855 = vmatprep.subr.bf16.mxu0 0
      %856 = vmatpush2.bf16.msra.mxu0 0
      %857 = vmatprep.subr.bf16.mxu0 0
      %858 = vmatpush2.bf16.msra.mxu0 0
      %859 = vmatprep.mubr.bf16.mxu0 0
      %860 = vmatmul.mubr.bf16.gmra.mxu0 %v822
      %v861 = vpop.f32.mrf.mxu0
      %v862 = vadd.f32 0.0, %v861
      %v863 = vpop.f32.mrf.mxu0
      %v864 = vpop.f32.mrf.mxu0
      %v865 = vadd.f32 0.0, %v864
      %v866 = vpop.f32.mrf.mxu0
      %867 = vmatprep.mubr.bf16.mxu0 0
      %868 = vmatmul.mubr.bf16.gmra.mxu0 %v825
      %v869 = vpop.f32.mrf.mxu0
      %v870 = vadd.f32 0.0, %v869
      %v871 = vpop.f32.mrf.mxu0
      %v872 = vpop.f32.mrf.mxu0
      %v873 = vpop.f32.mrf.mxu0
      %874 = vdwg.mxu0
      %v875 = vadd.f32 %v785, %v862
      %v876 = vadd.f32 %v786, %v865
      %v877 = vadd.f32 %v787, %v870
      %v878 = vld [vmem:[%s1 + $0x80] sm:$0xf]
      %v879 = vld [vmem:[%s1 + $0x84] sm:$0xf]
      %v880 = vld [vmem:[%s1 + $0x88] sm:$0xf]
      %v881 = vld [vmem:[%s1 + $0x8c] sm:$0xf]
      %vm882 = vcmask 1040384
      %v883 = vrot.slane %v236, 7
      %v884 = vrot.slane %v237, 7
      %v885 = vsel %vm882, %v883, %v884
      %v886 = vrot.slane %v238, 7
      %v887 = vsel %vm882, %v884, %v886
      %v892 = vunpack.c.l.b16 %v878
      %v893 = vunpack.c.l.b16 %v879
      %v894 = vunpack.c.l.b16 %v880
      %v895 = vunpack.c.l.b16 %v881
      %v896 = vpack.c.b16 %v893, %v892
      %v897 = vpack.c.b16 %v895, %v894
      %v901 = vsel %vm275, %v885, 0
      %v904 = vsel %vm275, %v887, 0
      %906 = vmatprep.subr.bf16.mxu0 0
      %907 = vmatpush1.bf16.msra.mxu0 0
      %908 = vmatprep.subr.bf16.mxu0 0
      %909 = vmatpush1.bf16.msra.mxu0 0
      %910 = vmatprep.subr.bf16.mxu0 0
      %911 = vmatpush1.bf16.msra.mxu0 0
      %912 = vmatprep.subr.bf16.mxu0 0
      %913 = vmatpush1.bf16.msra.mxu0 0
      %914 = vmatprep.subr.bf16.mxu0 0
      %915 = vmatpush1.bf16.msra.mxu0 0
      %916 = vmatprep.subr.bf16.mxu0 0
      %917 = vmatpush1.bf16.msra.mxu0 0
      %918 = vmatprep.subr.bf16.mxu0 0
      %919 = vmatpush1.bf16.msra.mxu0 %v897
      %920 = vmatprep.subr.bf16.mxu0 0
      %921 = vmatpush1.bf16.msra.mxu0 %v896
      %922 = vmatprep.subr.bf16.mxu0 0
      %923 = vmatpush2.bf16.msra.mxu0 0
      %924 = vmatprep.subr.bf16.mxu0 0
      %925 = vmatpush2.bf16.msra.mxu0 0
      %926 = vmatprep.subr.bf16.mxu0 0
      %927 = vmatpush2.bf16.msra.mxu0 0
      %928 = vmatprep.subr.bf16.mxu0 0
      %929 = vmatpush2.bf16.msra.mxu0 0
      %930 = vmatprep.subr.bf16.mxu0 0
      %931 = vmatpush2.bf16.msra.mxu0 0
      %932 = vmatprep.subr.bf16.mxu0 0
      %933 = vmatpush2.bf16.msra.mxu0 0
      %934 = vmatprep.subr.bf16.mxu0 0
      %935 = vmatpush2.bf16.msra.mxu0 0
      %936 = vmatprep.subr.bf16.mxu0 0
      %937 = vmatpush2.bf16.msra.mxu0 0
      %938 = vmatprep.mubr.bf16.mxu0 0
      %939 = vmatmul.mubr.bf16.gmra.mxu0 %v901
      %v940 = vpop.f32.mrf.mxu0
      %v941 = vadd.f32 0.0, %v940
      %v942 = vpop.f32.mrf.mxu0
      %v943 = vpop.f32.mrf.mxu0
      %v944 = vadd.f32 0.0, %v943
      %v945 = vpop.f32.mrf.mxu0
      %946 = vmatprep.mubr.bf16.mxu0 0
      %947 = vmatmul.mubr.bf16.gmra.mxu0 %v904
      %v948 = vpop.f32.mrf.mxu0
      %v949 = vadd.f32 0.0, %v948
      %v950 = vpop.f32.mrf.mxu0
      %v951 = vpop.f32.mrf.mxu0
      %v952 = vpop.f32.mrf.mxu0
      %953 = vdwg.mxu0
      %v954 = vadd.f32 %v875, %v941
      %v955 = vadd.f32 %v876, %v944
      %v956 = vadd.f32 %v877, %v949
      %v957 = vld [vmem:[%s2] sm:$0x1]
      %v959 = vlaneseq
      %v960 = vshrl.u32 %v959, 7
      %v961 = vsub.s32 0, %v960
      %v962 = vrot.slane %v957, %v961
      %v964 = vadd.f32 %v954, %v962
      %v965 = vadd.f32 %v955, %v962
      %v966 = vadd.f32 %v956, %v962
      %v967 = vmax.f32 %v964, 0.0
      %v968 = vmax.f32 %v965, 0.0
      %v969 = vmax.f32 %v966, 0.0
      %v970 = vpack.c.bf16 %v968, %v967
      %v971 = vpack.c.bf16 %v969, %v969
      %v972 = vld [vmem:[%s3] sm:$0xf]
      %v973 = vld [vmem:[%s3 + $0x4] sm:$0xf]
      %v974 = vld [vmem:[%s3 + $0x8] sm:$0xf]
      %v975 = vld [vmem:[%s3 + $0xc] sm:$0xf]
      %v976 = vld [vmem:[%s3 + $0x10] sm:$0xf]
      %v977 = vld [vmem:[%s3 + $0x14] sm:$0xf]
      %v978 = vld [vmem:[%s3 + $0x18] sm:$0xf]
      %v979 = vld [vmem:[%s3 + $0x1c] sm:$0xf]
      %v980 = vld [vmem:[%s3 + $0x20] sm:$0xf]
      %v981 = vld [vmem:[%s3 + $0x24] sm:$0xf]
      %v982 = vld [vmem:[%s3 + $0x28] sm:$0xf]
      %v983 = vld [vmem:[%s3 + $0x2c] sm:$0xf]
      %v984 = vld [vmem:[%s3 + $0x30] sm:$0xf]
      %v985 = vld [vmem:[%s3 + $0x34] sm:$0xf]
      %v986 = vld [vmem:[%s3 + $0x38] sm:$0xf]
      %v987 = vld [vmem:[%s3 + $0x3c] sm:$0xf]
      %v988 = vld [vmem:[%s4] sm:$0x1]
      %v990 = vlaneseq
      %v991 = vshrl.u32 %v990, 7
      %v992 = vsub.s32 0, %v991
      %v993 = vrot.slane %v988, %v992
      %v1011 = vunpack.c.l.b16 %v972
      %v1012 = vunpack.c.l.b16 %v973
      %v1013 = vunpack.c.l.b16 %v974
      %v1014 = vunpack.c.l.b16 %v975
      %v1015 = vunpack.c.l.b16 %v976
      %v1016 = vunpack.c.l.b16 %v977
      %v1017 = vunpack.c.l.b16 %v978
      %v1018 = vunpack.c.l.b16 %v979
      %v1019 = vunpack.c.l.b16 %v980
      %v1020 = vunpack.c.l.b16 %v981
      %v1021 = vunpack.c.l.b16 %v982
      %v1022 = vunpack.c.l.b16 %v983
      %v1023 = vunpack.c.l.b16 %v984
      %v1024 = vunpack.c.l.b16 %v985
      %v1025 = vunpack.c.l.b16 %v986
      %v1026 = vunpack.c.l.b16 %v987
      %v1027 = vpack.c.b16 %v1012, %v1011
      %v1028 = vpack.c.b16 %v1014, %v1013
      %v1029 = vpack.c.b16 %v1016, %v1015
      %v1030 = vpack.c.b16 %v1018, %v1017
      %v1031 = vpack.c.b16 %v1020, %v1019
      %v1032 = vpack.c.b16 %v1022, %v1021
      %v1033 = vpack.c.b16 %v1024, %v1023
      %v1034 = vpack.c.b16 %v1026, %v1025
      %1043 = vmatprep.subr.bf16.mxu0 0
      %1044 = vmatpush1.bf16.msra.mxu0 %v1034
      %1045 = vmatprep.subr.bf16.mxu0 0
      %1046 = vmatpush1.bf16.msra.mxu0 %v1033
      %1047 = vmatprep.subr.bf16.mxu0 0
      %1048 = vmatpush1.bf16.msra.mxu0 %v1032
      %1049 = vmatprep.subr.bf16.mxu0 0
      %1050 = vmatpush1.bf16.msra.mxu0 %v1031
      %1051 = vmatprep.subr.bf16.mxu0 0
      %1052 = vmatpush1.bf16.msra.mxu0 %v1030
      %1053 = vmatprep.subr.bf16.mxu0 0
      %1054 = vmatpush1.bf16.msra.mxu0 %v1029
      %1055 = vmatprep.subr.bf16.mxu0 0
      %1056 = vmatpush1.bf16.msra.mxu0 %v1028
      %1057 = vmatprep.subr.bf16.mxu0 0
      %1058 = vmatpush1.bf16.msra.mxu0 %v1027
      %1059 = vmatprep.subr.bf16.mxu0 0
      %1060 = vmatpush2.bf16.msra.mxu0 0
      %1061 = vmatprep.subr.bf16.mxu0 0
      %1062 = vmatpush2.bf16.msra.mxu0 0
      %1063 = vmatprep.subr.bf16.mxu0 0
      %1064 = vmatpush2.bf16.msra.mxu0 0
      %1065 = vmatprep.subr.bf16.mxu0 0
      %1066 = vmatpush2.bf16.msra.mxu0 0
      %1067 = vmatprep.subr.bf16.mxu0 0
      %1068 = vmatpush2.bf16.msra.mxu0 0
      %1069 = vmatprep.subr.bf16.mxu0 0
      %1070 = vmatpush2.bf16.msra.mxu0 0
      %1071 = vmatprep.subr.bf16.mxu0 0
      %1072 = vmatpush2.bf16.msra.mxu0 0
      %1073 = vmatprep.subr.bf16.mxu0 0
      %1074 = vmatpush2.bf16.msra.mxu0 0
      %1075 = vmatprep.mubr.bf16.mxu0 0
      %1076 = vmatmul.mubr.bf16.gmra.mxu0 %v970
      %v1077 = vpop.f32.mrf.mxu0
      %v1078 = vadd.f32 %v993, %v1077
      %v1079 = vpop.f32.mrf.mxu0
      %v1080 = vpop.f32.mrf.mxu0
      %v1081 = vadd.f32 %v993, %v1080
      %v1082 = vpop.f32.mrf.mxu0
      %1083 = vmatprep.mubr.bf16.mxu0 0
      %1084 = vmatmul.mubr.bf16.gmra.mxu0 %v971
      %v1085 = vpop.f32.mrf.mxu0
      %v1086 = vadd.f32 %v993, %v1085
      %v1087 = vpop.f32.mrf.mxu0
      %v1088 = vpop.f32.mrf.mxu0
      %v1089 = vpop.f32.mrf.mxu0
      %1090 = vdwg.mxu0
      %vm1091 = vcmask 257024
      %1092 = vst.msk [vmem:[%s224] sm:$0xf] %vm1091, 0
      %1093 = vst.msk [vmem:[%s224 + $0x4] sm:$0xf] %vm1091, 0
      %1094 = vst.msk [vmem:[%s224 + $0x8] sm:$0xf] %vm1091, 0
      %1095 = vst.msk [vmem:[%s224 + $0xc] sm:$0xf] %vm1091, 0
      %vm1096 = vcmask 254976
      %1097 = vst.msk [vmem:[%s224 + $0x10] sm:$0x3] %vm1096, 0
      %vm1100 = vcmask 1040384
      %v1101 = vrot.slane %v226, 7
      %v1102 = vrot.slane %v227, 7
      %v1103 = vsel %vm1100, %v1101, %v1102
      %v1105 = vadd.f32 %v1078, %v1103
      %v1106 = vpack.c.bf16 %v1105, %v1105
      %v1108 = vunpack.c.l.b16 %v1106
      %v1109 = vpack.c.b16 %v1108, %v1108
      %v1111 = vshll.u32 %v1109, 16
      %v1113 = vrot.slane %v1111, 5
      %v1114 = vshrl.u32 %v1109, 16
      %v1116 = vrot.slane %v1114, 4
      %v1117 = vor.u32 %v1116, %v1113
      %v1118 = vrot.slane %v1117, 4
      %vm1121 = vcmask 257027
      %vm1122 = vsmask.f32 7950
      %vm1123 = vmand %vm1121, %vm1122
      %v1124 = vld [vmem:[%s224] sm:$0x8]
      %v1125 = vsel %vm1123, %v1113, %v1124
      %1126 = vst [vmem:[%s224] sm:$0x8] %v1125
      %vm1127 = vcmask 254976
      %vm1128 = vmand %vm1127, %vm792
      %v1129 = vld [vmem:[%s224 + $0x4] sm:$0x3]
      %v1130 = vsel %vm1128, %v1118, %v1129
      %1131 = vst [vmem:[%s224 + $0x4] sm:$0x3] %v1130
      %v1133 = vrot.slane %v228, 7
      %v1134 = vsel %vm1100, %v1102, %v1133
      %v1137 = vadd.f32 %v1078, %v1102
      %v1138 = vadd.f32 %v1081, %v1134
      %v1139 = vpack.c.bf16 %v1138, %v1137
      %v1141 = vunpack.c.l.b16 %v1139
      %v1142 = vunpack.c.h.b16 %v1139
      %v1143 = vpack.c.b16 %v1141, %v1141
      %v1144 = vpack.c.b16 %v1142, %v1142
      %vm1145 = vsmask.f32 3328
      %vm1146 = vsmask.f32 7440
      %vm1147 = vmor %vm1145, %vm1146
      %v1149 = vshrl.u32 %v1143, 16
      %v1151 = vrot.slane %v1149, 4
      %v1152 = vshll.u32 %v1143, 16
      %v1154 = vrot.slane %v1152, 5
      %v1155 = vor.u32 %v1151, %v1154
      %v1156 = vrot.slane %v1155, 4
      %v1158 = vshll.u32 %v1144, 16
      %v1160 = vrot.slane %v1158, 5
      %v1161 = vsel %vm1147, %v1156, %v1160
      %v1162 = vshrl.u32 %v1144, 16
      %v1164 = vrot.slane %v1162, 4
      %v1165 = vrot.slane %v1164, 4
      %vm1168 = vcmask 257026
      %vm1169 = vsmask.f32 7946
      %vm1170 = vmand %vm1168, %vm1169
      %v1171 = vld [vmem:[%s224 + $0x4] sm:$0xc]
      %v1172 = vsel %vm1170, %v1161, %v1171
      %1173 = vst [vmem:[%s224 + $0x4] sm:$0xc] %v1172
      %vm1174 = vcmask 253952
      %vm1175 = vsmask.f32 256
      %vm1176 = vmand %vm1174, %vm1175
      %v1177 = vld [vmem:[%s224 + $0x8] sm:$0x1]
      %v1178 = vsel %vm1176, %v1165, %v1177
      %1179 = vst [vmem:[%s224 + $0x8] sm:$0x1] %v1178
      %v1181 = vadd.f32 %v1081, %v1133
      %v1182 = vpack.c.bf16 %v1181, %v1181
      %v1184 = vunpack.c.l.b16 %v1182
      %v1185 = vpack.c.b16 %v1184, %v1184
      %v1187 = vshrl.u32 %v1185, 16
      %v1189 = vrot.slane %v1187, 4
      %v1190 = vshll.u32 %v1185, 16
      %v1192 = vrot.slane %v1190, 5
      %v1193 = vor.u32 %v1189, %v1192
      %v1194 = vrot.slane %v1193, 4
      %vm1196 = vcmask 257025
      %vm1197 = vsmask.f32 3334
      %vm1198 = vmand %vm1196, %vm1197
      %v1199 = vld [vmem:[%s224 + $0x8] sm:$0xe]
      %v1200 = vsel %vm1198, %v1194, %v1199
      %1201 = vst [vmem:[%s224 + $0x8] sm:$0xe] %v1200
      %v1203 = vrot.slane %v229, 7
      %v1205 = vadd.f32 %v1086, %v1203
      %v1206 = vpack.c.bf16 %v1205, %v1205
      %v1208 = vunpack.c.l.b16 %v1206
      %v1209 = vpack.c.b16 %v1208, %v1208
      %v1211 = vshrl.u32 %v1209, 16
      %v1213 = vrot.slane %v1211, 4
      %v1214 = vshll.u32 %v1209, 16
      %v1216 = vrot.slane %v1214, 5
      %v1217 = vor.u32 %v1213, %v1216
      %v1218 = vrot.slane %v1217, 4
      %vm1220 = vcmask 256000
      %vm1221 = vsmask.f32 2306
      %vm1222 = vmand %vm1220, %vm1221
      %v1223 = vld [vmem:[%s224 + $0xc] sm:$0x7]
      %v1224 = vsel %vm1222, %v1218, %v1223
      %1225 = vst [vmem:[%s224 + $0xc] sm:$0x7] %v1224
      %p1226 = scmp.lt.s32.totalorder %s16, 1
      %s1227 = scalar_select %p1226, %s16, 1
      %s1228 = smul.addr %s1227, 5
      %s1229 = smul.addr %s1228, 4
      %s1230 = scalar_lea.vmem %s5, %s1229
      // Predicated region
      $region41: #{vqvae_forward.14} parent=39 // pred_check
        %p1231 = pneg %p144
      $region42: #{vqvae_forward.14} parent=39 // pred_check_branch
        %1233 = sbr.rel (%p1231) target = $region44
      $region43: #{vqvae_forward.14} parent=39 // pred_region
        _
      $region44: #{vqvae_forward.14} parent=39 // pred_fallthru
        _
    $region40: #{vqvae_forward.14} parent=5 // pred_fallthru
      _
    %p1234 = scmp.le.s32.totalorder 2, %s11
    // Predicated region
    $region45: #{vqvae_forward.14} parent=5 // pred_check
      %p1235 = pneg %p1234
    $region46: #{vqvae_forward.14} parent=5 // pred_check_branch
      %1237 = sbr.rel (%p1235) target = $region48
    $region47: #{vqvae_forward.14} parent=5 // pred_region
      %s1238 = ssub.s32 %s11, 2
      // Predicated region
      $region49: #{vqvae_forward.14} parent=47 // pred_check
        %p1239 = pneg %p150
      $region50: #{vqvae_forward.14} parent=47 // pred_check_branch
        %1241 = sbr.rel (%p1239) target = $region52
      $region51: #{vqvae_forward.14} parent=47 // pred_region
        %p1242 = scmp.lt.s32.totalorder %s17, 1
        %s1243 = scalar_select %p1242, %s17, 1
        %s1244 = smul.addr %s1243, 5
        %s1245 = smul.addr %s1244, 4
        %s1246 = scalar_lea.vmem %s5, %s1245
      $region52: #{vqvae_forward.14} parent=47 // pred_fallthru
        _
    $region48: #{vqvae_forward.14} parent=5 // pred_fallthru
      _
  $region6: #{vqvae_forward.14} parent=0 // loop_footer
    %s15 = sadd.s32 1, %s11
  $region7: #{vqvae_forward.14} parent=0 // loop_footer_branch
    %10 = sbr.rel target = $region3
  $region8: #{vqvae_forward.14} parent=0 // loop_exit
    _

// kernel: tile.18
$region0: #{tile.18}
  #allocation0 [shape = 's32[1]{0}', space=sflag, size = 0x4, scoped, tag = 'scoped memory for tile.18']
  %s0 = inlined_call_operand.vmem [shape: f32[32], index: 0, kind: input, shape index: {}]
  %s1 = inlined_call_operand.vmem [shape: f32[4,32], index: 1, kind: output, shape index: {}]
  // Predicated region
  $region2: #{tile.18} parent=0 // pred_check
    _
  $region3: #{tile.18} parent=0 // pred_check_branch
    %3 = sbr.rel (0) target = $region5
  $region4: #{tile.18} parent=0 // pred_region
    _
  $region5: #{tile.18} parent=0 // pred_fallthru
    _
  %v4 = vld [vmem:[%s0] ss:$0 sm:$0xff]
  %5 = vst [vmem:[%s1] sm:$0xf] %v4

// kernel: mul.99
$region0: #{mul.99}
  %s0 = inlined_call_operand.vmem [shape: f32[4,32], index: 0, kind: input, shape index: {}]
  %s1 = inlined_call_operand.vmem [shape: f32[128], index: 1, kind: output, shape index: {}]
  $region1: #{mul.99} parent=0
    #allocation0 [shape = 'u8[4096]{0}', space=vmem, size = 0x1000, scoped, tag = 'scoped mem for output reshape']
    #allocation1 [shape = 'u8[4096]{0}', space=vmem, size = 0x1000, scoped, tag = 'scoped mem for input reshape']
    %s3 = sshll.u32 1, 4
    %s4 = ssub.s32 %s3, 1
    %v5 = vld [vmem:[%s0] sm:%s4]
    %6 = vst [vmem:[#allocation1] sm:%s4] %v5
    %v7 = vld [vmem:[#allocation1] sm:$0x1]
    %vm8 = vcmask 261120
    %9 = vst.msk [vmem:[#allocation0] sm:$0x1] %vm8, %v7
    %s10 = scalar_lea.vmem [#allocation1], 3
    %v11 = vld [vmem:[%s10] sm:$0x1]
    %12 = vrot.lane.b32.xlu0 %v11, 96
    %v13 = vpop.permute.xlu0 %12
    %vm14 = vcmask 1048320
    %15 = vst.msk [vmem:[#allocation0] sm:$0x1] %vm14, %v13
    %s16 = scalar_lea.vmem [#allocation1], 2
    %v17 = vld [vmem:[%s16] sm:$0x1]
    %18 = vrot.lane.b32.xlu0 %v17, 64
    %v19 = vpop.permute.xlu0 %18
    %vm20 = vcmask 785920
    %21 = vst.msk [vmem:[#allocation0] sm:$0x1] %vm20, %v19
    %s22 = scalar_lea.vmem [#allocation1], 1
    %v23 = vld [vmem:[%s22] sm:$0x1]
    %24 = vrot.lane.b32.xlu0 %v23, 32
    %v25 = vpop.permute.xlu0 %24
    %vm26 = vcmask 523520
    %27 = vst.msk [vmem:[#allocation0] sm:$0x1] %vm26, %v25
    %s29 = sshll.u32 1, 1
    %s30 = ssub.s32 %s29, 1
    %v32 = vld [vmem:[#allocation0] sm:%s30]
    %s33 = sshll.u32 1, 1
    %s34 = ssub.s32 %s33, 1
    %35 = vst [vmem:[%s1] sm:%s34] %v32

// kernel: tile.24
$region0: #{tile.24}
  %s0 = inlined_call_operand.vmem [shape: f32[4,32], index: 0, kind: input, shape index: {}]
  %s1 = inlined_call_operand.vmem [shape: f32[1,128], index: 1, kind: output, shape index: {}]
  $region1: #{tile.24} parent=0
    #allocation0 [shape = 'u8[4096]{0}', space=vmem, size = 0x1000, scoped, tag = 'scoped mem for output reshape']
    #allocation1 [shape = 'u8[4096]{0}', space=vmem, size = 0x1000, scoped, tag = 'scoped mem for input reshape']
    %s3 = sshll.u32 1, 4
    %s4 = ssub.s32 %s3, 1
    %v5 = vld [vmem:[%s0] sm:%s4]
    %6 = vst [vmem:[#allocation1] sm:%s4] %v5
    %v7 = vld [vmem:[#allocation1] sm:$0x1]
    %vm8 = vcmask 261120
    %9 = vst.msk [vmem:[#allocation0] sm:$0x1] %vm8, %v7
    %s10 = scalar_lea.vmem [#allocation1], 3
    %v11 = vld [vmem:[%s10] sm:$0x1]
    %12 = vrot.lane.b32.xlu0 %v11, 96
    %v13 = vpop.permute.xlu0 %12
    %vm14 = vcmask 1048320
    %15 = vst.msk [vmem:[#allocation0] sm:$0x1] %vm14, %v13
    %s16 = scalar_lea.vmem [#allocation1], 2
    %v17 = vld [vmem:[%s16] sm:$0x1]
    %18 = vrot.lane.b32.xlu0 %v17, 64
    %v19 = vpop.permute.xlu0 %18
    %vm20 = vcmask 785920
    %21 = vst.msk [vmem:[#allocation0] sm:$0x1] %vm20, %v19
    %s22 = scalar_lea.vmem [#allocation1], 1
    %v23 = vld [vmem:[%s22] sm:$0x1]
    %24 = vrot.lane.b32.xlu0 %v23, 32
    %v25 = vpop.permute.xlu0 %24
    %vm26 = vcmask 523520
    %27 = vst.msk [vmem:[#allocation0] sm:$0x1] %vm26, %v25
    %s29 = sshll.u32 1, 1
    %s30 = ssub.s32 %s29, 1
    %v32 = vld [vmem:[#allocation0] sm:%s30]
    %s33 = sshll.u32 1, 1
    %s34 = ssub.s32 %s33, 1
    %35 = vst [vmem:[%s1] sm:%s34] %v32

// kernel: vqvae_forward.16
$region0: #{vqvae_forward.16}
  #allocation0 [shape = 'u32[]', space=smem, size = 0x4, offset = 0x4, fixed_abs, tag = 'smem constant byte address 0x4 - core index']
  #allocation1 [shape = 'u32[144,128]{1,0:T(1,128)}', space=vmem, size = 0x12000, scoped, tag = 'internal scratch']
  %s0 = inlined_call_operand.vmem [shape: bf16[2,36,32], index: 0, kind: input, shape index: {}]
  %s1 = inlined_call_operand.vmem [shape: bf16[288,128], index: 1, kind: input, shape index: {}]
  %s2 = inlined_call_operand.vmem [shape: f32[1,128], index: 2, kind: input, shape index: {}]
  %s3 = inlined_call_operand.vmem [shape: bf16[2,24,128], index: 3, kind: output, shape index: {}]
  %s4 = sld [smem:[#allocation0]]
  $region45: #{vqvae_forward.16} parent=0
    _
  %s6 = ssub.s32 1, %s4
  %s7 = scalar_select 0, %s6, %s4
  loop: start=0, step=1, limit=4
  $region2: #{vqvae_forward.16} parent=0 // loop_pre_header
    _
  $region3: #{vqvae_forward.16} parent=0 // loop_header
    %s9 = sphi 0, %s13
    %p10 = scmp.ge.s32.totalorder %s9, 4
    %s19 = sphi 0, %s21
    %s22 = sphi 0, %s19
    %s23 = sphi 0, %s22
    %s39 = sphi 0, %s23
    %s43 = sphi 0, %s43
    %s45 = sphi 0, %s43
    %s46 = sphi 0, %s45
    %s60 = sphi 0, %s46
    %s64 = sphi 0, %s64
    %s66 = sphi 0, %s64
    %s67 = sphi 0, %s66
    %s81 = sphi 0, %s67
    %s87 = sphi 0, %s89
    %s90 = sphi 0, %s87
    %s91 = sphi 0, %s90
    %s107 = sphi 0, %s91
  $region4: #{vqvae_forward.16} parent=0 // loop_header_branch
    %12 = sbr.rel (%p10) target = $region8
  $region5: #{vqvae_forward.16} parent=0 // loop_body
    %s14 = ssub.s32 %s9, 1
    %s15 = ssub.s32 %s9, 2
    %s16 = sadd.s32 %s9, 1
    %s17 = ssub.s32 %s9, %s16
    %p18 = scmp.eq.s32.totalorder %s17, 0
    %s20 = sadd.s32 %s19, 1
    %s21 = scalar_select %p18, %s19, %s20
    %p24 = pneg %p18
    %p25 = scmp.eq.s32.totalorder %s9, 1
    %p26 = por %p24, %p25
    %p27 = scmp.ne.s32.totalorder %s19, %s22
    %p28 = scmp.eq.s32.totalorder %s9, 0
    %p29 = por %p27, %p28
    %p30 = scmp.ne.s32.totalorder %s19, %s22
    %p31 = scmp.eq.s32.totalorder %s14, 1
    %p32 = por %p30, %p31
    %p33 = scmp.ne.s32.totalorder %s22, %s23
    %p34 = scmp.eq.s32.totalorder %s14, 0
    %p35 = por %p33, %p34
    %p36 = scmp.ne.s32.totalorder %s22, %s23
    %p37 = scmp.eq.s32.totalorder %s15, 1
    %p38 = por %p36, %p37
    %p40 = scmp.ne.s32.totalorder %s23, %s39
    %p41 = scmp.eq.s32.totalorder %s15, 0
    %p42 = por %p40, %p41
    %s44 = sadd.s32 %s43, 1
    %p47 = scmp.eq.s32.totalorder %s9, 1
    %p48 = scmp.ne.s32.totalorder %s43, %s45
    %p49 = scmp.eq.s32.totalorder %s9, 0
    %p50 = por %p48, %p49
    %p51 = scmp.ne.s32.totalorder %s43, %s45
    %p52 = scmp.eq.s32.totalorder %s14, 1
    %p53 = por %p51, %p52
    %p54 = scmp.ne.s32.totalorder %s45, %s46
    %p55 = scmp.eq.s32.totalorder %s14, 0
    %p56 = por %p54, %p55
    %p57 = scmp.ne.s32.totalorder %s45, %s46
    %p58 = scmp.eq.s32.totalorder %s15, 1
    %p59 = por %p57, %p58
    %p61 = scmp.ne.s32.totalorder %s46, %s60
    %p62 = scmp.eq.s32.totalorder %s15, 0
    %p63 = por %p61, %p62
    %s65 = sadd.s32 %s64, 1
    %p68 = scmp.eq.s32.totalorder %s9, 1
    %p69 = scmp.ne.s32.totalorder %s64, %s66
    %p70 = scmp.eq.s32.totalorder %s9, 0
    %p71 = por %p69, %p70
    %p72 = scmp.ne.s32.totalorder %s64, %s66
    %p73 = scmp.eq.s32.totalorder %s14, 1
    %p74 = por %p72, %p73
    %p75 = scmp.ne.s32.totalorder %s66, %s67
    %p76 = scmp.eq.s32.totalorder %s14, 0
    %p77 = por %p75, %p76
    %p78 = scmp.ne.s32.totalorder %s66, %s67
    %p79 = scmp.eq.s32.totalorder %s15, 1
    %p80 = por %p78, %p79
    %p82 = scmp.ne.s32.totalorder %s67, %s81
    %p83 = scmp.eq.s32.totalorder %s15, 0
    %p84 = por %p82, %p83
    %s85 = ssub.s32 %s9, %s16
    %p86 = scmp.eq.s32.totalorder %s85, 0
    %s88 = sadd.s32 %s87, 1
    %s89 = scalar_select %p86, %s87, %s88
    %p92 = pneg %p86
    %p93 = scmp.eq.s32.totalorder %s9, 1
    %p94 = por %p92, %p93
    %p95 = scmp.ne.s32.totalorder %s87, %s90
    %p96 = scmp.eq.s32.totalorder %s9, 0
    %p97 = por %p95, %p96
    %p98 = scmp.ne.s32.totalorder %s87, %s90
    %p99 = scmp.eq.s32.totalorder %s14, 1
    %p100 = por %p98, %p99
    %p101 = scmp.ne.s32.totalorder %s90, %s91
    %p102 = scmp.eq.s32.totalorder %s14, 0
    %p103 = por %p101, %p102
    %p104 = scmp.ne.s32.totalorder %s90, %s91
    %p105 = scmp.eq.s32.totalorder %s15, 1
    %p106 = por %p104, %p105
    %p108 = scmp.ne.s32.totalorder %s91, %s107
    %p109 = scmp.eq.s32.totalorder %s15, 0
    %p110 = por %p108, %p109
    %p111 = scmp.le.s32.totalorder 1, %s9
    %p112 = scmp.lt.s32.totalorder %s9, 3
    %p113 = pnand %p111, %p112
    %p114 = pneg %p113
    // Predicated region
    $region9: #{vqvae_forward.16} parent=5 // pred_check
      _
    $region10: #{vqvae_forward.16} parent=5 // pred_check_branch
      %116 = sbr.rel (%p113) target = $region12
    $region11: #{vqvae_forward.16} parent=5 // pred_region
      %s117 = ssub.s32 %s9, 1
      // Predicated region
      $region13: #{vqvae_forward.16} parent=11 // pred_check
        %p118 = pneg %p56
      $region14: #{vqvae_forward.16} parent=11 // pred_check_branch
        %120 = sbr.rel (%p118) target = $region16
      $region15: #{vqvae_forward.16} parent=11 // pred_region
        _
      $region16: #{vqvae_forward.16} parent=11 // pred_fallthru
        _
      // Predicated region
      $region17: #{vqvae_forward.16} parent=11 // pred_check
        %p121 = pneg %p77
      $region18: #{vqvae_forward.16} parent=11 // pred_check_branch
        %123 = sbr.rel (%p121) target = $region20
      $region19: #{vqvae_forward.16} parent=11 // pred_region
        _
      $region20: #{vqvae_forward.16} parent=11 // pred_fallthru
        _
    $region12: #{vqvae_forward.16} parent=5 // pred_fallthru
      _
    %p124 = scmp.lt.s32.totalorder %s9, 2
    // Predicated region
    $region21: #{vqvae_forward.16} parent=5 // pred_check
      %p125 = pneg %p124
    $region22: #{vqvae_forward.16} parent=5 // pred_check_branch
      %127 = sbr.rel (%p125) target = $region24
    $region23: #{vqvae_forward.16} parent=5 // pred_region
      // Predicated region
      $region25: #{vqvae_forward.16} parent=23 // pred_check
        %p128 = pneg %p29
      $region26: #{vqvae_forward.16} parent=23 // pred_check_branch
        %130 = sbr.rel (%p128) target = $region28
      $region27: #{vqvae_forward.16} parent=23 // pred_region
        %p131 = scmp.lt.s32.totalorder %s9, 1
        %s132 = scalar_select %p131, %s9, 1
        %s133 = smul.addr %s132, 5
        %s134 = smul.addr %s133, 4
        %s135 = scalar_lea.vmem %s0, %s134
      $region28: #{vqvae_forward.16} parent=23 // pred_fallthru
        _
    $region24: #{vqvae_forward.16} parent=5 // pred_fallthru
      _
    %p136 = scmp.le.s32.totalorder 1, %s9
    %p137 = scmp.lt.s32.totalorder %s9, 3
    %p138 = pnand %p136, %p137
    %p139 = pneg %p138
    // Predicated region
    $region29: #{vqvae_forward.16} parent=5 // pred_check
      _
    $region30: #{vqvae_forward.16} parent=5 // pred_check_branch
      %141 = sbr.rel (%p138) target = $region32
    $region31: #{vqvae_forward.16} parent=5 // pred_region
      %s142 = ssub.s32 %s9, 1
      %p143 = scmp.lt.s32.totalorder %s14, 1
      %s144 = scalar_select %p143, %s14, 1
      %s145 = smul.addr %s144, 5
      %s146 = smul.addr %s145, 4
      %s147 = scalar_lea.vmem %s0, %s146
      %p148 = pneg %p35
      %p149 = pneg %p32
      %p150 = pneg %p56
      %p151 = pneg %p53
      %p152 = pneg %p77
      %p153 = pneg %p74
      %p154 = pneg %p103
      %p155 = pneg %p100
      %p156 = scmp.lt.s32.totalorder %s14, 1
      %s157 = scalar_select %p156, %s14, 1
      %s158 = smul.addr %s157, 3
      %s159 = smul.addr %s158, 4
      %s160 = scalar_lea.vmem %s3, %s159
      %p161 = scmp.lt.s32.totalorder %s14, 1
      %s162 = scalar_select %p161, %s14, 1
      %s163 = smul.addr %s162, 5
      %s164 = smul.addr %s163, 4
      %s165 = scalar_lea.vmem %s0, %s164
      %p166 = scmp.lt.s32.totalorder %s14, 1
      %s167 = scalar_select %p166, %s14, 1
      %s168 = smul.addr %s167, 3
      %s169 = smul.addr %s168, 4
      %s170 = scalar_lea.vmem %s3, %s169
      %v172 = vld [vmem:[%s165] sm:$0xf]
      %v173 = vld [vmem:[%s165 + $0x4] sm:$0xf]
      %v174 = vld [vmem:[%s165 + $0x8] sm:$0xf]
      %v175 = vld [vmem:[%s165 + $0xc] sm:$0xf]
      %v176 = vld [vmem:[%s165 + $0x10] sm:$0x3]
      %v177 = vunpack.c.l.bf16 %v172
      %v178 = vunpack.c.l.bf16 %v173
      %v179 = vunpack.c.l.bf16 %v174
      %v180 = vunpack.c.l.bf16 %v175
      %v181 = vunpack.c.l.bf16 %v176
      %v182 = vmax.f32 %v177, 0.0
      %v183 = vmax.f32 %v178, 0.0
      %v184 = vmax.f32 %v179, 0.0
      %v185 = vmax.f32 %v180, 0.0
      %v186 = vmax.f32 %v181, 0.0
      %v187 = vpack.c.bf16 %v183, %v182
      %v188 = vpack.c.bf16 %v185, %v184
      %v189 = vpack.c.bf16 %v186, %v186
      %v190 = vld [vmem:[%s1] sm:$0xf]
      %v191 = vld [vmem:[%s1 + $0x4] sm:$0xf]
      %v192 = vld [vmem:[%s1 + $0x8] sm:$0xf]
      %v193 = vld [vmem:[%s1 + $0xc] sm:$0xf]
      %v194 = vld [vmem:[%s1 + $0x10] sm:$0xf]
      %v195 = vld [vmem:[%s1 + $0x14] sm:$0xf]
      %v196 = vld [vmem:[%s1 + $0x18] sm:$0xf]
      %v197 = vld [vmem:[%s1 + $0x1c] sm:$0xf]
      %vm198 = vsmask.f32 7424
      %v200 = vshrl.u32 %v187, 16
      %v202 = vshll.u32 %v187, 16
      %v204 = vrot.slane %v202, 1
      %v205 = vor.u32 %v200, %v204
      %v207 = vshll.u32 %v188, 16
      %v209 = vrot.slane %v207, 1
      %v210 = vsel %vm198, %v205, %v209
      %v211 = vshrl.u32 %v188, 16
      %v213 = vor.u32 %v211, %v209
      %v218 = vunpack.c.l.b16 %v194
      %v219 = vunpack.c.l.b16 %v195
      %v220 = vunpack.c.l.b16 %v196
      %v221 = vunpack.c.l.b16 %v197
      %v222 = vpack.c.b16 %v219, %v218
      %v223 = vpack.c.b16 %v221, %v220
      %vm226 = vcmask 261120
      %v228 = vsel %vm226, %v210, 0
      %v231 = vsel %vm226, %v213, 0
      %233 = vmatprep.subr.bf16.mxu0 0
      %234 = vmatpush1.bf16.msra.mxu0 0
      %235 = vmatprep.subr.bf16.mxu0 0
      %236 = vmatpush1.bf16.msra.mxu0 0
      %237 = vmatprep.subr.bf16.mxu0 0
      %238 = vmatpush1.bf16.msra.mxu0 0
      %239 = vmatprep.subr.bf16.mxu0 0
      %240 = vmatpush1.bf16.msra.mxu0 0
      %241 = vmatprep.subr.bf16.mxu0 0
      %242 = vmatpush1.bf16.msra.mxu0 0
      %243 = vmatprep.subr.bf16.mxu0 0
      %244 = vmatpush1.bf16.msra.mxu0 0
      %245 = vmatprep.subr.bf16.mxu0 0
      %246 = vmatpush1.bf16.msra.mxu0 %v223
      %247 = vmatprep.subr.bf16.mxu0 0
      %248 = vmatpush1.bf16.msra.mxu0 %v222
      %249 = vmatprep.subr.bf16.mxu0 0
      %250 = vmatpush2.bf16.msra.mxu0 0
      %251 = vmatprep.subr.bf16.mxu0 0
      %252 = vmatpush2.bf16.msra.mxu0 0
      %253 = vmatprep.subr.bf16.mxu0 0
      %254 = vmatpush2.bf16.msra.mxu0 0
      %255 = vmatprep.subr.bf16.mxu0 0
      %256 = vmatpush2.bf16.msra.mxu0 0
      %257 = vmatprep.subr.bf16.mxu0 0
      %258 = vmatpush2.bf16.msra.mxu0 0
      %259 = vmatprep.subr.bf16.mxu0 0
      %260 = vmatpush2.bf16.msra.mxu0 0
      %261 = vmatprep.subr.bf16.mxu0 0
      %262 = vmatpush2.bf16.msra.mxu0 0
      %263 = vmatprep.subr.bf16.mxu0 0
      %264 = vmatpush2.bf16.msra.mxu0 0
      %265 = vmatprep.mubr.bf16.mxu0 0
      %266 = vmatmul.mubr.bf16.gmra.mxu0 %v228
      %v267 = vpop.f32.mrf.mxu0
      %v268 = vadd.f32 0.0, %v267
      %v269 = vpop.f32.mrf.mxu0
      %v270 = vpop.f32.mrf.mxu0
      %v271 = vadd.f32 0.0, %v270
      %v272 = vpop.f32.mrf.mxu0
      %273 = vmatprep.mubr.bf16.mxu0 0
      %274 = vmatmul.mubr.bf16.gmra.mxu0 %v231
      %v275 = vpop.f32.mrf.mxu0
      %v276 = vadd.f32 0.0, %v275
      %v277 = vpop.f32.mrf.mxu0
      %v278 = vpop.f32.mrf.mxu0
      %v279 = vpop.f32.mrf.mxu0
      %280 = vdwg.mxu0
      %v285 = vunpack.c.l.b16 %v190
      %v286 = vunpack.c.l.b16 %v191
      %v287 = vunpack.c.l.b16 %v192
      %v288 = vunpack.c.l.b16 %v193
      %v289 = vpack.c.b16 %v286, %v285
      %v290 = vpack.c.b16 %v288, %v287
      %v293 = vsel %vm226, %v187, 0
      %v295 = vsel %vm226, %v188, 0
      %297 = vmatprep.subr.bf16.mxu0 0
      %298 = vmatpush1.bf16.msra.mxu0 0
      %299 = vmatprep.subr.bf16.mxu0 0
      %300 = vmatpush1.bf16.msra.mxu0 0
      %301 = vmatprep.subr.bf16.mxu0 0
      %302 = vmatpush1.bf16.msra.mxu0 0
      %303 = vmatprep.subr.bf16.mxu0 0
      %304 = vmatpush1.bf16.msra.mxu0 0
      %305 = vmatprep.subr.bf16.mxu0 0
      %306 = vmatpush1.bf16.msra.mxu0 0
      %307 = vmatprep.subr.bf16.mxu0 0
      %308 = vmatpush1.bf16.msra.mxu0 0
      %309 = vmatprep.subr.bf16.mxu0 0
      %310 = vmatpush1.bf16.msra.mxu0 %v290
      %311 = vmatprep.subr.bf16.mxu0 0
      %312 = vmatpush1.bf16.msra.mxu0 %v289
      %313 = vmatprep.subr.bf16.mxu0 0
      %314 = vmatpush2.bf16.msra.mxu0 0
      %315 = vmatprep.subr.bf16.mxu0 0
      %316 = vmatpush2.bf16.msra.mxu0 0
      %317 = vmatprep.subr.bf16.mxu0 0
      %318 = vmatpush2.bf16.msra.mxu0 0
      %319 = vmatprep.subr.bf16.mxu0 0
      %320 = vmatpush2.bf16.msra.mxu0 0
      %321 = vmatprep.subr.bf16.mxu0 0
      %322 = vmatpush2.bf16.msra.mxu0 0
      %323 = vmatprep.subr.bf16.mxu0 0
      %324 = vmatpush2.bf16.msra.mxu0 0
      %325 = vmatprep.subr.bf16.mxu0 0
      %326 = vmatpush2.bf16.msra.mxu0 0
      %327 = vmatprep.subr.bf16.mxu0 0
      %328 = vmatpush2.bf16.msra.mxu0 0
      %329 = vmatprep.mubr.bf16.mxu0 0
      %330 = vmatmul.mubr.bf16.gmra.mxu0 %v293
      %v331 = vpop.f32.mrf.mxu0
      %v332 = vadd.f32 %v268, %v331
      %v333 = vpop.f32.mrf.mxu0
      %v334 = vpop.f32.mrf.mxu0
      %v335 = vadd.f32 %v271, %v334
      %v336 = vpop.f32.mrf.mxu0
      %337 = vmatprep.mubr.bf16.mxu0 0
      %338 = vmatmul.mubr.bf16.gmra.mxu0 %v295
      %v339 = vpop.f32.mrf.mxu0
      %v340 = vadd.f32 %v276, %v339
      %v341 = vpop.f32.mrf.mxu0
      %v342 = vpop.f32.mrf.mxu0
      %v343 = vpop.f32.mrf.mxu0
      %344 = vdwg.mxu0
      %v345 = vld [vmem:[%s1 + $0x20] sm:$0xf]
      %v346 = vld [vmem:[%s1 + $0x24] sm:$0xf]
      %v347 = vld [vmem:[%s1 + $0x28] sm:$0xf]
      %v348 = vld [vmem:[%s1 + $0x2c] sm:$0xf]
      %vm351 = vcmask 1046528
      %v352 = vrot.slane %v187, 1
      %v353 = vrot.slane %v188, 1
      %v354 = vsel %vm351, %v352, %v353
      %v359 = vunpack.c.l.b16 %v345
      %v360 = vunpack.c.l.b16 %v346
      %v361 = vunpack.c.l.b16 %v347
      %v362 = vunpack.c.l.b16 %v348
      %v363 = vpack.c.b16 %v360, %v359
      %v364 = vpack.c.b16 %v362, %v361
      %v368 = vsel %vm226, %v354, 0
      %v371 = vsel %vm226, %v353, 0
      %373 = vmatprep.subr.bf16.mxu0 0
      %374 = vmatpush1.bf16.msra.mxu0 0
      %375 = vmatprep.subr.bf16.mxu0 0
      %376 = vmatpush1.bf16.msra.mxu0 0
      %377 = vmatprep.subr.bf16.mxu0 0
      %378 = vmatpush1.bf16.msra.mxu0 0
      %379 = vmatprep.subr.bf16.mxu0 0
      %380 = vmatpush1.bf16.msra.mxu0 0
      %381 = vmatprep.subr.bf16.mxu0 0
      %382 = vmatpush1.bf16.msra.mxu0 0
      %383 = vmatprep.subr.bf16.mxu0 0
      %384 = vmatpush1.bf16.msra.mxu0 0
      %385 = vmatprep.subr.bf16.mxu0 0
      %386 = vmatpush1.bf16.msra.mxu0 %v364
      %387 = vmatprep.subr.bf16.mxu0 0
      %388 = vmatpush1.bf16.msra.mxu0 %v363
      %389 = vmatprep.subr.bf16.mxu0 0
      %390 = vmatpush2.bf16.msra.mxu0 0
      %391 = vmatprep.subr.bf16.mxu0 0
      %392 = vmatpush2.bf16.msra.mxu0 0
      %393 = vmatprep.subr.bf16.mxu0 0
      %394 = vmatpush2.bf16.msra.mxu0 0
      %395 = vmatprep.subr.bf16.mxu0 0
      %396 = vmatpush2.bf16.msra.mxu0 0
      %397 = vmatprep.subr.bf16.mxu0 0
      %398 = vmatpush2.bf16.msra.mxu0 0
      %399 = vmatprep.subr.bf16.mxu0 0
      %400 = vmatpush2.bf16.msra.mxu0 0
      %401 = vmatprep.subr.bf16.mxu0 0
      %402 = vmatpush2.bf16.msra.mxu0 0
      %403 = vmatprep.subr.bf16.mxu0 0
      %404 = vmatpush2.bf16.msra.mxu0 0
      %405 = vmatprep.mubr.bf16.mxu0 0
      %406 = vmatmul.mubr.bf16.gmra.mxu0 %v368
      %v407 = vpop.f32.mrf.mxu0
      %v408 = vadd.f32 0.0, %v407
      %v409 = vpop.f32.mrf.mxu0
      %v410 = vpop.f32.mrf.mxu0
      %v411 = vadd.f32 0.0, %v410
      %v412 = vpop.f32.mrf.mxu0
      %413 = vmatprep.mubr.bf16.mxu0 0
      %414 = vmatmul.mubr.bf16.gmra.mxu0 %v371
      %v415 = vpop.f32.mrf.mxu0
      %v416 = vadd.f32 0.0, %v415
      %v417 = vpop.f32.mrf.mxu0
      %v418 = vpop.f32.mrf.mxu0
      %v419 = vpop.f32.mrf.mxu0
      %420 = vdwg.mxu0
      %v421 = vadd.f32 %v332, %v408
      %v422 = vadd.f32 %v335, %v411
      %v423 = vadd.f32 %v340, %v416
      %v424 = vld [vmem:[%s1 + $0x30] sm:$0xf]
      %v425 = vld [vmem:[%s1 + $0x34] sm:$0xf]
      %v426 = vld [vmem:[%s1 + $0x38] sm:$0xf]
      %v427 = vld [vmem:[%s1 + $0x3c] sm:$0xf]
      %vm428 = vcmask 1044480
      %v429 = vrot.slane %v187, 3
      %v430 = vrot.slane %v188, 3
      %v431 = vsel %vm428, %v429, %v430
      %v436 = vunpack.c.l.b16 %v424
      %v437 = vunpack.c.l.b16 %v425
      %v438 = vunpack.c.l.b16 %v426
      %v439 = vunpack.c.l.b16 %v427
      %v440 = vpack.c.b16 %v437, %v436
      %v441 = vpack.c.b16 %v439, %v438
      %v445 = vsel %vm226, %v431, 0
      %v448 = vsel %vm226, %v430, 0
      %450 = vmatprep.subr.bf16.mxu0 0
      %451 = vmatpush1.bf16.msra.mxu0 0
      %452 = vmatprep.subr.bf16.mxu0 0
      %453 = vmatpush1.bf16.msra.mxu0 0
      %454 = vmatprep.subr.bf16.mxu0 0
      %455 = vmatpush1.bf16.msra.mxu0 0
      %456 = vmatprep.subr.bf16.mxu0 0
      %457 = vmatpush1.bf16.msra.mxu0 0
      %458 = vmatprep.subr.bf16.mxu0 0
      %459 = vmatpush1.bf16.msra.mxu0 0
      %460 = vmatprep.subr.bf16.mxu0 0
      %461 = vmatpush1.bf16.msra.mxu0 0
      %462 = vmatprep.subr.bf16.mxu0 0
      %463 = vmatpush1.bf16.msra.mxu0 %v441
      %464 = vmatprep.subr.bf16.mxu0 0
      %465 = vmatpush1.bf16.msra.mxu0 %v440
      %466 = vmatprep.subr.bf16.mxu0 0
      %467 = vmatpush2.bf16.msra.mxu0 0
      %468 = vmatprep.subr.bf16.mxu0 0
      %469 = vmatpush2.bf16.msra.mxu0 0
      %470 = vmatprep.subr.bf16.mxu0 0
      %471 = vmatpush2.bf16.msra.mxu0 0
      %472 = vmatprep.subr.bf16.mxu0 0
      %473 = vmatpush2.bf16.msra.mxu0 0
      %474 = vmatprep.subr.bf16.mxu0 0
      %475 = vmatpush2.bf16.msra.mxu0 0
      %476 = vmatprep.subr.bf16.mxu0 0
      %477 = vmatpush2.bf16.msra.mxu0 0
      %478 = vmatprep.subr.bf16.mxu0 0
      %479 = vmatpush2.bf16.msra.mxu0 0
      %480 = vmatprep.subr.bf16.mxu0 0
      %481 = vmatpush2.bf16.msra.mxu0 0
      %482 = vmatprep.mubr.bf16.mxu0 0
      %483 = vmatmul.mubr.bf16.gmra.mxu0 %v445
      %v484 = vpop.f32.mrf.mxu0
      %v485 = vadd.f32 0.0, %v484
      %v486 = vpop.f32.mrf.mxu0
      %v487 = vpop.f32.mrf.mxu0
      %v488 = vadd.f32 0.0, %v487
      %v489 = vpop.f32.mrf.mxu0
      %490 = vmatprep.mubr.bf16.mxu0 0
      %491 = vmatmul.mubr.bf16.gmra.mxu0 %v448
      %v492 = vpop.f32.mrf.mxu0
      %v493 = vadd.f32 0.0, %v492
      %v494 = vpop.f32.mrf.mxu0
      %v495 = vpop.f32.mrf.mxu0
      %v496 = vpop.f32.mrf.mxu0
      %497 = vdwg.mxu0
      %v498 = vadd.f32 %v421, %v485
      %v499 = vadd.f32 %v422, %v488
      %v500 = vadd.f32 %v423, %v493
      %v501 = vld [vmem:[%s1 + $0x40] sm:$0xf]
      %v502 = vld [vmem:[%s1 + $0x44] sm:$0xf]
      %v503 = vld [vmem:[%s1 + $0x48] sm:$0xf]
      %v504 = vld [vmem:[%s1 + $0x4c] sm:$0xf]
      %vm505 = vsmask.f32 4352
      %v506 = vrot.slane %v200, 3
      %v507 = vrot.slane %v202, 4
      %v508 = vor.u32 %v506, %v507
      %v509 = vrot.slane %v211, 3
      %v510 = vrot.slane %v207, 4
      %v511 = vor.u32 %v509, %v510
      %v512 = vsel %vm505, %v508, %v511
      %v517 = vunpack.c.l.b16 %v501
      %v518 = vunpack.c.l.b16 %v502
      %v519 = vunpack.c.l.b16 %v503
      %v520 = vunpack.c.l.b16 %v504
      %v521 = vpack.c.b16 %v518, %v517
      %v522 = vpack.c.b16 %v520, %v519
      %v526 = vsel %vm226, %v512, 0
      %v529 = vsel %vm226, %v511, 0
      %531 = vmatprep.subr.bf16.mxu0 0
      %532 = vmatpush1.bf16.msra.mxu0 0
      %533 = vmatprep.subr.bf16.mxu0 0
      %534 = vmatpush1.bf16.msra.mxu0 0
      %535 = vmatprep.subr.bf16.mxu0 0
      %536 = vmatpush1.bf16.msra.mxu0 0
      %537 = vmatprep.subr.bf16.mxu0 0
      %538 = vmatpush1.bf16.msra.mxu0 0
      %539 = vmatprep.subr.bf16.mxu0 0
      %540 = vmatpush1.bf16.msra.mxu0 0
      %541 = vmatprep.subr.bf16.mxu0 0
      %542 = vmatpush1.bf16.msra.mxu0 0
      %543 = vmatprep.subr.bf16.mxu0 0
      %544 = vmatpush1.bf16.msra.mxu0 %v522
      %545 = vmatprep.subr.bf16.mxu0 0
      %546 = vmatpush1.bf16.msra.mxu0 %v521
      %547 = vmatprep.subr.bf16.mxu0 0
      %548 = vmatpush2.bf16.msra.mxu0 0
      %549 = vmatprep.subr.bf16.mxu0 0
      %550 = vmatpush2.bf16.msra.mxu0 0
      %551 = vmatprep.subr.bf16.mxu0 0
      %552 = vmatpush2.bf16.msra.mxu0 0
      %553 = vmatprep.subr.bf16.mxu0 0
      %554 = vmatpush2.bf16.msra.mxu0 0
      %555 = vmatprep.subr.bf16.mxu0 0
      %556 = vmatpush2.bf16.msra.mxu0 0
      %557 = vmatprep.subr.bf16.mxu0 0
      %558 = vmatpush2.bf16.msra.mxu0 0
      %559 = vmatprep.subr.bf16.mxu0 0
      %560 = vmatpush2.bf16.msra.mxu0 0
      %561 = vmatprep.subr.bf16.mxu0 0
      %562 = vmatpush2.bf16.msra.mxu0 0
      %563 = vmatprep.mubr.bf16.mxu0 0
      %564 = vmatmul.mubr.bf16.gmra.mxu0 %v526
      %v565 = vpop.f32.mrf.mxu0
      %v566 = vadd.f32 0.0, %v565
      %v567 = vpop.f32.mrf.mxu0
      %v568 = vpop.f32.mrf.mxu0
      %v569 = vadd.f32 0.0, %v568
      %v570 = vpop.f32.mrf.mxu0
      %571 = vmatprep.mubr.bf16.mxu0 0
      %572 = vmatmul.mubr.bf16.gmra.mxu0 %v529
      %v573 = vpop.f32.mrf.mxu0
      %v574 = vadd.f32 0.0, %v573
      %v575 = vpop.f32.mrf.mxu0
      %v576 = vpop.f32.mrf.mxu0
      %v577 = vpop.f32.mrf.mxu0
      %578 = vdwg.mxu0
      %v579 = vadd.f32 %v498, %v566
      %v580 = vadd.f32 %v499, %v569
      %v581 = vadd.f32 %v500, %v574
      %v582 = vld [vmem:[%s1 + $0x50] sm:$0xf]
      %v583 = vld [vmem:[%s1 + $0x54] sm:$0xf]
      %v584 = vld [vmem:[%s1 + $0x58] sm:$0xf]
      %v585 = vld [vmem:[%s1 + $0x5c] sm:$0xf]
      %vm586 = vcmask 1043456
      %v587 = vrot.slane %v187, 4
      %v588 = vrot.slane %v188, 4
      %v589 = vsel %vm586, %v587, %v588
      %v594 = vunpack.c.l.b16 %v582
      %v595 = vunpack.c.l.b16 %v583
      %v596 = vunpack.c.l.b16 %v584
      %v597 = vunpack.c.l.b16 %v585
      %v598 = vpack.c.b16 %v595, %v594
      %v599 = vpack.c.b16 %v597, %v596
      %v603 = vsel %vm226, %v589, 0
      %v606 = vsel %vm226, %v588, 0
      %608 = vmatprep.subr.bf16.mxu0 0
      %609 = vmatpush1.bf16.msra.mxu0 0
      %610 = vmatprep.subr.bf16.mxu0 0
      %611 = vmatpush1.bf16.msra.mxu0 0
      %612 = vmatprep.subr.bf16.mxu0 0
      %613 = vmatpush1.bf16.msra.mxu0 0
      %614 = vmatprep.subr.bf16.mxu0 0
      %615 = vmatpush1.bf16.msra.mxu0 0
      %616 = vmatprep.subr.bf16.mxu0 0
      %617 = vmatpush1.bf16.msra.mxu0 0
      %618 = vmatprep.subr.bf16.mxu0 0
      %619 = vmatpush1.bf16.msra.mxu0 0
      %620 = vmatprep.subr.bf16.mxu0 0
      %621 = vmatpush1.bf16.msra.mxu0 %v599
      %622 = vmatprep.subr.bf16.mxu0 0
      %623 = vmatpush1.bf16.msra.mxu0 %v598
      %624 = vmatprep.subr.bf16.mxu0 0
      %625 = vmatpush2.bf16.msra.mxu0 0
      %626 = vmatprep.subr.bf16.mxu0 0
      %627 = vmatpush2.bf16.msra.mxu0 0
      %628 = vmatprep.subr.bf16.mxu0 0
      %629 = vmatpush2.bf16.msra.mxu0 0
      %630 = vmatprep.subr.bf16.mxu0 0
      %631 = vmatpush2.bf16.msra.mxu0 0
      %632 = vmatprep.subr.bf16.mxu0 0
      %633 = vmatpush2.bf16.msra.mxu0 0
      %634 = vmatprep.subr.bf16.mxu0 0
      %635 = vmatpush2.bf16.msra.mxu0 0
      %636 = vmatprep.subr.bf16.mxu0 0
      %637 = vmatpush2.bf16.msra.mxu0 0
      %638 = vmatprep.subr.bf16.mxu0 0
      %639 = vmatpush2.bf16.msra.mxu0 0
      %640 = vmatprep.mubr.bf16.mxu0 0
      %641 = vmatmul.mubr.bf16.gmra.mxu0 %v603
      %v642 = vpop.f32.mrf.mxu0
      %v643 = vadd.f32 0.0, %v642
      %v644 = vpop.f32.mrf.mxu0
      %v645 = vpop.f32.mrf.mxu0
      %v646 = vadd.f32 0.0, %v645
      %v647 = vpop.f32.mrf.mxu0
      %648 = vmatprep.mubr.bf16.mxu0 0
      %649 = vmatmul.mubr.bf16.gmra.mxu0 %v606
      %v650 = vpop.f32.mrf.mxu0
      %v651 = vadd.f32 0.0, %v650
      %v652 = vpop.f32.mrf.mxu0
      %v653 = vpop.f32.mrf.mxu0
      %v654 = vpop.f32.mrf.mxu0
      %655 = vdwg.mxu0
      %v656 = vadd.f32 %v579, %v643
      %v657 = vadd.f32 %v580, %v646
      %v658 = vadd.f32 %v581, %v651
      %v659 = vld [vmem:[%s1 + $0x60] sm:$0xf]
      %v660 = vld [vmem:[%s1 + $0x64] sm:$0xf]
      %v661 = vld [vmem:[%s1 + $0x68] sm:$0xf]
      %v662 = vld [vmem:[%s1 + $0x6c] sm:$0xf]
      %vm664 = vcmask 1041408
      %v665 = vrot.slane %v187, 6
      %v666 = vrot.slane %v188, 6
      %v667 = vsel %vm664, %v665, %v666
      %v668 = vrot.slane %v189, 6
      %v669 = vsel %vm664, %v666, %v668
      %v674 = vunpack.c.l.b16 %v659
      %v675 = vunpack.c.l.b16 %v660
      %v676 = vunpack.c.l.b16 %v661
      %v677 = vunpack.c.l.b16 %v662
      %v678 = vpack.c.b16 %v675, %v674
      %v679 = vpack.c.b16 %v677, %v676
      %v683 = vsel %vm226, %v667, 0
      %v686 = vsel %vm226, %v669, 0
      %688 = vmatprep.subr.bf16.mxu0 0
      %689 = vmatpush1.bf16.msra.mxu0 0
      %690 = vmatprep.subr.bf16.mxu0 0
      %691 = vmatpush1.bf16.msra.mxu0 0
      %692 = vmatprep.subr.bf16.mxu0 0
      %693 = vmatpush1.bf16.msra.mxu0 0
      %694 = vmatprep.subr.bf16.mxu0 0
      %695 = vmatpush1.bf16.msra.mxu0 0
      %696 = vmatprep.subr.bf16.mxu0 0
      %697 = vmatpush1.bf16.msra.mxu0 0
      %698 = vmatprep.subr.bf16.mxu0 0
      %699 = vmatpush1.bf16.msra.mxu0 0
      %700 = vmatprep.subr.bf16.mxu0 0
      %701 = vmatpush1.bf16.msra.mxu0 %v679
      %702 = vmatprep.subr.bf16.mxu0 0
      %703 = vmatpush1.bf16.msra.mxu0 %v678
      %704 = vmatprep.subr.bf16.mxu0 0
      %705 = vmatpush2.bf16.msra.mxu0 0
      %706 = vmatprep.subr.bf16.mxu0 0
      %707 = vmatpush2.bf16.msra.mxu0 0
      %708 = vmatprep.subr.bf16.mxu0 0
      %709 = vmatpush2.bf16.msra.mxu0 0
      %710 = vmatprep.subr.bf16.mxu0 0
      %711 = vmatpush2.bf16.msra.mxu0 0
      %712 = vmatprep.subr.bf16.mxu0 0
      %713 = vmatpush2.bf16.msra.mxu0 0
      %714 = vmatprep.subr.bf16.mxu0 0
      %715 = vmatpush2.bf16.msra.mxu0 0
      %716 = vmatprep.subr.bf16.mxu0 0
      %717 = vmatpush2.bf16.msra.mxu0 0
      %718 = vmatprep.subr.bf16.mxu0 0
      %719 = vmatpush2.bf16.msra.mxu0 0
      %720 = vmatprep.mubr.bf16.mxu0 0
      %721 = vmatmul.mubr.bf16.gmra.mxu0 %v683
      %v722 = vpop.f32.mrf.mxu0
      %v723 = vadd.f32 0.0, %v722
      %v724 = vpop.f32.mrf.mxu0
      %v725 = vpop.f32.mrf.mxu0
      %v726 = vadd.f32 0.0, %v725
      %v727 = vpop.f32.mrf.mxu0
      %728 = vmatprep.mubr.bf16.mxu0 0
      %729 = vmatmul.mubr.bf16.gmra.mxu0 %v686
      %v730 = vpop.f32.mrf.mxu0
      %v731 = vadd.f32 0.0, %v730
      %v732 = vpop.f32.mrf.mxu0
      %v733 = vpop.f32.mrf.mxu0
      %v734 = vpop.f32.mrf.mxu0
      %735 = vdwg.mxu0
      %v736 = vadd.f32 %v656, %v723
      %v737 = vadd.f32 %v657, %v726
      %v738 = vadd.f32 %v658, %v731
      %v739 = vld [vmem:[%s1 + $0x70] sm:$0xf]
      %v740 = vld [vmem:[%s1 + $0x74] sm:$0xf]
      %v741 = vld [vmem:[%s1 + $0x78] sm:$0xf]
      %v742 = vld [vmem:[%s1 + $0x7c] sm:$0xf]
      %vm743 = vsmask.f32 1280
      %v744 = vrot.slane %v200, 6
      %v745 = vrot.slane %v202, 7
      %v746 = vor.u32 %v744, %v745
      %v747 = vrot.slane %v211, 6
      %v748 = vrot.slane %v207, 7
      %v749 = vor.u32 %v747, %v748
      %v750 = vsel %vm743, %v746, %v749
      %v752 = vshrl.u32 %v189, 16
      %v754 = vrot.slane %v752, 6
      %v755 = vshll.u32 %v189, 16
      %v757 = vrot.slane %v755, 7
      %v758 = vor.u32 %v754, %v757
      %v759 = vsel %vm743, %v749, %v758
      %v764 = vunpack.c.l.b16 %v739
      %v765 = vunpack.c.l.b16 %v740
      %v766 = vunpack.c.l.b16 %v741
      %v767 = vunpack.c.l.b16 %v742
      %v768 = vpack.c.b16 %v765, %v764
      %v769 = vpack.c.b16 %v767, %v766
      %v773 = vsel %vm226, %v750, 0
      %v776 = vsel %vm226, %v759, 0
      %778 = vmatprep.subr.bf16.mxu0 0
      %779 = vmatpush1.bf16.msra.mxu0 0
      %780 = vmatprep.subr.bf16.mxu0 0
      %781 = vmatpush1.bf16.msra.mxu0 0
      %782 = vmatprep.subr.bf16.mxu0 0
      %783 = vmatpush1.bf16.msra.mxu0 0
      %784 = vmatprep.subr.bf16.mxu0 0
      %785 = vmatpush1.bf16.msra.mxu0 0
      %786 = vmatprep.subr.bf16.mxu0 0
      %787 = vmatpush1.bf16.msra.mxu0 0
      %788 = vmatprep.subr.bf16.mxu0 0
      %789 = vmatpush1.bf16.msra.mxu0 0
      %790 = vmatprep.subr.bf16.mxu0 0
      %791 = vmatpush1.bf16.msra.mxu0 %v769
      %792 = vmatprep.subr.bf16.mxu0 0
      %793 = vmatpush1.bf16.msra.mxu0 %v768
      %794 = vmatprep.subr.bf16.mxu0 0
      %795 = vmatpush2.bf16.msra.mxu0 0
      %796 = vmatprep.subr.bf16.mxu0 0
      %797 = vmatpush2.bf16.msra.mxu0 0
      %798 = vmatprep.subr.bf16.mxu0 0
      %799 = vmatpush2.bf16.msra.mxu0 0
      %800 = vmatprep.subr.bf16.mxu0 0
      %801 = vmatpush2.bf16.msra.mxu0 0
      %802 = vmatprep.subr.bf16.mxu0 0
      %803 = vmatpush2.bf16.msra.mxu0 0
      %804 = vmatprep.subr.bf16.mxu0 0
      %805 = vmatpush2.bf16.msra.mxu0 0
      %806 = vmatprep.subr.bf16.mxu0 0
      %807 = vmatpush2.bf16.msra.mxu0 0
      %808 = vmatprep.subr.bf16.mxu0 0
      %809 = vmatpush2.bf16.msra.mxu0 0
      %810 = vmatprep.mubr.bf16.mxu0 0
      %811 = vmatmul.mubr.bf16.gmra.mxu0 %v773
      %v812 = vpop.f32.mrf.mxu0
      %v813 = vadd.f32 0.0, %v812
      %v814 = vpop.f32.mrf.mxu0
      %v815 = vpop.f32.mrf.mxu0
      %v816 = vadd.f32 0.0, %v815
      %v817 = vpop.f32.mrf.mxu0
      %818 = vmatprep.mubr.bf16.mxu0 0
      %819 = vmatmul.mubr.bf16.gmra.mxu0 %v776
      %v820 = vpop.f32.mrf.mxu0
      %v821 = vadd.f32 0.0, %v820
      %v822 = vpop.f32.mrf.mxu0
      %v823 = vpop.f32.mrf.mxu0
      %v824 = vpop.f32.mrf.mxu0
      %825 = vdwg.mxu0
      %v826 = vadd.f32 %v736, %v813
      %v827 = vadd.f32 %v737, %v816
      %v828 = vadd.f32 %v738, %v821
      %v829 = vld [vmem:[%s1 + $0x80] sm:$0xf]
      %v830 = vld [vmem:[%s1 + $0x84] sm:$0xf]
      %v831 = vld [vmem:[%s1 + $0x88] sm:$0xf]
      %v832 = vld [vmem:[%s1 + $0x8c] sm:$0xf]
      %vm833 = vcmask 1040384
      %v834 = vrot.slane %v187, 7
      %v835 = vrot.slane %v188, 7
      %v836 = vsel %vm833, %v834, %v835
      %v837 = vrot.slane %v189, 7
      %v838 = vsel %vm833, %v835, %v837
      %v843 = vunpack.c.l.b16 %v829
      %v844 = vunpack.c.l.b16 %v830
      %v845 = vunpack.c.l.b16 %v831
      %v846 = vunpack.c.l.b16 %v832
      %v847 = vpack.c.b16 %v844, %v843
      %v848 = vpack.c.b16 %v846, %v845
      %v852 = vsel %vm226, %v836, 0
      %v855 = vsel %vm226, %v838, 0
      %857 = vmatprep.subr.bf16.mxu0 0
      %858 = vmatpush1.bf16.msra.mxu0 0
      %859 = vmatprep.subr.bf16.mxu0 0
      %860 = vmatpush1.bf16.msra.mxu0 0
      %861 = vmatprep.subr.bf16.mxu0 0
      %862 = vmatpush1.bf16.msra.mxu0 0
      %863 = vmatprep.subr.bf16.mxu0 0
      %864 = vmatpush1.bf16.msra.mxu0 0
      %865 = vmatprep.subr.bf16.mxu0 0
      %866 = vmatpush1.bf16.msra.mxu0 0
      %867 = vmatprep.subr.bf16.mxu0 0
      %868 = vmatpush1.bf16.msra.mxu0 0
      %869 = vmatprep.subr.bf16.mxu0 0
      %870 = vmatpush1.bf16.msra.mxu0 %v848
      %871 = vmatprep.subr.bf16.mxu0 0
      %872 = vmatpush1.bf16.msra.mxu0 %v847
      %873 = vmatprep.subr.bf16.mxu0 0
      %874 = vmatpush2.bf16.msra.mxu0 0
      %875 = vmatprep.subr.bf16.mxu0 0
      %876 = vmatpush2.bf16.msra.mxu0 0
      %877 = vmatprep.subr.bf16.mxu0 0
      %878 = vmatpush2.bf16.msra.mxu0 0
      %879 = vmatprep.subr.bf16.mxu0 0
      %880 = vmatpush2.bf16.msra.mxu0 0
      %881 = vmatprep.subr.bf16.mxu0 0
      %882 = vmatpush2.bf16.msra.mxu0 0
      %883 = vmatprep.subr.bf16.mxu0 0
      %884 = vmatpush2.bf16.msra.mxu0 0
      %885 = vmatprep.subr.bf16.mxu0 0
      %886 = vmatpush2.bf16.msra.mxu0 0
      %887 = vmatprep.subr.bf16.mxu0 0
      %888 = vmatpush2.bf16.msra.mxu0 0
      %889 = vmatprep.mubr.bf16.mxu0 0
      %890 = vmatmul.mubr.bf16.gmra.mxu0 %v852
      %v891 = vpop.f32.mrf.mxu0
      %v892 = vadd.f32 0.0, %v891
      %v893 = vpop.f32.mrf.mxu0
      %v894 = vpop.f32.mrf.mxu0
      %v895 = vadd.f32 0.0, %v894
      %v896 = vpop.f32.mrf.mxu0
      %897 = vmatprep.mubr.bf16.mxu0 0
      %898 = vmatmul.mubr.bf16.gmra.mxu0 %v855
      %v899 = vpop.f32.mrf.mxu0
      %v900 = vadd.f32 0.0, %v899
      %v901 = vpop.f32.mrf.mxu0
      %v902 = vpop.f32.mrf.mxu0
      %v903 = vpop.f32.mrf.mxu0
      %904 = vdwg.mxu0
      %v905 = vadd.f32 %v826, %v892
      %v906 = vadd.f32 %v827, %v895
      %v907 = vadd.f32 %v828, %v900
      %v908 = vld [vmem:[%s2] sm:$0x1]
      %v910 = vlaneseq
      %v911 = vshrl.u32 %v910, 7
      %v912 = vsub.s32 0, %v911
      %v913 = vrot.slane %v908, %v912
      %v915 = vadd.f32 %v905, %v913
      %v916 = vadd.f32 %v906, %v913
      %v917 = vadd.f32 %v907, %v913
      %v918 = vmax.f32 %v915, 0.0
      %v919 = vmax.f32 %v916, 0.0
      %v920 = vmax.f32 %v917, 0.0
      %v921 = vpack.c.bf16 %v919, %v918
      %v922 = vpack.c.bf16 %v920, %v920
      %v925 = vunpack.c.l.b16 %v921
      %v926 = vunpack.c.h.b16 %v921
      %v927 = vunpack.c.l.b16 %v922
      %v928 = vpack.c.b16 %v925, %v925
      %v929 = vpack.c.b16 %v926, %v926
      %v930 = vpack.c.b16 %v927, %v927
      %934 = vst [vmem:[%s170] sm:$0xf] %v928
      %935 = vst [vmem:[%s170 + $0x4] sm:$0xf] %v929
      %936 = vst [vmem:[%s170 + $0x8] sm:$0x7] %v930
      %937 = vst [vmem:[%s170 + $0x8] sm:$0x8] 0
      %p938 = scmp.lt.s32.totalorder %s14, 1
      %s939 = scalar_select %p938, %s14, 1
      %s940 = smul.addr %s939, 3
      %s941 = smul.addr %s940, 4
      %s942 = scalar_lea.vmem %s3, %s941
      // Predicated region
      $region33: #{vqvae_forward.16} parent=31 // pred_check
        %p943 = pneg %p100
      $region34: #{vqvae_forward.16} parent=31 // pred_check_branch
        %945 = sbr.rel (%p943) target = $region36
      $region35: #{vqvae_forward.16} parent=31 // pred_region
        _
      $region36: #{vqvae_forward.16} parent=31 // pred_fallthru
        _
    $region32: #{vqvae_forward.16} parent=5 // pred_fallthru
      _
    %p946 = scmp.le.s32.totalorder 2, %s9
    // Predicated region
    $region37: #{vqvae_forward.16} parent=5 // pred_check
      %p947 = pneg %p946
    $region38: #{vqvae_forward.16} parent=5 // pred_check_branch
      %949 = sbr.rel (%p947) target = $region40
    $region39: #{vqvae_forward.16} parent=5 // pred_region
      %s950 = ssub.s32 %s9, 2
      // Predicated region
      $region41: #{vqvae_forward.16} parent=39 // pred_check
        %p951 = pneg %p106
      $region42: #{vqvae_forward.16} parent=39 // pred_check_branch
        %953 = sbr.rel (%p951) target = $region44
      $region43: #{vqvae_forward.16} parent=39 // pred_region
        %p954 = scmp.lt.s32.totalorder %s15, 1
        %s955 = scalar_select %p954, %s15, 1
        %s956 = smul.addr %s955, 3
        %s957 = smul.addr %s956, 4
        %s958 = scalar_lea.vmem %s3, %s957
      $region44: #{vqvae_forward.16} parent=39 // pred_fallthru
        _
    $region40: #{vqvae_forward.16} parent=5 // pred_fallthru
      _
  $region6: #{vqvae_forward.16} parent=0 // loop_footer
    %s13 = sadd.s32 1, %s9
  $region7: #{vqvae_forward.16} parent=0 // loop_footer_branch
    %8 = sbr.rel target = $region3
  $region8: #{vqvae_forward.16} parent=0 // loop_exit
    _

// kernel: tile.28
$region0: #{tile.28}
  #allocation0 [shape = 's32[1]{0}', space=sflag, size = 0x4, scoped, tag = 'scoped memory for tile.28']
  %s0 = inlined_call_operand.vmem [shape: f32[3], index: 0, kind: input, shape index: {}]
  %s1 = inlined_call_operand.vmem [shape: f32[4,3], index: 1, kind: output, shape index: {}]
  // Predicated region
  $region2: #{tile.28} parent=0 // pred_check
    _
  $region3: #{tile.28} parent=0 // pred_check_branch
    %3 = sbr.rel (0) target = $region5
  $region4: #{tile.28} parent=0 // pred_region
    _
  $region5: #{tile.28} parent=0 // pred_fallthru
    _
  %v4 = vld [vmem:[%s0] ss:$0 sm:$0xff]
  %5 = vst [vmem:[%s1] sm:$0xf] %v4

// kernel: tile.29
$region0: #{tile.29}
  %s0 = inlined_call_operand.vmem [shape: f32[4,3], index: 0, kind: input, shape index: {}]
  %s1 = inlined_call_operand.vmem [shape: f32[1,12], index: 1, kind: output, shape index: {}]
  $region1: #{tile.29} parent=0
    #allocation0 [shape = 'u8[4096]{0}', space=vmem, size = 0x1000, scoped, tag = 'scoped mem for output reshape']
    #allocation1 [shape = 'u8[4096]{0}', space=vmem, size = 0x1000, scoped, tag = 'scoped mem for input reshape']
    %s3 = sshll.u32 1, 4
    %s4 = ssub.s32 %s3, 1
    %v5 = vld [vmem:[%s0] sm:%s4]
    %6 = vst [vmem:[#allocation1] sm:%s4] %v5
    %v7 = vld [vmem:[#allocation1] sm:$0x1]
    %vm8 = vcmask 23552
    %9 = vst.msk [vmem:[#allocation0] sm:$0x1] %vm8, %v7
    %s10 = scalar_lea.vmem [#allocation1], 3
    %v11 = vld [vmem:[%s10] sm:$0x1]
    %12 = vrot.lane.b32.xlu0 %v11, 9
    %v13 = vpop.permute.xlu0 %12
    %vm14 = vcmask 97352
    %15 = vst.msk [vmem:[#allocation0] sm:$0x1] %vm14, %v13
    %s16 = scalar_lea.vmem [#allocation1], 2
    %v17 = vld [vmem:[%s16] sm:$0x1]
    %18 = vrot.lane.b32.xlu0 %v17, 6
    %v19 = vpop.permute.xlu0 %18
    %vm20 = vcmask 72752
    %21 = vst.msk [vmem:[#allocation0] sm:$0x1] %vm20, %v19
    %s22 = scalar_lea.vmem [#allocation1], 1
    %v23 = vld [vmem:[%s22] sm:$0x1]
    %24 = vrot.lane.b32.xlu0 %v23, 3
    %v25 = vpop.permute.xlu0 %24
    %vm26 = vcmask 48152
    %27 = vst.msk [vmem:[#allocation0] sm:$0x1] %vm26, %v25
    %s29 = sshll.u32 1, 1
    %s30 = ssub.s32 %s29, 1
    %v32 = vld [vmem:[#allocation0] sm:%s30]
    %s33 = sshll.u32 1, 1
    %s34 = ssub.s32 %s33, 1
    %35 = vst [vmem:[%s1] sm:%s34] %v32

// kernel: vqvae_forward.17
$region0: #{vqvae_forward.17}
  #allocation0 [shape = 'u32[]', space=smem, size = 0x4, offset = 0x4, fixed_abs, tag = 'smem constant byte address 0x4 - core index']
  #allocation1 [shape = 'u32[144,128]{1,0:T(1,128)}', space=vmem, size = 0x12000, scoped, tag = 'internal scratch']
  %s0 = inlined_call_operand.vmem [shape: bf16[2,100,32], index: 0, kind: input, shape index: {}]
  %s1 = inlined_call_operand.vmem [shape: bf16[288,128], index: 1, kind: input, shape index: {}]
  %s2 = inlined_call_operand.vmem [shape: f32[1,128], index: 2, kind: input, shape index: {}]
  %s3 = inlined_call_operand.vmem [shape: f32[2,80,128], index: 3, kind: output, shape index: {}]
  %s4 = sld [smem:[#allocation0]]
  $region45: #{vqvae_forward.17} parent=0
    _
  %s6 = ssub.s32 1, %s4
  %s7 = scalar_select 0, %s6, %s4
  loop: start=0, step=1, limit=4
  $region2: #{vqvae_forward.17} parent=0 // loop_pre_header
    _
  $region3: #{vqvae_forward.17} parent=0 // loop_header
    %s9 = sphi 0, %s13
    %p10 = scmp.ge.s32.totalorder %s9, 4
    %s19 = sphi 0, %s21
    %s22 = sphi 0, %s19
    %s23 = sphi 0, %s22
    %s39 = sphi 0, %s23
    %s43 = sphi 0, %s43
    %s45 = sphi 0, %s43
    %s46 = sphi 0, %s45
    %s60 = sphi 0, %s46
    %s64 = sphi 0, %s64
    %s66 = sphi 0, %s64
    %s67 = sphi 0, %s66
    %s81 = sphi 0, %s67
    %s87 = sphi 0, %s89
    %s90 = sphi 0, %s87
    %s91 = sphi 0, %s90
    %s107 = sphi 0, %s91
  $region4: #{vqvae_forward.17} parent=0 // loop_header_branch
    %12 = sbr.rel (%p10) target = $region8
  $region5: #{vqvae_forward.17} parent=0 // loop_body
    %s14 = ssub.s32 %s9, 1
    %s15 = ssub.s32 %s9, 2
    %s16 = sadd.s32 %s9, 1
    %s17 = ssub.s32 %s9, %s16
    %p18 = scmp.eq.s32.totalorder %s17, 0
    %s20 = sadd.s32 %s19, 1
    %s21 = scalar_select %p18, %s19, %s20
    %p24 = pneg %p18
    %p25 = scmp.eq.s32.totalorder %s9, 1
    %p26 = por %p24, %p25
    %p27 = scmp.ne.s32.totalorder %s19, %s22
    %p28 = scmp.eq.s32.totalorder %s9, 0
    %p29 = por %p27, %p28
    %p30 = scmp.ne.s32.totalorder %s19, %s22
    %p31 = scmp.eq.s32.totalorder %s14, 1
    %p32 = por %p30, %p31
    %p33 = scmp.ne.s32.totalorder %s22, %s23
    %p34 = scmp.eq.s32.totalorder %s14, 0
    %p35 = por %p33, %p34
    %p36 = scmp.ne.s32.totalorder %s22, %s23
    %p37 = scmp.eq.s32.totalorder %s15, 1
    %p38 = por %p36, %p37
    %p40 = scmp.ne.s32.totalorder %s23, %s39
    %p41 = scmp.eq.s32.totalorder %s15, 0
    %p42 = por %p40, %p41
    %s44 = sadd.s32 %s43, 1
    %p47 = scmp.eq.s32.totalorder %s9, 1
    %p48 = scmp.ne.s32.totalorder %s43, %s45
    %p49 = scmp.eq.s32.totalorder %s9, 0
    %p50 = por %p48, %p49
    %p51 = scmp.ne.s32.totalorder %s43, %s45
    %p52 = scmp.eq.s32.totalorder %s14, 1
    %p53 = por %p51, %p52
    %p54 = scmp.ne.s32.totalorder %s45, %s46
    %p55 = scmp.eq.s32.totalorder %s14, 0
    %p56 = por %p54, %p55
    %p57 = scmp.ne.s32.totalorder %s45, %s46
    %p58 = scmp.eq.s32.totalorder %s15, 1
    %p59 = por %p57, %p58
    %p61 = scmp.ne.s32.totalorder %s46, %s60
    %p62 = scmp.eq.s32.totalorder %s15, 0
    %p63 = por %p61, %p62
    %s65 = sadd.s32 %s64, 1
    %p68 = scmp.eq.s32.totalorder %s9, 1
    %p69 = scmp.ne.s32.totalorder %s64, %s66
    %p70 = scmp.eq.s32.totalorder %s9, 0
    %p71 = por %p69, %p70
    %p72 = scmp.ne.s32.totalorder %s64, %s66
    %p73 = scmp.eq.s32.totalorder %s14, 1
    %p74 = por %p72, %p73
    %p75 = scmp.ne.s32.totalorder %s66, %s67
    %p76 = scmp.eq.s32.totalorder %s14, 0
    %p77 = por %p75, %p76
    %p78 = scmp.ne.s32.totalorder %s66, %s67
    %p79 = scmp.eq.s32.totalorder %s15, 1
    %p80 = por %p78, %p79
    %p82 = scmp.ne.s32.totalorder %s67, %s81
    %p83 = scmp.eq.s32.totalorder %s15, 0
    %p84 = por %p82, %p83
    %s85 = ssub.s32 %s9, %s16
    %p86 = scmp.eq.s32.totalorder %s85, 0
    %s88 = sadd.s32 %s87, 1
    %s89 = scalar_select %p86, %s87, %s88
    %p92 = pneg %p86
    %p93 = scmp.eq.s32.totalorder %s9, 1
    %p94 = por %p92, %p93
    %p95 = scmp.ne.s32.totalorder %s87, %s90
    %p96 = scmp.eq.s32.totalorder %s9, 0
    %p97 = por %p95, %p96
    %p98 = scmp.ne.s32.totalorder %s87, %s90
    %p99 = scmp.eq.s32.totalorder %s14, 1
    %p100 = por %p98, %p99
    %p101 = scmp.ne.s32.totalorder %s90, %s91
    %p102 = scmp.eq.s32.totalorder %s14, 0
    %p103 = por %p101, %p102
    %p104 = scmp.ne.s32.totalorder %s90, %s91
    %p105 = scmp.eq.s32.totalorder %s15, 1
    %p106 = por %p104, %p105
    %p108 = scmp.ne.s32.totalorder %s91, %s107
    %p109 = scmp.eq.s32.totalorder %s15, 0
    %p110 = por %p108, %p109
    %p111 = scmp.le.s32.totalorder 1, %s9
    %p112 = scmp.lt.s32.totalorder %s9, 3
    %p113 = pnand %p111, %p112
    %p114 = pneg %p113
    // Predicated region
    $region9: #{vqvae_forward.17} parent=5 // pred_check
      _
    $region10: #{vqvae_forward.17} parent=5 // pred_check_branch
      %116 = sbr.rel (%p113) target = $region12
    $region11: #{vqvae_forward.17} parent=5 // pred_region
      %s117 = ssub.s32 %s9, 1
      // Predicated region
      $region13: #{vqvae_forward.17} parent=11 // pred_check
        %p118 = pneg %p56
      $region14: #{vqvae_forward.17} parent=11 // pred_check_branch
        %120 = sbr.rel (%p118) target = $region16
      $region15: #{vqvae_forward.17} parent=11 // pred_region
        _
      $region16: #{vqvae_forward.17} parent=11 // pred_fallthru
        _
      // Predicated region
      $region17: #{vqvae_forward.17} parent=11 // pred_check
        %p121 = pneg %p77
      $region18: #{vqvae_forward.17} parent=11 // pred_check_branch
        %123 = sbr.rel (%p121) target = $region20
      $region19: #{vqvae_forward.17} parent=11 // pred_region
        _
      $region20: #{vqvae_forward.17} parent=11 // pred_fallthru
        _
    $region12: #{vqvae_forward.17} parent=5 // pred_fallthru
      _
    %p124 = scmp.lt.s32.totalorder %s9, 2
    // Predicated region
    $region21: #{vqvae_forward.17} parent=5 // pred_check
      %p125 = pneg %p124
    $region22: #{vqvae_forward.17} parent=5 // pred_check_branch
      %127 = sbr.rel (%p125) target = $region24
    $region23: #{vqvae_forward.17} parent=5 // pred_region
      // Predicated region
      $region25: #{vqvae_forward.17} parent=23 // pred_check
        %p128 = pneg %p29
      $region26: #{vqvae_forward.17} parent=23 // pred_check_branch
        %130 = sbr.rel (%p128) target = $region28
      $region27: #{vqvae_forward.17} parent=23 // pred_region
        %p131 = scmp.lt.s32.totalorder %s9, 1
        %s132 = scalar_select %p131, %s9, 1
        %s133 = smul.addr %s132, 13
        %s134 = smul.addr %s133, 4
        %s135 = scalar_lea.vmem %s0, %s134
      $region28: #{vqvae_forward.17} parent=23 // pred_fallthru
        _
    $region24: #{vqvae_forward.17} parent=5 // pred_fallthru
      _
    %p136 = scmp.le.s32.totalorder 1, %s9
    %p137 = scmp.lt.s32.totalorder %s9, 3
    %p138 = pnand %p136, %p137
    %p139 = pneg %p138
    // Predicated region
    $region29: #{vqvae_forward.17} parent=5 // pred_check
      _
    $region30: #{vqvae_forward.17} parent=5 // pred_check_branch
      %141 = sbr.rel (%p138) target = $region32
    $region31: #{vqvae_forward.17} parent=5 // pred_region
      %s142 = ssub.s32 %s9, 1
      %p143 = scmp.lt.s32.totalorder %s14, 1
      %s144 = scalar_select %p143, %s14, 1
      %s145 = smul.addr %s144, 13
      %s146 = smul.addr %s145, 4
      %s147 = scalar_lea.vmem %s0, %s146
      %p148 = pneg %p35
      %p149 = pneg %p32
      %p150 = pneg %p56
      %p151 = pneg %p53
      %p152 = pneg %p77
      %p153 = pneg %p74
      %p154 = pneg %p103
      %p155 = pneg %p100
      %p156 = scmp.lt.s32.totalorder %s14, 1
      %s157 = scalar_select %p156, %s14, 1
      %s158 = smul.addr %s157, 10
      %s159 = smul.addr %s158, 8
      %s160 = scalar_lea.vmem %s3, %s159
      %p161 = scmp.lt.s32.totalorder %s14, 1
      %s162 = scalar_select %p161, %s14, 1
      %s163 = smul.addr %s162, 13
      %s164 = smul.addr %s163, 4
      %s165 = scalar_lea.vmem %s0, %s164
      %p166 = scmp.lt.s32.totalorder %s14, 1
      %s167 = scalar_select %p166, %s14, 1
      %s168 = smul.addr %s167, 10
      %s169 = smul.addr %s168, 8
      %s170 = scalar_lea.vmem %s3, %s169
      %v172 = vld [vmem:[%s165] sm:$0xf]
      %v173 = vld [vmem:[%s165 + $0x4] sm:$0xf]
      %v174 = vld [vmem:[%s165 + $0x8] sm:$0xf]
      %v175 = vld [vmem:[%s165 + $0xc] sm:$0xf]
      %v176 = vld [vmem:[%s165 + $0x10] sm:$0xf]
      %v177 = vld [vmem:[%s165 + $0x14] sm:$0xf]
      %v178 = vld [vmem:[%s165 + $0x18] sm:$0xf]
      %v179 = vld [vmem:[%s165 + $0x1c] sm:$0xf]
      %v180 = vld [vmem:[%s165 + $0x20] sm:$0xf]
      %v181 = vld [vmem:[%s165 + $0x24] sm:$0xf]
      %v182 = vld [vmem:[%s165 + $0x28] sm:$0xf]
      %v183 = vld [vmem:[%s165 + $0x2c] sm:$0xf]
      %v184 = vld [vmem:[%s165 + $0x30] sm:$0x3]
      %v185 = vld [vmem:[%s1] sm:$0xf]
      %v186 = vld [vmem:[%s1 + $0x4] sm:$0xf]
      %v187 = vld [vmem:[%s1 + $0x8] sm:$0xf]
      %v188 = vld [vmem:[%s1 + $0xc] sm:$0xf]
      %v189 = vld [vmem:[%s1 + $0x10] sm:$0xf]
      %v190 = vld [vmem:[%s1 + $0x14] sm:$0xf]
      %v191 = vld [vmem:[%s1 + $0x18] sm:$0xf]
      %v192 = vld [vmem:[%s1 + $0x1c] sm:$0xf]
      %v203 = vunpack.c.l.b16 %v172
      %v204 = vunpack.c.l.b16 %v173
      %v205 = vunpack.c.l.b16 %v174
      %v206 = vunpack.c.l.b16 %v175
      %v207 = vunpack.c.l.b16 %v176
      %v208 = vunpack.c.l.b16 %v177
      %v209 = vunpack.c.l.b16 %v178
      %v210 = vunpack.c.l.b16 %v179
      %v211 = vunpack.c.l.b16 %v180
      %v212 = vunpack.c.l.b16 %v181
      %v213 = vpack.c.b16 %v204, %v203
      %v214 = vpack.c.b16 %v206, %v205
      %v215 = vpack.c.b16 %v208, %v207
      %v216 = vpack.c.b16 %v210, %v209
      %v217 = vpack.c.b16 %v212, %v211
      %vm218 = vsmask.f32 7424
      %v220 = vshrl.u32 %v213, 16
      %v222 = vshll.u32 %v213, 16
      %v224 = vrot.slane %v222, 1
      %v225 = vor.u32 %v220, %v224
      %v227 = vshll.u32 %v214, 16
      %v229 = vrot.slane %v227, 1
      %v230 = vsel %vm218, %v225, %v229
      %v231 = vshrl.u32 %v214, 16
      %v233 = vor.u32 %v231, %v229
      %v235 = vshll.u32 %v215, 16
      %v237 = vrot.slane %v235, 1
      %v238 = vsel %vm218, %v233, %v237
      %v239 = vshrl.u32 %v215, 16
      %v241 = vor.u32 %v239, %v237
      %v243 = vshll.u32 %v216, 16
      %v245 = vrot.slane %v243, 1
      %v246 = vsel %vm218, %v241, %v245
      %v247 = vshrl.u32 %v216, 16
      %v249 = vor.u32 %v247, %v245
      %v251 = vshll.u32 %v217, 16
      %v253 = vrot.slane %v251, 1
      %v254 = vsel %vm218, %v249, %v253
      %v255 = vshrl.u32 %v217, 16
      %v257 = vor.u32 %v255, %v253
      %v262 = vunpack.c.l.b16 %v189
      %v263 = vunpack.c.l.b16 %v190
      %v264 = vunpack.c.l.b16 %v191
      %v265 = vunpack.c.l.b16 %v192
      %v266 = vpack.c.b16 %v263, %v262
      %v267 = vpack.c.b16 %v265, %v264
      %vm270 = vcmask 261120
      %v272 = vsel %vm270, %v230, 0
      %v275 = vsel %vm270, %v238, 0
      %v278 = vsel %vm270, %v246, 0
      %v281 = vsel %vm270, %v254, 0
      %v284 = vsel %vm270, %v257, 0
      %286 = vmatprep.subr.bf16.mxu0 0
      %287 = vmatpush1.bf16.msra.mxu0 0
      %288 = vmatprep.subr.bf16.mxu0 0
      %289 = vmatpush1.bf16.msra.mxu0 0
      %290 = vmatprep.subr.bf16.mxu0 0
      %291 = vmatpush1.bf16.msra.mxu0 0
      %292 = vmatprep.subr.bf16.mxu0 0
      %293 = vmatpush1.bf16.msra.mxu0 0
      %294 = vmatprep.subr.bf16.mxu0 0
      %295 = vmatpush1.bf16.msra.mxu0 0
      %296 = vmatprep.subr.bf16.mxu0 0
      %297 = vmatpush1.bf16.msra.mxu0 0
      %298 = vmatprep.subr.bf16.mxu0 0
      %299 = vmatpush1.bf16.msra.mxu0 %v267
      %300 = vmatprep.subr.bf16.mxu0 0
      %301 = vmatpush1.bf16.msra.mxu0 %v266
      %302 = vmatprep.subr.bf16.mxu0 0
      %303 = vmatpush2.bf16.msra.mxu0 0
      %304 = vmatprep.subr.bf16.mxu0 0
      %305 = vmatpush2.bf16.msra.mxu0 0
      %306 = vmatprep.subr.bf16.mxu0 0
      %307 = vmatpush2.bf16.msra.mxu0 0
      %308 = vmatprep.subr.bf16.mxu0 0
      %309 = vmatpush2.bf16.msra.mxu0 0
      %310 = vmatprep.subr.bf16.mxu0 0
      %311 = vmatpush2.bf16.msra.mxu0 0
      %312 = vmatprep.subr.bf16.mxu0 0
      %313 = vmatpush2.bf16.msra.mxu0 0
      %314 = vmatprep.subr.bf16.mxu0 0
      %315 = vmatpush2.bf16.msra.mxu0 0
      %316 = vmatprep.subr.bf16.mxu0 0
      %317 = vmatpush2.bf16.msra.mxu0 0
      %318 = vmatprep.mubr.bf16.mxu0 0
      %319 = vmatmul.mubr.bf16.gmra.mxu0 %v272
      %v320 = vpop.f32.mrf.mxu0
      %v321 = vadd.f32 0.0, %v320
      %v322 = vpop.f32.mrf.mxu0
      %v323 = vpop.f32.mrf.mxu0
      %v324 = vadd.f32 0.0, %v323
      %v325 = vpop.f32.mrf.mxu0
      %326 = vmatprep.mubr.bf16.mxu0 0
      %327 = vmatmul.mubr.bf16.gmra.mxu0 %v275
      %v328 = vpop.f32.mrf.mxu0
      %v329 = vadd.f32 0.0, %v328
      %v330 = vpop.f32.mrf.mxu0
      %v331 = vpop.f32.mrf.mxu0
      %v332 = vadd.f32 0.0, %v331
      %v333 = vpop.f32.mrf.mxu0
      %334 = vmatprep.mubr.bf16.mxu0 0
      %335 = vmatmul.mubr.bf16.gmra.mxu0 %v278
      %v336 = vpop.f32.mrf.mxu0
      %v337 = vadd.f32 0.0, %v336
      %v338 = vpop.f32.mrf.mxu0
      %v339 = vpop.f32.mrf.mxu0
      %v340 = vadd.f32 0.0, %v339
      %v341 = vpop.f32.mrf.mxu0
      %342 = vmatprep.mubr.bf16.mxu0 0
      %343 = vmatmul.mubr.bf16.gmra.mxu0 %v281
      %v344 = vpop.f32.mrf.mxu0
      %v345 = vadd.f32 0.0, %v344
      %v346 = vpop.f32.mrf.mxu0
      %v347 = vpop.f32.mrf.mxu0
      %v348 = vadd.f32 0.0, %v347
      %v349 = vpop.f32.mrf.mxu0
      %350 = vmatprep.mubr.bf16.mxu0 0
      %351 = vmatmul.mubr.bf16.gmra.mxu0 %v284
      %v352 = vpop.f32.mrf.mxu0
      %v353 = vadd.f32 0.0, %v352
      %v354 = vpop.f32.mrf.mxu0
      %v355 = vpop.f32.mrf.mxu0
      %v356 = vadd.f32 0.0, %v355
      %v357 = vpop.f32.mrf.mxu0
      %358 = vdwg.mxu0
      %v363 = vunpack.c.l.b16 %v185
      %v364 = vunpack.c.l.b16 %v186
      %v365 = vunpack.c.l.b16 %v187
      %v366 = vunpack.c.l.b16 %v188
      %v367 = vpack.c.b16 %v364, %v363
      %v368 = vpack.c.b16 %v366, %v365
      %v371 = vsel %vm270, %v213, 0
      %v373 = vsel %vm270, %v214, 0
      %v375 = vsel %vm270, %v215, 0
      %v377 = vsel %vm270, %v216, 0
      %v379 = vsel %vm270, %v217, 0
      %381 = vmatprep.subr.bf16.mxu0 0
      %382 = vmatpush1.bf16.msra.mxu0 0
      %383 = vmatprep.subr.bf16.mxu0 0
      %384 = vmatpush1.bf16.msra.mxu0 0
      %385 = vmatprep.subr.bf16.mxu0 0
      %386 = vmatpush1.bf16.msra.mxu0 0
      %387 = vmatprep.subr.bf16.mxu0 0
      %388 = vmatpush1.bf16.msra.mxu0 0
      %389 = vmatprep.subr.bf16.mxu0 0
      %390 = vmatpush1.bf16.msra.mxu0 0
      %391 = vmatprep.subr.bf16.mxu0 0
      %392 = vmatpush1.bf16.msra.mxu0 0
      %393 = vmatprep.subr.bf16.mxu0 0
      %394 = vmatpush1.bf16.msra.mxu0 %v368
      %395 = vmatprep.subr.bf16.mxu0 0
      %396 = vmatpush1.bf16.msra.mxu0 %v367
      %397 = vmatprep.subr.bf16.mxu0 0
      %398 = vmatpush2.bf16.msra.mxu0 0
      %399 = vmatprep.subr.bf16.mxu0 0
      %400 = vmatpush2.bf16.msra.mxu0 0
      %401 = vmatprep.subr.bf16.mxu0 0
      %402 = vmatpush2.bf16.msra.mxu0 0
      %403 = vmatprep.subr.bf16.mxu0 0
      %404 = vmatpush2.bf16.msra.mxu0 0
      %405 = vmatprep.subr.bf16.mxu0 0
      %406 = vmatpush2.bf16.msra.mxu0 0
      %407 = vmatprep.subr.bf16.mxu0 0
      %408 = vmatpush2.bf16.msra.mxu0 0
      %409 = vmatprep.subr.bf16.mxu0 0
      %410 = vmatpush2.bf16.msra.mxu0 0
      %411 = vmatprep.subr.bf16.mxu0 0
      %412 = vmatpush2.bf16.msra.mxu0 0
      %413 = vmatprep.mubr.bf16.mxu0 0
      %414 = vmatmul.mubr.bf16.gmra.mxu0 %v371
      %v415 = vpop.f32.mrf.mxu0
      %v416 = vadd.f32 %v321, %v415
      %v417 = vpop.f32.mrf.mxu0
      %v418 = vpop.f32.mrf.mxu0
      %v419 = vadd.f32 %v324, %v418
      %v420 = vpop.f32.mrf.mxu0
      %421 = vmatprep.mubr.bf16.mxu0 0
      %422 = vmatmul.mubr.bf16.gmra.mxu0 %v373
      %v423 = vpop.f32.mrf.mxu0
      %v424 = vadd.f32 %v329, %v423
      %v425 = vpop.f32.mrf.mxu0
      %v426 = vpop.f32.mrf.mxu0
      %v427 = vadd.f32 %v332, %v426
      %v428 = vpop.f32.mrf.mxu0
      %429 = vmatprep.mubr.bf16.mxu0 0
      %430 = vmatmul.mubr.bf16.gmra.mxu0 %v375
      %v431 = vpop.f32.mrf.mxu0
      %v432 = vadd.f32 %v337, %v431
      %v433 = vpop.f32.mrf.mxu0
      %v434 = vpop.f32.mrf.mxu0
      %v435 = vadd.f32 %v340, %v434
      %v436 = vpop.f32.mrf.mxu0
      %437 = vmatprep.mubr.bf16.mxu0 0
      %438 = vmatmul.mubr.bf16.gmra.mxu0 %v377
      %v439 = vpop.f32.mrf.mxu0
      %v440 = vadd.f32 %v345, %v439
      %v441 = vpop.f32.mrf.mxu0
      %v442 = vpop.f32.mrf.mxu0
      %v443 = vadd.f32 %v348, %v442
      %v444 = vpop.f32.mrf.mxu0
      %445 = vmatprep.mubr.bf16.mxu0 0
      %446 = vmatmul.mubr.bf16.gmra.mxu0 %v379
      %v447 = vpop.f32.mrf.mxu0
      %v448 = vadd.f32 %v353, %v447
      %v449 = vpop.f32.mrf.mxu0
      %v450 = vpop.f32.mrf.mxu0
      %v451 = vadd.f32 %v356, %v450
      %v452 = vpop.f32.mrf.mxu0
      %453 = vdwg.mxu0
      %v454 = vld [vmem:[%s1 + $0x20] sm:$0xf]
      %v455 = vld [vmem:[%s1 + $0x24] sm:$0xf]
      %v456 = vld [vmem:[%s1 + $0x28] sm:$0xf]
      %v457 = vld [vmem:[%s1 + $0x2c] sm:$0xf]
      %vm458 = vcmask 1046528
      %v459 = vrot.slane %v213, 1
      %v460 = vrot.slane %v214, 1
      %v461 = vsel %vm458, %v459, %v460
      %v462 = vrot.slane %v215, 1
      %v463 = vsel %vm458, %v460, %v462
      %v464 = vrot.slane %v216, 1
      %v465 = vsel %vm458, %v462, %v464
      %v466 = vrot.slane %v217, 1
      %v467 = vsel %vm458, %v464, %v466
      %v472 = vunpack.c.l.b16 %v454
      %v473 = vunpack.c.l.b16 %v455
      %v474 = vunpack.c.l.b16 %v456
      %v475 = vunpack.c.l.b16 %v457
      %v476 = vpack.c.b16 %v473, %v472
      %v477 = vpack.c.b16 %v475, %v474
      %v481 = vsel %vm270, %v461, 0
      %v484 = vsel %vm270, %v463, 0
      %v487 = vsel %vm270, %v465, 0
      %v490 = vsel %vm270, %v467, 0
      %v493 = vsel %vm270, %v466, 0
      %495 = vmatprep.subr.bf16.mxu0 0
      %496 = vmatpush1.bf16.msra.mxu0 0
      %497 = vmatprep.subr.bf16.mxu0 0
      %498 = vmatpush1.bf16.msra.mxu0 0
      %499 = vmatprep.subr.bf16.mxu0 0
      %500 = vmatpush1.bf16.msra.mxu0 0
      %501 = vmatprep.subr.bf16.mxu0 0
      %502 = vmatpush1.bf16.msra.mxu0 0
      %503 = vmatprep.subr.bf16.mxu0 0
      %504 = vmatpush1.bf16.msra.mxu0 0
      %505 = vmatprep.subr.bf16.mxu0 0
      %506 = vmatpush1.bf16.msra.mxu0 0
      %507 = vmatprep.subr.bf16.mxu0 0
      %508 = vmatpush1.bf16.msra.mxu0 %v477
      %509 = vmatprep.subr.bf16.mxu0 0
      %510 = vmatpush1.bf16.msra.mxu0 %v476
      %511 = vmatprep.subr.bf16.mxu0 0
      %512 = vmatpush2.bf16.msra.mxu0 0
      %513 = vmatprep.subr.bf16.mxu0 0
      %514 = vmatpush2.bf16.msra.mxu0 0
      %515 = vmatprep.subr.bf16.mxu0 0
      %516 = vmatpush2.bf16.msra.mxu0 0
      %517 = vmatprep.subr.bf16.mxu0 0
      %518 = vmatpush2.bf16.msra.mxu0 0
      %519 = vmatprep.subr.bf16.mxu0 0
      %520 = vmatpush2.bf16.msra.mxu0 0
      %521 = vmatprep.subr.bf16.mxu0 0
      %522 = vmatpush2.bf16.msra.mxu0 0
      %523 = vmatprep.subr.bf16.mxu0 0
      %524 = vmatpush2.bf16.msra.mxu0 0
      %525 = vmatprep.subr.bf16.mxu0 0
      %526 = vmatpush2.bf16.msra.mxu0 0
      %527 = vmatprep.mubr.bf16.mxu0 0
      %528 = vmatmul.mubr.bf16.gmra.mxu0 %v481
      %v529 = vpop.f32.mrf.mxu0
      %v530 = vadd.f32 0.0, %v529
      %v531 = vpop.f32.mrf.mxu0
      %v532 = vpop.f32.mrf.mxu0
      %v533 = vadd.f32 0.0, %v532
      %v534 = vpop.f32.mrf.mxu0
      %535 = vmatprep.mubr.bf16.mxu0 0
      %536 = vmatmul.mubr.bf16.gmra.mxu0 %v484
      %v537 = vpop.f32.mrf.mxu0
      %v538 = vadd.f32 0.0, %v537
      %v539 = vpop.f32.mrf.mxu0
      %v540 = vpop.f32.mrf.mxu0
      %v541 = vadd.f32 0.0, %v540
      %v542 = vpop.f32.mrf.mxu0
      %543 = vmatprep.mubr.bf16.mxu0 0
      %544 = vmatmul.mubr.bf16.gmra.mxu0 %v487
      %v545 = vpop.f32.mrf.mxu0
      %v546 = vadd.f32 0.0, %v545
      %v547 = vpop.f32.mrf.mxu0
      %v548 = vpop.f32.mrf.mxu0
      %v549 = vadd.f32 0.0, %v548
      %v550 = vpop.f32.mrf.mxu0
      %551 = vmatprep.mubr.bf16.mxu0 0
      %552 = vmatmul.mubr.bf16.gmra.mxu0 %v490
      %v553 = vpop.f32.mrf.mxu0
      %v554 = vadd.f32 0.0, %v553
      %v555 = vpop.f32.mrf.mxu0
      %v556 = vpop.f32.mrf.mxu0
      %v557 = vadd.f32 0.0, %v556
      %v558 = vpop.f32.mrf.mxu0
      %559 = vmatprep.mubr.bf16.mxu0 0
      %560 = vmatmul.mubr.bf16.gmra.mxu0 %v493
      %v561 = vpop.f32.mrf.mxu0
      %v562 = vadd.f32 0.0, %v561
      %v563 = vpop.f32.mrf.mxu0
      %v564 = vpop.f32.mrf.mxu0
      %v565 = vadd.f32 0.0, %v564
      %v566 = vpop.f32.mrf.mxu0
      %567 = vdwg.mxu0
      %v568 = vadd.f32 %v416, %v530
      %v569 = vadd.f32 %v419, %v533
      %v570 = vadd.f32 %v424, %v538
      %v571 = vadd.f32 %v427, %v541
      %v572 = vadd.f32 %v432, %v546
      %v573 = vadd.f32 %v435, %v549
      %v574 = vadd.f32 %v440, %v554
      %v575 = vadd.f32 %v443, %v557
      %v576 = vadd.f32 %v448, %v562
      %v577 = vadd.f32 %v451, %v565
      %v578 = vld [vmem:[%s1 + $0x30] sm:$0xf]
      %v579 = vld [vmem:[%s1 + $0x34] sm:$0xf]
      %v580 = vld [vmem:[%s1 + $0x38] sm:$0xf]
      %v581 = vld [vmem:[%s1 + $0x3c] sm:$0xf]
      %v583 = vunpack.c.l.b16 %v182
      %v584 = vpack.c.b16 %v205, %v204
      %v585 = vpack.c.b16 %v207, %v206
      %v586 = vpack.c.b16 %v209, %v208
      %v587 = vpack.c.b16 %v211, %v210
      %v588 = vpack.c.b16 %v583, %v212
      %v589 = vrot.slane %v584, 1
      %v590 = vrot.slane %v585, 1
      %v591 = vsel %vm458, %v589, %v590
      %v592 = vrot.slane %v586, 1
      %v593 = vsel %vm458, %v590, %v592
      %v594 = vrot.slane %v587, 1
      %v595 = vsel %vm458, %v592, %v594
      %v596 = vrot.slane %v588, 1
      %v597 = vsel %vm458, %v594, %v596
      %v602 = vunpack.c.l.b16 %v578
      %v603 = vunpack.c.l.b16 %v579
      %v604 = vunpack.c.l.b16 %v580
      %v605 = vunpack.c.l.b16 %v581
      %v606 = vpack.c.b16 %v603, %v602
      %v607 = vpack.c.b16 %v605, %v604
      %v611 = vsel %vm270, %v591, 0
      %v614 = vsel %vm270, %v593, 0
      %v617 = vsel %vm270, %v595, 0
      %v620 = vsel %vm270, %v597, 0
      %v623 = vsel %vm270, %v596, 0
      %625 = vmatprep.subr.bf16.mxu0 0
      %626 = vmatpush1.bf16.msra.mxu0 0
      %627 = vmatprep.subr.bf16.mxu0 0
      %628 = vmatpush1.bf16.msra.mxu0 0
      %629 = vmatprep.subr.bf16.mxu0 0
      %630 = vmatpush1.bf16.msra.mxu0 0
      %631 = vmatprep.subr.bf16.mxu0 0
      %632 = vmatpush1.bf16.msra.mxu0 0
      %633 = vmatprep.subr.bf16.mxu0 0
      %634 = vmatpush1.bf16.msra.mxu0 0
      %635 = vmatprep.subr.bf16.mxu0 0
      %636 = vmatpush1.bf16.msra.mxu0 0
      %637 = vmatprep.subr.bf16.mxu0 0
      %638 = vmatpush1.bf16.msra.mxu0 %v607
      %639 = vmatprep.subr.bf16.mxu0 0
      %640 = vmatpush1.bf16.msra.mxu0 %v606
      %641 = vmatprep.subr.bf16.mxu0 0
      %642 = vmatpush2.bf16.msra.mxu0 0
      %643 = vmatprep.subr.bf16.mxu0 0
      %644 = vmatpush2.bf16.msra.mxu0 0
      %645 = vmatprep.subr.bf16.mxu0 0
      %646 = vmatpush2.bf16.msra.mxu0 0
      %647 = vmatprep.subr.bf16.mxu0 0
      %648 = vmatpush2.bf16.msra.mxu0 0
      %649 = vmatprep.subr.bf16.mxu0 0
      %650 = vmatpush2.bf16.msra.mxu0 0
      %651 = vmatprep.subr.bf16.mxu0 0
      %652 = vmatpush2.bf16.msra.mxu0 0
      %653 = vmatprep.subr.bf16.mxu0 0
      %654 = vmatpush2.bf16.msra.mxu0 0
      %655 = vmatprep.subr.bf16.mxu0 0
      %656 = vmatpush2.bf16.msra.mxu0 0
      %657 = vmatprep.mubr.bf16.mxu0 0
      %658 = vmatmul.mubr.bf16.gmra.mxu0 %v611
      %v659 = vpop.f32.mrf.mxu0
      %v660 = vadd.f32 0.0, %v659
      %v661 = vpop.f32.mrf.mxu0
      %v662 = vpop.f32.mrf.mxu0
      %v663 = vadd.f32 0.0, %v662
      %v664 = vpop.f32.mrf.mxu0
      %665 = vmatprep.mubr.bf16.mxu0 0
      %666 = vmatmul.mubr.bf16.gmra.mxu0 %v614
      %v667 = vpop.f32.mrf.mxu0
      %v668 = vadd.f32 0.0, %v667
      %v669 = vpop.f32.mrf.mxu0
      %v670 = vpop.f32.mrf.mxu0
      %v671 = vadd.f32 0.0, %v670
      %v672 = vpop.f32.mrf.mxu0
      %673 = vmatprep.mubr.bf16.mxu0 0
      %674 = vmatmul.mubr.bf16.gmra.mxu0 %v617
      %v675 = vpop.f32.mrf.mxu0
      %v676 = vadd.f32 0.0, %v675
      %v677 = vpop.f32.mrf.mxu0
      %v678 = vpop.f32.mrf.mxu0
      %v679 = vadd.f32 0.0, %v678
      %v680 = vpop.f32.mrf.mxu0
      %681 = vmatprep.mubr.bf16.mxu0 0
      %682 = vmatmul.mubr.bf16.gmra.mxu0 %v620
      %v683 = vpop.f32.mrf.mxu0
      %v684 = vadd.f32 0.0, %v683
      %v685 = vpop.f32.mrf.mxu0
      %v686 = vpop.f32.mrf.mxu0
      %v687 = vadd.f32 0.0, %v686
      %v688 = vpop.f32.mrf.mxu0
      %689 = vmatprep.mubr.bf16.mxu0 0
      %690 = vmatmul.mubr.bf16.gmra.mxu0 %v623
      %v691 = vpop.f32.mrf.mxu0
      %v692 = vadd.f32 0.0, %v691
      %v693 = vpop.f32.mrf.mxu0
      %v694 = vpop.f32.mrf.mxu0
      %v695 = vadd.f32 0.0, %v694
      %v696 = vpop.f32.mrf.mxu0
      %697 = vdwg.mxu0
      %v698 = vadd.f32 %v568, %v660
      %v699 = vadd.f32 %v569, %v663
      %v700 = vadd.f32 %v570, %v668
      %v701 = vadd.f32 %v571, %v671
      %v702 = vadd.f32 %v572, %v676
      %v703 = vadd.f32 %v573, %v679
      %v704 = vadd.f32 %v574, %v684
      %v705 = vadd.f32 %v575, %v687
      %v706 = vadd.f32 %v576, %v692
      %v707 = vadd.f32 %v577, %v695
      %v708 = vld [vmem:[%s1 + $0x40] sm:$0xf]
      %v709 = vld [vmem:[%s1 + $0x44] sm:$0xf]
      %v710 = vld [vmem:[%s1 + $0x48] sm:$0xf]
      %v711 = vld [vmem:[%s1 + $0x4c] sm:$0xf]
      %v713 = vunpack.c.l.b16 %v183
      %v714 = vpack.c.b16 %v713, %v713
      %vm715 = vsmask.f32 6400
      %v717 = vshrl.u32 %v584, 16
      %v719 = vrot.slane %v717, 1
      %v720 = vshll.u32 %v584, 16
      %v722 = vrot.slane %v720, 2
      %v723 = vor.u32 %v719, %v722
      %v725 = vshrl.u32 %v585, 16
      %v727 = vrot.slane %v725, 1
      %v728 = vshll.u32 %v585, 16
      %v730 = vrot.slane %v728, 2
      %v731 = vor.u32 %v727, %v730
      %v732 = vsel %vm715, %v723, %v731
      %v734 = vshrl.u32 %v586, 16
      %v736 = vrot.slane %v734, 1
      %v737 = vshll.u32 %v586, 16
      %v739 = vrot.slane %v737, 2
      %v740 = vor.u32 %v736, %v739
      %v741 = vsel %vm715, %v731, %v740
      %v743 = vshrl.u32 %v587, 16
      %v745 = vrot.slane %v743, 1
      %v746 = vshll.u32 %v587, 16
      %v748 = vrot.slane %v746, 2
      %v749 = vor.u32 %v745, %v748
      %v750 = vsel %vm715, %v740, %v749
      %v752 = vshrl.u32 %v588, 16
      %v754 = vrot.slane %v752, 1
      %v755 = vshll.u32 %v588, 16
      %v757 = vrot.slane %v755, 2
      %v758 = vor.u32 %v754, %v757
      %v759 = vsel %vm715, %v749, %v758
      %v761 = vshll.u32 %v714, 16
      %v763 = vrot.slane %v761, 2
      %v764 = vsel %vm715, %v758, %v763
      %v769 = vunpack.c.l.b16 %v708
      %v770 = vunpack.c.l.b16 %v709
      %v771 = vunpack.c.l.b16 %v710
      %v772 = vunpack.c.l.b16 %v711
      %v773 = vpack.c.b16 %v770, %v769
      %v774 = vpack.c.b16 %v772, %v771
      %v778 = vsel %vm270, %v732, 0
      %v781 = vsel %vm270, %v741, 0
      %v784 = vsel %vm270, %v750, 0
      %v787 = vsel %vm270, %v759, 0
      %v790 = vsel %vm270, %v764, 0
      %792 = vmatprep.subr.bf16.mxu0 0
      %793 = vmatpush1.bf16.msra.mxu0 0
      %794 = vmatprep.subr.bf16.mxu0 0
      %795 = vmatpush1.bf16.msra.mxu0 0
      %796 = vmatprep.subr.bf16.mxu0 0
      %797 = vmatpush1.bf16.msra.mxu0 0
      %798 = vmatprep.subr.bf16.mxu0 0
      %799 = vmatpush1.bf16.msra.mxu0 0
      %800 = vmatprep.subr.bf16.mxu0 0
      %801 = vmatpush1.bf16.msra.mxu0 0
      %802 = vmatprep.subr.bf16.mxu0 0
      %803 = vmatpush1.bf16.msra.mxu0 0
      %804 = vmatprep.subr.bf16.mxu0 0
      %805 = vmatpush1.bf16.msra.mxu0 %v774
      %806 = vmatprep.subr.bf16.mxu0 0
      %807 = vmatpush1.bf16.msra.mxu0 %v773
      %808 = vmatprep.subr.bf16.mxu0 0
      %809 = vmatpush2.bf16.msra.mxu0 0
      %810 = vmatprep.subr.bf16.mxu0 0
      %811 = vmatpush2.bf16.msra.mxu0 0
      %812 = vmatprep.subr.bf16.mxu0 0
      %813 = vmatpush2.bf16.msra.mxu0 0
      %814 = vmatprep.subr.bf16.mxu0 0
      %815 = vmatpush2.bf16.msra.mxu0 0
      %816 = vmatprep.subr.bf16.mxu0 0
      %817 = vmatpush2.bf16.msra.mxu0 0
      %818 = vmatprep.subr.bf16.mxu0 0
      %819 = vmatpush2.bf16.msra.mxu0 0
      %820 = vmatprep.subr.bf16.mxu0 0
      %821 = vmatpush2.bf16.msra.mxu0 0
      %822 = vmatprep.subr.bf16.mxu0 0
      %823 = vmatpush2.bf16.msra.mxu0 0
      %824 = vmatprep.mubr.bf16.mxu0 0
      %825 = vmatmul.mubr.bf16.gmra.mxu0 %v778
      %v826 = vpop.f32.mrf.mxu0
      %v827 = vadd.f32 0.0, %v826
      %v828 = vpop.f32.mrf.mxu0
      %v829 = vpop.f32.mrf.mxu0
      %v830 = vadd.f32 0.0, %v829
      %v831 = vpop.f32.mrf.mxu0
      %832 = vmatprep.mubr.bf16.mxu0 0
      %833 = vmatmul.mubr.bf16.gmra.mxu0 %v781
      %v834 = vpop.f32.mrf.mxu0
      %v835 = vadd.f32 0.0, %v834
      %v836 = vpop.f32.mrf.mxu0
      %v837 = vpop.f32.mrf.mxu0
      %v838 = vadd.f32 0.0, %v837
      %v839 = vpop.f32.mrf.mxu0
      %840 = vmatprep.mubr.bf16.mxu0 0
      %841 = vmatmul.mubr.bf16.gmra.mxu0 %v784
      %v842 = vpop.f32.mrf.mxu0
      %v843 = vadd.f32 0.0, %v842
      %v844 = vpop.f32.mrf.mxu0
      %v845 = vpop.f32.mrf.mxu0
      %v846 = vadd.f32 0.0, %v845
      %v847 = vpop.f32.mrf.mxu0
      %848 = vmatprep.mubr.bf16.mxu0 0
      %849 = vmatmul.mubr.bf16.gmra.mxu0 %v787
      %v850 = vpop.f32.mrf.mxu0
      %v851 = vadd.f32 0.0, %v850
      %v852 = vpop.f32.mrf.mxu0
      %v853 = vpop.f32.mrf.mxu0
      %v854 = vadd.f32 0.0, %v853
      %v855 = vpop.f32.mrf.mxu0
      %856 = vmatprep.mubr.bf16.mxu0 0
      %857 = vmatmul.mubr.bf16.gmra.mxu0 %v790
      %v858 = vpop.f32.mrf.mxu0
      %v859 = vadd.f32 0.0, %v858
      %v860 = vpop.f32.mrf.mxu0
      %v861 = vpop.f32.mrf.mxu0
      %v862 = vadd.f32 0.0, %v861
      %v863 = vpop.f32.mrf.mxu0
      %864 = vdwg.mxu0
      %v865 = vadd.f32 %v698, %v827
      %v866 = vadd.f32 %v699, %v830
      %v867 = vadd.f32 %v700, %v835
      %v868 = vadd.f32 %v701, %v838
      %v869 = vadd.f32 %v702, %v843
      %v870 = vadd.f32 %v703, %v846
      %v871 = vadd.f32 %v704, %v851
      %v872 = vadd.f32 %v705, %v854
      %v873 = vadd.f32 %v706, %v859
      %v874 = vadd.f32 %v707, %v862
      %v875 = vld [vmem:[%s1 + $0x50] sm:$0xf]
      %v876 = vld [vmem:[%s1 + $0x54] sm:$0xf]
      %v877 = vld [vmem:[%s1 + $0x58] sm:$0xf]
      %v878 = vld [vmem:[%s1 + $0x5c] sm:$0xf]
      %vm879 = vcmask 1045504
      %v880 = vrot.slane %v584, 2
      %v881 = vrot.slane %v585, 2
      %v882 = vsel %vm879, %v880, %v881
      %v883 = vrot.slane %v586, 2
      %v884 = vsel %vm879, %v881, %v883
      %v885 = vrot.slane %v587, 2
      %v886 = vsel %vm879, %v883, %v885
      %v887 = vrot.slane %v588, 2
      %v888 = vsel %vm879, %v885, %v887
      %v889 = vrot.slane %v714, 2
      %v890 = vsel %vm879, %v887, %v889
      %v895 = vunpack.c.l.b16 %v875
      %v896 = vunpack.c.l.b16 %v876
      %v897 = vunpack.c.l.b16 %v877
      %v898 = vunpack.c.l.b16 %v878
      %v899 = vpack.c.b16 %v896, %v895
      %v900 = vpack.c.b16 %v898, %v897
      %v904 = vsel %vm270, %v882, 0
      %v907 = vsel %vm270, %v884, 0
      %v910 = vsel %vm270, %v886, 0
      %v913 = vsel %vm270, %v888, 0
      %v916 = vsel %vm270, %v890, 0
      %918 = vmatprep.subr.bf16.mxu0 0
      %919 = vmatpush1.bf16.msra.mxu0 0
      %920 = vmatprep.subr.bf16.mxu0 0
      %921 = vmatpush1.bf16.msra.mxu0 0
      %922 = vmatprep.subr.bf16.mxu0 0
      %923 = vmatpush1.bf16.msra.mxu0 0
      %924 = vmatprep.subr.bf16.mxu0 0
      %925 = vmatpush1.bf16.msra.mxu0 0
      %926 = vmatprep.subr.bf16.mxu0 0
      %927 = vmatpush1.bf16.msra.mxu0 0
      %928 = vmatprep.subr.bf16.mxu0 0
      %929 = vmatpush1.bf16.msra.mxu0 0
      %930 = vmatprep.subr.bf16.mxu0 0
      %931 = vmatpush1.bf16.msra.mxu0 %v900
      %932 = vmatprep.subr.bf16.mxu0 0
      %933 = vmatpush1.bf16.msra.mxu0 %v899
      %934 = vmatprep.subr.bf16.mxu0 0
      %935 = vmatpush2.bf16.msra.mxu0 0
      %936 = vmatprep.subr.bf16.mxu0 0
      %937 = vmatpush2.bf16.msra.mxu0 0
      %938 = vmatprep.subr.bf16.mxu0 0
      %939 = vmatpush2.bf16.msra.mxu0 0
      %940 = vmatprep.subr.bf16.mxu0 0
      %941 = vmatpush2.bf16.msra.mxu0 0
      %942 = vmatprep.subr.bf16.mxu0 0
      %943 = vmatpush2.bf16.msra.mxu0 0
      %944 = vmatprep.subr.bf16.mxu0 0
      %945 = vmatpush2.bf16.msra.mxu0 0
      %946 = vmatprep.subr.bf16.mxu0 0
      %947 = vmatpush2.bf16.msra.mxu0 0
      %948 = vmatprep.subr.bf16.mxu0 0
      %949 = vmatpush2.bf16.msra.mxu0 0
      %950 = vmatprep.mubr.bf16.mxu0 0
      %951 = vmatmul.mubr.bf16.gmra.mxu0 %v904
      %v952 = vpop.f32.mrf.mxu0
      %v953 = vadd.f32 0.0, %v952
      %v954 = vpop.f32.mrf.mxu0
      %v955 = vpop.f32.mrf.mxu0
      %v956 = vadd.f32 0.0, %v955
      %v957 = vpop.f32.mrf.mxu0
      %958 = vmatprep.mubr.bf16.mxu0 0
      %959 = vmatmul.mubr.bf16.gmra.mxu0 %v907
      %v960 = vpop.f32.mrf.mxu0
      %v961 = vadd.f32 0.0, %v960
      %v962 = vpop.f32.mrf.mxu0
      %v963 = vpop.f32.mrf.mxu0
      %v964 = vadd.f32 0.0, %v963
      %v965 = vpop.f32.mrf.mxu0
      %966 = vmatprep.mubr.bf16.mxu0 0
      %967 = vmatmul.mubr.bf16.gmra.mxu0 %v910
      %v968 = vpop.f32.mrf.mxu0
      %v969 = vadd.f32 0.0, %v968
      %v970 = vpop.f32.mrf.mxu0
      %v971 = vpop.f32.mrf.mxu0
      %v972 = vadd.f32 0.0, %v971
      %v973 = vpop.f32.mrf.mxu0
      %974 = vmatprep.mubr.bf16.mxu0 0
      %975 = vmatmul.mubr.bf16.gmra.mxu0 %v913
      %v976 = vpop.f32.mrf.mxu0
      %v977 = vadd.f32 0.0, %v976
      %v978 = vpop.f32.mrf.mxu0
      %v979 = vpop.f32.mrf.mxu0
      %v980 = vadd.f32 0.0, %v979
      %v981 = vpop.f32.mrf.mxu0
      %982 = vmatprep.mubr.bf16.mxu0 0
      %983 = vmatmul.mubr.bf16.gmra.mxu0 %v916
      %v984 = vpop.f32.mrf.mxu0
      %v985 = vadd.f32 0.0, %v984
      %v986 = vpop.f32.mrf.mxu0
      %v987 = vpop.f32.mrf.mxu0
      %v988 = vadd.f32 0.0, %v987
      %v989 = vpop.f32.mrf.mxu0
      %990 = vdwg.mxu0
      %v991 = vadd.f32 %v865, %v953
      %v992 = vadd.f32 %v866, %v956
      %v993 = vadd.f32 %v867, %v961
      %v994 = vadd.f32 %v868, %v964
      %v995 = vadd.f32 %v869, %v969
      %v996 = vadd.f32 %v870, %v972
      %v997 = vadd.f32 %v871, %v977
      %v998 = vadd.f32 %v872, %v980
      %v999 = vadd.f32 %v873, %v985
      %v1000 = vadd.f32 %v874, %v988
      %v1001 = vld [vmem:[%s1 + $0x60] sm:$0xf]
      %v1002 = vld [vmem:[%s1 + $0x64] sm:$0xf]
      %v1003 = vld [vmem:[%s1 + $0x68] sm:$0xf]
      %v1004 = vld [vmem:[%s1 + $0x6c] sm:$0xf]
      %v1006 = vunpack.c.l.b16 %v184
      %v1007 = vpack.c.b16 %v713, %v583
      %v1008 = vpack.c.b16 %v1006, %v1006
      %v1009 = vrot.slane %v214, 2
      %v1010 = vrot.slane %v215, 2
      %v1011 = vsel %vm879, %v1009, %v1010
      %v1012 = vrot.slane %v216, 2
      %v1013 = vsel %vm879, %v1010, %v1012
      %v1014 = vrot.slane %v217, 2
      %v1015 = vsel %vm879, %v1012, %v1014
      %v1016 = vrot.slane %v1007, 2
      %v1017 = vsel %vm879, %v1014, %v1016
      %v1018 = vrot.slane %v1008, 2
      %v1019 = vsel %vm879, %v1016, %v1018
      %v1024 = vunpack.c.l.b16 %v1001
      %v1025 = vunpack.c.l.b16 %v1002
      %v1026 = vunpack.c.l.b16 %v1003
      %v1027 = vunpack.c.l.b16 %v1004
      %v1028 = vpack.c.b16 %v1025, %v1024
      %v1029 = vpack.c.b16 %v1027, %v1026
      %v1033 = vsel %vm270, %v1011, 0
      %v1036 = vsel %vm270, %v1013, 0
      %v1039 = vsel %vm270, %v1015, 0
      %v1042 = vsel %vm270, %v1017, 0
      %v1045 = vsel %vm270, %v1019, 0
      %1047 = vmatprep.subr.bf16.mxu0 0
      %1048 = vmatpush1.bf16.msra.mxu0 0
      %1049 = vmatprep.subr.bf16.mxu0 0
      %1050 = vmatpush1.bf16.msra.mxu0 0
      %1051 = vmatprep.subr.bf16.mxu0 0
      %1052 = vmatpush1.bf16.msra.mxu0 0
      %1053 = vmatprep.subr.bf16.mxu0 0
      %1054 = vmatpush1.bf16.msra.mxu0 0
      %1055 = vmatprep.subr.bf16.mxu0 0
      %1056 = vmatpush1.bf16.msra.mxu0 0
      %1057 = vmatprep.subr.bf16.mxu0 0
      %1058 = vmatpush1.bf16.msra.mxu0 0
      %1059 = vmatprep.subr.bf16.mxu0 0
      %1060 = vmatpush1.bf16.msra.mxu0 %v1029
      %1061 = vmatprep.subr.bf16.mxu0 0
      %1062 = vmatpush1.bf16.msra.mxu0 %v1028
      %1063 = vmatprep.subr.bf16.mxu0 0
      %1064 = vmatpush2.bf16.msra.mxu0 0
      %1065 = vmatprep.subr.bf16.mxu0 0
      %1066 = vmatpush2.bf16.msra.mxu0 0
      %1067 = vmatprep.subr.bf16.mxu0 0
      %1068 = vmatpush2.bf16.msra.mxu0 0
      %1069 = vmatprep.subr.bf16.mxu0 0
      %1070 = vmatpush2.bf16.msra.mxu0 0
      %1071 = vmatprep.subr.bf16.mxu0 0
      %1072 = vmatpush2.bf16.msra.mxu0 0
      %1073 = vmatprep.subr.bf16.mxu0 0
      %1074 = vmatpush2.bf16.msra.mxu0 0
      %1075 = vmatprep.subr.bf16.mxu0 0
      %1076 = vmatpush2.bf16.msra.mxu0 0
      %1077 = vmatprep.subr.bf16.mxu0 0
      %1078 = vmatpush2.bf16.msra.mxu0 0
      %1079 = vmatprep.mubr.bf16.mxu0 0
      %1080 = vmatmul.mubr.bf16.gmra.mxu0 %v1033
      %v1081 = vpop.f32.mrf.mxu0
      %v1082 = vadd.f32 0.0, %v1081
      %v1083 = vpop.f32.mrf.mxu0
      %v1084 = vpop.f32.mrf.mxu0
      %v1085 = vadd.f32 0.0, %v1084
      %v1086 = vpop.f32.mrf.mxu0
      %1087 = vmatprep.mubr.bf16.mxu0 0
      %1088 = vmatmul.mubr.bf16.gmra.mxu0 %v1036
      %v1089 = vpop.f32.mrf.mxu0
      %v1090 = vadd.f32 0.0, %v1089
      %v1091 = vpop.f32.mrf.mxu0
      %v1092 = vpop.f32.mrf.mxu0
      %v1093 = vadd.f32 0.0, %v1092
      %v1094 = vpop.f32.mrf.mxu0
      %1095 = vmatprep.mubr.bf16.mxu0 0
      %1096 = vmatmul.mubr.bf16.gmra.mxu0 %v1039
      %v1097 = vpop.f32.mrf.mxu0
      %v1098 = vadd.f32 0.0, %v1097
      %v1099 = vpop.f32.mrf.mxu0
      %v1100 = vpop.f32.mrf.mxu0
      %v1101 = vadd.f32 0.0, %v1100
      %v1102 = vpop.f32.mrf.mxu0
      %1103 = vmatprep.mubr.bf16.mxu0 0
      %1104 = vmatmul.mubr.bf16.gmra.mxu0 %v1042
      %v1105 = vpop.f32.mrf.mxu0
      %v1106 = vadd.f32 0.0, %v1105
      %v1107 = vpop.f32.mrf.mxu0
      %v1108 = vpop.f32.mrf.mxu0
      %v1109 = vadd.f32 0.0, %v1108
      %v1110 = vpop.f32.mrf.mxu0
      %1111 = vmatprep.mubr.bf16.mxu0 0
      %1112 = vmatmul.mubr.bf16.gmra.mxu0 %v1045
      %v1113 = vpop.f32.mrf.mxu0
      %v1114 = vadd.f32 0.0, %v1113
      %v1115 = vpop.f32.mrf.mxu0
      %v1116 = vpop.f32.mrf.mxu0
      %v1117 = vadd.f32 0.0, %v1116
      %v1118 = vpop.f32.mrf.mxu0
      %1119 = vdwg.mxu0
      %v1120 = vadd.f32 %v991, %v1082
      %v1121 = vadd.f32 %v992, %v1085
      %v1122 = vadd.f32 %v993, %v1090
      %v1123 = vadd.f32 %v994, %v1093
      %v1124 = vadd.f32 %v995, %v1098
      %v1125 = vadd.f32 %v996, %v1101
      %v1126 = vadd.f32 %v997, %v1106
      %v1127 = vadd.f32 %v998, %v1109
      %v1128 = vadd.f32 %v999, %v1114
      %v1129 = vadd.f32 %v1000, %v1117
      %v1130 = vld [vmem:[%s1 + $0x70] sm:$0xf]
      %v1131 = vld [vmem:[%s1 + $0x74] sm:$0xf]
      %v1132 = vld [vmem:[%s1 + $0x78] sm:$0xf]
      %v1133 = vld [vmem:[%s1 + $0x7c] sm:$0xf]
      %vm1134 = vsmask.f32 5376
      %v1135 = vrot.slane %v231, 2
      %v1136 = vrot.slane %v227, 3
      %v1137 = vor.u32 %v1135, %v1136
      %v1138 = vrot.slane %v239, 2
      %v1139 = vrot.slane %v235, 3
      %v1140 = vor.u32 %v1138, %v1139
      %v1141 = vsel %vm1134, %v1137, %v1140
      %v1142 = vrot.slane %v247, 2
      %v1143 = vrot.slane %v243, 3
      %v1144 = vor.u32 %v1142, %v1143
      %v1145 = vsel %vm1134, %v1140, %v1144
      %v1146 = vrot.slane %v255, 2
      %v1147 = vrot.slane %v251, 3
      %v1148 = vor.u32 %v1146, %v1147
      %v1149 = vsel %vm1134, %v1144, %v1148
      %v1151 = vshrl.u32 %v1007, 16
      %v1153 = vrot.slane %v1151, 2
      %v1154 = vshll.u32 %v1007, 16
      %v1156 = vrot.slane %v1154, 3
      %v1157 = vor.u32 %v1153, %v1156
      %v1158 = vsel %vm1134, %v1148, %v1157
      %v1160 = vshrl.u32 %v1008, 16
      %v1162 = vrot.slane %v1160, 2
      %v1163 = vshll.u32 %v1008, 16
      %v1165 = vrot.slane %v1163, 3
      %v1166 = vor.u32 %v1162, %v1165
      %v1167 = vsel %vm1134, %v1157, %v1166
      %v1172 = vunpack.c.l.b16 %v1130
      %v1173 = vunpack.c.l.b16 %v1131
      %v1174 = vunpack.c.l.b16 %v1132
      %v1175 = vunpack.c.l.b16 %v1133
      %v1176 = vpack.c.b16 %v1173, %v1172
      %v1177 = vpack.c.b16 %v1175, %v1174
      %v1181 = vsel %vm270, %v1141, 0
      %v1184 = vsel %vm270, %v1145, 0
      %v1187 = vsel %vm270, %v1149, 0
      %v1190 = vsel %vm270, %v1158, 0
      %v1193 = vsel %vm270, %v1167, 0
      %1195 = vmatprep.subr.bf16.mxu0 0
      %1196 = vmatpush1.bf16.msra.mxu0 0
      %1197 = vmatprep.subr.bf16.mxu0 0
      %1198 = vmatpush1.bf16.msra.mxu0 0
      %1199 = vmatprep.subr.bf16.mxu0 0
      %1200 = vmatpush1.bf16.msra.mxu0 0
      %1201 = vmatprep.subr.bf16.mxu0 0
      %1202 = vmatpush1.bf16.msra.mxu0 0
      %1203 = vmatprep.subr.bf16.mxu0 0
      %1204 = vmatpush1.bf16.msra.mxu0 0
      %1205 = vmatprep.subr.bf16.mxu0 0
      %1206 = vmatpush1.bf16.msra.mxu0 0
      %1207 = vmatprep.subr.bf16.mxu0 0
      %1208 = vmatpush1.bf16.msra.mxu0 %v1177
      %1209 = vmatprep.subr.bf16.mxu0 0
      %1210 = vmatpush1.bf16.msra.mxu0 %v1176
      %1211 = vmatprep.subr.bf16.mxu0 0
      %1212 = vmatpush2.bf16.msra.mxu0 0
      %1213 = vmatprep.subr.bf16.mxu0 0
      %1214 = vmatpush2.bf16.msra.mxu0 0
      %1215 = vmatprep.subr.bf16.mxu0 0
      %1216 = vmatpush2.bf16.msra.mxu0 0
      %1217 = vmatprep.subr.bf16.mxu0 0
      %1218 = vmatpush2.bf16.msra.mxu0 0
      %1219 = vmatprep.subr.bf16.mxu0 0
      %1220 = vmatpush2.bf16.msra.mxu0 0
      %1221 = vmatprep.subr.bf16.mxu0 0
      %1222 = vmatpush2.bf16.msra.mxu0 0
      %1223 = vmatprep.subr.bf16.mxu0 0
      %1224 = vmatpush2.bf16.msra.mxu0 0
      %1225 = vmatprep.subr.bf16.mxu0 0
      %1226 = vmatpush2.bf16.msra.mxu0 0
      %1227 = vmatprep.mubr.bf16.mxu0 0
      %1228 = vmatmul.mubr.bf16.gmra.mxu0 %v1181
      %v1229 = vpop.f32.mrf.mxu0
      %v1230 = vadd.f32 0.0, %v1229
      %v1231 = vpop.f32.mrf.mxu0
      %v1232 = vpop.f32.mrf.mxu0
      %v1233 = vadd.f32 0.0, %v1232
      %v1234 = vpop.f32.mrf.mxu0
      %1235 = vmatprep.mubr.bf16.mxu0 0
      %1236 = vmatmul.mubr.bf16.gmra.mxu0 %v1184
      %v1237 = vpop.f32.mrf.mxu0
      %v1238 = vadd.f32 0.0, %v1237
      %v1239 = vpop.f32.mrf.mxu0
      %v1240 = vpop.f32.mrf.mxu0
      %v1241 = vadd.f32 0.0, %v1240
      %v1242 = vpop.f32.mrf.mxu0
      %1243 = vmatprep.mubr.bf16.mxu0 0
      %1244 = vmatmul.mubr.bf16.gmra.mxu0 %v1187
      %v1245 = vpop.f32.mrf.mxu0
      %v1246 = vadd.f32 0.0, %v1245
      %v1247 = vpop.f32.mrf.mxu0
      %v1248 = vpop.f32.mrf.mxu0
      %v1249 = vadd.f32 0.0, %v1248
      %v1250 = vpop.f32.mrf.mxu0
      %1251 = vmatprep.mubr.bf16.mxu0 0
      %1252 = vmatmul.mubr.bf16.gmra.mxu0 %v1190
      %v1253 = vpop.f32.mrf.mxu0
      %v1254 = vadd.f32 0.0, %v1253
      %v1255 = vpop.f32.mrf.mxu0
      %v1256 = vpop.f32.mrf.mxu0
      %v1257 = vadd.f32 0.0, %v1256
      %v1258 = vpop.f32.mrf.mxu0
      %1259 = vmatprep.mubr.bf16.mxu0 0
      %1260 = vmatmul.mubr.bf16.gmra.mxu0 %v1193
      %v1261 = vpop.f32.mrf.mxu0
      %v1262 = vadd.f32 0.0, %v1261
      %v1263 = vpop.f32.mrf.mxu0
      %v1264 = vpop.f32.mrf.mxu0
      %v1265 = vadd.f32 0.0, %v1264
      %v1266 = vpop.f32.mrf.mxu0
      %1267 = vdwg.mxu0
      %v1268 = vadd.f32 %v1120, %v1230
      %v1269 = vadd.f32 %v1121, %v1233
      %v1270 = vadd.f32 %v1122, %v1238
      %v1271 = vadd.f32 %v1123, %v1241
      %v1272 = vadd.f32 %v1124, %v1246
      %v1273 = vadd.f32 %v1125, %v1249
      %v1274 = vadd.f32 %v1126, %v1254
      %v1275 = vadd.f32 %v1127, %v1257
      %v1276 = vadd.f32 %v1128, %v1262
      %v1277 = vadd.f32 %v1129, %v1265
      %v1278 = vld [vmem:[%s1 + $0x80] sm:$0xf]
      %v1279 = vld [vmem:[%s1 + $0x84] sm:$0xf]
      %v1280 = vld [vmem:[%s1 + $0x88] sm:$0xf]
      %v1281 = vld [vmem:[%s1 + $0x8c] sm:$0xf]
      %vm1282 = vcmask 1044480
      %v1283 = vrot.slane %v214, 3
      %v1284 = vrot.slane %v215, 3
      %v1285 = vsel %vm1282, %v1283, %v1284
      %v1286 = vrot.slane %v216, 3
      %v1287 = vsel %vm1282, %v1284, %v1286
      %v1288 = vrot.slane %v217, 3
      %v1289 = vsel %vm1282, %v1286, %v1288
      %v1290 = vrot.slane %v1007, 3
      %v1291 = vsel %vm1282, %v1288, %v1290
      %v1292 = vrot.slane %v1008, 3
      %v1293 = vsel %vm1282, %v1290, %v1292
      %v1298 = vunpack.c.l.b16 %v1278
      %v1299 = vunpack.c.l.b16 %v1279
      %v1300 = vunpack.c.l.b16 %v1280
      %v1301 = vunpack.c.l.b16 %v1281
      %v1302 = vpack.c.b16 %v1299, %v1298
      %v1303 = vpack.c.b16 %v1301, %v1300
      %v1307 = vsel %vm270, %v1285, 0
      %v1310 = vsel %vm270, %v1287, 0
      %v1313 = vsel %vm270, %v1289, 0
      %v1316 = vsel %vm270, %v1291, 0
      %v1319 = vsel %vm270, %v1293, 0
      %1321 = vmatprep.subr.bf16.mxu0 0
      %1322 = vmatpush1.bf16.msra.mxu0 0
      %1323 = vmatprep.subr.bf16.mxu0 0
      %1324 = vmatpush1.bf16.msra.mxu0 0
      %1325 = vmatprep.subr.bf16.mxu0 0
      %1326 = vmatpush1.bf16.msra.mxu0 0
      %1327 = vmatprep.subr.bf16.mxu0 0
      %1328 = vmatpush1.bf16.msra.mxu0 0
      %1329 = vmatprep.subr.bf16.mxu0 0
      %1330 = vmatpush1.bf16.msra.mxu0 0
      %1331 = vmatprep.subr.bf16.mxu0 0
      %1332 = vmatpush1.bf16.msra.mxu0 0
      %1333 = vmatprep.subr.bf16.mxu0 0
      %1334 = vmatpush1.bf16.msra.mxu0 %v1303
      %1335 = vmatprep.subr.bf16.mxu0 0
      %1336 = vmatpush1.bf16.msra.mxu0 %v1302
      %1337 = vmatprep.subr.bf16.mxu0 0
      %1338 = vmatpush2.bf16.msra.mxu0 0
      %1339 = vmatprep.subr.bf16.mxu0 0
      %1340 = vmatpush2.bf16.msra.mxu0 0
      %1341 = vmatprep.subr.bf16.mxu0 0
      %1342 = vmatpush2.bf16.msra.mxu0 0
      %1343 = vmatprep.subr.bf16.mxu0 0
      %1344 = vmatpush2.bf16.msra.mxu0 0
      %1345 = vmatprep.subr.bf16.mxu0 0
      %1346 = vmatpush2.bf16.msra.mxu0 0
      %1347 = vmatprep.subr.bf16.mxu0 0
      %1348 = vmatpush2.bf16.msra.mxu0 0
      %1349 = vmatprep.subr.bf16.mxu0 0
      %1350 = vmatpush2.bf16.msra.mxu0 0
      %1351 = vmatprep.subr.bf16.mxu0 0
      %1352 = vmatpush2.bf16.msra.mxu0 0
      %1353 = vmatprep.mubr.bf16.mxu0 0
      %1354 = vmatmul.mubr.bf16.gmra.mxu0 %v1307
      %v1355 = vpop.f32.mrf.mxu0
      %v1356 = vadd.f32 0.0, %v1355
      %v1357 = vpop.f32.mrf.mxu0
      %v1358 = vpop.f32.mrf.mxu0
      %v1359 = vadd.f32 0.0, %v1358
      %v1360 = vpop.f32.mrf.mxu0
      %1361 = vmatprep.mubr.bf16.mxu0 0
      %1362 = vmatmul.mubr.bf16.gmra.mxu0 %v1310
      %v1363 = vpop.f32.mrf.mxu0
      %v1364 = vadd.f32 0.0, %v1363
      %v1365 = vpop.f32.mrf.mxu0
      %v1366 = vpop.f32.mrf.mxu0
      %v1367 = vadd.f32 0.0, %v1366
      %v1368 = vpop.f32.mrf.mxu0
      %1369 = vmatprep.mubr.bf16.mxu0 0
      %1370 = vmatmul.mubr.bf16.gmra.mxu0 %v1313
      %v1371 = vpop.f32.mrf.mxu0
      %v1372 = vadd.f32 0.0, %v1371
      %v1373 = vpop.f32.mrf.mxu0
      %v1374 = vpop.f32.mrf.mxu0
      %v1375 = vadd.f32 0.0, %v1374
      %v1376 = vpop.f32.mrf.mxu0
      %1377 = vmatprep.mubr.bf16.mxu0 0
      %1378 = vmatmul.mubr.bf16.gmra.mxu0 %v1316
      %v1379 = vpop.f32.mrf.mxu0
      %v1380 = vadd.f32 0.0, %v1379
      %v1381 = vpop.f32.mrf.mxu0
      %v1382 = vpop.f32.mrf.mxu0
      %v1383 = vadd.f32 0.0, %v1382
      %v1384 = vpop.f32.mrf.mxu0
      %1385 = vmatprep.mubr.bf16.mxu0 0
      %1386 = vmatmul.mubr.bf16.gmra.mxu0 %v1319
      %v1387 = vpop.f32.mrf.mxu0
      %v1388 = vadd.f32 0.0, %v1387
      %v1389 = vpop.f32.mrf.mxu0
      %v1390 = vpop.f32.mrf.mxu0
      %v1391 = vadd.f32 0.0, %v1390
      %v1392 = vpop.f32.mrf.mxu0
      %1393 = vdwg.mxu0
      %v1394 = vadd.f32 %v1268, %v1356
      %v1395 = vadd.f32 %v1269, %v1359
      %v1396 = vadd.f32 %v1270, %v1364
      %v1397 = vadd.f32 %v1271, %v1367
      %v1398 = vadd.f32 %v1272, %v1372
      %v1399 = vadd.f32 %v1273, %v1375
      %v1400 = vadd.f32 %v1274, %v1380
      %v1401 = vadd.f32 %v1275, %v1383
      %v1402 = vadd.f32 %v1276, %v1388
      %v1403 = vadd.f32 %v1277, %v1391
      %v1404 = vld [vmem:[%s2] sm:$0x1]
      %v1406 = vlaneseq
      %v1407 = vshrl.u32 %v1406, 7
      %v1408 = vsub.s32 0, %v1407
      %v1409 = vrot.slane %v1404, %v1408
      %v1411 = vadd.f32 %v1394, %v1409
      %v1412 = vadd.f32 %v1395, %v1409
      %v1413 = vadd.f32 %v1396, %v1409
      %v1414 = vadd.f32 %v1397, %v1409
      %v1415 = vadd.f32 %v1398, %v1409
      %v1416 = vadd.f32 %v1399, %v1409
      %v1417 = vadd.f32 %v1400, %v1409
      %v1418 = vadd.f32 %v1401, %v1409
      %v1419 = vadd.f32 %v1402, %v1409
      %v1420 = vadd.f32 %v1403, %v1409
      %v1421 = vtanh.pop %v1411
      %v1422 = vtanh.pop %v1412
      %v1423 = vtanh.pop %v1413
      %v1424 = vtanh.pop %v1414
      %v1425 = vtanh.pop %v1415
      %v1426 = vtanh.pop %v1416
      %v1427 = vtanh.pop %v1417
      %v1428 = vtanh.pop %v1418
      %v1429 = vtanh.pop %v1419
      %v1430 = vtanh.pop %v1420
      %1431 = vst [vmem:[%s170] sm:$0xff] %v1421
      %1432 = vst [vmem:[%s170 + $0x8] sm:$0xff] %v1422
      %1433 = vst [vmem:[%s170 + $0x10] sm:$0xff] %v1423
      %1434 = vst [vmem:[%s170 + $0x18] sm:$0xff] %v1424
      %1435 = vst [vmem:[%s170 + $0x20] sm:$0xff] %v1425
      %1436 = vst [vmem:[%s170 + $0x28] sm:$0xff] %v1426
      %1437 = vst [vmem:[%s170 + $0x30] sm:$0xff] %v1427
      %1438 = vst [vmem:[%s170 + $0x38] sm:$0xff] %v1428
      %1439 = vst [vmem:[%s170 + $0x40] sm:$0xff] %v1429
      %1440 = vst [vmem:[%s170 + $0x48] sm:$0x3f] %v1430
      %1441 = vst [vmem:[%s170 + $0x4e] sm:$0x3] 0.0
      %p1442 = scmp.lt.s32.totalorder %s14, 1
      %s1443 = scalar_select %p1442, %s14, 1
      %s1444 = smul.addr %s1443, 10
      %s1445 = smul.addr %s1444, 8
      %s1446 = scalar_lea.vmem %s3, %s1445
      // Predicated region
      $region33: #{vqvae_forward.17} parent=31 // pred_check
        %p1447 = pneg %p100
      $region34: #{vqvae_forward.17} parent=31 // pred_check_branch
        %1449 = sbr.rel (%p1447) target = $region36
      $region35: #{vqvae_forward.17} parent=31 // pred_region
        _
      $region36: #{vqvae_forward.17} parent=31 // pred_fallthru
        _
    $region32: #{vqvae_forward.17} parent=5 // pred_fallthru
      _
    %p1450 = scmp.le.s32.totalorder 2, %s9
    // Predicated region
    $region37: #{vqvae_forward.17} parent=5 // pred_check
      %p1451 = pneg %p1450
    $region38: #{vqvae_forward.17} parent=5 // pred_check_branch
      %1453 = sbr.rel (%p1451) target = $region40
    $region39: #{vqvae_forward.17} parent=5 // pred_region
      %s1454 = ssub.s32 %s9, 2
      // Predicated region
      $region41: #{vqvae_forward.17} parent=39 // pred_check
        %p1455 = pneg %p106
      $region42: #{vqvae_forward.17} parent=39 // pred_check_branch
        %1457 = sbr.rel (%p1455) target = $region44
      $region43: #{vqvae_forward.17} parent=39 // pred_region
        %p1458 = scmp.lt.s32.totalorder %s15, 1
        %s1459 = scalar_select %p1458, %s15, 1
        %s1460 = smul.addr %s1459, 10
        %s1461 = smul.addr %s1460, 8
        %s1462 = scalar_lea.vmem %s3, %s1461
      $region44: #{vqvae_forward.17} parent=39 // pred_fallthru
        _
    $region40: #{vqvae_forward.17} parent=5 // pred_fallthru
      _
  $region6: #{vqvae_forward.17} parent=0 // loop_footer
    %s13 = sadd.s32 1, %s9
  $region7: #{vqvae_forward.17} parent=0 // loop_footer_branch
    %8 = sbr.rel target = $region3
  $region8: #{vqvae_forward.17} parent=0 // loop_exit
    _

</llo_original>
